<compile_context>
chip_gen: v6e
topology: v6e:2x2x1
jax: 0.10.0
libtpu: 0.0.40
codegen_flags: <defaults>
</compile_context>

<pallas_src>
import math
from functools import partial

import jax
import jax.numpy as jnp
from jax import lax
from jax.experimental import pallas as pl
from jax.experimental.pallas import tpu as pltpu


# ----------------------------- matmul helpers ------------------------------

def _mm_hi(a, b, dims):
    """Tiny / rank-1 matmuls at full f32 accuracy (negligible cost)."""
    return lax.dot_general(a, b, (dims, ((), ())),
                           precision=lax.Precision.HIGHEST,
                           preferred_element_type=jnp.float32)


def _dot_bf16(u, v):
    return lax.dot_general(u, v, (((1,), (0,)), ((), ())),
                           preferred_element_type=jnp.float32)


def _split(a):
    """Split an f32 matrix into (hi, lo) bf16 parts; hi + lo ~ a to ~16 bits."""
    hi = a.astype(jnp.bfloat16)
    lo = (a - hi.astype(jnp.float32)).astype(jnp.bfloat16)
    return hi, lo


def _mm3s(a_s, b_s):
    """bf16x3 matmul on pre-split operands (3 native MXU passes, f32 accum).

    ~2x cheaper than Precision.HIGHEST (6-pass) with relative error ~1.5e-5.
    Full single-pass bf16 was evaluated and rejected: rounding injected by the
    squarings swamps the tiny per-column std of exp(-tau*L) at large tau.
    """
    a_hi, a_lo = a_s
    b_hi, b_lo = b_s
    return _dot_bf16(a_hi, b_hi) + _dot_bf16(a_lo, b_hi) + _dot_bf16(a_hi, b_lo)


def _mm3(a, b):
    return _mm3s(_split(a), _split(b))


def _sq3(e):
    """Square E with a single hi/lo split feeding both operands."""
    s = _split(e)
    return _mm3s(s, s)


_INV_FACT = [1.0 / math.factorial(k) for k in range(13)]


def _expm_taylor12(B, eye):
    """exp(B) via degree-12 Taylor, Paterson–Stockmeyer: 5 matmuls total.

    B, B2, B4 are split to bf16 hi/lo exactly once each and reused.
    """
    Bs = _split(B)
    B2 = _mm3s(Bs, Bs)
    B2s = _split(B2)
    B3 = _mm3s(B2s, Bs)
    B4 = _mm3s(B2s, B2s)
    B4s = _split(B4)
    c = _INV_FACT

    def chunk(c0, c1, c2, c3):
        return c0 * eye + c1 * B + c2 * B2 + c3 * B3

    p0 = chunk(c[0], c[1], c[2], c[3])
    p1 = chunk(c[4], c[5], c[6], c[7])
    p2 = chunk(c[8], c[9], c[10], c[11])
    # Horner in B4; the leading c12 * B4 term is a scalar multiply, not a matmul.
    acc = c[12] * B4 + p2
    acc = _mm3s(_split(acc), B4s) + p1
    acc = _mm3s(_split(acc), B4s) + p0
    return acc


# --------------------------------- kernel ----------------------------------

def _diffusion_loss_kernel(x_ref, o_ref, *, taus, max_distance, num_nodes, theta):
    N = num_nodes                                   # true node count
    x = x_ref[...].astype(jnp.float32)              # (Np, D), zero-padded rows
    Np, D = x.shape

    rows = lax.broadcasted_iota(jnp.int32, (Np, Np), 0)
    cols = lax.broadcasted_iota(jnp.int32, (Np, Np), 1)
    eye = (rows == cols).astype(jnp.float32)

    # Real-node masks for the padded layout.
    row_mask = (lax.broadcasted_iota(jnp.int32, (Np, 1), 0) < N).astype(jnp.float32)
    col_mask = (lax.broadcasted_iota(jnp.int32, (1, Np), 1) < N).astype(jnp.float32)

    # ---- pairwise Euclidean distances (torch.cdist, p=2) ----
    xx = x * x
    sq_row = jnp.sum(xx, axis=1, keepdims=True)                          # (Np,1), lane reduce
    # (1,Np) squared norms via a tiny ones-row MXU contraction.
    sq_col = _mm_hi(jnp.ones((1, D), jnp.float32), xx, ((1,), (1,)))     # (1,Np)
    gram = _mm_hi(x, x, ((1,), (1,)))                                    # (Np,Np) = x @ x.T
    d2 = jnp.maximum(sq_row + sq_col - 2.0 * gram, 0.0)
    dist = jnp.sqrt(d2)

    # ---- adjacency (sigmoid kernel), zero diagonal, padded rows/cols zeroed ----
    adj = jax.nn.sigmoid(-(1.0 / max_distance) * (dist - max_distance))
    adj = adj * ((1.0 - eye) * row_mask * col_mask)

    # ---- normalized Laplacian D^{-1/2} (D - A) D^{-1/2} ----
    deg_row = jnp.sum(adj, axis=1, keepdims=True)                        # (Np,1)
    # Independent (1,Np) column sum via a rank-1 MXU contraction (adj is only
    # symmetric up to rounding of the two squared-norm paths, so do not reuse
    # deg_row blindly; this contraction is essentially free).
    deg_col = _mm_hi(jnp.ones((1, Np), jnp.float32), adj, ((1,), (0,)))  # (1,Np)
    dinv_row = lax.rsqrt(deg_row + 1e-6)
    dinv_col = lax.rsqrt(deg_col + 1e-6)
    # Padded block of lap_n is exactly zero, so exp(-tau*lap_n) is exactly
    # block-diagonal with an identity padded block.
    lap_n = dinv_row * (eye * deg_row - adj) * dinv_col

    inv_n = 1.0 / float(N)
    inv_nm1 = 1.0 / float(max(N - 1, 1))
    row_ind = col_mask                               # (1,Np) indicator of real ROWS

    def cov_sum(E):
        # heat_filter @ delta_i == column i of heat_filter, so the per-node
        # loop of the PyTorch module collapses to per-column statistics.
        # Row reductions are masked ones-row MXU contractions: no exposed
        # cross-sublane XLU tail after the last tau, and padded rows drop out.
        col_sum = _mm_hi(row_ind, E, ((1,), (0,)))                 # (1,Np)
        col_mean = col_sum * inv_n
        dev = E - col_mean
        ssq = _mm_hi(row_ind, dev * dev, ((1,), (0,)))             # (1,Np)
        col_std = jnp.sqrt(ssq * inv_nm1)                          # ddof=1 (torch.std)
        coeff = col_std / (col_mean + 1e-6)
        return jnp.sum(coeff * col_mask, keepdims=True)            # (1,1), real cols only

    total = jnp.zeros((1, 1), jnp.float32)
    # Process taus in increasing order; a tau that is a dyadic multiple of the
    # previously computed one reuses that heat filter via extra squarings
    # (exp(-2t L) = exp(-t L)^2).  taus is static, so this is trace-time logic.
    cur_tau = None
    E = None
    for tau in sorted(float(t) for t in taus):
        reused = False
        if cur_tau is not None and cur_tau > 0.0:
            ratio = tau / cur_tau
            m = int(round(math.log2(ratio))) if ratio > 0 else -1
            if m >= 0 and abs(ratio - 2.0 ** m) <= 1e-9 * max(ratio, 1.0):
                for _ in range(m):
                    E = _sq3(E)
                cur_tau = tau
                reused = True
        if not reused:
            # ||lap_n||_2 <= 2 for a normalized Laplacian (the +1e-6 regularized
            # D^{-1/2} only shrinks entries) => ||tau*lap_n|| <= 2*tau.
            s = max(0, int(math.ceil(math.log2(max(2.0 * tau / theta, 1e-30)))))
            B = (-tau / float(2 ** s)) * lap_n
            E = _expm_taylor12(B, eye)
            for _ in range(s):
                E = _sq3(E)
            cur_tau = tau
        total = total + cov_sum(E)

    # (1,1) VMEM scalar store: negligible cost, proven lowering path.
    o_ref[...] = total * (1.0 / float(N * len(taus)))


# -------------------------------- wrapper -----------------------------------

def _vmem_limit_bytes():
    """Generation-aware scoped VMEM limit: ~112 MiB on 128 MiB chips (v5e/v6e),
    ~48 MiB on 64 MiB chips (v7x), conservative fallback if the query fails."""
    mib = 1024 * 1024
    try:
        cap = int(getattr(pltpu.get_tpu_info(), "vmem_capacity_bytes", 64 * mib))
    except Exception:
        cap = 64 * mib
    return int(max(32 * mib, min(cap - 16 * mib, 112 * mib)))


def diffusion_loss(positions, taus=(5.0, 10.0), max_distance=50.0):
    N, D = positions.shape
    # Pad the node count to a lane-aligned multiple of 128: lane-dense VPU ops
    # and full MXU tiles.  Padded rows/cols are masked out inside the kernel
    # and all normalizations use the true N.
    lane = 128
    Np = max(lane, -(-N // lane) * lane)
    x = positions.astype(jnp.float32)
    if Np != N:
        x = jnp.pad(x, ((0, Np - N), (0, 0)))

    kernel = partial(
        _diffusion_loss_kernel,
        taus=tuple(float(t) for t in taus),
        max_distance=float(max_distance),
        num_nodes=int(N),
        theta=2.0,
    )
    out = pl.pallas_call(
        kernel,
        out_shape=jax.ShapeDtypeStruct((1, 1), jnp.float32),
        grid=(1,),
        in_specs=[pl.BlockSpec((Np, D), lambda i: (0, 0))],
        out_specs=pl.BlockSpec((1, 1), lambda i: (0, 0)),
        compiler_params=pltpu.CompilerParams(
            dimension_semantics=("arbitrary",),
            vmem_limit_bytes=_vmem_limit_bytes(),
        ),
    )(x)
    return out[0, 0]


# ------------------------------- reference ----------------------------------

def _reference(x, taus=(5.0, 10.0), max_distance=50.0):
    # pure-JAX reference mirroring the PyTorch module
    N = x.shape[0]
    diff = x[:, None, :] - x[None, :, :]
    dist = jnp.sqrt(jnp.maximum(jnp.sum(diff * diff, axis=-1), 0.0))
    adj = jax.nn.sigmoid(-(1.0 / max_distance) * (dist - max_distance))
    adj = adj - jnp.diag(jnp.diag(adj))
    deg = jnp.sum(adj, axis=1)
    lap = jnp.diag(deg) - adj
    dis = jnp.diag(1.0 / jnp.sqrt(deg + 1e-6))
    ln = dis @ lap @ dis
    total = 0.0
    for tau in taus:
        hf = jax.scipy.linalg.expm(-tau * ln)
        mean = jnp.mean(hf, axis=0)
        std = jnp.std(hf, axis=0, ddof=1)
        total = total + jnp.sum(std / (mean + 1e-6))
    return total / (N * len(taus))


if __name__ == "__main__":
    key = jax.random.PRNGKey(0)
    N, D = 8, 3
    positions = jax.random.normal(key, (N, D), dtype=jnp.float32) * 10.0

    loss = diffusion_loss(positions)
    jax.block_until_ready(loss)

    ref = _reference(positions)
    assert jnp.isfinite(loss), "kernel produced non-finite loss"
    assert jnp.allclose(loss, ref, rtol=5e-2, atol=1e-3), (loss, ref)

    print("KERNEL_OK")
</pallas_src>

<mosaic_0001>
module attributes {stable_mosaic.version = 11 : i64} {
  func.func @_diffusion_loss_kernel(%arg0: i32, %arg1: memref<128x3xf32, #tpu.memory_space<vmem>>, %arg2: memref<1x1xf32, #tpu.memory_space<vmem>>) attributes {dimension_semantics = [#tpu.dimension_semantics<arbitrary>], iteration_bounds = array<i64: 1>, scalar_prefetch = 0 : i64, scratch_operands = 0 : i64, tpu.core_type = #tpu.core_type<tc>, window_params = [{pipeline_mode = #tpu.pipeline_mode<synchronous>, transform_indices = @transform_0, window_bounds = array<i64: 128, 3>}, {pipeline_mode = #tpu.pipeline_mode<synchronous>, transform_indices = @transform_1, window_bounds = array<i64: 1, 1>}]} {
    %c0 = arith.constant 0 : index
    %c0_0 = arith.constant 0 : index
    %0 = vector.load %arg1[%c0, %c0_0] : memref<128x3xf32, #tpu.memory_space<vmem>>, vector<128x3xf32>
    %1 = tpu.iota {dimensions = array<i32: 0>} : vector<128x128xi32>
    %2 = tpu.iota {dimensions = array<i32: 1>} : vector<128x128xi32>
    %3 = arith.cmpi eq, %1, %2 : vector<128x128xi32>
    %4 = arith.extui %3 : vector<128x128xi1> to vector<128x128xi32>
    %5 = arith.sitofp %4 : vector<128x128xi32> to vector<128x128xf32>
    %6 = tpu.iota {dimensions = array<i32: 0>} : vector<128x1xi32>
    %c8_i32 = arith.constant 8 : i32
    %7 = vector.broadcast %c8_i32 : i32 to vector<128x1xi32>
    %8 = arith.cmpi slt, %6, %7 : vector<128x1xi32>
    %9 = arith.extui %8 : vector<128x1xi1> to vector<128x1xi32>
    %10 = arith.sitofp %9 : vector<128x1xi32> to vector<128x1xf32>
    %11 = tpu.iota {dimensions = array<i32: 1>} : vector<1x128xi32>
    %c8_i32_1 = arith.constant 8 : i32
    %12 = vector.broadcast %c8_i32_1 : i32 to vector<1x128xi32>
    %13 = arith.cmpi slt, %11, %12 : vector<1x128xi32>
    %14 = arith.extui %13 : vector<1x128xi1> to vector<1x128xi32>
    %15 = arith.sitofp %14 : vector<1x128xi32> to vector<1x128xf32>
    %16 = arith.mulf %0, %0 : vector<128x3xf32>
    %cst = arith.constant dense<0.000000e+00> : vector<128xf32>
    %17 = vector.multi_reduction <add>, %16, %cst [1] : vector<128x3xf32> to vector<128xf32>
    %18 = vector.shape_cast %17 : vector<128xf32> to vector<128x1xf32>
    %cst_2 = arith.constant 1.000000e+00 : f32
    %19 = vector.broadcast %cst_2 : f32 to vector<1x3xf32>
    %cst_3 = arith.constant dense<0.000000e+00> : vector<1x128xf32>
    %20 = tpu.matmul %19, %16, %cst_3 {dimension_numbers = #tpu.dot_dimension_numbers<[1], [1], [0], [0], [0, 0, 1, 0], [], []>, precision = #tpu.contract_precision<fp32>} : vector<1x3xf32>, vector<128x3xf32>, vector<1x128xf32> -> vector<1x128xf32>
    %cst_4 = arith.constant dense<0.000000e+00> : vector<128x128xf32>
    %21 = tpu.matmul %0, %0, %cst_4 {dimension_numbers = #tpu.dot_dimension_numbers<[1], [1], [0], [0], [0, 0, 1, 0], [], []>, precision = #tpu.contract_precision<fp32>} : vector<128x3xf32>, vector<128x3xf32>, vector<128x128xf32> -> vector<128x128xf32>
    %22 = vector.broadcast %18 : vector<128x1xf32> to vector<128x128xf32>
    %23 = vector.broadcast %20 : vector<1x128xf32> to vector<128x128xf32>
    %24 = arith.addf %22, %23 : vector<128x128xf32>
    %cst_5 = arith.constant 2.000000e+00 : f32
    %25 = vector.broadcast %cst_5 : f32 to vector<128x128xf32>
    %26 = arith.mulf %25, %21 : vector<128x128xf32>
    %27 = arith.subf %24, %26 : vector<128x128xf32>
    %cst_6 = arith.constant 0.000000e+00 : f32
    %28 = vector.broadcast %cst_6 : f32 to vector<128x128xf32>
    %29 = arith.maximumf %27, %28 : vector<128x128xf32>
    %30 = math.sqrt %29 : vector<128x128xf32>
    %cst_7 = arith.constant 5.000000e+01 : f32
    %31 = vector.broadcast %cst_7 : f32 to vector<128x128xf32>
    %32 = arith.subf %30, %31 : vector<128x128xf32>
    %cst_8 = arith.constant -2.000000e-02 : f32
    %33 = vector.broadcast %cst_8 : f32 to vector<128x128xf32>
    %34 = arith.mulf %33, %32 : vector<128x128xf32>
    %35 = arith.negf %34 : vector<128x128xf32>
    %36 = math.exp %35 : vector<128x128xf32>
    %cst_9 = arith.constant 1.000000e+00 : f32
    %37 = vector.broadcast %cst_9 : f32 to vector<128x128xf32>
    %38 = arith.addf %37, %36 : vector<128x128xf32>
    %39 = arith.divf %37, %38 : vector<128x128xf32>
    %cst_10 = arith.constant 1.000000e+00 : f32
    %40 = vector.broadcast %cst_10 : f32 to vector<128x128xf32>
    %41 = arith.subf %40, %5 : vector<128x128xf32>
    %42 = vector.broadcast %10 : vector<128x1xf32> to vector<128x128xf32>
    %43 = arith.mulf %41, %42 : vector<128x128xf32>
    %44 = vector.broadcast %15 : vector<1x128xf32> to vector<128x128xf32>
    %45 = arith.mulf %43, %44 : vector<128x128xf32>
    %46 = arith.mulf %39, %45 : vector<128x128xf32>
    %cst_11 = arith.constant dense<0.000000e+00> : vector<128xf32>
    %47 = vector.multi_reduction <add>, %46, %cst_11 [1] : vector<128x128xf32> to vector<128xf32>
    %48 = vector.shape_cast %47 : vector<128xf32> to vector<128x1xf32>
    %cst_12 = arith.constant 1.000000e+00 : f32
    %49 = vector.broadcast %cst_12 : f32 to vector<1x128xf32>
    %cst_13 = arith.constant dense<0.000000e+00> : vector<1x128xf32>
    %50 = tpu.matmul %49, %46, %cst_13 {dimension_numbers = #tpu.dot_dimension_numbers<[1], [0], [0], [1], [0, 0, 1, 1], [], []>, precision = #tpu.contract_precision<fp32>} : vector<1x128xf32>, vector<128x128xf32>, vector<1x128xf32> -> vector<1x128xf32>
    %cst_14 = arith.constant 9.99999997E-7 : f32
    %51 = vector.broadcast %cst_14 : f32 to vector<128x1xf32>
    %52 = arith.addf %48, %51 : vector<128x1xf32>
    %53 = math.rsqrt %52 : vector<128x1xf32>
    %cst_15 = arith.constant 9.99999997E-7 : f32
    %54 = vector.broadcast %cst_15 : f32 to vector<1x128xf32>
    %55 = arith.addf %50, %54 : vector<1x128xf32>
    %56 = math.rsqrt %55 : vector<1x128xf32>
    %57 = vector.broadcast %48 : vector<128x1xf32> to vector<128x128xf32>
    %58 = arith.mulf %5, %57 : vector<128x128xf32>
    %59 = arith.subf %58, %46 : vector<128x128xf32>
    %60 = vector.broadcast %53 : vector<128x1xf32> to vector<128x128xf32>
    %61 = arith.mulf %60, %59 : vector<128x128xf32>
    %62 = vector.broadcast %56 : vector<1x128xf32> to vector<128x128xf32>
    %63 = arith.mulf %61, %62 : vector<128x128xf32>
    %cst_16 = arith.constant 0.000000e+00 : f32
    %64 = vector.broadcast %cst_16 : f32 to vector<1x1xf32>
    %cst_17 = arith.constant -6.250000e-01 : f32
    %65 = vector.broadcast %cst_17 : f32 to vector<128x128xf32>
    %66 = arith.mulf %65, %63 : vector<128x128xf32>
    %67 = arith.truncf %66 : vector<128x128xf32> to vector<128x128xbf16>
    %68 = arith.extf %67 : vector<128x128xbf16> to vector<128x128xf32>
    %69 = arith.subf %66, %68 : vector<128x128xf32>
    %70 = arith.truncf %69 : vector<128x128xf32> to vector<128x128xbf16>
    %cst_18 = arith.constant dense<0.000000e+00> : vector<128x128xf32>
    %71 = tpu.matmul %67, %67, %cst_18 {dimension_numbers = #tpu.dot_dimension_numbers<[1], [0], [0], [1], [0, 0, 1, 1], [], []>} : vector<128x128xbf16>, vector<128x128xbf16>, vector<128x128xf32> -> vector<128x128xf32>
    %cst_19 = arith.constant dense<0.000000e+00> : vector<128x128xf32>
    %72 = tpu.matmul %70, %67, %cst_19 {dimension_numbers = #tpu.dot_dimension_numbers<[1], [0], [0], [1], [0, 0, 1, 1], [], []>} : vector<128x128xbf16>, vector<128x128xbf16>, vector<128x128xf32> -> vector<128x128xf32>
    %73 = arith.addf %71, %72 : vector<128x128xf32>
    %cst_20 = arith.constant dense<0.000000e+00> : vector<128x128xf32>
    %74 = tpu.matmul %67, %70, %cst_20 {dimension_numbers = #tpu.dot_dimension_numbers<[1], [0], [0], [1], [0, 0, 1, 1], [], []>} : vector<128x128xbf16>, vector<128x128xbf16>, vector<128x128xf32> -> vector<128x128xf32>
    %75 = arith.addf %73, %74 : vector<128x128xf32>
    %76 = arith.truncf %75 : vector<128x128xf32> to vector<128x128xbf16>
    %77 = arith.extf %76 : vector<128x128xbf16> to vector<128x128xf32>
    %78 = arith.subf %75, %77 : vector<128x128xf32>
    %79 = arith.truncf %78 : vector<128x128xf32> to vector<128x128xbf16>
    %cst_21 = arith.constant dense<0.000000e+00> : vector<128x128xf32>
    %80 = tpu.matmul %76, %67, %cst_21 {dimension_numbers = #tpu.dot_dimension_numbers<[1], [0], [0], [1], [0, 0, 1, 1], [], []>} : vector<128x128xbf16>, vector<128x128xbf16>, vector<128x128xf32> -> vector<128x128xf32>
    %cst_22 = arith.constant dense<0.000000e+00> : vector<128x128xf32>
    %81 = tpu.matmul %79, %67, %cst_22 {dimension_numbers = #tpu.dot_dimension_numbers<[1], [0], [0], [1], [0, 0, 1, 1], [], []>} : vector<128x128xbf16>, vector<128x128xbf16>, vector<128x128xf32> -> vector<128x128xf32>
    %82 = arith.addf %80, %81 : vector<128x128xf32>
    %cst_23 = arith.constant dense<0.000000e+00> : vector<128x128xf32>
    %83 = tpu.matmul %76, %70, %cst_23 {dimension_numbers = #tpu.dot_dimension_numbers<[1], [0], [0], [1], [0, 0, 1, 1], [], []>} : vector<128x128xbf16>, vector<128x128xbf16>, vector<128x128xf32> -> vector<128x128xf32>
    %84 = arith.addf %82, %83 : vector<128x128xf32>
    %cst_24 = arith.constant dense<0.000000e+00> : vector<128x128xf32>
    %85 = tpu.matmul %76, %76, %cst_24 {dimension_numbers = #tpu.dot_dimension_numbers<[1], [0], [0], [1], [0, 0, 1, 1], [], []>} : vector<128x128xbf16>, vector<128x128xbf16>, vector<128x128xf32> -> vector<128x128xf32>
    %cst_25 = arith.constant dense<0.000000e+00> : vector<128x128xf32>
    %86 = tpu.matmul %79, %76, %cst_25 {dimension_numbers = #tpu.dot_dimension_numbers<[1], [0], [0], [1], [0, 0, 1, 1], [], []>} : vector<128x128xbf16>, vector<128x128xbf16>, vector<128x128xf32> -> vector<128x128xf32>
    %87 = arith.addf %85, %86 : vector<128x128xf32>
    %cst_26 = arith.constant dense<0.000000e+00> : vector<128x128xf32>
    %88 = tpu.matmul %76, %79, %cst_26 {dimension_numbers = #tpu.dot_dimension_numbers<[1], [0], [0], [1], [0, 0, 1, 1], [], []>} : vector<128x128xbf16>, vector<128x128xbf16>, vector<128x128xf32> -> vector<128x128xf32>
    %89 = arith.addf %87, %88 : vector<128x128xf32>
    %90 = arith.truncf %89 : vector<128x128xf32> to vector<128x128xbf16>
    %91 = arith.extf %90 : vector<128x128xbf16> to vector<128x128xf32>
    %92 = arith.subf %89, %91 : vector<128x128xf32>
    %93 = arith.truncf %92 : vector<128x128xf32> to vector<128x128xbf16>
    %cst_27 = arith.constant 1.000000e+00 : f32
    %94 = vector.broadcast %cst_27 : f32 to vector<128x128xf32>
    %95 = arith.mulf %94, %5 : vector<128x128xf32>
    %cst_28 = arith.constant 1.000000e+00 : f32
    %96 = vector.broadcast %cst_28 : f32 to vector<128x128xf32>
    %97 = arith.mulf %96, %66 : vector<128x128xf32>
    %98 = arith.addf %95, %97 : vector<128x128xf32>
    %cst_29 = arith.constant 5.000000e-01 : f32
    %99 = vector.broadcast %cst_29 : f32 to vector<128x128xf32>
    %100 = arith.mulf %99, %75 : vector<128x128xf32>
    %101 = arith.addf %98, %100 : vector<128x128xf32>
    %cst_30 = arith.constant 0.166666672 : f32
    %102 = vector.broadcast %cst_30 : f32 to vector<128x128xf32>
    %103 = arith.mulf %102, %84 : vector<128x128xf32>
    %104 = arith.addf %101, %103 : vector<128x128xf32>
    %cst_31 = arith.constant 0.0416666679 : f32
    %105 = vector.broadcast %cst_31 : f32 to vector<128x128xf32>
    %106 = arith.mulf %105, %5 : vector<128x128xf32>
    %cst_32 = arith.constant 0.00833333377 : f32
    %107 = vector.broadcast %cst_32 : f32 to vector<128x128xf32>
    %108 = arith.mulf %107, %66 : vector<128x128xf32>
    %109 = arith.addf %106, %108 : vector<128x128xf32>
    %cst_33 = arith.constant 0.00138888892 : f32
    %110 = vector.broadcast %cst_33 : f32 to vector<128x128xf32>
    %111 = arith.mulf %110, %75 : vector<128x128xf32>
    %112 = arith.addf %109, %111 : vector<128x128xf32>
    %cst_34 = arith.constant 1.98412701E-4 : f32
    %113 = vector.broadcast %cst_34 : f32 to vector<128x128xf32>
    %114 = arith.mulf %113, %84 : vector<128x128xf32>
    %115 = arith.addf %112, %114 : vector<128x128xf32>
    %cst_35 = arith.constant 2.48015876E-5 : f32
    %116 = vector.broadcast %cst_35 : f32 to vector<128x128xf32>
    %117 = arith.mulf %116, %5 : vector<128x128xf32>
    %cst_36 = arith.constant 2.75573188E-6 : f32
    %118 = vector.broadcast %cst_36 : f32 to vector<128x128xf32>
    %119 = arith.mulf %118, %66 : vector<128x128xf32>
    %120 = arith.addf %117, %119 : vector<128x128xf32>
    %cst_37 = arith.constant 2.755732E-7 : f32
    %121 = vector.broadcast %cst_37 : f32 to vector<128x128xf32>
    %122 = arith.mulf %121, %75 : vector<128x128xf32>
    %123 = arith.addf %120, %122 : vector<128x128xf32>
    %cst_38 = arith.constant 2.50521079E-8 : f32
    %124 = vector.broadcast %cst_38 : f32 to vector<128x128xf32>
    %125 = arith.mulf %124, %84 : vector<128x128xf32>
    %126 = arith.addf %123, %125 : vector<128x128xf32>
    %cst_39 = arith.constant 2.08767559E-9 : f32
    %127 = vector.broadcast %cst_39 : f32 to vector<128x128xf32>
    %128 = arith.mulf %127, %89 : vector<128x128xf32>
    %129 = arith.addf %128, %126 : vector<128x128xf32>
    %130 = arith.truncf %129 : vector<128x128xf32> to vector<128x128xbf16>
    %131 = arith.extf %130 : vector<128x128xbf16> to vector<128x128xf32>
    %132 = arith.subf %129, %131 : vector<128x128xf32>
    %133 = arith.truncf %132 : vector<128x128xf32> to vector<128x128xbf16>
    %cst_40 = arith.constant dense<0.000000e+00> : vector<128x128xf32>
    %134 = tpu.matmul %130, %90, %cst_40 {dimension_numbers = #tpu.dot_dimension_numbers<[1], [0], [0], [1], [0, 0, 1, 1], [], []>} : vector<128x128xbf16>, vector<128x128xbf16>, vector<128x128xf32> -> vector<128x128xf32>
    %cst_41 = arith.constant dense<0.000000e+00> : vector<128x128xf32>
    %135 = tpu.matmul %133, %90, %cst_41 {dimension_numbers = #tpu.dot_dimension_numbers<[1], [0], [0], [1], [0, 0, 1, 1], [], []>} : vector<128x128xbf16>, vector<128x128xbf16>, vector<128x128xf32> -> vector<128x128xf32>
    %136 = arith.addf %134, %135 : vector<128x128xf32>
    %cst_42 = arith.constant dense<0.000000e+00> : vector<128x128xf32>
    %137 = tpu.matmul %130, %93, %cst_42 {dimension_numbers = #tpu.dot_dimension_numbers<[1], [0], [0], [1], [0, 0, 1, 1], [], []>} : vector<128x128xbf16>, vector<128x128xbf16>, vector<128x128xf32> -> vector<128x128xf32>
    %138 = arith.addf %136, %137 : vector<128x128xf32>
    %139 = arith.addf %138, %115 : vector<128x128xf32>
    %140 = arith.truncf %139 : vector<128x128xf32> to vector<128x128xbf16>
    %141 = arith.extf %140 : vector<128x128xbf16> to vector<128x128xf32>
    %142 = arith.subf %139, %141 : vector<128x128xf32>
    %143 = arith.truncf %142 : vector<128x128xf32> to vector<128x128xbf16>
    %cst_43 = arith.constant dense<0.000000e+00> : vector<128x128xf32>
    %144 = tpu.matmul %140, %90, %cst_43 {dimension_numbers = #tpu.dot_dimension_numbers<[1], [0], [0], [1], [0, 0, 1, 1], [], []>} : vector<128x128xbf16>, vector<128x128xbf16>, vector<128x128xf32> -> vector<128x128xf32>
    %cst_44 = arith.constant dense<0.000000e+00> : vector<128x128xf32>
    %145 = tpu.matmul %143, %90, %cst_44 {dimension_numbers = #tpu.dot_dimension_numbers<[1], [0], [0], [1], [0, 0, 1, 1], [], []>} : vector<128x128xbf16>, vector<128x128xbf16>, vector<128x128xf32> -> vector<128x128xf32>
    %146 = arith.addf %144, %145 : vector<128x128xf32>
    %cst_45 = arith.constant dense<0.000000e+00> : vector<128x128xf32>
    %147 = tpu.matmul %140, %93, %cst_45 {dimension_numbers = #tpu.dot_dimension_numbers<[1], [0], [0], [1], [0, 0, 1, 1], [], []>} : vector<128x128xbf16>, vector<128x128xbf16>, vector<128x128xf32> -> vector<128x128xf32>
    %148 = arith.addf %146, %147 : vector<128x128xf32>
    %149 = arith.addf %148, %104 : vector<128x128xf32>
    %150 = arith.truncf %149 : vector<128x128xf32> to vector<128x128xbf16>
    %151 = arith.extf %150 : vector<128x128xbf16> to vector<128x128xf32>
    %152 = arith.subf %149, %151 : vector<128x128xf32>
    %153 = arith.truncf %152 : vector<128x128xf32> to vector<128x128xbf16>
    %cst_46 = arith.constant dense<0.000000e+00> : vector<128x128xf32>
    %154 = tpu.matmul %150, %150, %cst_46 {dimension_numbers = #tpu.dot_dimension_numbers<[1], [0], [0], [1], [0, 0, 1, 1], [], []>} : vector<128x128xbf16>, vector<128x128xbf16>, vector<128x128xf32> -> vector<128x128xf32>
    %cst_47 = arith.constant dense<0.000000e+00> : vector<128x128xf32>
    %155 = tpu.matmul %153, %150, %cst_47 {dimension_numbers = #tpu.dot_dimension_numbers<[1], [0], [0], [1], [0, 0, 1, 1], [], []>} : vector<128x128xbf16>, vector<128x128xbf16>, vector<128x128xf32> -> vector<128x128xf32>
    %156 = arith.addf %154, %155 : vector<128x128xf32>
    %cst_48 = arith.constant dense<0.000000e+00> : vector<128x128xf32>
    %157 = tpu.matmul %150, %153, %cst_48 {dimension_numbers = #tpu.dot_dimension_numbers<[1], [0], [0], [1], [0, 0, 1, 1], [], []>} : vector<128x128xbf16>, vector<128x128xbf16>, vector<128x128xf32> -> vector<128x128xf32>
    %158 = arith.addf %156, %157 : vector<128x128xf32>
    %159 = arith.truncf %158 : vector<128x128xf32> to vector<128x128xbf16>
    %160 = arith.extf %159 : vector<128x128xbf16> to vector<128x128xf32>
    %161 = arith.subf %158, %160 : vector<128x128xf32>
    %162 = arith.truncf %161 : vector<128x128xf32> to vector<128x128xbf16>
    %cst_49 = arith.constant dense<0.000000e+00> : vector<128x128xf32>
    %163 = tpu.matmul %159, %159, %cst_49 {dimension_numbers = #tpu.dot_dimension_numbers<[1], [0], [0], [1], [0, 0, 1, 1], [], []>} : vector<128x128xbf16>, vector<128x128xbf16>, vector<128x128xf32> -> vector<128x128xf32>
    %cst_50 = arith.constant dense<0.000000e+00> : vector<128x128xf32>
    %164 = tpu.matmul %162, %159, %cst_50 {dimension_numbers = #tpu.dot_dimension_numbers<[1], [0], [0], [1], [0, 0, 1, 1], [], []>} : vector<128x128xbf16>, vector<128x128xbf16>, vector<128x128xf32> -> vector<128x128xf32>
    %165 = arith.addf %163, %164 : vector<128x128xf32>
    %cst_51 = arith.constant dense<0.000000e+00> : vector<128x128xf32>
    %166 = tpu.matmul %159, %162, %cst_51 {dimension_numbers = #tpu.dot_dimension_numbers<[1], [0], [0], [1], [0, 0, 1, 1], [], []>} : vector<128x128xbf16>, vector<128x128xbf16>, vector<128x128xf32> -> vector<128x128xf32>
    %167 = arith.addf %165, %166 : vector<128x128xf32>
    %168 = arith.truncf %167 : vector<128x128xf32> to vector<128x128xbf16>
    %169 = arith.extf %168 : vector<128x128xbf16> to vector<128x128xf32>
    %170 = arith.subf %167, %169 : vector<128x128xf32>
    %171 = arith.truncf %170 : vector<128x128xf32> to vector<128x128xbf16>
    %cst_52 = arith.constant dense<0.000000e+00> : vector<128x128xf32>
    %172 = tpu.matmul %168, %168, %cst_52 {dimension_numbers = #tpu.dot_dimension_numbers<[1], [0], [0], [1], [0, 0, 1, 1], [], []>} : vector<128x128xbf16>, vector<128x128xbf16>, vector<128x128xf32> -> vector<128x128xf32>
    %cst_53 = arith.constant dense<0.000000e+00> : vector<128x128xf32>
    %173 = tpu.matmul %171, %168, %cst_53 {dimension_numbers = #tpu.dot_dimension_numbers<[1], [0], [0], [1], [0, 0, 1, 1], [], []>} : vector<128x128xbf16>, vector<128x128xbf16>, vector<128x128xf32> -> vector<128x128xf32>
    %174 = arith.addf %172, %173 : vector<128x128xf32>
    %cst_54 = arith.constant dense<0.000000e+00> : vector<128x128xf32>
    %175 = tpu.matmul %168, %171, %cst_54 {dimension_numbers = #tpu.dot_dimension_numbers<[1], [0], [0], [1], [0, 0, 1, 1], [], []>} : vector<128x128xbf16>, vector<128x128xbf16>, vector<128x128xf32> -> vector<128x128xf32>
    %176 = arith.addf %174, %175 : vector<128x128xf32>
    %cst_55 = arith.constant dense<0.000000e+00> : vector<1x128xf32>
    %177 = tpu.matmul %15, %176, %cst_55 {dimension_numbers = #tpu.dot_dimension_numbers<[1], [0], [0], [1], [0, 0, 1, 1], [], []>, precision = #tpu.contract_precision<fp32>} : vector<1x128xf32>, vector<128x128xf32>, vector<1x128xf32> -> vector<1x128xf32>
    %cst_56 = arith.constant 1.250000e-01 : f32
    %178 = vector.broadcast %cst_56 : f32 to vector<1x128xf32>
    %179 = arith.mulf %177, %178 : vector<1x128xf32>
    %180 = vector.broadcast %179 : vector<1x128xf32> to vector<128x128xf32>
    %181 = arith.subf %176, %180 : vector<128x128xf32>
    %182 = arith.mulf %181, %181 : vector<128x128xf32>
    %cst_57 = arith.constant dense<0.000000e+00> : vector<1x128xf32>
    %183 = tpu.matmul %15, %182, %cst_57 {dimension_numbers = #tpu.dot_dimension_numbers<[1], [0], [0], [1], [0, 0, 1, 1], [], []>, precision = #tpu.contract_precision<fp32>} : vector<1x128xf32>, vector<128x128xf32>, vector<1x128xf32> -> vector<1x128xf32>
    %cst_58 = arith.constant 0.142857149 : f32
    %184 = vector.broadcast %cst_58 : f32 to vector<1x128xf32>
    %185 = arith.mulf %183, %184 : vector<1x128xf32>
    %186 = math.sqrt %185 : vector<1x128xf32>
    %cst_59 = arith.constant 9.99999997E-7 : f32
    %187 = vector.broadcast %cst_59 : f32 to vector<1x128xf32>
    %188 = arith.addf %179, %187 : vector<1x128xf32>
    %189 = arith.divf %186, %188 : vector<1x128xf32>
    %190 = arith.mulf %189, %15 : vector<1x128xf32>
    %191 = vector.shape_cast %190 : vector<1x128xf32> to vector<1x1x128xf32>
    %cst_60 = arith.constant dense<0.000000e+00> : vector<1xf32>
    %192 = vector.multi_reduction <add>, %191, %cst_60 [1, 2] : vector<1x1x128xf32> to vector<1xf32>
    %193 = vector.shape_cast %192 : vector<1xf32> to vector<1x1x1xf32>
    %194 = vector.extract %193[0, 0, 0] : f32 from vector<1x1x1xf32>
    %195 = vector.broadcast %194 : f32 to vector<1x1xf32>
    %196 = arith.addf %64, %195 : vector<1x1xf32>
    %197 = arith.truncf %176 : vector<128x128xf32> to vector<128x128xbf16>
    %198 = arith.extf %197 : vector<128x128xbf16> to vector<128x128xf32>
    %199 = arith.subf %176, %198 : vector<128x128xf32>
    %200 = arith.truncf %199 : vector<128x128xf32> to vector<128x128xbf16>
    %cst_61 = arith.constant dense<0.000000e+00> : vector<128x128xf32>
    %201 = tpu.matmul %197, %197, %cst_61 {dimension_numbers = #tpu.dot_dimension_numbers<[1], [0], [0], [1], [0, 0, 1, 1], [], []>} : vector<128x128xbf16>, vector<128x128xbf16>, vector<128x128xf32> -> vector<128x128xf32>
    %cst_62 = arith.constant dense<0.000000e+00> : vector<128x128xf32>
    %202 = tpu.matmul %200, %197, %cst_62 {dimension_numbers = #tpu.dot_dimension_numbers<[1], [0], [0], [1], [0, 0, 1, 1], [], []>} : vector<128x128xbf16>, vector<128x128xbf16>, vector<128x128xf32> -> vector<128x128xf32>
    %203 = arith.addf %201, %202 : vector<128x128xf32>
    %cst_63 = arith.constant dense<0.000000e+00> : vector<128x128xf32>
    %204 = tpu.matmul %197, %200, %cst_63 {dimension_numbers = #tpu.dot_dimension_numbers<[1], [0], [0], [1], [0, 0, 1, 1], [], []>} : vector<128x128xbf16>, vector<128x128xbf16>, vector<128x128xf32> -> vector<128x128xf32>
    %205 = arith.addf %203, %204 : vector<128x128xf32>
    %cst_64 = arith.constant dense<0.000000e+00> : vector<1x128xf32>
    %206 = tpu.matmul %15, %205, %cst_64 {dimension_numbers = #tpu.dot_dimension_numbers<[1], [0], [0], [1], [0, 0, 1, 1], [], []>, precision = #tpu.contract_precision<fp32>} : vector<1x128xf32>, vector<128x128xf32>, vector<1x128xf32> -> vector<1x128xf32>
    %cst_65 = arith.constant 1.250000e-01 : f32
    %207 = vector.broadcast %cst_65 : f32 to vector<1x128xf32>
    %208 = arith.mulf %206, %207 : vector<1x128xf32>
    %209 = vector.broadcast %208 : vector<1x128xf32> to vector<128x128xf32>
    %210 = arith.subf %205, %209 : vector<128x128xf32>
    %211 = arith.mulf %210, %210 : vector<128x128xf32>
    %cst_66 = arith.constant dense<0.000000e+00> : vector<1x128xf32>
    %212 = tpu.matmul %15, %211, %cst_66 {dimension_numbers = #tpu.dot_dimension_numbers<[1], [0], [0], [1], [0, 0, 1, 1], [], []>, precision = #tpu.contract_precision<fp32>} : vector<1x128xf32>, vector<128x128xf32>, vector<1x128xf32> -> vector<1x128xf32>
    %cst_67 = arith.constant 0.142857149 : f32
    %213 = vector.broadcast %cst_67 : f32 to vector<1x128xf32>
    %214 = arith.mulf %212, %213 : vector<1x128xf32>
    %215 = math.sqrt %214 : vector<1x128xf32>
    %cst_68 = arith.constant 9.99999997E-7 : f32
    %216 = vector.broadcast %cst_68 : f32 to vector<1x128xf32>
    %217 = arith.addf %208, %216 : vector<1x128xf32>
    %218 = arith.divf %215, %217 : vector<1x128xf32>
    %219 = arith.mulf %218, %15 : vector<1x128xf32>
    %220 = vector.shape_cast %219 : vector<1x128xf32> to vector<1x1x128xf32>
    %cst_69 = arith.constant dense<0.000000e+00> : vector<1xf32>
    %221 = vector.multi_reduction <add>, %220, %cst_69 [1, 2] : vector<1x1x128xf32> to vector<1xf32>
    %222 = vector.shape_cast %221 : vector<1xf32> to vector<1x1x1xf32>
    %223 = vector.extract %222[0, 0, 0] : f32 from vector<1x1x1xf32>
    %224 = vector.broadcast %223 : f32 to vector<1x1xf32>
    %225 = arith.addf %196, %224 : vector<1x1xf32>
    %cst_70 = arith.constant 6.250000e-02 : f32
    %226 = vector.broadcast %cst_70 : f32 to vector<1x1xf32>
    %227 = arith.mulf %225, %226 : vector<1x1xf32>
    %c0_71 = arith.constant 0 : index
    %c0_72 = arith.constant 0 : index
    %228 = vector.load %arg2[%c0_71, %c0_72] : memref<1x1xf32, #tpu.memory_space<vmem>>, vector<1x1xf32>
    tpu.vector_store %arg2[%c0_71, %c0_72], %227 {strides = array<i32>} : memref<1x1xf32, #tpu.memory_space<vmem>>, vector<1x1xf32>,
    return
  }
  func.func @transform_0(%arg0: i32) -> (i32, i32) {
    %c0_i32 = arith.constant 0 : i32
    %c0_i32_0 = arith.constant 0 : i32
    %c0_i32_1 = arith.constant 0 : i32
    return %c0_i32, %c0_i32_0 : i32, i32
  }
  func.func @transform_1(%arg0: i32) -> (i32, i32) {
    %c0_i32 = arith.constant 0 : i32
    %c0_i32_0 = arith.constant 0 : i32
    %c0_i32_1 = arith.constant 0 : i32
    return %c0_i32, %c0_i32_0 : i32, i32
  }
}

</mosaic_0001>

<llo_original>
// kernel: tpu_custom_call.1
$region0: #{tpu_custom_call.1}
  #allocation0 [shape = 'u32[]', space=smem, size = 0x4, offset = 0x4, fixed_abs, tag = 'smem constant byte address 0x4 - core index']
  #allocation1 [shape = 'u32[144,128]{1,0:T(1,128)}', space=vmem, size = 0x12000, scoped, tag = 'internal scratch']
  %s0 = inlined_call_operand.vmem [shape: f32[128,3], index: 0, kind: input, shape index: {}]
  %s1 = inlined_call_operand.hbm [shape: f32[1,1], index: 1, kind: output, shape index: {}]
  %s2 = sld [smem:[#allocation0]]
  $region14: #{tpu_custom_call.1} parent=0
    _
  %s4 = ssub.s32 1, %s2
  %s5 = scalar_select 0, %s4, %s2
  $region1: #{tpu_custom_call.1} parent=0
    #allocation2 [shape = 'u8[512]{0}', space=vmem, size = 0x400, scoped, tag = 'output window, operand 0, single buffered']
    #allocation3 [shape = 's32[1]{0}', space=sflag, size = 0x4, scoped, tag = 'scoped memory for tpu_custom_call.1']
    %6 = vsyncpa [#allocation3], 0
    // Predicated region
    $region2: #{tpu_custom_call.1} parent=1 // pred_check
      _
    $region3: #{tpu_custom_call.1} parent=1 // pred_check_branch
      %8 = sbr.rel (0) target = $region5
    $region4: #{tpu_custom_call.1} parent=1 // pred_region
      _
    $region5: #{tpu_custom_call.1} parent=1 // pred_fallthru
      _
    %v10 = vld [vmem:[%s0] sm:$0xff]
    %v11 = vld [vmem:[%s0 + $0x8] sm:$0xff]
    %v12 = vld [vmem:[%s0 + $0x10] sm:$0xff]
    %v13 = vld [vmem:[%s0 + $0x18] sm:$0xff]
    %v14 = vld [vmem:[%s0 + $0x20] sm:$0xff]
    %v15 = vld [vmem:[%s0 + $0x28] sm:$0xff]
    %v16 = vld [vmem:[%s0 + $0x30] sm:$0xff]
    %v17 = vld [vmem:[%s0 + $0x38] sm:$0xff]
    %v18 = vld [vmem:[%s0 + $0x40] sm:$0xff]
    %v19 = vld [vmem:[%s0 + $0x48] sm:$0xff]
    %v20 = vld [vmem:[%s0 + $0x50] sm:$0xff]
    %v21 = vld [vmem:[%s0 + $0x58] sm:$0xff]
    %v22 = vld [vmem:[%s0 + $0x60] sm:$0xff]
    %v23 = vld [vmem:[%s0 + $0x68] sm:$0xff]
    %v24 = vld [vmem:[%s0 + $0x70] sm:$0xff]
    %v25 = vld [vmem:[%s0 + $0x78] sm:$0xff]
    %v26 = vlaneseq
    %v27 = vshrl.u32 %v26, 7
    %v28 = vadd.s32 %v27, 8
    %v29 = vadd.s32 %v27, 16
    %v30 = vadd.s32 %v27, 24
    %v31 = vadd.s32 %v27, 32
    %v32 = vadd.s32 %v27, 40
    %v33 = vadd.s32 %v27, 48
    %v34 = vadd.s32 %v27, 56
    %v35 = vadd.s32 %v27, 64
    %v36 = vadd.s32 %v27, 72
    %v37 = vadd.s32 %v27, 80
    %v38 = vadd.s32 %v27, 88
    %v39 = vadd.s32 %v27, 96
    %v40 = vadd.s32 %v27, 104
    %v41 = vadd.s32 %v27, 112
    %v42 = vadd.s32 %v27, 120
    %v43 = vlaneseq
    %v44 = vand.u32 %v43, 127
    %vm45 = vcmp.eq.s32.totalorder %v27, %v44
    %vm46 = vcmp.eq.s32.totalorder %v28, %v44
    %vm47 = vcmp.eq.s32.totalorder %v29, %v44
    %vm48 = vcmp.eq.s32.totalorder %v30, %v44
    %vm49 = vcmp.eq.s32.totalorder %v31, %v44
    %vm50 = vcmp.eq.s32.totalorder %v32, %v44
    %vm51 = vcmp.eq.s32.totalorder %v33, %v44
    %vm52 = vcmp.eq.s32.totalorder %v34, %v44
    %vm53 = vcmp.eq.s32.totalorder %v35, %v44
    %vm54 = vcmp.eq.s32.totalorder %v36, %v44
    %vm55 = vcmp.eq.s32.totalorder %v37, %v44
    %vm56 = vcmp.eq.s32.totalorder %v38, %v44
    %vm57 = vcmp.eq.s32.totalorder %v39, %v44
    %vm58 = vcmp.eq.s32.totalorder %v40, %v44
    %vm59 = vcmp.eq.s32.totalorder %v41, %v44
    %vm60 = vcmp.eq.s32.totalorder %v42, %v44
    %v61 = vsel %vm45, 1, 0
    %v62 = vsel %vm46, 1, 0
    %v63 = vsel %vm47, 1, 0
    %v64 = vsel %vm48, 1, 0
    %v65 = vsel %vm49, 1, 0
    %v66 = vsel %vm50, 1, 0
    %v67 = vsel %vm51, 1, 0
    %v68 = vsel %vm52, 1, 0
    %v69 = vsel %vm53, 1, 0
    %v70 = vsel %vm54, 1, 0
    %v71 = vsel %vm55, 1, 0
    %v72 = vsel %vm56, 1, 0
    %v73 = vsel %vm57, 1, 0
    %v74 = vsel %vm58, 1, 0
    %v75 = vsel %vm59, 1, 0
    %v76 = vsel %vm60, 1, 0
    %v77 = vcvt.s32.f32 %v61
    %v78 = vcvt.s32.f32 %v62
    %v79 = vcvt.s32.f32 %v63
    %v80 = vcvt.s32.f32 %v64
    %v81 = vcvt.s32.f32 %v65
    %v82 = vcvt.s32.f32 %v66
    %v83 = vcvt.s32.f32 %v67
    %v84 = vcvt.s32.f32 %v68
    %v85 = vcvt.s32.f32 %v69
    %v86 = vcvt.s32.f32 %v70
    %v87 = vcvt.s32.f32 %v71
    %v88 = vcvt.s32.f32 %v72
    %v89 = vcvt.s32.f32 %v73
    %v90 = vcvt.s32.f32 %v74
    %v91 = vcvt.s32.f32 %v75
    %v92 = vcvt.s32.f32 %v76
    %vm93 = vcmp.lt.s32.totalorder %v27, 8
    %vm94 = vcmp.lt.s32.totalorder %v28, 8
    %vm95 = vcmp.lt.s32.totalorder %v29, 8
    %vm96 = vcmp.lt.s32.totalorder %v30, 8
    %vm97 = vcmp.lt.s32.totalorder %v31, 8
    %vm98 = vcmp.lt.s32.totalorder %v32, 8
    %vm99 = vcmp.lt.s32.totalorder %v33, 8
    %vm100 = vcmp.lt.s32.totalorder %v34, 8
    %vm101 = vcmp.lt.s32.totalorder %v35, 8
    %vm102 = vcmp.lt.s32.totalorder %v36, 8
    %vm103 = vcmp.lt.s32.totalorder %v37, 8
    %vm104 = vcmp.lt.s32.totalorder %v38, 8
    %vm105 = vcmp.lt.s32.totalorder %v39, 8
    %vm106 = vcmp.lt.s32.totalorder %v40, 8
    %vm107 = vcmp.lt.s32.totalorder %v41, 8
    %vm108 = vcmp.lt.s32.totalorder %v42, 8
    %v109 = vsel %vm93, 1, 0
    %v110 = vsel %vm94, 1, 0
    %v111 = vsel %vm95, 1, 0
    %v112 = vsel %vm96, 1, 0
    %v113 = vsel %vm97, 1, 0
    %v114 = vsel %vm98, 1, 0
    %v115 = vsel %vm99, 1, 0
    %v116 = vsel %vm100, 1, 0
    %v117 = vsel %vm101, 1, 0
    %v118 = vsel %vm102, 1, 0
    %v119 = vsel %vm103, 1, 0
    %v120 = vsel %vm104, 1, 0
    %v121 = vsel %vm105, 1, 0
    %v122 = vsel %vm106, 1, 0
    %v123 = vsel %vm107, 1, 0
    %v124 = vsel %vm108, 1, 0
    %v125 = vcvt.s32.f32 %v109
    %v126 = vcvt.s32.f32 %v110
    %v127 = vcvt.s32.f32 %v111
    %v128 = vcvt.s32.f32 %v112
    %v129 = vcvt.s32.f32 %v113
    %v130 = vcvt.s32.f32 %v114
    %v131 = vcvt.s32.f32 %v115
    %v132 = vcvt.s32.f32 %v116
    %v133 = vcvt.s32.f32 %v117
    %v134 = vcvt.s32.f32 %v118
    %v135 = vcvt.s32.f32 %v119
    %v136 = vcvt.s32.f32 %v120
    %v137 = vcvt.s32.f32 %v121
    %v138 = vcvt.s32.f32 %v122
    %v139 = vcvt.s32.f32 %v123
    %v140 = vcvt.s32.f32 %v124
    %vm141 = vcmp.lt.s32.totalorder %v44, 8
    %v142 = vsel %vm141, 1, 0
    %v143 = vcvt.s32.f32 %v142
    %v144 = vmul.f32 %v10, %v10
    %v145 = vmul.f32 %v11, %v11
    %v146 = vmul.f32 %v12, %v12
    %v147 = vmul.f32 %v13, %v13
    %v148 = vmul.f32 %v14, %v14
    %v149 = vmul.f32 %v15, %v15
    %v150 = vmul.f32 %v16, %v16
    %v151 = vmul.f32 %v17, %v17
    %v152 = vmul.f32 %v18, %v18
    %v153 = vmul.f32 %v19, %v19
    %v154 = vmul.f32 %v20, %v20
    %v155 = vmul.f32 %v21, %v21
    %v156 = vmul.f32 %v22, %v22
    %v157 = vmul.f32 %v23, %v23
    %v158 = vmul.f32 %v24, %v24
    %v159 = vmul.f32 %v25, %v25
    %vm160 = vcmask 23552
    %v161 = vsel %vm160, %v144, 0.0
    %162 = vadd.xlane.f32.xlu0 %v161
    %v163 = vpop.xlane.xlu0 %162
    %v164 = vsel %vm160, %v145, 0.0
    %165 = vadd.xlane.f32.xlu0 %v164
    %v166 = vpop.xlane.xlu0 %165
    %v167 = vsel %vm160, %v146, 0.0
    %168 = vadd.xlane.f32.xlu0 %v167
    %v169 = vpop.xlane.xlu0 %168
    %v170 = vsel %vm160, %v147, 0.0
    %171 = vadd.xlane.f32.xlu0 %v170
    %v172 = vpop.xlane.xlu0 %171
    %v173 = vsel %vm160, %v148, 0.0
    %174 = vadd.xlane.f32.xlu0 %v173
    %v175 = vpop.xlane.xlu0 %174
    %v176 = vsel %vm160, %v149, 0.0
    %177 = vadd.xlane.f32.xlu0 %v176
    %v178 = vpop.xlane.xlu0 %177
    %v179 = vsel %vm160, %v150, 0.0
    %180 = vadd.xlane.f32.xlu0 %v179
    %v181 = vpop.xlane.xlu0 %180
    %v182 = vsel %vm160, %v151, 0.0
    %183 = vadd.xlane.f32.xlu0 %v182
    %v184 = vpop.xlane.xlu0 %183
    %v185 = vsel %vm160, %v152, 0.0
    %186 = vadd.xlane.f32.xlu0 %v185
    %v187 = vpop.xlane.xlu0 %186
    %v188 = vsel %vm160, %v153, 0.0
    %189 = vadd.xlane.f32.xlu0 %v188
    %v190 = vpop.xlane.xlu0 %189
    %v191 = vsel %vm160, %v154, 0.0
    %192 = vadd.xlane.f32.xlu0 %v191
    %v193 = vpop.xlane.xlu0 %192
    %v194 = vsel %vm160, %v155, 0.0
    %195 = vadd.xlane.f32.xlu0 %v194
    %v196 = vpop.xlane.xlu0 %195
    %v197 = vsel %vm160, %v156, 0.0
    %198 = vadd.xlane.f32.xlu0 %v197
    %v199 = vpop.xlane.xlu0 %198
    %v200 = vsel %vm160, %v157, 0.0
    %201 = vadd.xlane.f32.xlu0 %v200
    %v202 = vpop.xlane.xlu0 %201
    %v203 = vsel %vm160, %v158, 0.0
    %204 = vadd.xlane.f32.xlu0 %v203
    %v205 = vpop.xlane.xlu0 %204
    %v206 = vsel %vm160, %v159, 0.0
    %207 = vadd.xlane.f32.xlu0 %v206
    %v208 = vpop.xlane.xlu0 %207
    %v210 = vsel %vm160, 1.0, 0
    %v213 = vsel %vm160, %v144, 0
    %v216 = vsel %vm160, %v145, 0
    %v219 = vsel %vm160, %v146, 0
    %v222 = vsel %vm160, %v147, 0
    %v225 = vsel %vm160, %v148, 0
    %v228 = vsel %vm160, %v149, 0
    %v231 = vsel %vm160, %v150, 0
    %v234 = vsel %vm160, %v151, 0
    %v237 = vsel %vm160, %v152, 0
    %v240 = vsel %vm160, %v153, 0
    %v243 = vsel %vm160, %v154, 0
    %v246 = vsel %vm160, %v155, 0
    %v249 = vsel %vm160, %v156, 0
    %v252 = vsel %vm160, %v157, 0
    %v255 = vsel %vm160, %v158, 0
    %v258 = vsel %vm160, %v159, 0
    %260 = vmatprep.subr.mxu0 0.0
    %v261 = vand.u32 %v258, 4294901760
    %262 = vmatpush1.xpose.msra.mxu0 %v261
    %263 = vmatprep.subr.mxu0 0.0
    %v264 = vand.u32 %v255, 4294901760
    %265 = vmatpush1.xpose.msra.mxu0 %v264
    %266 = vmatprep.subr.mxu0 0.0
    %v267 = vand.u32 %v252, 4294901760
    %268 = vmatpush1.xpose.msra.mxu0 %v267
    %269 = vmatprep.subr.mxu0 0.0
    %v270 = vand.u32 %v249, 4294901760
    %271 = vmatpush1.xpose.msra.mxu0 %v270
    %272 = vmatprep.subr.mxu0 0.0
    %v273 = vand.u32 %v246, 4294901760
    %274 = vmatpush1.xpose.msra.mxu0 %v273
    %275 = vmatprep.subr.mxu0 0.0
    %v276 = vand.u32 %v243, 4294901760
    %277 = vmatpush1.xpose.msra.mxu0 %v276
    %278 = vmatprep.subr.mxu0 0.0
    %v279 = vand.u32 %v240, 4294901760
    %280 = vmatpush1.xpose.msra.mxu0 %v279
    %281 = vmatprep.subr.mxu0 0.0
    %v282 = vand.u32 %v237, 4294901760
    %283 = vmatpush1.xpose.msra.mxu0 %v282
    %284 = vmatprep.subr.mxu0 0.0
    %v285 = vand.u32 %v234, 4294901760
    %286 = vmatpush1.xpose.msra.mxu0 %v285
    %287 = vmatprep.subr.mxu0 0.0
    %v288 = vand.u32 %v231, 4294901760
    %289 = vmatpush1.xpose.msra.mxu0 %v288
    %290 = vmatprep.subr.mxu0 0.0
    %v291 = vand.u32 %v228, 4294901760
    %292 = vmatpush1.xpose.msra.mxu0 %v291
    %293 = vmatprep.subr.mxu0 0.0
    %v294 = vand.u32 %v225, 4294901760
    %295 = vmatpush1.xpose.msra.mxu0 %v294
    %296 = vmatprep.subr.mxu0 0.0
    %v297 = vand.u32 %v222, 4294901760
    %298 = vmatpush1.xpose.msra.mxu0 %v297
    %299 = vmatprep.subr.mxu0 0.0
    %v300 = vand.u32 %v219, 4294901760
    %301 = vmatpush1.xpose.msra.mxu0 %v300
    %302 = vmatprep.subr.mxu0 0.0
    %v303 = vand.u32 %v216, 4294901760
    %304 = vmatpush1.xpose.msra.mxu0 %v303
    %305 = vmatprep.subr.mxu0 0.0
    %v306 = vand.u32 %v213, 4294901760
    %307 = vmatpush1.xpose.msra.mxu0 %v306
    %308 = vmatprep.subr.mxu0 0.0
    %309 = vmatpush2.xpose.msra.mxu0 0.0
    %310 = vmatprep.subr.mxu0 0.0
    %311 = vmatpush2.xpose.msra.mxu0 0.0
    %312 = vmatprep.subr.mxu0 0.0
    %313 = vmatpush2.xpose.msra.mxu0 0.0
    %314 = vmatprep.subr.mxu0 0.0
    %315 = vmatpush2.xpose.msra.mxu0 0.0
    %316 = vmatprep.subr.mxu0 0.0
    %317 = vmatpush2.xpose.msra.mxu0 0.0
    %318 = vmatprep.subr.mxu0 0.0
    %319 = vmatpush2.xpose.msra.mxu0 0.0
    %320 = vmatprep.subr.mxu0 0.0
    %321 = vmatpush2.xpose.msra.mxu0 0.0
    %322 = vmatprep.subr.mxu0 0.0
    %323 = vmatpush2.xpose.msra.mxu0 0.0
    %324 = vmatprep.subr.mxu0 0.0
    %325 = vmatpush2.xpose.msra.mxu0 0.0
    %326 = vmatprep.subr.mxu0 0.0
    %327 = vmatpush2.xpose.msra.mxu0 0.0
    %328 = vmatprep.subr.mxu0 0.0
    %329 = vmatpush2.xpose.msra.mxu0 0.0
    %330 = vmatprep.subr.mxu0 0.0
    %331 = vmatpush2.xpose.msra.mxu0 0.0
    %332 = vmatprep.subr.mxu0 0.0
    %333 = vmatpush2.xpose.msra.mxu0 0.0
    %334 = vmatprep.subr.mxu0 0.0
    %335 = vmatpush2.xpose.msra.mxu0 0.0
    %336 = vmatprep.subr.mxu0 0.0
    %337 = vmatpush2.xpose.msra.mxu0 0.0
    %338 = vmatprep.subr.mxu0 0.0
    %339 = vmatpush2.xpose.msra.mxu0 0.0
    %340 = vmatprep.mubr.f32.mxu0 0.0
    %v341 = vand.u32 %v210, 4294901760
    %v342 = vsub.f32 %v210, %v341
    %v343 = vand.u32 %v342, 4294901760
    %v344 = vsub.f32 %v342, %v343
    %v345 = vand.u32 %v344, 4294901760
    %346 = vmatmul.mubr.f32.gmra.mxu0 %v345
    %v347 = vpop.f32.mrf.mxu0
    %v348 = vadd.f32 0.0, %v347
    %v349 = vpop.f32.mrf.mxu0
    %350 = vdwg.mxu0
    %351 = vmatprep.subr.mxu0 0.0
    %v352 = vand.u32 %v258, 4294901760
    %v353 = vsub.f32 %v258, %v352
    %v354 = vand.u32 %v353, 4294901760
    %v355 = vsub.f32 %v353, %v354
    %v356 = vand.u32 %v355, 4294901760
    %357 = vmatpush1.xpose.msra.mxu0 %v356
    %358 = vmatprep.subr.mxu0 0.0
    %v359 = vand.u32 %v255, 4294901760
    %v360 = vsub.f32 %v255, %v359
    %v361 = vand.u32 %v360, 4294901760
    %v362 = vsub.f32 %v360, %v361
    %v363 = vand.u32 %v362, 4294901760
    %364 = vmatpush1.xpose.msra.mxu0 %v363
    %365 = vmatprep.subr.mxu0 0.0
    %v366 = vand.u32 %v252, 4294901760
    %v367 = vsub.f32 %v252, %v366
    %v368 = vand.u32 %v367, 4294901760
    %v369 = vsub.f32 %v367, %v368
    %v370 = vand.u32 %v369, 4294901760
    %371 = vmatpush1.xpose.msra.mxu0 %v370
    %372 = vmatprep.subr.mxu0 0.0
    %v373 = vand.u32 %v249, 4294901760
    %v374 = vsub.f32 %v249, %v373
    %v375 = vand.u32 %v374, 4294901760
    %v376 = vsub.f32 %v374, %v375
    %v377 = vand.u32 %v376, 4294901760
    %378 = vmatpush1.xpose.msra.mxu0 %v377
    %379 = vmatprep.subr.mxu0 0.0
    %v380 = vand.u32 %v246, 4294901760
    %v381 = vsub.f32 %v246, %v380
    %v382 = vand.u32 %v381, 4294901760
    %v383 = vsub.f32 %v381, %v382
    %v384 = vand.u32 %v383, 4294901760
    %385 = vmatpush1.xpose.msra.mxu0 %v384
    %386 = vmatprep.subr.mxu0 0.0
    %v387 = vand.u32 %v243, 4294901760
    %v388 = vsub.f32 %v243, %v387
    %v389 = vand.u32 %v388, 4294901760
    %v390 = vsub.f32 %v388, %v389
    %v391 = vand.u32 %v390, 4294901760
    %392 = vmatpush1.xpose.msra.mxu0 %v391
    %393 = vmatprep.subr.mxu0 0.0
    %v394 = vand.u32 %v240, 4294901760
    %v395 = vsub.f32 %v240, %v394
    %v396 = vand.u32 %v395, 4294901760
    %v397 = vsub.f32 %v395, %v396
    %v398 = vand.u32 %v397, 4294901760
    %399 = vmatpush1.xpose.msra.mxu0 %v398
    %400 = vmatprep.subr.mxu0 0.0
    %v401 = vand.u32 %v237, 4294901760
    %v402 = vsub.f32 %v237, %v401
    %v403 = vand.u32 %v402, 4294901760
    %v404 = vsub.f32 %v402, %v403
    %v405 = vand.u32 %v404, 4294901760
    %406 = vmatpush1.xpose.msra.mxu0 %v405
    %407 = vmatprep.subr.mxu0 0.0
    %v408 = vand.u32 %v234, 4294901760
    %v409 = vsub.f32 %v234, %v408
    %v410 = vand.u32 %v409, 4294901760
    %v411 = vsub.f32 %v409, %v410
    %v412 = vand.u32 %v411, 4294901760
    %413 = vmatpush1.xpose.msra.mxu0 %v412
    %414 = vmatprep.subr.mxu0 0.0
    %v415 = vand.u32 %v231, 4294901760
    %v416 = vsub.f32 %v231, %v415
    %v417 = vand.u32 %v416, 4294901760
    %v418 = vsub.f32 %v416, %v417
    %v419 = vand.u32 %v418, 4294901760
    %420 = vmatpush1.xpose.msra.mxu0 %v419
    %421 = vmatprep.subr.mxu0 0.0
    %v422 = vand.u32 %v228, 4294901760
    %v423 = vsub.f32 %v228, %v422
    %v424 = vand.u32 %v423, 4294901760
    %v425 = vsub.f32 %v423, %v424
    %v426 = vand.u32 %v425, 4294901760
    %427 = vmatpush1.xpose.msra.mxu0 %v426
    %428 = vmatprep.subr.mxu0 0.0
    %v429 = vand.u32 %v225, 4294901760
    %v430 = vsub.f32 %v225, %v429
    %v431 = vand.u32 %v430, 4294901760
    %v432 = vsub.f32 %v430, %v431
    %v433 = vand.u32 %v432, 4294901760
    %434 = vmatpush1.xpose.msra.mxu0 %v433
    %435 = vmatprep.subr.mxu0 0.0
    %v436 = vand.u32 %v222, 4294901760
    %v437 = vsub.f32 %v222, %v436
    %v438 = vand.u32 %v437, 4294901760
    %v439 = vsub.f32 %v437, %v438
    %v440 = vand.u32 %v439, 4294901760
    %441 = vmatpush1.xpose.msra.mxu0 %v440
    %442 = vmatprep.subr.mxu0 0.0
    %v443 = vand.u32 %v219, 4294901760
    %v444 = vsub.f32 %v219, %v443
    %v445 = vand.u32 %v444, 4294901760
    %v446 = vsub.f32 %v444, %v445
    %v447 = vand.u32 %v446, 4294901760
    %448 = vmatpush1.xpose.msra.mxu0 %v447
    %449 = vmatprep.subr.mxu0 0.0
    %v450 = vand.u32 %v216, 4294901760
    %v451 = vsub.f32 %v216, %v450
    %v452 = vand.u32 %v451, 4294901760
    %v453 = vsub.f32 %v451, %v452
    %v454 = vand.u32 %v453, 4294901760
    %455 = vmatpush1.xpose.msra.mxu0 %v454
    %456 = vmatprep.subr.mxu0 0.0
    %v457 = vand.u32 %v213, 4294901760
    %v458 = vsub.f32 %v213, %v457
    %v459 = vand.u32 %v458, 4294901760
    %v460 = vsub.f32 %v458, %v459
    %v461 = vand.u32 %v460, 4294901760
    %462 = vmatpush1.xpose.msra.mxu0 %v461
    %463 = vmatprep.subr.mxu0 0.0
    %464 = vmatpush2.xpose.msra.mxu0 0.0
    %465 = vmatprep.subr.mxu0 0.0
    %466 = vmatpush2.xpose.msra.mxu0 0.0
    %467 = vmatprep.subr.mxu0 0.0
    %468 = vmatpush2.xpose.msra.mxu0 0.0
    %469 = vmatprep.subr.mxu0 0.0
    %470 = vmatpush2.xpose.msra.mxu0 0.0
    %471 = vmatprep.subr.mxu0 0.0
    %472 = vmatpush2.xpose.msra.mxu0 0.0
    %473 = vmatprep.subr.mxu0 0.0
    %474 = vmatpush2.xpose.msra.mxu0 0.0
    %475 = vmatprep.subr.mxu0 0.0
    %476 = vmatpush2.xpose.msra.mxu0 0.0
    %477 = vmatprep.subr.mxu0 0.0
    %478 = vmatpush2.xpose.msra.mxu0 0.0
    %479 = vmatprep.subr.mxu0 0.0
    %480 = vmatpush2.xpose.msra.mxu0 0.0
    %481 = vmatprep.subr.mxu0 0.0
    %482 = vmatpush2.xpose.msra.mxu0 0.0
    %483 = vmatprep.subr.mxu0 0.0
    %484 = vmatpush2.xpose.msra.mxu0 0.0
    %485 = vmatprep.subr.mxu0 0.0
    %486 = vmatpush2.xpose.msra.mxu0 0.0
    %487 = vmatprep.subr.mxu0 0.0
    %488 = vmatpush2.xpose.msra.mxu0 0.0
    %489 = vmatprep.subr.mxu0 0.0
    %490 = vmatpush2.xpose.msra.mxu0 0.0
    %491 = vmatprep.subr.mxu0 0.0
    %492 = vmatpush2.xpose.msra.mxu0 0.0
    %493 = vmatprep.subr.mxu0 0.0
    %494 = vmatpush2.xpose.msra.mxu0 0.0
    %495 = vmatprep.mubr.f32.mxu0 0.0
    %v496 = vand.u32 %v210, 4294901760
    %497 = vmatmul.mubr.f32.gmra.mxu0 %v496
    %v498 = vpop.f32.mrf.mxu0
    %v499 = vadd.f32 %v348, %v498
    %v500 = vpop.f32.mrf.mxu0
    %501 = vdwg.mxu0
    %502 = vmatprep.subr.mxu0 0.0
    %v503 = vand.u32 %v258, 4294901760
    %v504 = vsub.f32 %v258, %v503
    %505 = vmatpush1.xpose.msra.mxu0 %v504
    %506 = vmatprep.subr.mxu0 0.0
    %v507 = vand.u32 %v255, 4294901760
    %v508 = vsub.f32 %v255, %v507
    %509 = vmatpush1.xpose.msra.mxu0 %v508
    %510 = vmatprep.subr.mxu0 0.0
    %v511 = vand.u32 %v252, 4294901760
    %v512 = vsub.f32 %v252, %v511
    %513 = vmatpush1.xpose.msra.mxu0 %v512
    %514 = vmatprep.subr.mxu0 0.0
    %v515 = vand.u32 %v249, 4294901760
    %v516 = vsub.f32 %v249, %v515
    %517 = vmatpush1.xpose.msra.mxu0 %v516
    %518 = vmatprep.subr.mxu0 0.0
    %v519 = vand.u32 %v246, 4294901760
    %v520 = vsub.f32 %v246, %v519
    %521 = vmatpush1.xpose.msra.mxu0 %v520
    %522 = vmatprep.subr.mxu0 0.0
    %v523 = vand.u32 %v243, 4294901760
    %v524 = vsub.f32 %v243, %v523
    %525 = vmatpush1.xpose.msra.mxu0 %v524
    %526 = vmatprep.subr.mxu0 0.0
    %v527 = vand.u32 %v240, 4294901760
    %v528 = vsub.f32 %v240, %v527
    %529 = vmatpush1.xpose.msra.mxu0 %v528
    %530 = vmatprep.subr.mxu0 0.0
    %v531 = vand.u32 %v237, 4294901760
    %v532 = vsub.f32 %v237, %v531
    %533 = vmatpush1.xpose.msra.mxu0 %v532
    %534 = vmatprep.subr.mxu0 0.0
    %v535 = vand.u32 %v234, 4294901760
    %v536 = vsub.f32 %v234, %v535
    %537 = vmatpush1.xpose.msra.mxu0 %v536
    %538 = vmatprep.subr.mxu0 0.0
    %v539 = vand.u32 %v231, 4294901760
    %v540 = vsub.f32 %v231, %v539
    %541 = vmatpush1.xpose.msra.mxu0 %v540
    %542 = vmatprep.subr.mxu0 0.0
    %v543 = vand.u32 %v228, 4294901760
    %v544 = vsub.f32 %v228, %v543
    %545 = vmatpush1.xpose.msra.mxu0 %v544
    %546 = vmatprep.subr.mxu0 0.0
    %v547 = vand.u32 %v225, 4294901760
    %v548 = vsub.f32 %v225, %v547
    %549 = vmatpush1.xpose.msra.mxu0 %v548
    %550 = vmatprep.subr.mxu0 0.0
    %v551 = vand.u32 %v222, 4294901760
    %v552 = vsub.f32 %v222, %v551
    %553 = vmatpush1.xpose.msra.mxu0 %v552
    %554 = vmatprep.subr.mxu0 0.0
    %v555 = vand.u32 %v219, 4294901760
    %v556 = vsub.f32 %v219, %v555
    %557 = vmatpush1.xpose.msra.mxu0 %v556
    %558 = vmatprep.subr.mxu0 0.0
    %v559 = vand.u32 %v216, 4294901760
    %v560 = vsub.f32 %v216, %v559
    %561 = vmatpush1.xpose.msra.mxu0 %v560
    %562 = vmatprep.subr.mxu0 0.0
    %v563 = vand.u32 %v213, 4294901760
    %v564 = vsub.f32 %v213, %v563
    %565 = vmatpush1.xpose.msra.mxu0 %v564
    %566 = vmatprep.subr.mxu0 0.0
    %567 = vmatpush2.xpose.msra.mxu0 0.0
    %568 = vmatprep.subr.mxu0 0.0
    %569 = vmatpush2.xpose.msra.mxu0 0.0
    %570 = vmatprep.subr.mxu0 0.0
    %571 = vmatpush2.xpose.msra.mxu0 0.0
    %572 = vmatprep.subr.mxu0 0.0
    %573 = vmatpush2.xpose.msra.mxu0 0.0
    %574 = vmatprep.subr.mxu0 0.0
    %575 = vmatpush2.xpose.msra.mxu0 0.0
    %576 = vmatprep.subr.mxu0 0.0
    %577 = vmatpush2.xpose.msra.mxu0 0.0
    %578 = vmatprep.subr.mxu0 0.0
    %579 = vmatpush2.xpose.msra.mxu0 0.0
    %580 = vmatprep.subr.mxu0 0.0
    %581 = vmatpush2.xpose.msra.mxu0 0.0
    %582 = vmatprep.subr.mxu0 0.0
    %583 = vmatpush2.xpose.msra.mxu0 0.0
    %584 = vmatprep.subr.mxu0 0.0
    %585 = vmatpush2.xpose.msra.mxu0 0.0
    %586 = vmatprep.subr.mxu0 0.0
    %587 = vmatpush2.xpose.msra.mxu0 0.0
    %588 = vmatprep.subr.mxu0 0.0
    %589 = vmatpush2.xpose.msra.mxu0 0.0
    %590 = vmatprep.subr.mxu0 0.0
    %591 = vmatpush2.xpose.msra.mxu0 0.0
    %592 = vmatprep.subr.mxu0 0.0
    %593 = vmatpush2.xpose.msra.mxu0 0.0
    %594 = vmatprep.subr.mxu0 0.0
    %595 = vmatpush2.xpose.msra.mxu0 0.0
    %596 = vmatprep.subr.mxu0 0.0
    %597 = vmatpush2.xpose.msra.mxu0 0.0
    %598 = vmatprep.mubr.f32.mxu0 0.0
    %v599 = vand.u32 %v210, 4294901760
    %v600 = vsub.f32 %v210, %v599
    %601 = vmatmul.mubr.f32.gmra.mxu0 %v600
    %v602 = vpop.f32.mrf.mxu0
    %v603 = vadd.f32 %v499, %v602
    %v604 = vpop.f32.mrf.mxu0
    %605 = vdwg.mxu0
    %606 = vmatprep.subr.mxu0 0.0
    %v607 = vand.u32 %v258, 4294901760
    %608 = vmatpush1.xpose.msra.mxu0 %v607
    %609 = vmatprep.subr.mxu0 0.0
    %v610 = vand.u32 %v255, 4294901760
    %611 = vmatpush1.xpose.msra.mxu0 %v610
    %612 = vmatprep.subr.mxu0 0.0
    %v613 = vand.u32 %v252, 4294901760
    %614 = vmatpush1.xpose.msra.mxu0 %v613
    %615 = vmatprep.subr.mxu0 0.0
    %v616 = vand.u32 %v249, 4294901760
    %617 = vmatpush1.xpose.msra.mxu0 %v616
    %618 = vmatprep.subr.mxu0 0.0
    %v619 = vand.u32 %v246, 4294901760
    %620 = vmatpush1.xpose.msra.mxu0 %v619
    %621 = vmatprep.subr.mxu0 0.0
    %v622 = vand.u32 %v243, 4294901760
    %623 = vmatpush1.xpose.msra.mxu0 %v622
    %624 = vmatprep.subr.mxu0 0.0
    %v625 = vand.u32 %v240, 4294901760
    %626 = vmatpush1.xpose.msra.mxu0 %v625
    %627 = vmatprep.subr.mxu0 0.0
    %v628 = vand.u32 %v237, 4294901760
    %629 = vmatpush1.xpose.msra.mxu0 %v628
    %630 = vmatprep.subr.mxu0 0.0
    %v631 = vand.u32 %v234, 4294901760
    %632 = vmatpush1.xpose.msra.mxu0 %v631
    %633 = vmatprep.subr.mxu0 0.0
    %v634 = vand.u32 %v231, 4294901760
    %635 = vmatpush1.xpose.msra.mxu0 %v634
    %636 = vmatprep.subr.mxu0 0.0
    %v637 = vand.u32 %v228, 4294901760
    %638 = vmatpush1.xpose.msra.mxu0 %v637
    %639 = vmatprep.subr.mxu0 0.0
    %v640 = vand.u32 %v225, 4294901760
    %641 = vmatpush1.xpose.msra.mxu0 %v640
    %642 = vmatprep.subr.mxu0 0.0
    %v643 = vand.u32 %v222, 4294901760
    %644 = vmatpush1.xpose.msra.mxu0 %v643
    %645 = vmatprep.subr.mxu0 0.0
    %v646 = vand.u32 %v219, 4294901760
    %647 = vmatpush1.xpose.msra.mxu0 %v646
    %648 = vmatprep.subr.mxu0 0.0
    %v649 = vand.u32 %v216, 4294901760
    %650 = vmatpush1.xpose.msra.mxu0 %v649
    %651 = vmatprep.subr.mxu0 0.0
    %v652 = vand.u32 %v213, 4294901760
    %653 = vmatpush1.xpose.msra.mxu0 %v652
    %654 = vmatprep.subr.mxu0 0.0
    %655 = vmatpush2.xpose.msra.mxu0 0.0
    %656 = vmatprep.subr.mxu0 0.0
    %657 = vmatpush2.xpose.msra.mxu0 0.0
    %658 = vmatprep.subr.mxu0 0.0
    %659 = vmatpush2.xpose.msra.mxu0 0.0
    %660 = vmatprep.subr.mxu0 0.0
    %661 = vmatpush2.xpose.msra.mxu0 0.0
    %662 = vmatprep.subr.mxu0 0.0
    %663 = vmatpush2.xpose.msra.mxu0 0.0
    %664 = vmatprep.subr.mxu0 0.0
    %665 = vmatpush2.xpose.msra.mxu0 0.0
    %666 = vmatprep.subr.mxu0 0.0
    %667 = vmatpush2.xpose.msra.mxu0 0.0
    %668 = vmatprep.subr.mxu0 0.0
    %669 = vmatpush2.xpose.msra.mxu0 0.0
    %670 = vmatprep.subr.mxu0 0.0
    %671 = vmatpush2.xpose.msra.mxu0 0.0
    %672 = vmatprep.subr.mxu0 0.0
    %673 = vmatpush2.xpose.msra.mxu0 0.0
    %674 = vmatprep.subr.mxu0 0.0
    %675 = vmatpush2.xpose.msra.mxu0 0.0
    %676 = vmatprep.subr.mxu0 0.0
    %677 = vmatpush2.xpose.msra.mxu0 0.0
    %678 = vmatprep.subr.mxu0 0.0
    %679 = vmatpush2.xpose.msra.mxu0 0.0
    %680 = vmatprep.subr.mxu0 0.0
    %681 = vmatpush2.xpose.msra.mxu0 0.0
    %682 = vmatprep.subr.mxu0 0.0
    %683 = vmatpush2.xpose.msra.mxu0 0.0
    %684 = vmatprep.subr.mxu0 0.0
    %685 = vmatpush2.xpose.msra.mxu0 0.0
    %686 = vmatprep.mubr.f32.mxu0 0.0
    %v687 = vand.u32 %v210, 4294901760
    %v688 = vsub.f32 %v210, %v687
    %v689 = vand.u32 %v688, 4294901760
    %690 = vmatmul.mubr.f32.gmra.mxu0 %v689
    %v691 = vpop.f32.mrf.mxu0
    %v692 = vadd.f32 %v603, %v691
    %v693 = vpop.f32.mrf.mxu0
    %694 = vdwg.mxu0
    %695 = vmatprep.subr.mxu0 0.0
    %v696 = vand.u32 %v258, 4294901760
    %v697 = vsub.f32 %v258, %v696
    %v698 = vand.u32 %v697, 4294901760
    %699 = vmatpush1.xpose.msra.mxu0 %v698
    %700 = vmatprep.subr.mxu0 0.0
    %v701 = vand.u32 %v255, 4294901760
    %v702 = vsub.f32 %v255, %v701
    %v703 = vand.u32 %v702, 4294901760
    %704 = vmatpush1.xpose.msra.mxu0 %v703
    %705 = vmatprep.subr.mxu0 0.0
    %v706 = vand.u32 %v252, 4294901760
    %v707 = vsub.f32 %v252, %v706
    %v708 = vand.u32 %v707, 4294901760
    %709 = vmatpush1.xpose.msra.mxu0 %v708
    %710 = vmatprep.subr.mxu0 0.0
    %v711 = vand.u32 %v249, 4294901760
    %v712 = vsub.f32 %v249, %v711
    %v713 = vand.u32 %v712, 4294901760
    %714 = vmatpush1.xpose.msra.mxu0 %v713
    %715 = vmatprep.subr.mxu0 0.0
    %v716 = vand.u32 %v246, 4294901760
    %v717 = vsub.f32 %v246, %v716
    %v718 = vand.u32 %v717, 4294901760
    %719 = vmatpush1.xpose.msra.mxu0 %v718
    %720 = vmatprep.subr.mxu0 0.0
    %v721 = vand.u32 %v243, 4294901760
    %v722 = vsub.f32 %v243, %v721
    %v723 = vand.u32 %v722, 4294901760
    %724 = vmatpush1.xpose.msra.mxu0 %v723
    %725 = vmatprep.subr.mxu0 0.0
    %v726 = vand.u32 %v240, 4294901760
    %v727 = vsub.f32 %v240, %v726
    %v728 = vand.u32 %v727, 4294901760
    %729 = vmatpush1.xpose.msra.mxu0 %v728
    %730 = vmatprep.subr.mxu0 0.0
    %v731 = vand.u32 %v237, 4294901760
    %v732 = vsub.f32 %v237, %v731
    %v733 = vand.u32 %v732, 4294901760
    %734 = vmatpush1.xpose.msra.mxu0 %v733
    %735 = vmatprep.subr.mxu0 0.0
    %v736 = vand.u32 %v234, 4294901760
    %v737 = vsub.f32 %v234, %v736
    %v738 = vand.u32 %v737, 4294901760
    %739 = vmatpush1.xpose.msra.mxu0 %v738
    %740 = vmatprep.subr.mxu0 0.0
    %v741 = vand.u32 %v231, 4294901760
    %v742 = vsub.f32 %v231, %v741
    %v743 = vand.u32 %v742, 4294901760
    %744 = vmatpush1.xpose.msra.mxu0 %v743
    %745 = vmatprep.subr.mxu0 0.0
    %v746 = vand.u32 %v228, 4294901760
    %v747 = vsub.f32 %v228, %v746
    %v748 = vand.u32 %v747, 4294901760
    %749 = vmatpush1.xpose.msra.mxu0 %v748
    %750 = vmatprep.subr.mxu0 0.0
    %v751 = vand.u32 %v225, 4294901760
    %v752 = vsub.f32 %v225, %v751
    %v753 = vand.u32 %v752, 4294901760
    %754 = vmatpush1.xpose.msra.mxu0 %v753
    %755 = vmatprep.subr.mxu0 0.0
    %v756 = vand.u32 %v222, 4294901760
    %v757 = vsub.f32 %v222, %v756
    %v758 = vand.u32 %v757, 4294901760
    %759 = vmatpush1.xpose.msra.mxu0 %v758
    %760 = vmatprep.subr.mxu0 0.0
    %v761 = vand.u32 %v219, 4294901760
    %v762 = vsub.f32 %v219, %v761
    %v763 = vand.u32 %v762, 4294901760
    %764 = vmatpush1.xpose.msra.mxu0 %v763
    %765 = vmatprep.subr.mxu0 0.0
    %v766 = vand.u32 %v216, 4294901760
    %v767 = vsub.f32 %v216, %v766
    %v768 = vand.u32 %v767, 4294901760
    %769 = vmatpush1.xpose.msra.mxu0 %v768
    %770 = vmatprep.subr.mxu0 0.0
    %v771 = vand.u32 %v213, 4294901760
    %v772 = vsub.f32 %v213, %v771
    %v773 = vand.u32 %v772, 4294901760
    %774 = vmatpush1.xpose.msra.mxu0 %v773
    %775 = vmatprep.subr.mxu0 0.0
    %776 = vmatpush2.xpose.msra.mxu0 0.0
    %777 = vmatprep.subr.mxu0 0.0
    %778 = vmatpush2.xpose.msra.mxu0 0.0
    %779 = vmatprep.subr.mxu0 0.0
    %780 = vmatpush2.xpose.msra.mxu0 0.0
    %781 = vmatprep.subr.mxu0 0.0
    %782 = vmatpush2.xpose.msra.mxu0 0.0
    %783 = vmatprep.subr.mxu0 0.0
    %784 = vmatpush2.xpose.msra.mxu0 0.0
    %785 = vmatprep.subr.mxu0 0.0
    %786 = vmatpush2.xpose.msra.mxu0 0.0
    %787 = vmatprep.subr.mxu0 0.0
    %788 = vmatpush2.xpose.msra.mxu0 0.0
    %789 = vmatprep.subr.mxu0 0.0
    %790 = vmatpush2.xpose.msra.mxu0 0.0
    %791 = vmatprep.subr.mxu0 0.0
    %792 = vmatpush2.xpose.msra.mxu0 0.0
    %793 = vmatprep.subr.mxu0 0.0
    %794 = vmatpush2.xpose.msra.mxu0 0.0
    %795 = vmatprep.subr.mxu0 0.0
    %796 = vmatpush2.xpose.msra.mxu0 0.0
    %797 = vmatprep.subr.mxu0 0.0
    %798 = vmatpush2.xpose.msra.mxu0 0.0
    %799 = vmatprep.subr.mxu0 0.0
    %800 = vmatpush2.xpose.msra.mxu0 0.0
    %801 = vmatprep.subr.mxu0 0.0
    %802 = vmatpush2.xpose.msra.mxu0 0.0
    %803 = vmatprep.subr.mxu0 0.0
    %804 = vmatpush2.xpose.msra.mxu0 0.0
    %805 = vmatprep.subr.mxu0 0.0
    %806 = vmatpush2.xpose.msra.mxu0 0.0
    %807 = vmatprep.mubr.f32.mxu0 0.0
    %v808 = vand.u32 %v210, 4294901760
    %809 = vmatmul.mubr.f32.gmra.mxu0 %v808
    %v810 = vpop.f32.mrf.mxu0
    %v811 = vadd.f32 %v692, %v810
    %v812 = vpop.f32.mrf.mxu0
    %813 = vdwg.mxu0
    %814 = vmatprep.subr.mxu0 0.0
    %v815 = vand.u32 %v258, 4294901760
    %816 = vmatpush1.xpose.msra.mxu0 %v815
    %817 = vmatprep.subr.mxu0 0.0
    %v818 = vand.u32 %v255, 4294901760
    %819 = vmatpush1.xpose.msra.mxu0 %v818
    %820 = vmatprep.subr.mxu0 0.0
    %v821 = vand.u32 %v252, 4294901760
    %822 = vmatpush1.xpose.msra.mxu0 %v821
    %823 = vmatprep.subr.mxu0 0.0
    %v824 = vand.u32 %v249, 4294901760
    %825 = vmatpush1.xpose.msra.mxu0 %v824
    %826 = vmatprep.subr.mxu0 0.0
    %v827 = vand.u32 %v246, 4294901760
    %828 = vmatpush1.xpose.msra.mxu0 %v827
    %829 = vmatprep.subr.mxu0 0.0
    %v830 = vand.u32 %v243, 4294901760
    %831 = vmatpush1.xpose.msra.mxu0 %v830
    %832 = vmatprep.subr.mxu0 0.0
    %v833 = vand.u32 %v240, 4294901760
    %834 = vmatpush1.xpose.msra.mxu0 %v833
    %835 = vmatprep.subr.mxu0 0.0
    %v836 = vand.u32 %v237, 4294901760
    %837 = vmatpush1.xpose.msra.mxu0 %v836
    %838 = vmatprep.subr.mxu0 0.0
    %v839 = vand.u32 %v234, 4294901760
    %840 = vmatpush1.xpose.msra.mxu0 %v839
    %841 = vmatprep.subr.mxu0 0.0
    %v842 = vand.u32 %v231, 4294901760
    %843 = vmatpush1.xpose.msra.mxu0 %v842
    %844 = vmatprep.subr.mxu0 0.0
    %v845 = vand.u32 %v228, 4294901760
    %846 = vmatpush1.xpose.msra.mxu0 %v845
    %847 = vmatprep.subr.mxu0 0.0
    %v848 = vand.u32 %v225, 4294901760
    %849 = vmatpush1.xpose.msra.mxu0 %v848
    %850 = vmatprep.subr.mxu0 0.0
    %v851 = vand.u32 %v222, 4294901760
    %852 = vmatpush1.xpose.msra.mxu0 %v851
    %853 = vmatprep.subr.mxu0 0.0
    %v854 = vand.u32 %v219, 4294901760
    %855 = vmatpush1.xpose.msra.mxu0 %v854
    %856 = vmatprep.subr.mxu0 0.0
    %v857 = vand.u32 %v216, 4294901760
    %858 = vmatpush1.xpose.msra.mxu0 %v857
    %859 = vmatprep.subr.mxu0 0.0
    %v860 = vand.u32 %v213, 4294901760
    %861 = vmatpush1.xpose.msra.mxu0 %v860
    %862 = vmatprep.subr.mxu0 0.0
    %863 = vmatpush2.xpose.msra.mxu0 0.0
    %864 = vmatprep.subr.mxu0 0.0
    %865 = vmatpush2.xpose.msra.mxu0 0.0
    %866 = vmatprep.subr.mxu0 0.0
    %867 = vmatpush2.xpose.msra.mxu0 0.0
    %868 = vmatprep.subr.mxu0 0.0
    %869 = vmatpush2.xpose.msra.mxu0 0.0
    %870 = vmatprep.subr.mxu0 0.0
    %871 = vmatpush2.xpose.msra.mxu0 0.0
    %872 = vmatprep.subr.mxu0 0.0
    %873 = vmatpush2.xpose.msra.mxu0 0.0
    %874 = vmatprep.subr.mxu0 0.0
    %875 = vmatpush2.xpose.msra.mxu0 0.0
    %876 = vmatprep.subr.mxu0 0.0
    %877 = vmatpush2.xpose.msra.mxu0 0.0
    %878 = vmatprep.subr.mxu0 0.0
    %879 = vmatpush2.xpose.msra.mxu0 0.0
    %880 = vmatprep.subr.mxu0 0.0
    %881 = vmatpush2.xpose.msra.mxu0 0.0
    %882 = vmatprep.subr.mxu0 0.0
    %883 = vmatpush2.xpose.msra.mxu0 0.0
    %884 = vmatprep.subr.mxu0 0.0
    %885 = vmatpush2.xpose.msra.mxu0 0.0
    %886 = vmatprep.subr.mxu0 0.0
    %887 = vmatpush2.xpose.msra.mxu0 0.0
    %888 = vmatprep.subr.mxu0 0.0
    %889 = vmatpush2.xpose.msra.mxu0 0.0
    %890 = vmatprep.subr.mxu0 0.0
    %891 = vmatpush2.xpose.msra.mxu0 0.0
    %892 = vmatprep.subr.mxu0 0.0
    %893 = vmatpush2.xpose.msra.mxu0 0.0
    %894 = vmatprep.mubr.f32.mxu0 0.0
    %v895 = vand.u32 %v210, 4294901760
    %896 = vmatmul.mubr.f32.gmra.mxu0 %v895
    %v897 = vpop.f32.mrf.mxu0
    %v898 = vadd.f32 %v811, %v897
    %v899 = vpop.f32.mrf.mxu0
    %900 = vdwg.mxu0
    %v902 = vsel %vm160, %v10, 0
    %v905 = vsel %vm160, %v11, 0
    %v908 = vsel %vm160, %v12, 0
    %v911 = vsel %vm160, %v13, 0
    %v914 = vsel %vm160, %v14, 0
    %v917 = vsel %vm160, %v15, 0
    %v920 = vsel %vm160, %v16, 0
    %v923 = vsel %vm160, %v17, 0
    %v926 = vsel %vm160, %v18, 0
    %v929 = vsel %vm160, %v19, 0
    %v932 = vsel %vm160, %v20, 0
    %v935 = vsel %vm160, %v21, 0
    %v938 = vsel %vm160, %v22, 0
    %v941 = vsel %vm160, %v23, 0
    %v944 = vsel %vm160, %v24, 0
    %v947 = vsel %vm160, %v25, 0
    %949 = vmatprep.subr.mxu0 0.0
    %v950 = vand.u32 %v947, 4294901760
    %951 = vmatpush1.xpose.msra.mxu0 %v950
    %952 = vmatprep.subr.mxu0 0.0
    %v953 = vand.u32 %v944, 4294901760
    %954 = vmatpush1.xpose.msra.mxu0 %v953
    %955 = vmatprep.subr.mxu0 0.0
    %v956 = vand.u32 %v941, 4294901760
    %957 = vmatpush1.xpose.msra.mxu0 %v956
    %958 = vmatprep.subr.mxu0 0.0
    %v959 = vand.u32 %v938, 4294901760
    %960 = vmatpush1.xpose.msra.mxu0 %v959
    %961 = vmatprep.subr.mxu0 0.0
    %v962 = vand.u32 %v935, 4294901760
    %963 = vmatpush1.xpose.msra.mxu0 %v962
    %964 = vmatprep.subr.mxu0 0.0
    %v965 = vand.u32 %v932, 4294901760
    %966 = vmatpush1.xpose.msra.mxu0 %v965
    %967 = vmatprep.subr.mxu0 0.0
    %v968 = vand.u32 %v929, 4294901760
    %969 = vmatpush1.xpose.msra.mxu0 %v968
    %970 = vmatprep.subr.mxu0 0.0
    %v971 = vand.u32 %v926, 4294901760
    %972 = vmatpush1.xpose.msra.mxu0 %v971
    %973 = vmatprep.subr.mxu0 0.0
    %v974 = vand.u32 %v923, 4294901760
    %975 = vmatpush1.xpose.msra.mxu0 %v974
    %976 = vmatprep.subr.mxu0 0.0
    %v977 = vand.u32 %v920, 4294901760
    %978 = vmatpush1.xpose.msra.mxu0 %v977
    %979 = vmatprep.subr.mxu0 0.0
    %v980 = vand.u32 %v917, 4294901760
    %981 = vmatpush1.xpose.msra.mxu0 %v980
    %982 = vmatprep.subr.mxu0 0.0
    %v983 = vand.u32 %v914, 4294901760
    %984 = vmatpush1.xpose.msra.mxu0 %v983
    %985 = vmatprep.subr.mxu0 0.0
    %v986 = vand.u32 %v911, 4294901760
    %987 = vmatpush1.xpose.msra.mxu0 %v986
    %988 = vmatprep.subr.mxu0 0.0
    %v989 = vand.u32 %v908, 4294901760
    %990 = vmatpush1.xpose.msra.mxu0 %v989
    %991 = vmatprep.subr.mxu0 0.0
    %v992 = vand.u32 %v905, 4294901760
    %993 = vmatpush1.xpose.msra.mxu0 %v992
    %994 = vmatprep.subr.mxu0 0.0
    %v995 = vand.u32 %v902, 4294901760
    %996 = vmatpush1.xpose.msra.mxu0 %v995
    %997 = vmatprep.subr.mxu0 0.0
    %998 = vmatpush2.xpose.msra.mxu0 0.0
    %999 = vmatprep.subr.mxu0 0.0
    %1000 = vmatpush2.xpose.msra.mxu0 0.0
    %1001 = vmatprep.subr.mxu0 0.0
    %1002 = vmatpush2.xpose.msra.mxu0 0.0
    %1003 = vmatprep.subr.mxu0 0.0
    %1004 = vmatpush2.xpose.msra.mxu0 0.0
    %1005 = vmatprep.subr.mxu0 0.0
    %1006 = vmatpush2.xpose.msra.mxu0 0.0
    %1007 = vmatprep.subr.mxu0 0.0
    %1008 = vmatpush2.xpose.msra.mxu0 0.0
    %1009 = vmatprep.subr.mxu0 0.0
    %1010 = vmatpush2.xpose.msra.mxu0 0.0
    %1011 = vmatprep.subr.mxu0 0.0
    %1012 = vmatpush2.xpose.msra.mxu0 0.0
    %1013 = vmatprep.subr.mxu0 0.0
    %1014 = vmatpush2.xpose.msra.mxu0 0.0
    %1015 = vmatprep.subr.mxu0 0.0
    %1016 = vmatpush2.xpose.msra.mxu0 0.0
    %1017 = vmatprep.subr.mxu0 0.0
    %1018 = vmatpush2.xpose.msra.mxu0 0.0
    %1019 = vmatprep.subr.mxu0 0.0
    %1020 = vmatpush2.xpose.msra.mxu0 0.0
    %1021 = vmatprep.subr.mxu0 0.0
    %1022 = vmatpush2.xpose.msra.mxu0 0.0
    %1023 = vmatprep.subr.mxu0 0.0
    %1024 = vmatpush2.xpose.msra.mxu0 0.0
    %1025 = vmatprep.subr.mxu0 0.0
    %1026 = vmatpush2.xpose.msra.mxu0 0.0
    %1027 = vmatprep.subr.mxu0 0.0
    %1028 = vmatpush2.xpose.msra.mxu0 0.0
    %1029 = vmatprep.mubr.f32.mxu0 0.0
    %v1030 = vand.u32 %v902, 4294901760
    %v1031 = vsub.f32 %v902, %v1030
    %v1032 = vand.u32 %v1031, 4294901760
    %v1033 = vsub.f32 %v1031, %v1032
    %v1034 = vand.u32 %v1033, 4294901760
    %1035 = vmatmul.mubr.f32.gmra.mxu0 %v1034
    %v1036 = vpop.f32.mrf.mxu0
    %v1037 = vadd.f32 0.0, %v1036
    %v1038 = vpop.f32.mrf.mxu0
    %1039 = vmatprep.mubr.f32.mxu0 0.0
    %v1040 = vand.u32 %v905, 4294901760
    %v1041 = vsub.f32 %v905, %v1040
    %v1042 = vand.u32 %v1041, 4294901760
    %v1043 = vsub.f32 %v1041, %v1042
    %v1044 = vand.u32 %v1043, 4294901760
    %1045 = vmatmul.mubr.f32.gmra.mxu0 %v1044
    %v1046 = vpop.f32.mrf.mxu0
    %v1047 = vadd.f32 0.0, %v1046
    %v1048 = vpop.f32.mrf.mxu0
    %1049 = vmatprep.mubr.f32.mxu0 0.0
    %v1050 = vand.u32 %v908, 4294901760
    %v1051 = vsub.f32 %v908, %v1050
    %v1052 = vand.u32 %v1051, 4294901760
    %v1053 = vsub.f32 %v1051, %v1052
    %v1054 = vand.u32 %v1053, 4294901760
    %1055 = vmatmul.mubr.f32.gmra.mxu0 %v1054
    %v1056 = vpop.f32.mrf.mxu0
    %v1057 = vadd.f32 0.0, %v1056
    %v1058 = vpop.f32.mrf.mxu0
    %1059 = vmatprep.mubr.f32.mxu0 0.0
    %v1060 = vand.u32 %v911, 4294901760
    %v1061 = vsub.f32 %v911, %v1060
    %v1062 = vand.u32 %v1061, 4294901760
    %v1063 = vsub.f32 %v1061, %v1062
    %v1064 = vand.u32 %v1063, 4294901760
    %1065 = vmatmul.mubr.f32.gmra.mxu0 %v1064
    %v1066 = vpop.f32.mrf.mxu0
    %v1067 = vadd.f32 0.0, %v1066
    %v1068 = vpop.f32.mrf.mxu0
    %1069 = vmatprep.mubr.f32.mxu0 0.0
    %v1070 = vand.u32 %v914, 4294901760
    %v1071 = vsub.f32 %v914, %v1070
    %v1072 = vand.u32 %v1071, 4294901760
    %v1073 = vsub.f32 %v1071, %v1072
    %v1074 = vand.u32 %v1073, 4294901760
    %1075 = vmatmul.mubr.f32.gmra.mxu0 %v1074
    %v1076 = vpop.f32.mrf.mxu0
    %v1077 = vadd.f32 0.0, %v1076
    %v1078 = vpop.f32.mrf.mxu0
    %1079 = vmatprep.mubr.f32.mxu0 0.0
    %v1080 = vand.u32 %v917, 4294901760
    %v1081 = vsub.f32 %v917, %v1080
    %v1082 = vand.u32 %v1081, 4294901760
    %v1083 = vsub.f32 %v1081, %v1082
    %v1084 = vand.u32 %v1083, 4294901760
    %1085 = vmatmul.mubr.f32.gmra.mxu0 %v1084
    %v1086 = vpop.f32.mrf.mxu0
    %v1087 = vadd.f32 0.0, %v1086
    %v1088 = vpop.f32.mrf.mxu0
    %1089 = vmatprep.mubr.f32.mxu0 0.0
    %v1090 = vand.u32 %v920, 4294901760
    %v1091 = vsub.f32 %v920, %v1090
    %v1092 = vand.u32 %v1091, 4294901760
    %v1093 = vsub.f32 %v1091, %v1092
    %v1094 = vand.u32 %v1093, 4294901760
    %1095 = vmatmul.mubr.f32.gmra.mxu0 %v1094
    %v1096 = vpop.f32.mrf.mxu0
    %v1097 = vadd.f32 0.0, %v1096
    %v1098 = vpop.f32.mrf.mxu0
    %1099 = vmatprep.mubr.f32.mxu0 0.0
    %v1100 = vand.u32 %v923, 4294901760
    %v1101 = vsub.f32 %v923, %v1100
    %v1102 = vand.u32 %v1101, 4294901760
    %v1103 = vsub.f32 %v1101, %v1102
    %v1104 = vand.u32 %v1103, 4294901760
    %1105 = vmatmul.mubr.f32.gmra.mxu0 %v1104
    %v1106 = vpop.f32.mrf.mxu0
    %v1107 = vadd.f32 0.0, %v1106
    %v1108 = vpop.f32.mrf.mxu0
    %1109 = vmatprep.mubr.f32.mxu0 0.0
    %v1110 = vand.u32 %v926, 4294901760
    %v1111 = vsub.f32 %v926, %v1110
    %v1112 = vand.u32 %v1111, 4294901760
    %v1113 = vsub.f32 %v1111, %v1112
    %v1114 = vand.u32 %v1113, 4294901760
    %1115 = vmatmul.mubr.f32.gmra.mxu0 %v1114
    %v1116 = vpop.f32.mrf.mxu0
    %v1117 = vadd.f32 0.0, %v1116
    %v1118 = vpop.f32.mrf.mxu0
    %1119 = vmatprep.mubr.f32.mxu0 0.0
    %v1120 = vand.u32 %v929, 4294901760
    %v1121 = vsub.f32 %v929, %v1120
    %v1122 = vand.u32 %v1121, 4294901760
    %v1123 = vsub.f32 %v1121, %v1122
    %v1124 = vand.u32 %v1123, 4294901760
    %1125 = vmatmul.mubr.f32.gmra.mxu0 %v1124
    %v1126 = vpop.f32.mrf.mxu0
    %v1127 = vadd.f32 0.0, %v1126
    %v1128 = vpop.f32.mrf.mxu0
    %1129 = vmatprep.mubr.f32.mxu0 0.0
    %v1130 = vand.u32 %v932, 4294901760
    %v1131 = vsub.f32 %v932, %v1130
    %v1132 = vand.u32 %v1131, 4294901760
    %v1133 = vsub.f32 %v1131, %v1132
    %v1134 = vand.u32 %v1133, 4294901760
    %1135 = vmatmul.mubr.f32.gmra.mxu0 %v1134
    %v1136 = vpop.f32.mrf.mxu0
    %v1137 = vadd.f32 0.0, %v1136
    %v1138 = vpop.f32.mrf.mxu0
    %1139 = vmatprep.mubr.f32.mxu0 0.0
    %v1140 = vand.u32 %v935, 4294901760
    %v1141 = vsub.f32 %v935, %v1140
    %v1142 = vand.u32 %v1141, 4294901760
    %v1143 = vsub.f32 %v1141, %v1142
    %v1144 = vand.u32 %v1143, 4294901760
    %1145 = vmatmul.mubr.f32.gmra.mxu0 %v1144
    %v1146 = vpop.f32.mrf.mxu0
    %v1147 = vadd.f32 0.0, %v1146
    %v1148 = vpop.f32.mrf.mxu0
    %1149 = vmatprep.mubr.f32.mxu0 0.0
    %v1150 = vand.u32 %v938, 4294901760
    %v1151 = vsub.f32 %v938, %v1150
    %v1152 = vand.u32 %v1151, 4294901760
    %v1153 = vsub.f32 %v1151, %v1152
    %v1154 = vand.u32 %v1153, 4294901760
    %1155 = vmatmul.mubr.f32.gmra.mxu0 %v1154
    %v1156 = vpop.f32.mrf.mxu0
    %v1157 = vadd.f32 0.0, %v1156
    %v1158 = vpop.f32.mrf.mxu0
    %1159 = vmatprep.mubr.f32.mxu0 0.0
    %v1160 = vand.u32 %v941, 4294901760
    %v1161 = vsub.f32 %v941, %v1160
    %v1162 = vand.u32 %v1161, 4294901760
    %v1163 = vsub.f32 %v1161, %v1162
    %v1164 = vand.u32 %v1163, 4294901760
    %1165 = vmatmul.mubr.f32.gmra.mxu0 %v1164
    %v1166 = vpop.f32.mrf.mxu0
    %v1167 = vadd.f32 0.0, %v1166
    %v1168 = vpop.f32.mrf.mxu0
    %1169 = vmatprep.mubr.f32.mxu0 0.0
    %v1170 = vand.u32 %v944, 4294901760
    %v1171 = vsub.f32 %v944, %v1170
    %v1172 = vand.u32 %v1171, 4294901760
    %v1173 = vsub.f32 %v1171, %v1172
    %v1174 = vand.u32 %v1173, 4294901760
    %1175 = vmatmul.mubr.f32.gmra.mxu0 %v1174
    %v1176 = vpop.f32.mrf.mxu0
    %v1177 = vadd.f32 0.0, %v1176
    %v1178 = vpop.f32.mrf.mxu0
    %1179 = vmatprep.mubr.f32.mxu0 0.0
    %v1180 = vand.u32 %v947, 4294901760
    %v1181 = vsub.f32 %v947, %v1180
    %v1182 = vand.u32 %v1181, 4294901760
    %v1183 = vsub.f32 %v1181, %v1182
    %v1184 = vand.u32 %v1183, 4294901760
    %1185 = vmatmul.mubr.f32.gmra.mxu0 %v1184
    %v1186 = vpop.f32.mrf.mxu0
    %v1187 = vadd.f32 0.0, %v1186
    %v1188 = vpop.f32.mrf.mxu0
    %1189 = vdwg.mxu0
    %1190 = vmatprep.subr.mxu0 0.0
    %v1191 = vand.u32 %v947, 4294901760
    %v1192 = vsub.f32 %v947, %v1191
    %v1193 = vand.u32 %v1192, 4294901760
    %v1194 = vsub.f32 %v1192, %v1193
    %v1195 = vand.u32 %v1194, 4294901760
    %1196 = vmatpush1.xpose.msra.mxu0 %v1195
    %1197 = vmatprep.subr.mxu0 0.0
    %v1198 = vand.u32 %v944, 4294901760
    %v1199 = vsub.f32 %v944, %v1198
    %v1200 = vand.u32 %v1199, 4294901760
    %v1201 = vsub.f32 %v1199, %v1200
    %v1202 = vand.u32 %v1201, 4294901760
    %1203 = vmatpush1.xpose.msra.mxu0 %v1202
    %1204 = vmatprep.subr.mxu0 0.0
    %v1205 = vand.u32 %v941, 4294901760
    %v1206 = vsub.f32 %v941, %v1205
    %v1207 = vand.u32 %v1206, 4294901760
    %v1208 = vsub.f32 %v1206, %v1207
    %v1209 = vand.u32 %v1208, 4294901760
    %1210 = vmatpush1.xpose.msra.mxu0 %v1209
    %1211 = vmatprep.subr.mxu0 0.0
    %v1212 = vand.u32 %v938, 4294901760
    %v1213 = vsub.f32 %v938, %v1212
    %v1214 = vand.u32 %v1213, 4294901760
    %v1215 = vsub.f32 %v1213, %v1214
    %v1216 = vand.u32 %v1215, 4294901760
    %1217 = vmatpush1.xpose.msra.mxu0 %v1216
    %1218 = vmatprep.subr.mxu0 0.0
    %v1219 = vand.u32 %v935, 4294901760
    %v1220 = vsub.f32 %v935, %v1219
    %v1221 = vand.u32 %v1220, 4294901760
    %v1222 = vsub.f32 %v1220, %v1221
    %v1223 = vand.u32 %v1222, 4294901760
    %1224 = vmatpush1.xpose.msra.mxu0 %v1223
    %1225 = vmatprep.subr.mxu0 0.0
    %v1226 = vand.u32 %v932, 4294901760
    %v1227 = vsub.f32 %v932, %v1226
    %v1228 = vand.u32 %v1227, 4294901760
    %v1229 = vsub.f32 %v1227, %v1228
    %v1230 = vand.u32 %v1229, 4294901760
    %1231 = vmatpush1.xpose.msra.mxu0 %v1230
    %1232 = vmatprep.subr.mxu0 0.0
    %v1233 = vand.u32 %v929, 4294901760
    %v1234 = vsub.f32 %v929, %v1233
    %v1235 = vand.u32 %v1234, 4294901760
    %v1236 = vsub.f32 %v1234, %v1235
    %v1237 = vand.u32 %v1236, 4294901760
    %1238 = vmatpush1.xpose.msra.mxu0 %v1237
    %1239 = vmatprep.subr.mxu0 0.0
    %v1240 = vand.u32 %v926, 4294901760
    %v1241 = vsub.f32 %v926, %v1240
    %v1242 = vand.u32 %v1241, 4294901760
    %v1243 = vsub.f32 %v1241, %v1242
    %v1244 = vand.u32 %v1243, 4294901760
    %1245 = vmatpush1.xpose.msra.mxu0 %v1244
    %1246 = vmatprep.subr.mxu0 0.0
    %v1247 = vand.u32 %v923, 4294901760
    %v1248 = vsub.f32 %v923, %v1247
    %v1249 = vand.u32 %v1248, 4294901760
    %v1250 = vsub.f32 %v1248, %v1249
    %v1251 = vand.u32 %v1250, 4294901760
    %1252 = vmatpush1.xpose.msra.mxu0 %v1251
    %1253 = vmatprep.subr.mxu0 0.0
    %v1254 = vand.u32 %v920, 4294901760
    %v1255 = vsub.f32 %v920, %v1254
    %v1256 = vand.u32 %v1255, 4294901760
    %v1257 = vsub.f32 %v1255, %v1256
    %v1258 = vand.u32 %v1257, 4294901760
    %1259 = vmatpush1.xpose.msra.mxu0 %v1258
    %1260 = vmatprep.subr.mxu0 0.0
    %v1261 = vand.u32 %v917, 4294901760
    %v1262 = vsub.f32 %v917, %v1261
    %v1263 = vand.u32 %v1262, 4294901760
    %v1264 = vsub.f32 %v1262, %v1263
    %v1265 = vand.u32 %v1264, 4294901760
    %1266 = vmatpush1.xpose.msra.mxu0 %v1265
    %1267 = vmatprep.subr.mxu0 0.0
    %v1268 = vand.u32 %v914, 4294901760
    %v1269 = vsub.f32 %v914, %v1268
    %v1270 = vand.u32 %v1269, 4294901760
    %v1271 = vsub.f32 %v1269, %v1270
    %v1272 = vand.u32 %v1271, 4294901760
    %1273 = vmatpush1.xpose.msra.mxu0 %v1272
    %1274 = vmatprep.subr.mxu0 0.0
    %v1275 = vand.u32 %v911, 4294901760
    %v1276 = vsub.f32 %v911, %v1275
    %v1277 = vand.u32 %v1276, 4294901760
    %v1278 = vsub.f32 %v1276, %v1277
    %v1279 = vand.u32 %v1278, 4294901760
    %1280 = vmatpush1.xpose.msra.mxu0 %v1279
    %1281 = vmatprep.subr.mxu0 0.0
    %v1282 = vand.u32 %v908, 4294901760
    %v1283 = vsub.f32 %v908, %v1282
    %v1284 = vand.u32 %v1283, 4294901760
    %v1285 = vsub.f32 %v1283, %v1284
    %v1286 = vand.u32 %v1285, 4294901760
    %1287 = vmatpush1.xpose.msra.mxu0 %v1286
    %1288 = vmatprep.subr.mxu0 0.0
    %v1289 = vand.u32 %v905, 4294901760
    %v1290 = vsub.f32 %v905, %v1289
    %v1291 = vand.u32 %v1290, 4294901760
    %v1292 = vsub.f32 %v1290, %v1291
    %v1293 = vand.u32 %v1292, 4294901760
    %1294 = vmatpush1.xpose.msra.mxu0 %v1293
    %1295 = vmatprep.subr.mxu0 0.0
    %v1296 = vand.u32 %v902, 4294901760
    %v1297 = vsub.f32 %v902, %v1296
    %v1298 = vand.u32 %v1297, 4294901760
    %v1299 = vsub.f32 %v1297, %v1298
    %v1300 = vand.u32 %v1299, 4294901760
    %1301 = vmatpush1.xpose.msra.mxu0 %v1300
    %1302 = vmatprep.subr.mxu0 0.0
    %1303 = vmatpush2.xpose.msra.mxu0 0.0
    %1304 = vmatprep.subr.mxu0 0.0
    %1305 = vmatpush2.xpose.msra.mxu0 0.0
    %1306 = vmatprep.subr.mxu0 0.0
    %1307 = vmatpush2.xpose.msra.mxu0 0.0
    %1308 = vmatprep.subr.mxu0 0.0
    %1309 = vmatpush2.xpose.msra.mxu0 0.0
    %1310 = vmatprep.subr.mxu0 0.0
    %1311 = vmatpush2.xpose.msra.mxu0 0.0
    %1312 = vmatprep.subr.mxu0 0.0
    %1313 = vmatpush2.xpose.msra.mxu0 0.0
    %1314 = vmatprep.subr.mxu0 0.0
    %1315 = vmatpush2.xpose.msra.mxu0 0.0
    %1316 = vmatprep.subr.mxu0 0.0
    %1317 = vmatpush2.xpose.msra.mxu0 0.0
    %1318 = vmatprep.subr.mxu0 0.0
    %1319 = vmatpush2.xpose.msra.mxu0 0.0
    %1320 = vmatprep.subr.mxu0 0.0
    %1321 = vmatpush2.xpose.msra.mxu0 0.0
    %1322 = vmatprep.subr.mxu0 0.0
    %1323 = vmatpush2.xpose.msra.mxu0 0.0
    %1324 = vmatprep.subr.mxu0 0.0
    %1325 = vmatpush2.xpose.msra.mxu0 0.0
    %1326 = vmatprep.subr.mxu0 0.0
    %1327 = vmatpush2.xpose.msra.mxu0 0.0
    %1328 = vmatprep.subr.mxu0 0.0
    %1329 = vmatpush2.xpose.msra.mxu0 0.0
    %1330 = vmatprep.subr.mxu0 0.0
    %1331 = vmatpush2.xpose.msra.mxu0 0.0
    %1332 = vmatprep.subr.mxu0 0.0
    %1333 = vmatpush2.xpose.msra.mxu0 0.0
    %1334 = vmatprep.mubr.f32.mxu0 0.0
    %v1335 = vand.u32 %v902, 4294901760
    %1336 = vmatmul.mubr.f32.gmra.mxu0 %v1335
    %v1337 = vpop.f32.mrf.mxu0
    %v1338 = vadd.f32 %v1037, %v1337
    %v1339 = vpop.f32.mrf.mxu0
    %1340 = vmatprep.mubr.f32.mxu0 0.0
    %v1341 = vand.u32 %v905, 4294901760
    %1342 = vmatmul.mubr.f32.gmra.mxu0 %v1341
    %v1343 = vpop.f32.mrf.mxu0
    %v1344 = vadd.f32 %v1047, %v1343
    %v1345 = vpop.f32.mrf.mxu0
    %1346 = vmatprep.mubr.f32.mxu0 0.0
    %v1347 = vand.u32 %v908, 4294901760
    %1348 = vmatmul.mubr.f32.gmra.mxu0 %v1347
    %v1349 = vpop.f32.mrf.mxu0
    %v1350 = vadd.f32 %v1057, %v1349
    %v1351 = vpop.f32.mrf.mxu0
    %1352 = vmatprep.mubr.f32.mxu0 0.0
    %v1353 = vand.u32 %v911, 4294901760
    %1354 = vmatmul.mubr.f32.gmra.mxu0 %v1353
    %v1355 = vpop.f32.mrf.mxu0
    %v1356 = vadd.f32 %v1067, %v1355
    %v1357 = vpop.f32.mrf.mxu0
    %1358 = vmatprep.mubr.f32.mxu0 0.0
    %v1359 = vand.u32 %v914, 4294901760
    %1360 = vmatmul.mubr.f32.gmra.mxu0 %v1359
    %v1361 = vpop.f32.mrf.mxu0
    %v1362 = vadd.f32 %v1077, %v1361
    %v1363 = vpop.f32.mrf.mxu0
    %1364 = vmatprep.mubr.f32.mxu0 0.0
    %v1365 = vand.u32 %v917, 4294901760
    %1366 = vmatmul.mubr.f32.gmra.mxu0 %v1365
    %v1367 = vpop.f32.mrf.mxu0
    %v1368 = vadd.f32 %v1087, %v1367
    %v1369 = vpop.f32.mrf.mxu0
    %1370 = vmatprep.mubr.f32.mxu0 0.0
    %v1371 = vand.u32 %v920, 4294901760
    %1372 = vmatmul.mubr.f32.gmra.mxu0 %v1371
    %v1373 = vpop.f32.mrf.mxu0
    %v1374 = vadd.f32 %v1097, %v1373
    %v1375 = vpop.f32.mrf.mxu0
    %1376 = vmatprep.mubr.f32.mxu0 0.0
    %v1377 = vand.u32 %v923, 4294901760
    %1378 = vmatmul.mubr.f32.gmra.mxu0 %v1377
    %v1379 = vpop.f32.mrf.mxu0
    %v1380 = vadd.f32 %v1107, %v1379
    %v1381 = vpop.f32.mrf.mxu0
    %1382 = vmatprep.mubr.f32.mxu0 0.0
    %v1383 = vand.u32 %v926, 4294901760
    %1384 = vmatmul.mubr.f32.gmra.mxu0 %v1383
    %v1385 = vpop.f32.mrf.mxu0
    %v1386 = vadd.f32 %v1117, %v1385
    %v1387 = vpop.f32.mrf.mxu0
    %1388 = vmatprep.mubr.f32.mxu0 0.0
    %v1389 = vand.u32 %v929, 4294901760
    %1390 = vmatmul.mubr.f32.gmra.mxu0 %v1389
    %v1391 = vpop.f32.mrf.mxu0
    %v1392 = vadd.f32 %v1127, %v1391
    %v1393 = vpop.f32.mrf.mxu0
    %1394 = vmatprep.mubr.f32.mxu0 0.0
    %v1395 = vand.u32 %v932, 4294901760
    %1396 = vmatmul.mubr.f32.gmra.mxu0 %v1395
    %v1397 = vpop.f32.mrf.mxu0
    %v1398 = vadd.f32 %v1137, %v1397
    %v1399 = vpop.f32.mrf.mxu0
    %1400 = vmatprep.mubr.f32.mxu0 0.0
    %v1401 = vand.u32 %v935, 4294901760
    %1402 = vmatmul.mubr.f32.gmra.mxu0 %v1401
    %v1403 = vpop.f32.mrf.mxu0
    %v1404 = vadd.f32 %v1147, %v1403
    %v1405 = vpop.f32.mrf.mxu0
    %1406 = vmatprep.mubr.f32.mxu0 0.0
    %v1407 = vand.u32 %v938, 4294901760
    %1408 = vmatmul.mubr.f32.gmra.mxu0 %v1407
    %v1409 = vpop.f32.mrf.mxu0
    %v1410 = vadd.f32 %v1157, %v1409
    %v1411 = vpop.f32.mrf.mxu0
    %1412 = vmatprep.mubr.f32.mxu0 0.0
    %v1413 = vand.u32 %v941, 4294901760
    %1414 = vmatmul.mubr.f32.gmra.mxu0 %v1413
    %v1415 = vpop.f32.mrf.mxu0
    %v1416 = vadd.f32 %v1167, %v1415
    %v1417 = vpop.f32.mrf.mxu0
    %1418 = vmatprep.mubr.f32.mxu0 0.0
    %v1419 = vand.u32 %v944, 4294901760
    %1420 = vmatmul.mubr.f32.gmra.mxu0 %v1419
    %v1421 = vpop.f32.mrf.mxu0
    %v1422 = vadd.f32 %v1177, %v1421
    %v1423 = vpop.f32.mrf.mxu0
    %1424 = vmatprep.mubr.f32.mxu0 0.0
    %v1425 = vand.u32 %v947, 4294901760
    %1426 = vmatmul.mubr.f32.gmra.mxu0 %v1425
    %v1427 = vpop.f32.mrf.mxu0
    %v1428 = vadd.f32 %v1187, %v1427
    %v1429 = vpop.f32.mrf.mxu0
    %1430 = vdwg.mxu0
    %1431 = vmatprep.subr.mxu0 0.0
    %v1432 = vand.u32 %v947, 4294901760
    %v1433 = vsub.f32 %v947, %v1432
    %1434 = vmatpush1.xpose.msra.mxu0 %v1433
    %1435 = vmatprep.subr.mxu0 0.0
    %v1436 = vand.u32 %v944, 4294901760
    %v1437 = vsub.f32 %v944, %v1436
    %1438 = vmatpush1.xpose.msra.mxu0 %v1437
    %1439 = vmatprep.subr.mxu0 0.0
    %v1440 = vand.u32 %v941, 4294901760
    %v1441 = vsub.f32 %v941, %v1440
    %1442 = vmatpush1.xpose.msra.mxu0 %v1441
    %1443 = vmatprep.subr.mxu0 0.0
    %v1444 = vand.u32 %v938, 4294901760
    %v1445 = vsub.f32 %v938, %v1444
    %1446 = vmatpush1.xpose.msra.mxu0 %v1445
    %1447 = vmatprep.subr.mxu0 0.0
    %v1448 = vand.u32 %v935, 4294901760
    %v1449 = vsub.f32 %v935, %v1448
    %1450 = vmatpush1.xpose.msra.mxu0 %v1449
    %1451 = vmatprep.subr.mxu0 0.0
    %v1452 = vand.u32 %v932, 4294901760
    %v1453 = vsub.f32 %v932, %v1452
    %1454 = vmatpush1.xpose.msra.mxu0 %v1453
    %1455 = vmatprep.subr.mxu0 0.0
    %v1456 = vand.u32 %v929, 4294901760
    %v1457 = vsub.f32 %v929, %v1456
    %1458 = vmatpush1.xpose.msra.mxu0 %v1457
    %1459 = vmatprep.subr.mxu0 0.0
    %v1460 = vand.u32 %v926, 4294901760
    %v1461 = vsub.f32 %v926, %v1460
    %1462 = vmatpush1.xpose.msra.mxu0 %v1461
    %1463 = vmatprep.subr.mxu0 0.0
    %v1464 = vand.u32 %v923, 4294901760
    %v1465 = vsub.f32 %v923, %v1464
    %1466 = vmatpush1.xpose.msra.mxu0 %v1465
    %1467 = vmatprep.subr.mxu0 0.0
    %v1468 = vand.u32 %v920, 4294901760
    %v1469 = vsub.f32 %v920, %v1468
    %1470 = vmatpush1.xpose.msra.mxu0 %v1469
    %1471 = vmatprep.subr.mxu0 0.0
    %v1472 = vand.u32 %v917, 4294901760
    %v1473 = vsub.f32 %v917, %v1472
    %1474 = vmatpush1.xpose.msra.mxu0 %v1473
    %1475 = vmatprep.subr.mxu0 0.0
    %v1476 = vand.u32 %v914, 4294901760
    %v1477 = vsub.f32 %v914, %v1476
    %1478 = vmatpush1.xpose.msra.mxu0 %v1477
    %1479 = vmatprep.subr.mxu0 0.0
    %v1480 = vand.u32 %v911, 4294901760
    %v1481 = vsub.f32 %v911, %v1480
    %1482 = vmatpush1.xpose.msra.mxu0 %v1481
    %1483 = vmatprep.subr.mxu0 0.0
    %v1484 = vand.u32 %v908, 4294901760
    %v1485 = vsub.f32 %v908, %v1484
    %1486 = vmatpush1.xpose.msra.mxu0 %v1485
    %1487 = vmatprep.subr.mxu0 0.0
    %v1488 = vand.u32 %v905, 4294901760
    %v1489 = vsub.f32 %v905, %v1488
    %1490 = vmatpush1.xpose.msra.mxu0 %v1489
    %1491 = vmatprep.subr.mxu0 0.0
    %v1492 = vand.u32 %v902, 4294901760
    %v1493 = vsub.f32 %v902, %v1492
    %1494 = vmatpush1.xpose.msra.mxu0 %v1493
    %1495 = vmatprep.subr.mxu0 0.0
    %1496 = vmatpush2.xpose.msra.mxu0 0.0
    %1497 = vmatprep.subr.mxu0 0.0
    %1498 = vmatpush2.xpose.msra.mxu0 0.0
    %1499 = vmatprep.subr.mxu0 0.0
    %1500 = vmatpush2.xpose.msra.mxu0 0.0
    %1501 = vmatprep.subr.mxu0 0.0
    %1502 = vmatpush2.xpose.msra.mxu0 0.0
    %1503 = vmatprep.subr.mxu0 0.0
    %1504 = vmatpush2.xpose.msra.mxu0 0.0
    %1505 = vmatprep.subr.mxu0 0.0
    %1506 = vmatpush2.xpose.msra.mxu0 0.0
    %1507 = vmatprep.subr.mxu0 0.0
    %1508 = vmatpush2.xpose.msra.mxu0 0.0
    %1509 = vmatprep.subr.mxu0 0.0
    %1510 = vmatpush2.xpose.msra.mxu0 0.0
    %1511 = vmatprep.subr.mxu0 0.0
    %1512 = vmatpush2.xpose.msra.mxu0 0.0
    %1513 = vmatprep.subr.mxu0 0.0
    %1514 = vmatpush2.xpose.msra.mxu0 0.0
    %1515 = vmatprep.subr.mxu0 0.0
    %1516 = vmatpush2.xpose.msra.mxu0 0.0
    %1517 = vmatprep.subr.mxu0 0.0
    %1518 = vmatpush2.xpose.msra.mxu0 0.0
    %1519 = vmatprep.subr.mxu0 0.0
    %1520 = vmatpush2.xpose.msra.mxu0 0.0
    %1521 = vmatprep.subr.mxu0 0.0
    %1522 = vmatpush2.xpose.msra.mxu0 0.0
    %1523 = vmatprep.subr.mxu0 0.0
    %1524 = vmatpush2.xpose.msra.mxu0 0.0
    %1525 = vmatprep.subr.mxu0 0.0
    %1526 = vmatpush2.xpose.msra.mxu0 0.0
    %1527 = vmatprep.mubr.f32.mxu0 0.0
    %v1528 = vand.u32 %v902, 4294901760
    %v1529 = vsub.f32 %v902, %v1528
    %1530 = vmatmul.mubr.f32.gmra.mxu0 %v1529
    %v1531 = vpop.f32.mrf.mxu0
    %v1532 = vadd.f32 %v1338, %v1531
    %v1533 = vpop.f32.mrf.mxu0
    %1534 = vmatprep.mubr.f32.mxu0 0.0
    %v1535 = vand.u32 %v905, 4294901760
    %v1536 = vsub.f32 %v905, %v1535
    %1537 = vmatmul.mubr.f32.gmra.mxu0 %v1536
    %v1538 = vpop.f32.mrf.mxu0
    %v1539 = vadd.f32 %v1344, %v1538
    %v1540 = vpop.f32.mrf.mxu0
    %1541 = vmatprep.mubr.f32.mxu0 0.0
    %v1542 = vand.u32 %v908, 4294901760
    %v1543 = vsub.f32 %v908, %v1542
    %1544 = vmatmul.mubr.f32.gmra.mxu0 %v1543
    %v1545 = vpop.f32.mrf.mxu0
    %v1546 = vadd.f32 %v1350, %v1545
    %v1547 = vpop.f32.mrf.mxu0
    %1548 = vmatprep.mubr.f32.mxu0 0.0
    %v1549 = vand.u32 %v911, 4294901760
    %v1550 = vsub.f32 %v911, %v1549
    %1551 = vmatmul.mubr.f32.gmra.mxu0 %v1550
    %v1552 = vpop.f32.mrf.mxu0
    %v1553 = vadd.f32 %v1356, %v1552
    %v1554 = vpop.f32.mrf.mxu0
    %1555 = vmatprep.mubr.f32.mxu0 0.0
    %v1556 = vand.u32 %v914, 4294901760
    %v1557 = vsub.f32 %v914, %v1556
    %1558 = vmatmul.mubr.f32.gmra.mxu0 %v1557
    %v1559 = vpop.f32.mrf.mxu0
    %v1560 = vadd.f32 %v1362, %v1559
    %v1561 = vpop.f32.mrf.mxu0
    %1562 = vmatprep.mubr.f32.mxu0 0.0
    %v1563 = vand.u32 %v917, 4294901760
    %v1564 = vsub.f32 %v917, %v1563
    %1565 = vmatmul.mubr.f32.gmra.mxu0 %v1564
    %v1566 = vpop.f32.mrf.mxu0
    %v1567 = vadd.f32 %v1368, %v1566
    %v1568 = vpop.f32.mrf.mxu0
    %1569 = vmatprep.mubr.f32.mxu0 0.0
    %v1570 = vand.u32 %v920, 4294901760
    %v1571 = vsub.f32 %v920, %v1570
    %1572 = vmatmul.mubr.f32.gmra.mxu0 %v1571
    %v1573 = vpop.f32.mrf.mxu0
    %v1574 = vadd.f32 %v1374, %v1573
    %v1575 = vpop.f32.mrf.mxu0
    %1576 = vmatprep.mubr.f32.mxu0 0.0
    %v1577 = vand.u32 %v923, 4294901760
    %v1578 = vsub.f32 %v923, %v1577
    %1579 = vmatmul.mubr.f32.gmra.mxu0 %v1578
    %v1580 = vpop.f32.mrf.mxu0
    %v1581 = vadd.f32 %v1380, %v1580
    %v1582 = vpop.f32.mrf.mxu0
    %1583 = vmatprep.mubr.f32.mxu0 0.0
    %v1584 = vand.u32 %v926, 4294901760
    %v1585 = vsub.f32 %v926, %v1584
    %1586 = vmatmul.mubr.f32.gmra.mxu0 %v1585
    %v1587 = vpop.f32.mrf.mxu0
    %v1588 = vadd.f32 %v1386, %v1587
    %v1589 = vpop.f32.mrf.mxu0
    %1590 = vmatprep.mubr.f32.mxu0 0.0
    %v1591 = vand.u32 %v929, 4294901760
    %v1592 = vsub.f32 %v929, %v1591
    %1593 = vmatmul.mubr.f32.gmra.mxu0 %v1592
    %v1594 = vpop.f32.mrf.mxu0
    %v1595 = vadd.f32 %v1392, %v1594
    %v1596 = vpop.f32.mrf.mxu0
    %1597 = vmatprep.mubr.f32.mxu0 0.0
    %v1598 = vand.u32 %v932, 4294901760
    %v1599 = vsub.f32 %v932, %v1598
    %1600 = vmatmul.mubr.f32.gmra.mxu0 %v1599
    %v1601 = vpop.f32.mrf.mxu0
    %v1602 = vadd.f32 %v1398, %v1601
    %v1603 = vpop.f32.mrf.mxu0
    %1604 = vmatprep.mubr.f32.mxu0 0.0
    %v1605 = vand.u32 %v935, 4294901760
    %v1606 = vsub.f32 %v935, %v1605
    %1607 = vmatmul.mubr.f32.gmra.mxu0 %v1606
    %v1608 = vpop.f32.mrf.mxu0
    %v1609 = vadd.f32 %v1404, %v1608
    %v1610 = vpop.f32.mrf.mxu0
    %1611 = vmatprep.mubr.f32.mxu0 0.0
    %v1612 = vand.u32 %v938, 4294901760
    %v1613 = vsub.f32 %v938, %v1612
    %1614 = vmatmul.mubr.f32.gmra.mxu0 %v1613
    %v1615 = vpop.f32.mrf.mxu0
    %v1616 = vadd.f32 %v1410, %v1615
    %v1617 = vpop.f32.mrf.mxu0
    %1618 = vmatprep.mubr.f32.mxu0 0.0
    %v1619 = vand.u32 %v941, 4294901760
    %v1620 = vsub.f32 %v941, %v1619
    %1621 = vmatmul.mubr.f32.gmra.mxu0 %v1620
    %v1622 = vpop.f32.mrf.mxu0
    %v1623 = vadd.f32 %v1416, %v1622
    %v1624 = vpop.f32.mrf.mxu0
    %1625 = vmatprep.mubr.f32.mxu0 0.0
    %v1626 = vand.u32 %v944, 4294901760
    %v1627 = vsub.f32 %v944, %v1626
    %1628 = vmatmul.mubr.f32.gmra.mxu0 %v1627
    %v1629 = vpop.f32.mrf.mxu0
    %v1630 = vadd.f32 %v1422, %v1629
    %v1631 = vpop.f32.mrf.mxu0
    %1632 = vmatprep.mubr.f32.mxu0 0.0
    %v1633 = vand.u32 %v947, 4294901760
    %v1634 = vsub.f32 %v947, %v1633
    %1635 = vmatmul.mubr.f32.gmra.mxu0 %v1634
    %v1636 = vpop.f32.mrf.mxu0
    %v1637 = vadd.f32 %v1428, %v1636
    %v1638 = vpop.f32.mrf.mxu0
    %1639 = vdwg.mxu0
    %1640 = vmatprep.subr.mxu0 0.0
    %v1641 = vand.u32 %v947, 4294901760
    %1642 = vmatpush1.xpose.msra.mxu0 %v1641
    %1643 = vmatprep.subr.mxu0 0.0
    %v1644 = vand.u32 %v944, 4294901760
    %1645 = vmatpush1.xpose.msra.mxu0 %v1644
    %1646 = vmatprep.subr.mxu0 0.0
    %v1647 = vand.u32 %v941, 4294901760
    %1648 = vmatpush1.xpose.msra.mxu0 %v1647
    %1649 = vmatprep.subr.mxu0 0.0
    %v1650 = vand.u32 %v938, 4294901760
    %1651 = vmatpush1.xpose.msra.mxu0 %v1650
    %1652 = vmatprep.subr.mxu0 0.0
    %v1653 = vand.u32 %v935, 4294901760
    %1654 = vmatpush1.xpose.msra.mxu0 %v1653
    %1655 = vmatprep.subr.mxu0 0.0
    %v1656 = vand.u32 %v932, 4294901760
    %1657 = vmatpush1.xpose.msra.mxu0 %v1656
    %1658 = vmatprep.subr.mxu0 0.0
    %v1659 = vand.u32 %v929, 4294901760
    %1660 = vmatpush1.xpose.msra.mxu0 %v1659
    %1661 = vmatprep.subr.mxu0 0.0
    %v1662 = vand.u32 %v926, 4294901760
    %1663 = vmatpush1.xpose.msra.mxu0 %v1662
    %1664 = vmatprep.subr.mxu0 0.0
    %v1665 = vand.u32 %v923, 4294901760
    %1666 = vmatpush1.xpose.msra.mxu0 %v1665
    %1667 = vmatprep.subr.mxu0 0.0
    %v1668 = vand.u32 %v920, 4294901760
    %1669 = vmatpush1.xpose.msra.mxu0 %v1668
    %1670 = vmatprep.subr.mxu0 0.0
    %v1671 = vand.u32 %v917, 4294901760
    %1672 = vmatpush1.xpose.msra.mxu0 %v1671
    %1673 = vmatprep.subr.mxu0 0.0
    %v1674 = vand.u32 %v914, 4294901760
    %1675 = vmatpush1.xpose.msra.mxu0 %v1674
    %1676 = vmatprep.subr.mxu0 0.0
    %v1677 = vand.u32 %v911, 4294901760
    %1678 = vmatpush1.xpose.msra.mxu0 %v1677
    %1679 = vmatprep.subr.mxu0 0.0
    %v1680 = vand.u32 %v908, 4294901760
    %1681 = vmatpush1.xpose.msra.mxu0 %v1680
    %1682 = vmatprep.subr.mxu0 0.0
    %v1683 = vand.u32 %v905, 4294901760
    %1684 = vmatpush1.xpose.msra.mxu0 %v1683
    %1685 = vmatprep.subr.mxu0 0.0
    %v1686 = vand.u32 %v902, 4294901760
    %1687 = vmatpush1.xpose.msra.mxu0 %v1686
    %1688 = vmatprep.subr.mxu0 0.0
    %1689 = vmatpush2.xpose.msra.mxu0 0.0
    %1690 = vmatprep.subr.mxu0 0.0
    %1691 = vmatpush2.xpose.msra.mxu0 0.0
    %1692 = vmatprep.subr.mxu0 0.0
    %1693 = vmatpush2.xpose.msra.mxu0 0.0
    %1694 = vmatprep.subr.mxu0 0.0
    %1695 = vmatpush2.xpose.msra.mxu0 0.0
    %1696 = vmatprep.subr.mxu0 0.0
    %1697 = vmatpush2.xpose.msra.mxu0 0.0
    %1698 = vmatprep.subr.mxu0 0.0
    %1699 = vmatpush2.xpose.msra.mxu0 0.0
    %1700 = vmatprep.subr.mxu0 0.0
    %1701 = vmatpush2.xpose.msra.mxu0 0.0
    %1702 = vmatprep.subr.mxu0 0.0
    %1703 = vmatpush2.xpose.msra.mxu0 0.0
    %1704 = vmatprep.subr.mxu0 0.0
    %1705 = vmatpush2.xpose.msra.mxu0 0.0
    %1706 = vmatprep.subr.mxu0 0.0
    %1707 = vmatpush2.xpose.msra.mxu0 0.0
    %1708 = vmatprep.subr.mxu0 0.0
    %1709 = vmatpush2.xpose.msra.mxu0 0.0
    %1710 = vmatprep.subr.mxu0 0.0
    %1711 = vmatpush2.xpose.msra.mxu0 0.0
    %1712 = vmatprep.subr.mxu0 0.0
    %1713 = vmatpush2.xpose.msra.mxu0 0.0
    %1714 = vmatprep.subr.mxu0 0.0
    %1715 = vmatpush2.xpose.msra.mxu0 0.0
    %1716 = vmatprep.subr.mxu0 0.0
    %1717 = vmatpush2.xpose.msra.mxu0 0.0
    %1718 = vmatprep.subr.mxu0 0.0
    %1719 = vmatpush2.xpose.msra.mxu0 0.0
    %1720 = vmatprep.mubr.f32.mxu0 0.0
    %v1721 = vand.u32 %v902, 4294901760
    %v1722 = vsub.f32 %v902, %v1721
    %v1723 = vand.u32 %v1722, 4294901760
    %1724 = vmatmul.mubr.f32.gmra.mxu0 %v1723
    %v1725 = vpop.f32.mrf.mxu0
    %v1726 = vadd.f32 %v1532, %v1725
    %v1727 = vpop.f32.mrf.mxu0
    %1728 = vmatprep.mubr.f32.mxu0 0.0
    %v1729 = vand.u32 %v905, 4294901760
    %v1730 = vsub.f32 %v905, %v1729
    %v1731 = vand.u32 %v1730, 4294901760
    %1732 = vmatmul.mubr.f32.gmra.mxu0 %v1731
    %v1733 = vpop.f32.mrf.mxu0
    %v1734 = vadd.f32 %v1539, %v1733
    %v1735 = vpop.f32.mrf.mxu0
    %1736 = vmatprep.mubr.f32.mxu0 0.0
    %v1737 = vand.u32 %v908, 4294901760
    %v1738 = vsub.f32 %v908, %v1737
    %v1739 = vand.u32 %v1738, 4294901760
    %1740 = vmatmul.mubr.f32.gmra.mxu0 %v1739
    %v1741 = vpop.f32.mrf.mxu0
    %v1742 = vadd.f32 %v1546, %v1741
    %v1743 = vpop.f32.mrf.mxu0
    %1744 = vmatprep.mubr.f32.mxu0 0.0
    %v1745 = vand.u32 %v911, 4294901760
    %v1746 = vsub.f32 %v911, %v1745
    %v1747 = vand.u32 %v1746, 4294901760
    %1748 = vmatmul.mubr.f32.gmra.mxu0 %v1747
    %v1749 = vpop.f32.mrf.mxu0
    %v1750 = vadd.f32 %v1553, %v1749
    %v1751 = vpop.f32.mrf.mxu0
    %1752 = vmatprep.mubr.f32.mxu0 0.0
    %v1753 = vand.u32 %v914, 4294901760
    %v1754 = vsub.f32 %v914, %v1753
    %v1755 = vand.u32 %v1754, 4294901760
    %1756 = vmatmul.mubr.f32.gmra.mxu0 %v1755
    %v1757 = vpop.f32.mrf.mxu0
    %v1758 = vadd.f32 %v1560, %v1757
    %v1759 = vpop.f32.mrf.mxu0
    %1760 = vmatprep.mubr.f32.mxu0 0.0
    %v1761 = vand.u32 %v917, 4294901760
    %v1762 = vsub.f32 %v917, %v1761
    %v1763 = vand.u32 %v1762, 4294901760
    %1764 = vmatmul.mubr.f32.gmra.mxu0 %v1763
    %v1765 = vpop.f32.mrf.mxu0
    %v1766 = vadd.f32 %v1567, %v1765
    %v1767 = vpop.f32.mrf.mxu0
    %1768 = vmatprep.mubr.f32.mxu0 0.0
    %v1769 = vand.u32 %v920, 4294901760
    %v1770 = vsub.f32 %v920, %v1769
    %v1771 = vand.u32 %v1770, 4294901760
    %1772 = vmatmul.mubr.f32.gmra.mxu0 %v1771
    %v1773 = vpop.f32.mrf.mxu0
    %v1774 = vadd.f32 %v1574, %v1773
    %v1775 = vpop.f32.mrf.mxu0
    %1776 = vmatprep.mubr.f32.mxu0 0.0
    %v1777 = vand.u32 %v923, 4294901760
    %v1778 = vsub.f32 %v923, %v1777
    %v1779 = vand.u32 %v1778, 4294901760
    %1780 = vmatmul.mubr.f32.gmra.mxu0 %v1779
    %v1781 = vpop.f32.mrf.mxu0
    %v1782 = vadd.f32 %v1581, %v1781
    %v1783 = vpop.f32.mrf.mxu0
    %1784 = vmatprep.mubr.f32.mxu0 0.0
    %v1785 = vand.u32 %v926, 4294901760
    %v1786 = vsub.f32 %v926, %v1785
    %v1787 = vand.u32 %v1786, 4294901760
    %1788 = vmatmul.mubr.f32.gmra.mxu0 %v1787
    %v1789 = vpop.f32.mrf.mxu0
    %v1790 = vadd.f32 %v1588, %v1789
    %v1791 = vpop.f32.mrf.mxu0
    %1792 = vmatprep.mubr.f32.mxu0 0.0
    %v1793 = vand.u32 %v929, 4294901760
    %v1794 = vsub.f32 %v929, %v1793
    %v1795 = vand.u32 %v1794, 4294901760
    %1796 = vmatmul.mubr.f32.gmra.mxu0 %v1795
    %v1797 = vpop.f32.mrf.mxu0
    %v1798 = vadd.f32 %v1595, %v1797
    %v1799 = vpop.f32.mrf.mxu0
    %1800 = vmatprep.mubr.f32.mxu0 0.0
    %v1801 = vand.u32 %v932, 4294901760
    %v1802 = vsub.f32 %v932, %v1801
    %v1803 = vand.u32 %v1802, 4294901760
    %1804 = vmatmul.mubr.f32.gmra.mxu0 %v1803
    %v1805 = vpop.f32.mrf.mxu0
    %v1806 = vadd.f32 %v1602, %v1805
    %v1807 = vpop.f32.mrf.mxu0
    %1808 = vmatprep.mubr.f32.mxu0 0.0
    %v1809 = vand.u32 %v935, 4294901760
    %v1810 = vsub.f32 %v935, %v1809
    %v1811 = vand.u32 %v1810, 4294901760
    %1812 = vmatmul.mubr.f32.gmra.mxu0 %v1811
    %v1813 = vpop.f32.mrf.mxu0
    %v1814 = vadd.f32 %v1609, %v1813
    %v1815 = vpop.f32.mrf.mxu0
    %1816 = vmatprep.mubr.f32.mxu0 0.0
    %v1817 = vand.u32 %v938, 4294901760
    %v1818 = vsub.f32 %v938, %v1817
    %v1819 = vand.u32 %v1818, 4294901760
    %1820 = vmatmul.mubr.f32.gmra.mxu0 %v1819
    %v1821 = vpop.f32.mrf.mxu0
    %v1822 = vadd.f32 %v1616, %v1821
    %v1823 = vpop.f32.mrf.mxu0
    %1824 = vmatprep.mubr.f32.mxu0 0.0
    %v1825 = vand.u32 %v941, 4294901760
    %v1826 = vsub.f32 %v941, %v1825
    %v1827 = vand.u32 %v1826, 4294901760
    %1828 = vmatmul.mubr.f32.gmra.mxu0 %v1827
    %v1829 = vpop.f32.mrf.mxu0
    %v1830 = vadd.f32 %v1623, %v1829
    %v1831 = vpop.f32.mrf.mxu0
    %1832 = vmatprep.mubr.f32.mxu0 0.0
    %v1833 = vand.u32 %v944, 4294901760
    %v1834 = vsub.f32 %v944, %v1833
    %v1835 = vand.u32 %v1834, 4294901760
    %1836 = vmatmul.mubr.f32.gmra.mxu0 %v1835
    %v1837 = vpop.f32.mrf.mxu0
    %v1838 = vadd.f32 %v1630, %v1837
    %v1839 = vpop.f32.mrf.mxu0
    %1840 = vmatprep.mubr.f32.mxu0 0.0
    %v1841 = vand.u32 %v947, 4294901760
    %v1842 = vsub.f32 %v947, %v1841
    %v1843 = vand.u32 %v1842, 4294901760
    %1844 = vmatmul.mubr.f32.gmra.mxu0 %v1843
    %v1845 = vpop.f32.mrf.mxu0
    %v1846 = vadd.f32 %v1637, %v1845
    %v1847 = vpop.f32.mrf.mxu0
    %1848 = vdwg.mxu0
    %1849 = vmatprep.subr.mxu0 0.0
    %v1850 = vand.u32 %v947, 4294901760
    %v1851 = vsub.f32 %v947, %v1850
    %v1852 = vand.u32 %v1851, 4294901760
    %1853 = vmatpush1.xpose.msra.mxu0 %v1852
    %1854 = vmatprep.subr.mxu0 0.0
    %v1855 = vand.u32 %v944, 4294901760
    %v1856 = vsub.f32 %v944, %v1855
    %v1857 = vand.u32 %v1856, 4294901760
    %1858 = vmatpush1.xpose.msra.mxu0 %v1857
    %1859 = vmatprep.subr.mxu0 0.0
    %v1860 = vand.u32 %v941, 4294901760
    %v1861 = vsub.f32 %v941, %v1860
    %v1862 = vand.u32 %v1861, 4294901760
    %1863 = vmatpush1.xpose.msra.mxu0 %v1862
    %1864 = vmatprep.subr.mxu0 0.0
    %v1865 = vand.u32 %v938, 4294901760
    %v1866 = vsub.f32 %v938, %v1865
    %v1867 = vand.u32 %v1866, 4294901760
    %1868 = vmatpush1.xpose.msra.mxu0 %v1867
    %1869 = vmatprep.subr.mxu0 0.0
    %v1870 = vand.u32 %v935, 4294901760
    %v1871 = vsub.f32 %v935, %v1870
    %v1872 = vand.u32 %v1871, 4294901760
    %1873 = vmatpush1.xpose.msra.mxu0 %v1872
    %1874 = vmatprep.subr.mxu0 0.0
    %v1875 = vand.u32 %v932, 4294901760
    %v1876 = vsub.f32 %v932, %v1875
    %v1877 = vand.u32 %v1876, 4294901760
    %1878 = vmatpush1.xpose.msra.mxu0 %v1877
    %1879 = vmatprep.subr.mxu0 0.0
    %v1880 = vand.u32 %v929, 4294901760
    %v1881 = vsub.f32 %v929, %v1880
    %v1882 = vand.u32 %v1881, 4294901760
    %1883 = vmatpush1.xpose.msra.mxu0 %v1882
    %1884 = vmatprep.subr.mxu0 0.0
    %v1885 = vand.u32 %v926, 4294901760
    %v1886 = vsub.f32 %v926, %v1885
    %v1887 = vand.u32 %v1886, 4294901760
    %1888 = vmatpush1.xpose.msra.mxu0 %v1887
    %1889 = vmatprep.subr.mxu0 0.0
    %v1890 = vand.u32 %v923, 4294901760
    %v1891 = vsub.f32 %v923, %v1890
    %v1892 = vand.u32 %v1891, 4294901760
    %1893 = vmatpush1.xpose.msra.mxu0 %v1892
    %1894 = vmatprep.subr.mxu0 0.0
    %v1895 = vand.u32 %v920, 4294901760
    %v1896 = vsub.f32 %v920, %v1895
    %v1897 = vand.u32 %v1896, 4294901760
    %1898 = vmatpush1.xpose.msra.mxu0 %v1897
    %1899 = vmatprep.subr.mxu0 0.0
    %v1900 = vand.u32 %v917, 4294901760
    %v1901 = vsub.f32 %v917, %v1900
    %v1902 = vand.u32 %v1901, 4294901760
    %1903 = vmatpush1.xpose.msra.mxu0 %v1902
    %1904 = vmatprep.subr.mxu0 0.0
    %v1905 = vand.u32 %v914, 4294901760
    %v1906 = vsub.f32 %v914, %v1905
    %v1907 = vand.u32 %v1906, 4294901760
    %1908 = vmatpush1.xpose.msra.mxu0 %v1907
    %1909 = vmatprep.subr.mxu0 0.0
    %v1910 = vand.u32 %v911, 4294901760
    %v1911 = vsub.f32 %v911, %v1910
    %v1912 = vand.u32 %v1911, 4294901760
    %1913 = vmatpush1.xpose.msra.mxu0 %v1912
    %1914 = vmatprep.subr.mxu0 0.0
    %v1915 = vand.u32 %v908, 4294901760
    %v1916 = vsub.f32 %v908, %v1915
    %v1917 = vand.u32 %v1916, 4294901760
    %1918 = vmatpush1.xpose.msra.mxu0 %v1917
    %1919 = vmatprep.subr.mxu0 0.0
    %v1920 = vand.u32 %v905, 4294901760
    %v1921 = vsub.f32 %v905, %v1920
    %v1922 = vand.u32 %v1921, 4294901760
    %1923 = vmatpush1.xpose.msra.mxu0 %v1922
    %1924 = vmatprep.subr.mxu0 0.0
    %v1925 = vand.u32 %v902, 4294901760
    %v1926 = vsub.f32 %v902, %v1925
    %v1927 = vand.u32 %v1926, 4294901760
    %1928 = vmatpush1.xpose.msra.mxu0 %v1927
    %1929 = vmatprep.subr.mxu0 0.0
    %1930 = vmatpush2.xpose.msra.mxu0 0.0
    %1931 = vmatprep.subr.mxu0 0.0
    %1932 = vmatpush2.xpose.msra.mxu0 0.0
    %1933 = vmatprep.subr.mxu0 0.0
    %1934 = vmatpush2.xpose.msra.mxu0 0.0
    %1935 = vmatprep.subr.mxu0 0.0
    %1936 = vmatpush2.xpose.msra.mxu0 0.0
    %1937 = vmatprep.subr.mxu0 0.0
    %1938 = vmatpush2.xpose.msra.mxu0 0.0
    %1939 = vmatprep.subr.mxu0 0.0
    %1940 = vmatpush2.xpose.msra.mxu0 0.0
    %1941 = vmatprep.subr.mxu0 0.0
    %1942 = vmatpush2.xpose.msra.mxu0 0.0
    %1943 = vmatprep.subr.mxu0 0.0
    %1944 = vmatpush2.xpose.msra.mxu0 0.0
    %1945 = vmatprep.subr.mxu0 0.0
    %1946 = vmatpush2.xpose.msra.mxu0 0.0
    %1947 = vmatprep.subr.mxu0 0.0
    %1948 = vmatpush2.xpose.msra.mxu0 0.0
    %1949 = vmatprep.subr.mxu0 0.0
    %1950 = vmatpush2.xpose.msra.mxu0 0.0
    %1951 = vmatprep.subr.mxu0 0.0
    %1952 = vmatpush2.xpose.msra.mxu0 0.0
    %1953 = vmatprep.subr.mxu0 0.0
    %1954 = vmatpush2.xpose.msra.mxu0 0.0
    %1955 = vmatprep.subr.mxu0 0.0
    %1956 = vmatpush2.xpose.msra.mxu0 0.0
    %1957 = vmatprep.subr.mxu0 0.0
    %1958 = vmatpush2.xpose.msra.mxu0 0.0
    %1959 = vmatprep.subr.mxu0 0.0
    %1960 = vmatpush2.xpose.msra.mxu0 0.0
    %1961 = vmatprep.mubr.f32.mxu0 0.0
    %v1962 = vand.u32 %v902, 4294901760
    %1963 = vmatmul.mubr.f32.gmra.mxu0 %v1962
    %v1964 = vpop.f32.mrf.mxu0
    %v1965 = vadd.f32 %v1726, %v1964
    %v1966 = vpop.f32.mrf.mxu0
    %1967 = vmatprep.mubr.f32.mxu0 0.0
    %v1968 = vand.u32 %v905, 4294901760
    %1969 = vmatmul.mubr.f32.gmra.mxu0 %v1968
    %v1970 = vpop.f32.mrf.mxu0
    %v1971 = vadd.f32 %v1734, %v1970
    %v1972 = vpop.f32.mrf.mxu0
    %1973 = vmatprep.mubr.f32.mxu0 0.0
    %v1974 = vand.u32 %v908, 4294901760
    %1975 = vmatmul.mubr.f32.gmra.mxu0 %v1974
    %v1976 = vpop.f32.mrf.mxu0
    %v1977 = vadd.f32 %v1742, %v1976
    %v1978 = vpop.f32.mrf.mxu0
    %1979 = vmatprep.mubr.f32.mxu0 0.0
    %v1980 = vand.u32 %v911, 4294901760
    %1981 = vmatmul.mubr.f32.gmra.mxu0 %v1980
    %v1982 = vpop.f32.mrf.mxu0
    %v1983 = vadd.f32 %v1750, %v1982
    %v1984 = vpop.f32.mrf.mxu0
    %1985 = vmatprep.mubr.f32.mxu0 0.0
    %v1986 = vand.u32 %v914, 4294901760
    %1987 = vmatmul.mubr.f32.gmra.mxu0 %v1986
    %v1988 = vpop.f32.mrf.mxu0
    %v1989 = vadd.f32 %v1758, %v1988
    %v1990 = vpop.f32.mrf.mxu0
    %1991 = vmatprep.mubr.f32.mxu0 0.0
    %v1992 = vand.u32 %v917, 4294901760
    %1993 = vmatmul.mubr.f32.gmra.mxu0 %v1992
    %v1994 = vpop.f32.mrf.mxu0
    %v1995 = vadd.f32 %v1766, %v1994
    %v1996 = vpop.f32.mrf.mxu0
    %1997 = vmatprep.mubr.f32.mxu0 0.0
    %v1998 = vand.u32 %v920, 4294901760
    %1999 = vmatmul.mubr.f32.gmra.mxu0 %v1998
    %v2000 = vpop.f32.mrf.mxu0
    %v2001 = vadd.f32 %v1774, %v2000
    %v2002 = vpop.f32.mrf.mxu0
    %2003 = vmatprep.mubr.f32.mxu0 0.0
    %v2004 = vand.u32 %v923, 4294901760
    %2005 = vmatmul.mubr.f32.gmra.mxu0 %v2004
    %v2006 = vpop.f32.mrf.mxu0
    %v2007 = vadd.f32 %v1782, %v2006
    %v2008 = vpop.f32.mrf.mxu0
    %2009 = vmatprep.mubr.f32.mxu0 0.0
    %v2010 = vand.u32 %v926, 4294901760
    %2011 = vmatmul.mubr.f32.gmra.mxu0 %v2010
    %v2012 = vpop.f32.mrf.mxu0
    %v2013 = vadd.f32 %v1790, %v2012
    %v2014 = vpop.f32.mrf.mxu0
    %2015 = vmatprep.mubr.f32.mxu0 0.0
    %v2016 = vand.u32 %v929, 4294901760
    %2017 = vmatmul.mubr.f32.gmra.mxu0 %v2016
    %v2018 = vpop.f32.mrf.mxu0
    %v2019 = vadd.f32 %v1798, %v2018
    %v2020 = vpop.f32.mrf.mxu0
    %2021 = vmatprep.mubr.f32.mxu0 0.0
    %v2022 = vand.u32 %v932, 4294901760
    %2023 = vmatmul.mubr.f32.gmra.mxu0 %v2022
    %v2024 = vpop.f32.mrf.mxu0
    %v2025 = vadd.f32 %v1806, %v2024
    %v2026 = vpop.f32.mrf.mxu0
    %2027 = vmatprep.mubr.f32.mxu0 0.0
    %v2028 = vand.u32 %v935, 4294901760
    %2029 = vmatmul.mubr.f32.gmra.mxu0 %v2028
    %v2030 = vpop.f32.mrf.mxu0
    %v2031 = vadd.f32 %v1814, %v2030
    %v2032 = vpop.f32.mrf.mxu0
    %2033 = vmatprep.mubr.f32.mxu0 0.0
    %v2034 = vand.u32 %v938, 4294901760
    %2035 = vmatmul.mubr.f32.gmra.mxu0 %v2034
    %v2036 = vpop.f32.mrf.mxu0
    %v2037 = vadd.f32 %v1822, %v2036
    %v2038 = vpop.f32.mrf.mxu0
    %2039 = vmatprep.mubr.f32.mxu0 0.0
    %v2040 = vand.u32 %v941, 4294901760
    %2041 = vmatmul.mubr.f32.gmra.mxu0 %v2040
    %v2042 = vpop.f32.mrf.mxu0
    %v2043 = vadd.f32 %v1830, %v2042
    %v2044 = vpop.f32.mrf.mxu0
    %2045 = vmatprep.mubr.f32.mxu0 0.0
    %v2046 = vand.u32 %v944, 4294901760
    %2047 = vmatmul.mubr.f32.gmra.mxu0 %v2046
    %v2048 = vpop.f32.mrf.mxu0
    %v2049 = vadd.f32 %v1838, %v2048
    %v2050 = vpop.f32.mrf.mxu0
    %2051 = vmatprep.mubr.f32.mxu0 0.0
    %v2052 = vand.u32 %v947, 4294901760
    %2053 = vmatmul.mubr.f32.gmra.mxu0 %v2052
    %v2054 = vpop.f32.mrf.mxu0
    %v2055 = vadd.f32 %v1846, %v2054
    %v2056 = vpop.f32.mrf.mxu0
    %2057 = vdwg.mxu0
    %2058 = vmatprep.subr.mxu0 0.0
    %v2059 = vand.u32 %v947, 4294901760
    %2060 = vmatpush1.xpose.msra.mxu0 %v2059
    %2061 = vmatprep.subr.mxu0 0.0
    %v2062 = vand.u32 %v944, 4294901760
    %2063 = vmatpush1.xpose.msra.mxu0 %v2062
    %2064 = vmatprep.subr.mxu0 0.0
    %v2065 = vand.u32 %v941, 4294901760
    %2066 = vmatpush1.xpose.msra.mxu0 %v2065
    %2067 = vmatprep.subr.mxu0 0.0
    %v2068 = vand.u32 %v938, 4294901760
    %2069 = vmatpush1.xpose.msra.mxu0 %v2068
    %2070 = vmatprep.subr.mxu0 0.0
    %v2071 = vand.u32 %v935, 4294901760
    %2072 = vmatpush1.xpose.msra.mxu0 %v2071
    %2073 = vmatprep.subr.mxu0 0.0
    %v2074 = vand.u32 %v932, 4294901760
    %2075 = vmatpush1.xpose.msra.mxu0 %v2074
    %2076 = vmatprep.subr.mxu0 0.0
    %v2077 = vand.u32 %v929, 4294901760
    %2078 = vmatpush1.xpose.msra.mxu0 %v2077
    %2079 = vmatprep.subr.mxu0 0.0
    %v2080 = vand.u32 %v926, 4294901760
    %2081 = vmatpush1.xpose.msra.mxu0 %v2080
    %2082 = vmatprep.subr.mxu0 0.0
    %v2083 = vand.u32 %v923, 4294901760
    %2084 = vmatpush1.xpose.msra.mxu0 %v2083
    %2085 = vmatprep.subr.mxu0 0.0
    %v2086 = vand.u32 %v920, 4294901760
    %2087 = vmatpush1.xpose.msra.mxu0 %v2086
    %2088 = vmatprep.subr.mxu0 0.0
    %v2089 = vand.u32 %v917, 4294901760
    %2090 = vmatpush1.xpose.msra.mxu0 %v2089
    %2091 = vmatprep.subr.mxu0 0.0
    %v2092 = vand.u32 %v914, 4294901760
    %2093 = vmatpush1.xpose.msra.mxu0 %v2092
    %2094 = vmatprep.subr.mxu0 0.0
    %v2095 = vand.u32 %v911, 4294901760
    %2096 = vmatpush1.xpose.msra.mxu0 %v2095
    %2097 = vmatprep.subr.mxu0 0.0
    %v2098 = vand.u32 %v908, 4294901760
    %2099 = vmatpush1.xpose.msra.mxu0 %v2098
    %2100 = vmatprep.subr.mxu0 0.0
    %v2101 = vand.u32 %v905, 4294901760
    %2102 = vmatpush1.xpose.msra.mxu0 %v2101
    %2103 = vmatprep.subr.mxu0 0.0
    %v2104 = vand.u32 %v902, 4294901760
    %2105 = vmatpush1.xpose.msra.mxu0 %v2104
    %2106 = vmatprep.subr.mxu0 0.0
    %2107 = vmatpush2.xpose.msra.mxu0 0.0
    %2108 = vmatprep.subr.mxu0 0.0
    %2109 = vmatpush2.xpose.msra.mxu0 0.0
    %2110 = vmatprep.subr.mxu0 0.0
    %2111 = vmatpush2.xpose.msra.mxu0 0.0
    %2112 = vmatprep.subr.mxu0 0.0
    %2113 = vmatpush2.xpose.msra.mxu0 0.0
    %2114 = vmatprep.subr.mxu0 0.0
    %2115 = vmatpush2.xpose.msra.mxu0 0.0
    %2116 = vmatprep.subr.mxu0 0.0
    %2117 = vmatpush2.xpose.msra.mxu0 0.0
    %2118 = vmatprep.subr.mxu0 0.0
    %2119 = vmatpush2.xpose.msra.mxu0 0.0
    %2120 = vmatprep.subr.mxu0 0.0
    %2121 = vmatpush2.xpose.msra.mxu0 0.0
    %2122 = vmatprep.subr.mxu0 0.0
    %2123 = vmatpush2.xpose.msra.mxu0 0.0
    %2124 = vmatprep.subr.mxu0 0.0
    %2125 = vmatpush2.xpose.msra.mxu0 0.0
    %2126 = vmatprep.subr.mxu0 0.0
    %2127 = vmatpush2.xpose.msra.mxu0 0.0
    %2128 = vmatprep.subr.mxu0 0.0
    %2129 = vmatpush2.xpose.msra.mxu0 0.0
    %2130 = vmatprep.subr.mxu0 0.0
    %2131 = vmatpush2.xpose.msra.mxu0 0.0
    %2132 = vmatprep.subr.mxu0 0.0
    %2133 = vmatpush2.xpose.msra.mxu0 0.0
    %2134 = vmatprep.subr.mxu0 0.0
    %2135 = vmatpush2.xpose.msra.mxu0 0.0
    %2136 = vmatprep.subr.mxu0 0.0
    %2137 = vmatpush2.xpose.msra.mxu0 0.0
    %2138 = vmatprep.mubr.f32.mxu0 0.0
    %v2139 = vand.u32 %v902, 4294901760
    %2140 = vmatmul.mubr.f32.gmra.mxu0 %v2139
    %v2141 = vpop.f32.mrf.mxu0
    %v2142 = vadd.f32 %v1965, %v2141
    %v2143 = vpop.f32.mrf.mxu0
    %2144 = vmatprep.mubr.f32.mxu0 0.0
    %v2145 = vand.u32 %v905, 4294901760
    %2146 = vmatmul.mubr.f32.gmra.mxu0 %v2145
    %v2147 = vpop.f32.mrf.mxu0
    %v2148 = vadd.f32 %v1971, %v2147
    %v2149 = vpop.f32.mrf.mxu0
    %2150 = vmatprep.mubr.f32.mxu0 0.0
    %v2151 = vand.u32 %v908, 4294901760
    %2152 = vmatmul.mubr.f32.gmra.mxu0 %v2151
    %v2153 = vpop.f32.mrf.mxu0
    %v2154 = vadd.f32 %v1977, %v2153
    %v2155 = vpop.f32.mrf.mxu0
    %2156 = vmatprep.mubr.f32.mxu0 0.0
    %v2157 = vand.u32 %v911, 4294901760
    %2158 = vmatmul.mubr.f32.gmra.mxu0 %v2157
    %v2159 = vpop.f32.mrf.mxu0
    %v2160 = vadd.f32 %v1983, %v2159
    %v2161 = vpop.f32.mrf.mxu0
    %2162 = vmatprep.mubr.f32.mxu0 0.0
    %v2163 = vand.u32 %v914, 4294901760
    %2164 = vmatmul.mubr.f32.gmra.mxu0 %v2163
    %v2165 = vpop.f32.mrf.mxu0
    %v2166 = vadd.f32 %v1989, %v2165
    %v2167 = vpop.f32.mrf.mxu0
    %2168 = vmatprep.mubr.f32.mxu0 0.0
    %v2169 = vand.u32 %v917, 4294901760
    %2170 = vmatmul.mubr.f32.gmra.mxu0 %v2169
    %v2171 = vpop.f32.mrf.mxu0
    %v2172 = vadd.f32 %v1995, %v2171
    %v2173 = vpop.f32.mrf.mxu0
    %2174 = vmatprep.mubr.f32.mxu0 0.0
    %v2175 = vand.u32 %v920, 4294901760
    %2176 = vmatmul.mubr.f32.gmra.mxu0 %v2175
    %v2177 = vpop.f32.mrf.mxu0
    %v2178 = vadd.f32 %v2001, %v2177
    %v2179 = vpop.f32.mrf.mxu0
    %2180 = vmatprep.mubr.f32.mxu0 0.0
    %v2181 = vand.u32 %v923, 4294901760
    %2182 = vmatmul.mubr.f32.gmra.mxu0 %v2181
    %v2183 = vpop.f32.mrf.mxu0
    %v2184 = vadd.f32 %v2007, %v2183
    %v2185 = vpop.f32.mrf.mxu0
    %2186 = vmatprep.mubr.f32.mxu0 0.0
    %v2187 = vand.u32 %v926, 4294901760
    %2188 = vmatmul.mubr.f32.gmra.mxu0 %v2187
    %v2189 = vpop.f32.mrf.mxu0
    %v2190 = vadd.f32 %v2013, %v2189
    %v2191 = vpop.f32.mrf.mxu0
    %2192 = vmatprep.mubr.f32.mxu0 0.0
    %v2193 = vand.u32 %v929, 4294901760
    %2194 = vmatmul.mubr.f32.gmra.mxu0 %v2193
    %v2195 = vpop.f32.mrf.mxu0
    %v2196 = vadd.f32 %v2019, %v2195
    %v2197 = vpop.f32.mrf.mxu0
    %2198 = vmatprep.mubr.f32.mxu0 0.0
    %v2199 = vand.u32 %v932, 4294901760
    %2200 = vmatmul.mubr.f32.gmra.mxu0 %v2199
    %v2201 = vpop.f32.mrf.mxu0
    %v2202 = vadd.f32 %v2025, %v2201
    %v2203 = vpop.f32.mrf.mxu0
    %2204 = vmatprep.mubr.f32.mxu0 0.0
    %v2205 = vand.u32 %v935, 4294901760
    %2206 = vmatmul.mubr.f32.gmra.mxu0 %v2205
    %v2207 = vpop.f32.mrf.mxu0
    %v2208 = vadd.f32 %v2031, %v2207
    %v2209 = vpop.f32.mrf.mxu0
    %2210 = vmatprep.mubr.f32.mxu0 0.0
    %v2211 = vand.u32 %v938, 4294901760
    %2212 = vmatmul.mubr.f32.gmra.mxu0 %v2211
    %v2213 = vpop.f32.mrf.mxu0
    %v2214 = vadd.f32 %v2037, %v2213
    %v2215 = vpop.f32.mrf.mxu0
    %2216 = vmatprep.mubr.f32.mxu0 0.0
    %v2217 = vand.u32 %v941, 4294901760
    %2218 = vmatmul.mubr.f32.gmra.mxu0 %v2217
    %v2219 = vpop.f32.mrf.mxu0
    %v2220 = vadd.f32 %v2043, %v2219
    %v2221 = vpop.f32.mrf.mxu0
    %2222 = vmatprep.mubr.f32.mxu0 0.0
    %v2223 = vand.u32 %v944, 4294901760
    %2224 = vmatmul.mubr.f32.gmra.mxu0 %v2223
    %v2225 = vpop.f32.mrf.mxu0
    %v2226 = vadd.f32 %v2049, %v2225
    %v2227 = vpop.f32.mrf.mxu0
    %2228 = vmatprep.mubr.f32.mxu0 0.0
    %v2229 = vand.u32 %v947, 4294901760
    %2230 = vmatmul.mubr.f32.gmra.mxu0 %v2229
    %v2231 = vpop.f32.mrf.mxu0
    %v2232 = vadd.f32 %v2055, %v2231
    %v2233 = vpop.f32.mrf.mxu0
    %2234 = vdwg.mxu0
    %v2235 = vlaneseq
    %v2236 = vshrl.u32 %v2235, 7
    %v2237 = vsub.s32 0, %v2236
    %v2238 = vrot.slane %v898, %v2237
    %v2239 = vadd.f32 %v163, %v2238
    %v2240 = vadd.f32 %v166, %v2238
    %v2241 = vadd.f32 %v169, %v2238
    %v2242 = vadd.f32 %v172, %v2238
    %v2243 = vadd.f32 %v175, %v2238
    %v2244 = vadd.f32 %v178, %v2238
    %v2245 = vadd.f32 %v181, %v2238
    %v2246 = vadd.f32 %v184, %v2238
    %v2247 = vadd.f32 %v187, %v2238
    %v2248 = vadd.f32 %v190, %v2238
    %v2249 = vadd.f32 %v193, %v2238
    %v2250 = vadd.f32 %v196, %v2238
    %v2251 = vadd.f32 %v199, %v2238
    %v2252 = vadd.f32 %v202, %v2238
    %v2253 = vadd.f32 %v205, %v2238
    %v2254 = vadd.f32 %v208, %v2238
    %v2255 = vmul.f32 %v2142, 2.0
    %v2256 = vmul.f32 %v2148, 2.0
    %v2257 = vmul.f32 %v2154, 2.0
    %v2258 = vmul.f32 %v2160, 2.0
    %v2259 = vmul.f32 %v2166, 2.0
    %v2260 = vmul.f32 %v2172, 2.0
    %v2261 = vmul.f32 %v2178, 2.0
    %v2262 = vmul.f32 %v2184, 2.0
    %v2263 = vmul.f32 %v2190, 2.0
    %v2264 = vmul.f32 %v2196, 2.0
    %v2265 = vmul.f32 %v2202, 2.0
    %v2266 = vmul.f32 %v2208, 2.0
    %v2267 = vmul.f32 %v2214, 2.0
    %v2268 = vmul.f32 %v2220, 2.0
    %v2269 = vmul.f32 %v2226, 2.0
    %v2270 = vmul.f32 %v2232, 2.0
    %v2271 = vsub.f32 %v2239, %v2255
    %v2272 = vsub.f32 %v2240, %v2256
    %v2273 = vsub.f32 %v2241, %v2257
    %v2274 = vsub.f32 %v2242, %v2258
    %v2275 = vsub.f32 %v2243, %v2259
    %v2276 = vsub.f32 %v2244, %v2260
    %v2277 = vsub.f32 %v2245, %v2261
    %v2278 = vsub.f32 %v2246, %v2262
    %v2279 = vsub.f32 %v2247, %v2263
    %v2280 = vsub.f32 %v2248, %v2264
    %v2281 = vsub.f32 %v2249, %v2265
    %v2282 = vsub.f32 %v2250, %v2266
    %v2283 = vsub.f32 %v2251, %v2267
    %v2284 = vsub.f32 %v2252, %v2268
    %v2285 = vsub.f32 %v2253, %v2269
    %v2286 = vsub.f32 %v2254, %v2270
    %v2287 = vmax.f32 %v2271, 0.0
    %v2288 = vmax.f32 %v2272, 0.0
    %v2289 = vmax.f32 %v2273, 0.0
    %v2290 = vmax.f32 %v2274, 0.0
    %v2291 = vmax.f32 %v2275, 0.0
    %v2292 = vmax.f32 %v2276, 0.0
    %v2293 = vmax.f32 %v2277, 0.0
    %v2294 = vmax.f32 %v2278, 0.0
    %v2295 = vmax.f32 %v2279, 0.0
    %v2296 = vmax.f32 %v2280, 0.0
    %v2297 = vmax.f32 %v2281, 0.0
    %v2298 = vmax.f32 %v2282, 0.0
    %v2299 = vmax.f32 %v2283, 0.0
    %v2300 = vmax.f32 %v2284, 0.0
    %v2301 = vmax.f32 %v2285, 0.0
    %v2302 = vmax.f32 %v2286, 0.0
    %v2303 = vrsqrt.pop %v2287
    %v2304 = vmul.f32 %v2287, %v2303
    %vm2305 = vcmp.eq.f32.partialorder %v2287, inf
    %v2306 = vsel %vm2305, %v2287, %v2304
    %vm2307 = vcmp.eq.f32.partialorder %v2287, 0.0
    %v2308 = vand.u32 %v2287, 2147483648
    %v2309 = vsel %vm2307, %v2308, %v2306
    %v2310 = vrsqrt.pop %v2288
    %v2311 = vmul.f32 %v2288, %v2310
    %vm2312 = vcmp.eq.f32.partialorder %v2288, inf
    %v2313 = vsel %vm2312, %v2288, %v2311
    %vm2314 = vcmp.eq.f32.partialorder %v2288, 0.0
    %v2315 = vand.u32 %v2288, 2147483648
    %v2316 = vsel %vm2314, %v2315, %v2313
    %v2317 = vrsqrt.pop %v2289
    %v2318 = vmul.f32 %v2289, %v2317
    %vm2319 = vcmp.eq.f32.partialorder %v2289, inf
    %v2320 = vsel %vm2319, %v2289, %v2318
    %vm2321 = vcmp.eq.f32.partialorder %v2289, 0.0
    %v2322 = vand.u32 %v2289, 2147483648
    %v2323 = vsel %vm2321, %v2322, %v2320
    %v2324 = vrsqrt.pop %v2290
    %v2325 = vmul.f32 %v2290, %v2324
    %vm2326 = vcmp.eq.f32.partialorder %v2290, inf
    %v2327 = vsel %vm2326, %v2290, %v2325
    %vm2328 = vcmp.eq.f32.partialorder %v2290, 0.0
    %v2329 = vand.u32 %v2290, 2147483648
    %v2330 = vsel %vm2328, %v2329, %v2327
    %v2331 = vrsqrt.pop %v2291
    %v2332 = vmul.f32 %v2291, %v2331
    %vm2333 = vcmp.eq.f32.partialorder %v2291, inf
    %v2334 = vsel %vm2333, %v2291, %v2332
    %vm2335 = vcmp.eq.f32.partialorder %v2291, 0.0
    %v2336 = vand.u32 %v2291, 2147483648
    %v2337 = vsel %vm2335, %v2336, %v2334
    %v2338 = vrsqrt.pop %v2292
    %v2339 = vmul.f32 %v2292, %v2338
    %vm2340 = vcmp.eq.f32.partialorder %v2292, inf
    %v2341 = vsel %vm2340, %v2292, %v2339
    %vm2342 = vcmp.eq.f32.partialorder %v2292, 0.0
    %v2343 = vand.u32 %v2292, 2147483648
    %v2344 = vsel %vm2342, %v2343, %v2341
    %v2345 = vrsqrt.pop %v2293
    %v2346 = vmul.f32 %v2293, %v2345
    %vm2347 = vcmp.eq.f32.partialorder %v2293, inf
    %v2348 = vsel %vm2347, %v2293, %v2346
    %vm2349 = vcmp.eq.f32.partialorder %v2293, 0.0
    %v2350 = vand.u32 %v2293, 2147483648
    %v2351 = vsel %vm2349, %v2350, %v2348
    %v2352 = vrsqrt.pop %v2294
    %v2353 = vmul.f32 %v2294, %v2352
    %vm2354 = vcmp.eq.f32.partialorder %v2294, inf
    %v2355 = vsel %vm2354, %v2294, %v2353
    %vm2356 = vcmp.eq.f32.partialorder %v2294, 0.0
    %v2357 = vand.u32 %v2294, 2147483648
    %v2358 = vsel %vm2356, %v2357, %v2355
    %v2359 = vrsqrt.pop %v2295
    %v2360 = vmul.f32 %v2295, %v2359
    %vm2361 = vcmp.eq.f32.partialorder %v2295, inf
    %v2362 = vsel %vm2361, %v2295, %v2360
    %vm2363 = vcmp.eq.f32.partialorder %v2295, 0.0
    %v2364 = vand.u32 %v2295, 2147483648
    %v2365 = vsel %vm2363, %v2364, %v2362
    %v2366 = vrsqrt.pop %v2296
    %v2367 = vmul.f32 %v2296, %v2366
    %vm2368 = vcmp.eq.f32.partialorder %v2296, inf
    %v2369 = vsel %vm2368, %v2296, %v2367
    %vm2370 = vcmp.eq.f32.partialorder %v2296, 0.0
    %v2371 = vand.u32 %v2296, 2147483648
    %v2372 = vsel %vm2370, %v2371, %v2369
    %v2373 = vrsqrt.pop %v2297
    %v2374 = vmul.f32 %v2297, %v2373
    %vm2375 = vcmp.eq.f32.partialorder %v2297, inf
    %v2376 = vsel %vm2375, %v2297, %v2374
    %vm2377 = vcmp.eq.f32.partialorder %v2297, 0.0
    %v2378 = vand.u32 %v2297, 2147483648
    %v2379 = vsel %vm2377, %v2378, %v2376
    %v2380 = vrsqrt.pop %v2298
    %v2381 = vmul.f32 %v2298, %v2380
    %vm2382 = vcmp.eq.f32.partialorder %v2298, inf
    %v2383 = vsel %vm2382, %v2298, %v2381
    %vm2384 = vcmp.eq.f32.partialorder %v2298, 0.0
    %v2385 = vand.u32 %v2298, 2147483648
    %v2386 = vsel %vm2384, %v2385, %v2383
    %v2387 = vrsqrt.pop %v2299
    %v2388 = vmul.f32 %v2299, %v2387
    %vm2389 = vcmp.eq.f32.partialorder %v2299, inf
    %v2390 = vsel %vm2389, %v2299, %v2388
    %vm2391 = vcmp.eq.f32.partialorder %v2299, 0.0
    %v2392 = vand.u32 %v2299, 2147483648
    %v2393 = vsel %vm2391, %v2392, %v2390
    %v2394 = vrsqrt.pop %v2300
    %v2395 = vmul.f32 %v2300, %v2394
    %vm2396 = vcmp.eq.f32.partialorder %v2300, inf
    %v2397 = vsel %vm2396, %v2300, %v2395
    %vm2398 = vcmp.eq.f32.partialorder %v2300, 0.0
    %v2399 = vand.u32 %v2300, 2147483648
    %v2400 = vsel %vm2398, %v2399, %v2397
    %v2401 = vrsqrt.pop %v2301
    %v2402 = vmul.f32 %v2301, %v2401
    %vm2403 = vcmp.eq.f32.partialorder %v2301, inf
    %v2404 = vsel %vm2403, %v2301, %v2402
    %vm2405 = vcmp.eq.f32.partialorder %v2301, 0.0
    %v2406 = vand.u32 %v2301, 2147483648
    %v2407 = vsel %vm2405, %v2406, %v2404
    %v2408 = vrsqrt.pop %v2302
    %v2409 = vmul.f32 %v2302, %v2408
    %vm2410 = vcmp.eq.f32.partialorder %v2302, inf
    %v2411 = vsel %vm2410, %v2302, %v2409
    %vm2412 = vcmp.eq.f32.partialorder %v2302, 0.0
    %v2413 = vand.u32 %v2302, 2147483648
    %v2414 = vsel %vm2412, %v2413, %v2411
    %v2415 = vsub.f32 %v2309, 50.0
    %v2416 = vsub.f32 %v2316, 50.0
    %v2417 = vsub.f32 %v2323, 50.0
    %v2418 = vsub.f32 %v2330, 50.0
    %v2419 = vsub.f32 %v2337, 50.0
    %v2420 = vsub.f32 %v2344, 50.0
    %v2421 = vsub.f32 %v2351, 50.0
    %v2422 = vsub.f32 %v2358, 50.0
    %v2423 = vsub.f32 %v2365, 50.0
    %v2424 = vsub.f32 %v2372, 50.0
    %v2425 = vsub.f32 %v2379, 50.0
    %v2426 = vsub.f32 %v2386, 50.0
    %v2427 = vsub.f32 %v2393, 50.0
    %v2428 = vsub.f32 %v2400, 50.0
    %v2429 = vsub.f32 %v2407, 50.0
    %v2430 = vsub.f32 %v2414, 50.0
    %v2431 = vmul.f32 %v2415, -0.02
    %v2432 = vmul.f32 %v2416, -0.02
    %v2433 = vmul.f32 %v2417, -0.02
    %v2434 = vmul.f32 %v2418, -0.02
    %v2435 = vmul.f32 %v2419, -0.02
    %v2436 = vmul.f32 %v2420, -0.02
    %v2437 = vmul.f32 %v2421, -0.02
    %v2438 = vmul.f32 %v2422, -0.02
    %v2439 = vmul.f32 %v2423, -0.02
    %v2440 = vmul.f32 %v2424, -0.02
    %v2441 = vmul.f32 %v2425, -0.02
    %v2442 = vmul.f32 %v2426, -0.02
    %v2443 = vmul.f32 %v2427, -0.02
    %v2444 = vmul.f32 %v2428, -0.02
    %v2445 = vmul.f32 %v2429, -0.02
    %v2446 = vmul.f32 %v2430, -0.02
    %v2447 = vxor.u32 %v2431, 2147483648
    %v2448 = vxor.u32 %v2432, 2147483648
    %v2449 = vxor.u32 %v2433, 2147483648
    %v2450 = vxor.u32 %v2434, 2147483648
    %v2451 = vxor.u32 %v2435, 2147483648
    %v2452 = vxor.u32 %v2436, 2147483648
    %v2453 = vxor.u32 %v2437, 2147483648
    %v2454 = vxor.u32 %v2438, 2147483648
    %v2455 = vxor.u32 %v2439, 2147483648
    %v2456 = vxor.u32 %v2440, 2147483648
    %v2457 = vxor.u32 %v2441, 2147483648
    %v2458 = vxor.u32 %v2442, 2147483648
    %v2459 = vxor.u32 %v2443, 2147483648
    %v2460 = vxor.u32 %v2444, 2147483648
    %v2461 = vxor.u32 %v2445, 2147483648
    %v2462 = vxor.u32 %v2446, 2147483648
    %v2463 = vmul.f32 %v2447, 1.442695
    %v2464 = vpow.pop %v2463
    %v2465 = vmul.f32 %v2448, 1.442695
    %v2466 = vpow.pop %v2465
    %v2467 = vmul.f32 %v2449, 1.442695
    %v2468 = vpow.pop %v2467
    %v2469 = vmul.f32 %v2450, 1.442695
    %v2470 = vpow.pop %v2469
    %v2471 = vmul.f32 %v2451, 1.442695
    %v2472 = vpow.pop %v2471
    %v2473 = vmul.f32 %v2452, 1.442695
    %v2474 = vpow.pop %v2473
    %v2475 = vmul.f32 %v2453, 1.442695
    %v2476 = vpow.pop %v2475
    %v2477 = vmul.f32 %v2454, 1.442695
    %v2478 = vpow.pop %v2477
    %v2479 = vmul.f32 %v2455, 1.442695
    %v2480 = vpow.pop %v2479
    %v2481 = vmul.f32 %v2456, 1.442695
    %v2482 = vpow.pop %v2481
    %v2483 = vmul.f32 %v2457, 1.442695
    %v2484 = vpow.pop %v2483
    %v2485 = vmul.f32 %v2458, 1.442695
    %v2486 = vpow.pop %v2485
    %v2487 = vmul.f32 %v2459, 1.442695
    %v2488 = vpow.pop %v2487
    %v2489 = vmul.f32 %v2460, 1.442695
    %v2490 = vpow.pop %v2489
    %v2491 = vmul.f32 %v2461, 1.442695
    %v2492 = vpow.pop %v2491
    %v2493 = vmul.f32 %v2462, 1.442695
    %v2494 = vpow.pop %v2493
    %v2495 = vadd.f32 %v2464, 1.0
    %v2496 = vadd.f32 %v2466, 1.0
    %v2497 = vadd.f32 %v2468, 1.0
    %v2498 = vadd.f32 %v2470, 1.0
    %v2499 = vadd.f32 %v2472, 1.0
    %v2500 = vadd.f32 %v2474, 1.0
    %v2501 = vadd.f32 %v2476, 1.0
    %v2502 = vadd.f32 %v2478, 1.0
    %v2503 = vadd.f32 %v2480, 1.0
    %v2504 = vadd.f32 %v2482, 1.0
    %v2505 = vadd.f32 %v2484, 1.0
    %v2506 = vadd.f32 %v2486, 1.0
    %v2507 = vadd.f32 %v2488, 1.0
    %v2508 = vadd.f32 %v2490, 1.0
    %v2509 = vadd.f32 %v2492, 1.0
    %v2510 = vadd.f32 %v2494, 1.0
    %v2511 = vrcp.pop %v2495
    %v2512 = vmul.f32 1.0, %v2511
    %v2513 = vrcp.pop %v2496
    %v2514 = vmul.f32 1.0, %v2513
    %v2515 = vrcp.pop %v2497
    %v2516 = vmul.f32 1.0, %v2515
    %v2517 = vrcp.pop %v2498
    %v2518 = vmul.f32 1.0, %v2517
    %v2519 = vrcp.pop %v2499
    %v2520 = vmul.f32 1.0, %v2519
    %v2521 = vrcp.pop %v2500
    %v2522 = vmul.f32 1.0, %v2521
    %v2523 = vrcp.pop %v2501
    %v2524 = vmul.f32 1.0, %v2523
    %v2525 = vrcp.pop %v2502
    %v2526 = vmul.f32 1.0, %v2525
    %v2527 = vrcp.pop %v2503
    %v2528 = vmul.f32 1.0, %v2527
    %v2529 = vrcp.pop %v2504
    %v2530 = vmul.f32 1.0, %v2529
    %v2531 = vrcp.pop %v2505
    %v2532 = vmul.f32 1.0, %v2531
    %v2533 = vrcp.pop %v2506
    %v2534 = vmul.f32 1.0, %v2533
    %v2535 = vrcp.pop %v2507
    %v2536 = vmul.f32 1.0, %v2535
    %v2537 = vrcp.pop %v2508
    %v2538 = vmul.f32 1.0, %v2537
    %v2539 = vrcp.pop %v2509
    %v2540 = vmul.f32 1.0, %v2539
    %v2541 = vrcp.pop %v2510
    %v2542 = vmul.f32 1.0, %v2541
    %v2543 = vsub.f32 1.0, %v77
    %v2544 = vsub.f32 1.0, %v78
    %v2545 = vsub.f32 1.0, %v79
    %v2546 = vsub.f32 1.0, %v80
    %v2547 = vsub.f32 1.0, %v81
    %v2548 = vsub.f32 1.0, %v82
    %v2549 = vsub.f32 1.0, %v83
    %v2550 = vsub.f32 1.0, %v84
    %v2551 = vsub.f32 1.0, %v85
    %v2552 = vsub.f32 1.0, %v86
    %v2553 = vsub.f32 1.0, %v87
    %v2554 = vsub.f32 1.0, %v88
    %v2555 = vsub.f32 1.0, %v89
    %v2556 = vsub.f32 1.0, %v90
    %v2557 = vsub.f32 1.0, %v91
    %v2558 = vsub.f32 1.0, %v92
    %v2559 = vmul.f32 %v2543, %v125
    %v2560 = vmul.f32 %v2544, %v126
    %v2561 = vmul.f32 %v2545, %v127
    %v2562 = vmul.f32 %v2546, %v128
    %v2563 = vmul.f32 %v2547, %v129
    %v2564 = vmul.f32 %v2548, %v130
    %v2565 = vmul.f32 %v2549, %v131
    %v2566 = vmul.f32 %v2550, %v132
    %v2567 = vmul.f32 %v2551, %v133
    %v2568 = vmul.f32 %v2552, %v134
    %v2569 = vmul.f32 %v2553, %v135
    %v2570 = vmul.f32 %v2554, %v136
    %v2571 = vmul.f32 %v2555, %v137
    %v2572 = vmul.f32 %v2556, %v138
    %v2573 = vmul.f32 %v2557, %v139
    %v2574 = vmul.f32 %v2558, %v140
    %v2575 = vmul.f32 %v2559, %v143
    %v2576 = vmul.f32 %v2560, %v143
    %v2577 = vmul.f32 %v2561, %v143
    %v2578 = vmul.f32 %v2562, %v143
    %v2579 = vmul.f32 %v2563, %v143
    %v2580 = vmul.f32 %v2564, %v143
    %v2581 = vmul.f32 %v2565, %v143
    %v2582 = vmul.f32 %v2566, %v143
    %v2583 = vmul.f32 %v2567, %v143
    %v2584 = vmul.f32 %v2568, %v143
    %v2585 = vmul.f32 %v2569, %v143
    %v2586 = vmul.f32 %v2570, %v143
    %v2587 = vmul.f32 %v2571, %v143
    %v2588 = vmul.f32 %v2572, %v143
    %v2589 = vmul.f32 %v2573, %v143
    %v2590 = vmul.f32 %v2574, %v143
    %v2591 = vmul.f32 %v2512, %v2575
    %v2592 = vmul.f32 %v2514, %v2576
    %v2593 = vmul.f32 %v2516, %v2577
    %v2594 = vmul.f32 %v2518, %v2578
    %v2595 = vmul.f32 %v2520, %v2579
    %v2596 = vmul.f32 %v2522, %v2580
    %v2597 = vmul.f32 %v2524, %v2581
    %v2598 = vmul.f32 %v2526, %v2582
    %v2599 = vmul.f32 %v2528, %v2583
    %v2600 = vmul.f32 %v2530, %v2584
    %v2601 = vmul.f32 %v2532, %v2585
    %v2602 = vmul.f32 %v2534, %v2586
    %v2603 = vmul.f32 %v2536, %v2587
    %v2604 = vmul.f32 %v2538, %v2588
    %v2605 = vmul.f32 %v2540, %v2589
    %v2606 = vmul.f32 %v2542, %v2590
    %2607 = vadd.xlane.f32.xlu0 %v2591
    %v2608 = vpop.xlane.xlu0 %2607
    %2609 = vadd.xlane.f32.xlu0 %v2592
    %v2610 = vpop.xlane.xlu0 %2609
    %2611 = vadd.xlane.f32.xlu0 %v2593
    %v2612 = vpop.xlane.xlu0 %2611
    %2613 = vadd.xlane.f32.xlu0 %v2594
    %v2614 = vpop.xlane.xlu0 %2613
    %2615 = vadd.xlane.f32.xlu0 %v2595
    %v2616 = vpop.xlane.xlu0 %2615
    %2617 = vadd.xlane.f32.xlu0 %v2596
    %v2618 = vpop.xlane.xlu0 %2617
    %2619 = vadd.xlane.f32.xlu0 %v2597
    %v2620 = vpop.xlane.xlu0 %2619
    %2621 = vadd.xlane.f32.xlu0 %v2598
    %v2622 = vpop.xlane.xlu0 %2621
    %2623 = vadd.xlane.f32.xlu0 %v2599
    %v2624 = vpop.xlane.xlu0 %2623
    %2625 = vadd.xlane.f32.xlu0 %v2600
    %v2626 = vpop.xlane.xlu0 %2625
    %2627 = vadd.xlane.f32.xlu0 %v2601
    %v2628 = vpop.xlane.xlu0 %2627
    %2629 = vadd.xlane.f32.xlu0 %v2602
    %v2630 = vpop.xlane.xlu0 %2629
    %2631 = vadd.xlane.f32.xlu0 %v2603
    %v2632 = vpop.xlane.xlu0 %2631
    %2633 = vadd.xlane.f32.xlu0 %v2604
    %v2634 = vpop.xlane.xlu0 %2633
    %2635 = vadd.xlane.f32.xlu0 %v2605
    %v2636 = vpop.xlane.xlu0 %2635
    %2637 = vadd.xlane.f32.xlu0 %v2606
    %v2638 = vpop.xlane.xlu0 %2637
    %v2639 = vadd.f32 %v2608, 1e-06
    %v2640 = vadd.f32 %v2610, 1e-06
    %v2641 = vadd.f32 %v2612, 1e-06
    %v2642 = vadd.f32 %v2614, 1e-06
    %v2643 = vadd.f32 %v2616, 1e-06
    %v2644 = vadd.f32 %v2618, 1e-06
    %v2645 = vadd.f32 %v2620, 1e-06
    %v2646 = vadd.f32 %v2622, 1e-06
    %v2647 = vadd.f32 %v2624, 1e-06
    %v2648 = vadd.f32 %v2626, 1e-06
    %v2649 = vadd.f32 %v2628, 1e-06
    %v2650 = vadd.f32 %v2630, 1e-06
    %v2651 = vadd.f32 %v2632, 1e-06
    %v2652 = vadd.f32 %v2634, 1e-06
    %v2653 = vadd.f32 %v2636, 1e-06
    %v2654 = vadd.f32 %v2638, 1e-06
    %v2655 = vrsqrt.pop %v2639
    %v2656 = vrsqrt.pop %v2640
    %v2657 = vrsqrt.pop %v2641
    %v2658 = vrsqrt.pop %v2642
    %v2659 = vrsqrt.pop %v2643
    %v2660 = vrsqrt.pop %v2644
    %v2661 = vrsqrt.pop %v2645
    %v2662 = vrsqrt.pop %v2646
    %v2663 = vrsqrt.pop %v2647
    %v2664 = vrsqrt.pop %v2648
    %v2665 = vrsqrt.pop %v2649
    %v2666 = vrsqrt.pop %v2650
    %v2667 = vrsqrt.pop %v2651
    %v2668 = vrsqrt.pop %v2652
    %v2669 = vrsqrt.pop %v2653
    %v2670 = vrsqrt.pop %v2654
    %2671 = vmatprep.subr.mxu0 0.0
    %v2672 = vand.u32 %v2606, 4294901760
    %2673 = vmatpush1.msra.mxu0 %v2672
    %2674 = vmatprep.subr.mxu0 0.0
    %v2675 = vand.u32 %v2605, 4294901760
    %2676 = vmatpush1.msra.mxu0 %v2675
    %2677 = vmatprep.subr.mxu0 0.0
    %v2678 = vand.u32 %v2604, 4294901760
    %2679 = vmatpush1.msra.mxu0 %v2678
    %2680 = vmatprep.subr.mxu0 0.0
    %v2681 = vand.u32 %v2603, 4294901760
    %2682 = vmatpush1.msra.mxu0 %v2681
    %2683 = vmatprep.subr.mxu0 0.0
    %v2684 = vand.u32 %v2602, 4294901760
    %2685 = vmatpush1.msra.mxu0 %v2684
    %2686 = vmatprep.subr.mxu0 0.0
    %v2687 = vand.u32 %v2601, 4294901760
    %2688 = vmatpush1.msra.mxu0 %v2687
    %2689 = vmatprep.subr.mxu0 0.0
    %v2690 = vand.u32 %v2600, 4294901760
    %2691 = vmatpush1.msra.mxu0 %v2690
    %2692 = vmatprep.subr.mxu0 0.0
    %v2693 = vand.u32 %v2599, 4294901760
    %2694 = vmatpush1.msra.mxu0 %v2693
    %2695 = vmatprep.subr.mxu0 0.0
    %v2696 = vand.u32 %v2598, 4294901760
    %2697 = vmatpush1.msra.mxu0 %v2696
    %2698 = vmatprep.subr.mxu0 0.0
    %v2699 = vand.u32 %v2597, 4294901760
    %2700 = vmatpush1.msra.mxu0 %v2699
    %2701 = vmatprep.subr.mxu0 0.0
    %v2702 = vand.u32 %v2596, 4294901760
    %2703 = vmatpush1.msra.mxu0 %v2702
    %2704 = vmatprep.subr.mxu0 0.0
    %v2705 = vand.u32 %v2595, 4294901760
    %2706 = vmatpush1.msra.mxu0 %v2705
    %2707 = vmatprep.subr.mxu0 0.0
    %v2708 = vand.u32 %v2594, 4294901760
    %2709 = vmatpush1.msra.mxu0 %v2708
    %2710 = vmatprep.subr.mxu0 0.0
    %v2711 = vand.u32 %v2593, 4294901760
    %2712 = vmatpush1.msra.mxu0 %v2711
    %2713 = vmatprep.subr.mxu0 0.0
    %v2714 = vand.u32 %v2592, 4294901760
    %2715 = vmatpush1.msra.mxu0 %v2714
    %2716 = vmatprep.subr.mxu0 0.0
    %v2717 = vand.u32 %v2591, 4294901760
    %2718 = vmatpush1.msra.mxu0 %v2717
    %2719 = vmatprep.subr.mxu0 0.0
    %2720 = vmatpush2.msra.mxu0 0.0
    %2721 = vmatprep.subr.mxu0 0.0
    %2722 = vmatpush2.msra.mxu0 0.0
    %2723 = vmatprep.subr.mxu0 0.0
    %2724 = vmatpush2.msra.mxu0 0.0
    %2725 = vmatprep.subr.mxu0 0.0
    %2726 = vmatpush2.msra.mxu0 0.0
    %2727 = vmatprep.subr.mxu0 0.0
    %2728 = vmatpush2.msra.mxu0 0.0
    %2729 = vmatprep.subr.mxu0 0.0
    %2730 = vmatpush2.msra.mxu0 0.0
    %2731 = vmatprep.subr.mxu0 0.0
    %2732 = vmatpush2.msra.mxu0 0.0
    %2733 = vmatprep.subr.mxu0 0.0
    %2734 = vmatpush2.msra.mxu0 0.0
    %2735 = vmatprep.subr.mxu0 0.0
    %2736 = vmatpush2.msra.mxu0 0.0
    %2737 = vmatprep.subr.mxu0 0.0
    %2738 = vmatpush2.msra.mxu0 0.0
    %2739 = vmatprep.subr.mxu0 0.0
    %2740 = vmatpush2.msra.mxu0 0.0
    %2741 = vmatprep.subr.mxu0 0.0
    %2742 = vmatpush2.msra.mxu0 0.0
    %2743 = vmatprep.subr.mxu0 0.0
    %2744 = vmatpush2.msra.mxu0 0.0
    %2745 = vmatprep.subr.mxu0 0.0
    %2746 = vmatpush2.msra.mxu0 0.0
    %2747 = vmatprep.subr.mxu0 0.0
    %2748 = vmatpush2.msra.mxu0 0.0
    %2749 = vmatprep.subr.mxu0 0.0
    %2750 = vmatpush2.msra.mxu0 0.0
    %2751 = vmatprep.mubr.f32.mxu0 0.0
    %2752 = vmatmul.mubr.f32.gmra.mxu0 0.0
    %v2753 = vpop.f32.mrf.mxu0
    %v2754 = vadd.f32 1e-06, %v2753
    %v2755 = vpop.f32.mrf.mxu0
    %2756 = vdwg.mxu0
    %2757 = vmatprep.subr.mxu0 0.0
    %v2758 = vand.u32 %v2606, 4294901760
    %v2759 = vsub.f32 %v2606, %v2758
    %v2760 = vand.u32 %v2759, 4294901760
    %v2761 = vsub.f32 %v2759, %v2760
    %v2762 = vand.u32 %v2761, 4294901760
    %2763 = vmatpush1.msra.mxu0 %v2762
    %2764 = vmatprep.subr.mxu0 0.0
    %v2765 = vand.u32 %v2605, 4294901760
    %v2766 = vsub.f32 %v2605, %v2765
    %v2767 = vand.u32 %v2766, 4294901760
    %v2768 = vsub.f32 %v2766, %v2767
    %v2769 = vand.u32 %v2768, 4294901760
    %2770 = vmatpush1.msra.mxu0 %v2769
    %2771 = vmatprep.subr.mxu0 0.0
    %v2772 = vand.u32 %v2604, 4294901760
    %v2773 = vsub.f32 %v2604, %v2772
    %v2774 = vand.u32 %v2773, 4294901760
    %v2775 = vsub.f32 %v2773, %v2774
    %v2776 = vand.u32 %v2775, 4294901760
    %2777 = vmatpush1.msra.mxu0 %v2776
    %2778 = vmatprep.subr.mxu0 0.0
    %v2779 = vand.u32 %v2603, 4294901760
    %v2780 = vsub.f32 %v2603, %v2779
    %v2781 = vand.u32 %v2780, 4294901760
    %v2782 = vsub.f32 %v2780, %v2781
    %v2783 = vand.u32 %v2782, 4294901760
    %2784 = vmatpush1.msra.mxu0 %v2783
    %2785 = vmatprep.subr.mxu0 0.0
    %v2786 = vand.u32 %v2602, 4294901760
    %v2787 = vsub.f32 %v2602, %v2786
    %v2788 = vand.u32 %v2787, 4294901760
    %v2789 = vsub.f32 %v2787, %v2788
    %v2790 = vand.u32 %v2789, 4294901760
    %2791 = vmatpush1.msra.mxu0 %v2790
    %2792 = vmatprep.subr.mxu0 0.0
    %v2793 = vand.u32 %v2601, 4294901760
    %v2794 = vsub.f32 %v2601, %v2793
    %v2795 = vand.u32 %v2794, 4294901760
    %v2796 = vsub.f32 %v2794, %v2795
    %v2797 = vand.u32 %v2796, 4294901760
    %2798 = vmatpush1.msra.mxu0 %v2797
    %2799 = vmatprep.subr.mxu0 0.0
    %v2800 = vand.u32 %v2600, 4294901760
    %v2801 = vsub.f32 %v2600, %v2800
    %v2802 = vand.u32 %v2801, 4294901760
    %v2803 = vsub.f32 %v2801, %v2802
    %v2804 = vand.u32 %v2803, 4294901760
    %2805 = vmatpush1.msra.mxu0 %v2804
    %2806 = vmatprep.subr.mxu0 0.0
    %v2807 = vand.u32 %v2599, 4294901760
    %v2808 = vsub.f32 %v2599, %v2807
    %v2809 = vand.u32 %v2808, 4294901760
    %v2810 = vsub.f32 %v2808, %v2809
    %v2811 = vand.u32 %v2810, 4294901760
    %2812 = vmatpush1.msra.mxu0 %v2811
    %2813 = vmatprep.subr.mxu0 0.0
    %v2814 = vand.u32 %v2598, 4294901760
    %v2815 = vsub.f32 %v2598, %v2814
    %v2816 = vand.u32 %v2815, 4294901760
    %v2817 = vsub.f32 %v2815, %v2816
    %v2818 = vand.u32 %v2817, 4294901760
    %2819 = vmatpush1.msra.mxu0 %v2818
    %2820 = vmatprep.subr.mxu0 0.0
    %v2821 = vand.u32 %v2597, 4294901760
    %v2822 = vsub.f32 %v2597, %v2821
    %v2823 = vand.u32 %v2822, 4294901760
    %v2824 = vsub.f32 %v2822, %v2823
    %v2825 = vand.u32 %v2824, 4294901760
    %2826 = vmatpush1.msra.mxu0 %v2825
    %2827 = vmatprep.subr.mxu0 0.0
    %v2828 = vand.u32 %v2596, 4294901760
    %v2829 = vsub.f32 %v2596, %v2828
    %v2830 = vand.u32 %v2829, 4294901760
    %v2831 = vsub.f32 %v2829, %v2830
    %v2832 = vand.u32 %v2831, 4294901760
    %2833 = vmatpush1.msra.mxu0 %v2832
    %2834 = vmatprep.subr.mxu0 0.0
    %v2835 = vand.u32 %v2595, 4294901760
    %v2836 = vsub.f32 %v2595, %v2835
    %v2837 = vand.u32 %v2836, 4294901760
    %v2838 = vsub.f32 %v2836, %v2837
    %v2839 = vand.u32 %v2838, 4294901760
    %2840 = vmatpush1.msra.mxu0 %v2839
    %2841 = vmatprep.subr.mxu0 0.0
    %v2842 = vand.u32 %v2594, 4294901760
    %v2843 = vsub.f32 %v2594, %v2842
    %v2844 = vand.u32 %v2843, 4294901760
    %v2845 = vsub.f32 %v2843, %v2844
    %v2846 = vand.u32 %v2845, 4294901760
    %2847 = vmatpush1.msra.mxu0 %v2846
    %2848 = vmatprep.subr.mxu0 0.0
    %v2849 = vand.u32 %v2593, 4294901760
    %v2850 = vsub.f32 %v2593, %v2849
    %v2851 = vand.u32 %v2850, 4294901760
    %v2852 = vsub.f32 %v2850, %v2851
    %v2853 = vand.u32 %v2852, 4294901760
    %2854 = vmatpush1.msra.mxu0 %v2853
    %2855 = vmatprep.subr.mxu0 0.0
    %v2856 = vand.u32 %v2592, 4294901760
    %v2857 = vsub.f32 %v2592, %v2856
    %v2858 = vand.u32 %v2857, 4294901760
    %v2859 = vsub.f32 %v2857, %v2858
    %v2860 = vand.u32 %v2859, 4294901760
    %2861 = vmatpush1.msra.mxu0 %v2860
    %2862 = vmatprep.subr.mxu0 0.0
    %v2863 = vand.u32 %v2591, 4294901760
    %v2864 = vsub.f32 %v2591, %v2863
    %v2865 = vand.u32 %v2864, 4294901760
    %v2866 = vsub.f32 %v2864, %v2865
    %v2867 = vand.u32 %v2866, 4294901760
    %2868 = vmatpush1.msra.mxu0 %v2867
    %2869 = vmatprep.subr.mxu0 0.0
    %2870 = vmatpush2.msra.mxu0 0.0
    %2871 = vmatprep.subr.mxu0 0.0
    %2872 = vmatpush2.msra.mxu0 0.0
    %2873 = vmatprep.subr.mxu0 0.0
    %2874 = vmatpush2.msra.mxu0 0.0
    %2875 = vmatprep.subr.mxu0 0.0
    %2876 = vmatpush2.msra.mxu0 0.0
    %2877 = vmatprep.subr.mxu0 0.0
    %2878 = vmatpush2.msra.mxu0 0.0
    %2879 = vmatprep.subr.mxu0 0.0
    %2880 = vmatpush2.msra.mxu0 0.0
    %2881 = vmatprep.subr.mxu0 0.0
    %2882 = vmatpush2.msra.mxu0 0.0
    %2883 = vmatprep.subr.mxu0 0.0
    %2884 = vmatpush2.msra.mxu0 0.0
    %2885 = vmatprep.subr.mxu0 0.0
    %2886 = vmatpush2.msra.mxu0 0.0
    %2887 = vmatprep.subr.mxu0 0.0
    %2888 = vmatpush2.msra.mxu0 0.0
    %2889 = vmatprep.subr.mxu0 0.0
    %2890 = vmatpush2.msra.mxu0 0.0
    %2891 = vmatprep.subr.mxu0 0.0
    %2892 = vmatpush2.msra.mxu0 0.0
    %2893 = vmatprep.subr.mxu0 0.0
    %2894 = vmatpush2.msra.mxu0 0.0
    %2895 = vmatprep.subr.mxu0 0.0
    %2896 = vmatpush2.msra.mxu0 0.0
    %2897 = vmatprep.subr.mxu0 0.0
    %2898 = vmatpush2.msra.mxu0 0.0
    %2899 = vmatprep.subr.mxu0 0.0
    %2900 = vmatpush2.msra.mxu0 0.0
    %2901 = vmatprep.mubr.f32.mxu0 0.0
    %2902 = vmatmul.mubr.f32.gmra.mxu0 1.0
    %v2903 = vpop.f32.mrf.mxu0
    %v2904 = vadd.f32 %v2754, %v2903
    %v2905 = vpop.f32.mrf.mxu0
    %2906 = vdwg.mxu0
    %2907 = vmatprep.subr.mxu0 0.0
    %v2908 = vand.u32 %v2606, 4294901760
    %v2909 = vsub.f32 %v2606, %v2908
    %2910 = vmatpush1.msra.mxu0 %v2909
    %2911 = vmatprep.subr.mxu0 0.0
    %v2912 = vand.u32 %v2605, 4294901760
    %v2913 = vsub.f32 %v2605, %v2912
    %2914 = vmatpush1.msra.mxu0 %v2913
    %2915 = vmatprep.subr.mxu0 0.0
    %v2916 = vand.u32 %v2604, 4294901760
    %v2917 = vsub.f32 %v2604, %v2916
    %2918 = vmatpush1.msra.mxu0 %v2917
    %2919 = vmatprep.subr.mxu0 0.0
    %v2920 = vand.u32 %v2603, 4294901760
    %v2921 = vsub.f32 %v2603, %v2920
    %2922 = vmatpush1.msra.mxu0 %v2921
    %2923 = vmatprep.subr.mxu0 0.0
    %v2924 = vand.u32 %v2602, 4294901760
    %v2925 = vsub.f32 %v2602, %v2924
    %2926 = vmatpush1.msra.mxu0 %v2925
    %2927 = vmatprep.subr.mxu0 0.0
    %v2928 = vand.u32 %v2601, 4294901760
    %v2929 = vsub.f32 %v2601, %v2928
    %2930 = vmatpush1.msra.mxu0 %v2929
    %2931 = vmatprep.subr.mxu0 0.0
    %v2932 = vand.u32 %v2600, 4294901760
    %v2933 = vsub.f32 %v2600, %v2932
    %2934 = vmatpush1.msra.mxu0 %v2933
    %2935 = vmatprep.subr.mxu0 0.0
    %v2936 = vand.u32 %v2599, 4294901760
    %v2937 = vsub.f32 %v2599, %v2936
    %2938 = vmatpush1.msra.mxu0 %v2937
    %2939 = vmatprep.subr.mxu0 0.0
    %v2940 = vand.u32 %v2598, 4294901760
    %v2941 = vsub.f32 %v2598, %v2940
    %2942 = vmatpush1.msra.mxu0 %v2941
    %2943 = vmatprep.subr.mxu0 0.0
    %v2944 = vand.u32 %v2597, 4294901760
    %v2945 = vsub.f32 %v2597, %v2944
    %2946 = vmatpush1.msra.mxu0 %v2945
    %2947 = vmatprep.subr.mxu0 0.0
    %v2948 = vand.u32 %v2596, 4294901760
    %v2949 = vsub.f32 %v2596, %v2948
    %2950 = vmatpush1.msra.mxu0 %v2949
    %2951 = vmatprep.subr.mxu0 0.0
    %v2952 = vand.u32 %v2595, 4294901760
    %v2953 = vsub.f32 %v2595, %v2952
    %2954 = vmatpush1.msra.mxu0 %v2953
    %2955 = vmatprep.subr.mxu0 0.0
    %v2956 = vand.u32 %v2594, 4294901760
    %v2957 = vsub.f32 %v2594, %v2956
    %2958 = vmatpush1.msra.mxu0 %v2957
    %2959 = vmatprep.subr.mxu0 0.0
    %v2960 = vand.u32 %v2593, 4294901760
    %v2961 = vsub.f32 %v2593, %v2960
    %2962 = vmatpush1.msra.mxu0 %v2961
    %2963 = vmatprep.subr.mxu0 0.0
    %v2964 = vand.u32 %v2592, 4294901760
    %v2965 = vsub.f32 %v2592, %v2964
    %2966 = vmatpush1.msra.mxu0 %v2965
    %2967 = vmatprep.subr.mxu0 0.0
    %v2968 = vand.u32 %v2591, 4294901760
    %v2969 = vsub.f32 %v2591, %v2968
    %2970 = vmatpush1.msra.mxu0 %v2969
    %2971 = vmatprep.subr.mxu0 0.0
    %2972 = vmatpush2.msra.mxu0 0.0
    %2973 = vmatprep.subr.mxu0 0.0
    %2974 = vmatpush2.msra.mxu0 0.0
    %2975 = vmatprep.subr.mxu0 0.0
    %2976 = vmatpush2.msra.mxu0 0.0
    %2977 = vmatprep.subr.mxu0 0.0
    %2978 = vmatpush2.msra.mxu0 0.0
    %2979 = vmatprep.subr.mxu0 0.0
    %2980 = vmatpush2.msra.mxu0 0.0
    %2981 = vmatprep.subr.mxu0 0.0
    %2982 = vmatpush2.msra.mxu0 0.0
    %2983 = vmatprep.subr.mxu0 0.0
    %2984 = vmatpush2.msra.mxu0 0.0
    %2985 = vmatprep.subr.mxu0 0.0
    %2986 = vmatpush2.msra.mxu0 0.0
    %2987 = vmatprep.subr.mxu0 0.0
    %2988 = vmatpush2.msra.mxu0 0.0
    %2989 = vmatprep.subr.mxu0 0.0
    %2990 = vmatpush2.msra.mxu0 0.0
    %2991 = vmatprep.subr.mxu0 0.0
    %2992 = vmatpush2.msra.mxu0 0.0
    %2993 = vmatprep.subr.mxu0 0.0
    %2994 = vmatpush2.msra.mxu0 0.0
    %2995 = vmatprep.subr.mxu0 0.0
    %2996 = vmatpush2.msra.mxu0 0.0
    %2997 = vmatprep.subr.mxu0 0.0
    %2998 = vmatpush2.msra.mxu0 0.0
    %2999 = vmatprep.subr.mxu0 0.0
    %3000 = vmatpush2.msra.mxu0 0.0
    %3001 = vmatprep.subr.mxu0 0.0
    %3002 = vmatpush2.msra.mxu0 0.0
    %3003 = vmatprep.mubr.f32.mxu0 0.0
    %3004 = vmatmul.mubr.f32.gmra.mxu0 0.0
    %v3005 = vpop.f32.mrf.mxu0
    %v3006 = vadd.f32 %v2904, %v3005
    %v3007 = vpop.f32.mrf.mxu0
    %3008 = vdwg.mxu0
    %3009 = vmatprep.subr.mxu0 0.0
    %v3010 = vand.u32 %v2606, 4294901760
    %3011 = vmatpush1.msra.mxu0 %v3010
    %3012 = vmatprep.subr.mxu0 0.0
    %v3013 = vand.u32 %v2605, 4294901760
    %3014 = vmatpush1.msra.mxu0 %v3013
    %3015 = vmatprep.subr.mxu0 0.0
    %v3016 = vand.u32 %v2604, 4294901760
    %3017 = vmatpush1.msra.mxu0 %v3016
    %3018 = vmatprep.subr.mxu0 0.0
    %v3019 = vand.u32 %v2603, 4294901760
    %3020 = vmatpush1.msra.mxu0 %v3019
    %3021 = vmatprep.subr.mxu0 0.0
    %v3022 = vand.u32 %v2602, 4294901760
    %3023 = vmatpush1.msra.mxu0 %v3022
    %3024 = vmatprep.subr.mxu0 0.0
    %v3025 = vand.u32 %v2601, 4294901760
    %3026 = vmatpush1.msra.mxu0 %v3025
    %3027 = vmatprep.subr.mxu0 0.0
    %v3028 = vand.u32 %v2600, 4294901760
    %3029 = vmatpush1.msra.mxu0 %v3028
    %3030 = vmatprep.subr.mxu0 0.0
    %v3031 = vand.u32 %v2599, 4294901760
    %3032 = vmatpush1.msra.mxu0 %v3031
    %3033 = vmatprep.subr.mxu0 0.0
    %v3034 = vand.u32 %v2598, 4294901760
    %3035 = vmatpush1.msra.mxu0 %v3034
    %3036 = vmatprep.subr.mxu0 0.0
    %v3037 = vand.u32 %v2597, 4294901760
    %3038 = vmatpush1.msra.mxu0 %v3037
    %3039 = vmatprep.subr.mxu0 0.0
    %v3040 = vand.u32 %v2596, 4294901760
    %3041 = vmatpush1.msra.mxu0 %v3040
    %3042 = vmatprep.subr.mxu0 0.0
    %v3043 = vand.u32 %v2595, 4294901760
    %3044 = vmatpush1.msra.mxu0 %v3043
    %3045 = vmatprep.subr.mxu0 0.0
    %v3046 = vand.u32 %v2594, 4294901760
    %3047 = vmatpush1.msra.mxu0 %v3046
    %3048 = vmatprep.subr.mxu0 0.0
    %v3049 = vand.u32 %v2593, 4294901760
    %3050 = vmatpush1.msra.mxu0 %v3049
    %3051 = vmatprep.subr.mxu0 0.0
    %v3052 = vand.u32 %v2592, 4294901760
    %3053 = vmatpush1.msra.mxu0 %v3052
    %3054 = vmatprep.subr.mxu0 0.0
    %v3055 = vand.u32 %v2591, 4294901760
    %3056 = vmatpush1.msra.mxu0 %v3055
    %3057 = vmatprep.subr.mxu0 0.0
    %3058 = vmatpush2.msra.mxu0 0.0
    %3059 = vmatprep.subr.mxu0 0.0
    %3060 = vmatpush2.msra.mxu0 0.0
    %3061 = vmatprep.subr.mxu0 0.0
    %3062 = vmatpush2.msra.mxu0 0.0
    %3063 = vmatprep.subr.mxu0 0.0
    %3064 = vmatpush2.msra.mxu0 0.0
    %3065 = vmatprep.subr.mxu0 0.0
    %3066 = vmatpush2.msra.mxu0 0.0
    %3067 = vmatprep.subr.mxu0 0.0
    %3068 = vmatpush2.msra.mxu0 0.0
    %3069 = vmatprep.subr.mxu0 0.0
    %3070 = vmatpush2.msra.mxu0 0.0
    %3071 = vmatprep.subr.mxu0 0.0
    %3072 = vmatpush2.msra.mxu0 0.0
    %3073 = vmatprep.subr.mxu0 0.0
    %3074 = vmatpush2.msra.mxu0 0.0
    %3075 = vmatprep.subr.mxu0 0.0
    %3076 = vmatpush2.msra.mxu0 0.0
    %3077 = vmatprep.subr.mxu0 0.0
    %3078 = vmatpush2.msra.mxu0 0.0
    %3079 = vmatprep.subr.mxu0 0.0
    %3080 = vmatpush2.msra.mxu0 0.0
    %3081 = vmatprep.subr.mxu0 0.0
    %3082 = vmatpush2.msra.mxu0 0.0
    %3083 = vmatprep.subr.mxu0 0.0
    %3084 = vmatpush2.msra.mxu0 0.0
    %3085 = vmatprep.subr.mxu0 0.0
    %3086 = vmatpush2.msra.mxu0 0.0
    %3087 = vmatprep.subr.mxu0 0.0
    %3088 = vmatpush2.msra.mxu0 0.0
    %3089 = vmatprep.mubr.f32.mxu0 0.0
    %3090 = vmatmul.mubr.f32.gmra.mxu0 0.0
    %v3091 = vpop.f32.mrf.mxu0
    %v3092 = vadd.f32 %v3006, %v3091
    %v3093 = vpop.f32.mrf.mxu0
    %3094 = vdwg.mxu0
    %3095 = vmatprep.subr.mxu0 0.0
    %v3096 = vand.u32 %v2606, 4294901760
    %v3097 = vsub.f32 %v2606, %v3096
    %v3098 = vand.u32 %v3097, 4294901760
    %3099 = vmatpush1.msra.mxu0 %v3098
    %3100 = vmatprep.subr.mxu0 0.0
    %v3101 = vand.u32 %v2605, 4294901760
    %v3102 = vsub.f32 %v2605, %v3101
    %v3103 = vand.u32 %v3102, 4294901760
    %3104 = vmatpush1.msra.mxu0 %v3103
    %3105 = vmatprep.subr.mxu0 0.0
    %v3106 = vand.u32 %v2604, 4294901760
    %v3107 = vsub.f32 %v2604, %v3106
    %v3108 = vand.u32 %v3107, 4294901760
    %3109 = vmatpush1.msra.mxu0 %v3108
    %3110 = vmatprep.subr.mxu0 0.0
    %v3111 = vand.u32 %v2603, 4294901760
    %v3112 = vsub.f32 %v2603, %v3111
    %v3113 = vand.u32 %v3112, 4294901760
    %3114 = vmatpush1.msra.mxu0 %v3113
    %3115 = vmatprep.subr.mxu0 0.0
    %v3116 = vand.u32 %v2602, 4294901760
    %v3117 = vsub.f32 %v2602, %v3116
    %v3118 = vand.u32 %v3117, 4294901760
    %3119 = vmatpush1.msra.mxu0 %v3118
    %3120 = vmatprep.subr.mxu0 0.0
    %v3121 = vand.u32 %v2601, 4294901760
    %v3122 = vsub.f32 %v2601, %v3121
    %v3123 = vand.u32 %v3122, 4294901760
    %3124 = vmatpush1.msra.mxu0 %v3123
    %3125 = vmatprep.subr.mxu0 0.0
    %v3126 = vand.u32 %v2600, 4294901760
    %v3127 = vsub.f32 %v2600, %v3126
    %v3128 = vand.u32 %v3127, 4294901760
    %3129 = vmatpush1.msra.mxu0 %v3128
    %3130 = vmatprep.subr.mxu0 0.0
    %v3131 = vand.u32 %v2599, 4294901760
    %v3132 = vsub.f32 %v2599, %v3131
    %v3133 = vand.u32 %v3132, 4294901760
    %3134 = vmatpush1.msra.mxu0 %v3133
    %3135 = vmatprep.subr.mxu0 0.0
    %v3136 = vand.u32 %v2598, 4294901760
    %v3137 = vsub.f32 %v2598, %v3136
    %v3138 = vand.u32 %v3137, 4294901760
    %3139 = vmatpush1.msra.mxu0 %v3138
    %3140 = vmatprep.subr.mxu0 0.0
    %v3141 = vand.u32 %v2597, 4294901760
    %v3142 = vsub.f32 %v2597, %v3141
    %v3143 = vand.u32 %v3142, 4294901760
    %3144 = vmatpush1.msra.mxu0 %v3143
    %3145 = vmatprep.subr.mxu0 0.0
    %v3146 = vand.u32 %v2596, 4294901760
    %v3147 = vsub.f32 %v2596, %v3146
    %v3148 = vand.u32 %v3147, 4294901760
    %3149 = vmatpush1.msra.mxu0 %v3148
    %3150 = vmatprep.subr.mxu0 0.0
    %v3151 = vand.u32 %v2595, 4294901760
    %v3152 = vsub.f32 %v2595, %v3151
    %v3153 = vand.u32 %v3152, 4294901760
    %3154 = vmatpush1.msra.mxu0 %v3153
    %3155 = vmatprep.subr.mxu0 0.0
    %v3156 = vand.u32 %v2594, 4294901760
    %v3157 = vsub.f32 %v2594, %v3156
    %v3158 = vand.u32 %v3157, 4294901760
    %3159 = vmatpush1.msra.mxu0 %v3158
    %3160 = vmatprep.subr.mxu0 0.0
    %v3161 = vand.u32 %v2593, 4294901760
    %v3162 = vsub.f32 %v2593, %v3161
    %v3163 = vand.u32 %v3162, 4294901760
    %3164 = vmatpush1.msra.mxu0 %v3163
    %3165 = vmatprep.subr.mxu0 0.0
    %v3166 = vand.u32 %v2592, 4294901760
    %v3167 = vsub.f32 %v2592, %v3166
    %v3168 = vand.u32 %v3167, 4294901760
    %3169 = vmatpush1.msra.mxu0 %v3168
    %3170 = vmatprep.subr.mxu0 0.0
    %v3171 = vand.u32 %v2591, 4294901760
    %v3172 = vsub.f32 %v2591, %v3171
    %v3173 = vand.u32 %v3172, 4294901760
    %3174 = vmatpush1.msra.mxu0 %v3173
    %3175 = vmatprep.subr.mxu0 0.0
    %3176 = vmatpush2.msra.mxu0 0.0
    %3177 = vmatprep.subr.mxu0 0.0
    %3178 = vmatpush2.msra.mxu0 0.0
    %3179 = vmatprep.subr.mxu0 0.0
    %3180 = vmatpush2.msra.mxu0 0.0
    %3181 = vmatprep.subr.mxu0 0.0
    %3182 = vmatpush2.msra.mxu0 0.0
    %3183 = vmatprep.subr.mxu0 0.0
    %3184 = vmatpush2.msra.mxu0 0.0
    %3185 = vmatprep.subr.mxu0 0.0
    %3186 = vmatpush2.msra.mxu0 0.0
    %3187 = vmatprep.subr.mxu0 0.0
    %3188 = vmatpush2.msra.mxu0 0.0
    %3189 = vmatprep.subr.mxu0 0.0
    %3190 = vmatpush2.msra.mxu0 0.0
    %3191 = vmatprep.subr.mxu0 0.0
    %3192 = vmatpush2.msra.mxu0 0.0
    %3193 = vmatprep.subr.mxu0 0.0
    %3194 = vmatpush2.msra.mxu0 0.0
    %3195 = vmatprep.subr.mxu0 0.0
    %3196 = vmatpush2.msra.mxu0 0.0
    %3197 = vmatprep.subr.mxu0 0.0
    %3198 = vmatpush2.msra.mxu0 0.0
    %3199 = vmatprep.subr.mxu0 0.0
    %3200 = vmatpush2.msra.mxu0 0.0
    %3201 = vmatprep.subr.mxu0 0.0
    %3202 = vmatpush2.msra.mxu0 0.0
    %3203 = vmatprep.subr.mxu0 0.0
    %3204 = vmatpush2.msra.mxu0 0.0
    %3205 = vmatprep.subr.mxu0 0.0
    %3206 = vmatpush2.msra.mxu0 0.0
    %3207 = vmatprep.mubr.f32.mxu0 0.0
    %3208 = vmatmul.mubr.f32.gmra.mxu0 1.0
    %v3209 = vpop.f32.mrf.mxu0
    %v3210 = vadd.f32 %v3092, %v3209
    %v3211 = vpop.f32.mrf.mxu0
    %3212 = vdwg.mxu0
    %3213 = vmatprep.subr.mxu0 0.0
    %v3214 = vand.u32 %v2606, 4294901760
    %3215 = vmatpush1.msra.mxu0 %v3214
    %3216 = vmatprep.subr.mxu0 0.0
    %v3217 = vand.u32 %v2605, 4294901760
    %3218 = vmatpush1.msra.mxu0 %v3217
    %3219 = vmatprep.subr.mxu0 0.0
    %v3220 = vand.u32 %v2604, 4294901760
    %3221 = vmatpush1.msra.mxu0 %v3220
    %3222 = vmatprep.subr.mxu0 0.0
    %v3223 = vand.u32 %v2603, 4294901760
    %3224 = vmatpush1.msra.mxu0 %v3223
    %3225 = vmatprep.subr.mxu0 0.0
    %v3226 = vand.u32 %v2602, 4294901760
    %3227 = vmatpush1.msra.mxu0 %v3226
    %3228 = vmatprep.subr.mxu0 0.0
    %v3229 = vand.u32 %v2601, 4294901760
    %3230 = vmatpush1.msra.mxu0 %v3229
    %3231 = vmatprep.subr.mxu0 0.0
    %v3232 = vand.u32 %v2600, 4294901760
    %3233 = vmatpush1.msra.mxu0 %v3232
    %3234 = vmatprep.subr.mxu0 0.0
    %v3235 = vand.u32 %v2599, 4294901760
    %3236 = vmatpush1.msra.mxu0 %v3235
    %3237 = vmatprep.subr.mxu0 0.0
    %v3238 = vand.u32 %v2598, 4294901760
    %3239 = vmatpush1.msra.mxu0 %v3238
    %3240 = vmatprep.subr.mxu0 0.0
    %v3241 = vand.u32 %v2597, 4294901760
    %3242 = vmatpush1.msra.mxu0 %v3241
    %3243 = vmatprep.subr.mxu0 0.0
    %v3244 = vand.u32 %v2596, 4294901760
    %3245 = vmatpush1.msra.mxu0 %v3244
    %3246 = vmatprep.subr.mxu0 0.0
    %v3247 = vand.u32 %v2595, 4294901760
    %3248 = vmatpush1.msra.mxu0 %v3247
    %3249 = vmatprep.subr.mxu0 0.0
    %v3250 = vand.u32 %v2594, 4294901760
    %3251 = vmatpush1.msra.mxu0 %v3250
    %3252 = vmatprep.subr.mxu0 0.0
    %v3253 = vand.u32 %v2593, 4294901760
    %3254 = vmatpush1.msra.mxu0 %v3253
    %3255 = vmatprep.subr.mxu0 0.0
    %v3256 = vand.u32 %v2592, 4294901760
    %3257 = vmatpush1.msra.mxu0 %v3256
    %3258 = vmatprep.subr.mxu0 0.0
    %v3259 = vand.u32 %v2591, 4294901760
    %3260 = vmatpush1.msra.mxu0 %v3259
    %3261 = vmatprep.subr.mxu0 0.0
    %3262 = vmatpush2.msra.mxu0 0.0
    %3263 = vmatprep.subr.mxu0 0.0
    %3264 = vmatpush2.msra.mxu0 0.0
    %3265 = vmatprep.subr.mxu0 0.0
    %3266 = vmatpush2.msra.mxu0 0.0
    %3267 = vmatprep.subr.mxu0 0.0
    %3268 = vmatpush2.msra.mxu0 0.0
    %3269 = vmatprep.subr.mxu0 0.0
    %3270 = vmatpush2.msra.mxu0 0.0
    %3271 = vmatprep.subr.mxu0 0.0
    %3272 = vmatpush2.msra.mxu0 0.0
    %3273 = vmatprep.subr.mxu0 0.0
    %3274 = vmatpush2.msra.mxu0 0.0
    %3275 = vmatprep.subr.mxu0 0.0
    %3276 = vmatpush2.msra.mxu0 0.0
    %3277 = vmatprep.subr.mxu0 0.0
    %3278 = vmatpush2.msra.mxu0 0.0
    %3279 = vmatprep.subr.mxu0 0.0
    %3280 = vmatpush2.msra.mxu0 0.0
    %3281 = vmatprep.subr.mxu0 0.0
    %3282 = vmatpush2.msra.mxu0 0.0
    %3283 = vmatprep.subr.mxu0 0.0
    %3284 = vmatpush2.msra.mxu0 0.0
    %3285 = vmatprep.subr.mxu0 0.0
    %3286 = vmatpush2.msra.mxu0 0.0
    %3287 = vmatprep.subr.mxu0 0.0
    %3288 = vmatpush2.msra.mxu0 0.0
    %3289 = vmatprep.subr.mxu0 0.0
    %3290 = vmatpush2.msra.mxu0 0.0
    %3291 = vmatprep.subr.mxu0 0.0
    %3292 = vmatpush2.msra.mxu0 0.0
    %3293 = vmatprep.mubr.f32.mxu0 0.0
    %3294 = vmatmul.mubr.f32.gmra.mxu0 1.0
    %v3295 = vpop.f32.mrf.mxu0
    %v3296 = vadd.f32 %v3210, %v3295
    %v3297 = vpop.f32.mrf.mxu0
    %3298 = vdwg.mxu0
    %v3299 = vrsqrt.pop %v3296
    %v3300 = vmul.f32 %v77, %v2608
    %v3301 = vmul.f32 %v78, %v2610
    %v3302 = vmul.f32 %v79, %v2612
    %v3303 = vmul.f32 %v80, %v2614
    %v3304 = vmul.f32 %v81, %v2616
    %v3305 = vmul.f32 %v82, %v2618
    %v3306 = vmul.f32 %v83, %v2620
    %v3307 = vmul.f32 %v84, %v2622
    %v3308 = vmul.f32 %v85, %v2624
    %v3309 = vmul.f32 %v86, %v2626
    %v3310 = vmul.f32 %v87, %v2628
    %v3311 = vmul.f32 %v88, %v2630
    %v3312 = vmul.f32 %v89, %v2632
    %v3313 = vmul.f32 %v90, %v2634
    %v3314 = vmul.f32 %v91, %v2636
    %v3315 = vmul.f32 %v92, %v2638
    %v3316 = vsub.f32 %v3300, %v2591
    %v3317 = vsub.f32 %v3301, %v2592
    %v3318 = vsub.f32 %v3302, %v2593
    %v3319 = vsub.f32 %v3303, %v2594
    %v3320 = vsub.f32 %v3304, %v2595
    %v3321 = vsub.f32 %v3305, %v2596
    %v3322 = vsub.f32 %v3306, %v2597
    %v3323 = vsub.f32 %v3307, %v2598
    %v3324 = vsub.f32 %v3308, %v2599
    %v3325 = vsub.f32 %v3309, %v2600
    %v3326 = vsub.f32 %v3310, %v2601
    %v3327 = vsub.f32 %v3311, %v2602
    %v3328 = vsub.f32 %v3312, %v2603
    %v3329 = vsub.f32 %v3313, %v2604
    %v3330 = vsub.f32 %v3314, %v2605
    %v3331 = vsub.f32 %v3315, %v2606
    %v3332 = vmul.f32 %v2655, %v3316
    %v3333 = vmul.f32 %v2656, %v3317
    %v3334 = vmul.f32 %v2657, %v3318
    %v3335 = vmul.f32 %v2658, %v3319
    %v3336 = vmul.f32 %v2659, %v3320
    %v3337 = vmul.f32 %v2660, %v3321
    %v3338 = vmul.f32 %v2661, %v3322
    %v3339 = vmul.f32 %v2662, %v3323
    %v3340 = vmul.f32 %v2663, %v3324
    %v3341 = vmul.f32 %v2664, %v3325
    %v3342 = vmul.f32 %v2665, %v3326
    %v3343 = vmul.f32 %v2666, %v3327
    %v3344 = vmul.f32 %v2667, %v3328
    %v3345 = vmul.f32 %v2668, %v3329
    %v3346 = vmul.f32 %v2669, %v3330
    %v3347 = vmul.f32 %v2670, %v3331
    %v3348 = vlaneseq
    %v3349 = vshrl.u32 %v3348, 7
    %v3350 = vsub.s32 0, %v3349
    %v3351 = vrot.slane %v3299, %v3350
    %v3352 = vmul.f32 %v3332, %v3351
    %v3353 = vmul.f32 %v3333, %v3351
    %v3354 = vmul.f32 %v3334, %v3351
    %v3355 = vmul.f32 %v3335, %v3351
    %v3356 = vmul.f32 %v3336, %v3351
    %v3357 = vmul.f32 %v3337, %v3351
    %v3358 = vmul.f32 %v3338, %v3351
    %v3359 = vmul.f32 %v3339, %v3351
    %v3360 = vmul.f32 %v3340, %v3351
    %v3361 = vmul.f32 %v3341, %v3351
    %v3362 = vmul.f32 %v3342, %v3351
    %v3363 = vmul.f32 %v3343, %v3351
    %v3364 = vmul.f32 %v3344, %v3351
    %v3365 = vmul.f32 %v3345, %v3351
    %v3366 = vmul.f32 %v3346, %v3351
    %v3367 = vmul.f32 %v3347, %v3351
    %v3368 = vmul.f32 %v3352, -0.625
    %v3369 = vmul.f32 %v3353, -0.625
    %v3370 = vmul.f32 %v3354, -0.625
    %v3371 = vmul.f32 %v3355, -0.625
    %v3372 = vmul.f32 %v3356, -0.625
    %v3373 = vmul.f32 %v3357, -0.625
    %v3374 = vmul.f32 %v3358, -0.625
    %v3375 = vmul.f32 %v3359, -0.625
    %v3376 = vmul.f32 %v3360, -0.625
    %v3377 = vmul.f32 %v3361, -0.625
    %v3378 = vmul.f32 %v3362, -0.625
    %v3379 = vmul.f32 %v3363, -0.625
    %v3380 = vmul.f32 %v3364, -0.625
    %v3381 = vmul.f32 %v3365, -0.625
    %v3382 = vmul.f32 %v3366, -0.625
    %v3383 = vmul.f32 %v3367, -0.625
    %v3384 = vpack.c.bf16 %v3369, %v3368
    %v3385 = vpack.c.bf16 %v3371, %v3370
    %v3386 = vpack.c.bf16 %v3373, %v3372
    %v3387 = vpack.c.bf16 %v3375, %v3374
    %v3388 = vpack.c.bf16 %v3377, %v3376
    %v3389 = vpack.c.bf16 %v3379, %v3378
    %v3390 = vpack.c.bf16 %v3381, %v3380
    %v3391 = vpack.c.bf16 %v3383, %v3382
    %v3392 = vunpack.c.l.bf16 %v3384
    %v3393 = vunpack.c.h.bf16 %v3384
    %v3394 = vunpack.c.l.bf16 %v3385
    %v3395 = vunpack.c.h.bf16 %v3385
    %v3396 = vunpack.c.l.bf16 %v3386
    %v3397 = vunpack.c.h.bf16 %v3386
    %v3398 = vunpack.c.l.bf16 %v3387
    %v3399 = vunpack.c.h.bf16 %v3387
    %v3400 = vunpack.c.l.bf16 %v3388
    %v3401 = vunpack.c.h.bf16 %v3388
    %v3402 = vunpack.c.l.bf16 %v3389
    %v3403 = vunpack.c.h.bf16 %v3389
    %v3404 = vunpack.c.l.bf16 %v3390
    %v3405 = vunpack.c.h.bf16 %v3390
    %v3406 = vunpack.c.l.bf16 %v3391
    %v3407 = vunpack.c.h.bf16 %v3391
    %v3408 = vsub.f32 %v3368, %v3392
    %v3409 = vsub.f32 %v3369, %v3393
    %v3410 = vsub.f32 %v3370, %v3394
    %v3411 = vsub.f32 %v3371, %v3395
    %v3412 = vsub.f32 %v3372, %v3396
    %v3413 = vsub.f32 %v3373, %v3397
    %v3414 = vsub.f32 %v3374, %v3398
    %v3415 = vsub.f32 %v3375, %v3399
    %v3416 = vsub.f32 %v3376, %v3400
    %v3417 = vsub.f32 %v3377, %v3401
    %v3418 = vsub.f32 %v3378, %v3402
    %v3419 = vsub.f32 %v3379, %v3403
    %v3420 = vsub.f32 %v3380, %v3404
    %v3421 = vsub.f32 %v3381, %v3405
    %v3422 = vsub.f32 %v3382, %v3406
    %v3423 = vsub.f32 %v3383, %v3407
    %v3424 = vpack.c.bf16 %v3409, %v3408
    %v3425 = vpack.c.bf16 %v3411, %v3410
    %v3426 = vpack.c.bf16 %v3413, %v3412
    %v3427 = vpack.c.bf16 %v3415, %v3414
    %v3428 = vpack.c.bf16 %v3417, %v3416
    %v3429 = vpack.c.bf16 %v3419, %v3418
    %v3430 = vpack.c.bf16 %v3421, %v3420
    %v3431 = vpack.c.bf16 %v3423, %v3422
    %3432 = vmatprep.subr.bf16.mxu0 0
    %3433 = vmatpush1.bf16.msra.mxu0 %v3391
    %3434 = vmatprep.subr.bf16.mxu0 0
    %3435 = vmatpush1.bf16.msra.mxu0 %v3390
    %3436 = vmatprep.subr.bf16.mxu0 0
    %3437 = vmatpush1.bf16.msra.mxu0 %v3389
    %3438 = vmatprep.subr.bf16.mxu0 0
    %3439 = vmatpush1.bf16.msra.mxu0 %v3388
    %3440 = vmatprep.subr.bf16.mxu0 0
    %3441 = vmatpush1.bf16.msra.mxu0 %v3387
    %3442 = vmatprep.subr.bf16.mxu0 0
    %3443 = vmatpush1.bf16.msra.mxu0 %v3386
    %3444 = vmatprep.subr.bf16.mxu0 0
    %3445 = vmatpush1.bf16.msra.mxu0 %v3385
    %3446 = vmatprep.subr.bf16.mxu0 0
    %3447 = vmatpush1.bf16.msra.mxu0 %v3384
    %3448 = vmatprep.subr.bf16.mxu0 0
    %3449 = vmatpush2.bf16.msra.mxu0 0
    %3450 = vmatprep.subr.bf16.mxu0 0
    %3451 = vmatpush2.bf16.msra.mxu0 0
    %3452 = vmatprep.subr.bf16.mxu0 0
    %3453 = vmatpush2.bf16.msra.mxu0 0
    %3454 = vmatprep.subr.bf16.mxu0 0
    %3455 = vmatpush2.bf16.msra.mxu0 0
    %3456 = vmatprep.subr.bf16.mxu0 0
    %3457 = vmatpush2.bf16.msra.mxu0 0
    %3458 = vmatprep.subr.bf16.mxu0 0
    %3459 = vmatpush2.bf16.msra.mxu0 0
    %3460 = vmatprep.subr.bf16.mxu0 0
    %3461 = vmatpush2.bf16.msra.mxu0 0
    %3462 = vmatprep.subr.bf16.mxu0 0
    %3463 = vmatpush2.bf16.msra.mxu0 0
    %3464 = vmatprep.mubr.bf16.mxu0 0
    %3465 = vmatmul.mubr.bf16.gmra.mxu0 %v3424
    %v3466 = vpop.f32.mrf.mxu0
    %v3467 = vadd.f32 0.0, %v3466
    %v3468 = vpop.f32.mrf.mxu0
    %v3469 = vpop.f32.mrf.mxu0
    %v3470 = vadd.f32 0.0, %v3469
    %v3471 = vpop.f32.mrf.mxu0
    %3472 = vmatprep.mubr.bf16.mxu0 0
    %3473 = vmatmul.mubr.bf16.gmra.mxu0 %v3425
    %v3474 = vpop.f32.mrf.mxu0
    %v3475 = vadd.f32 0.0, %v3474
    %v3476 = vpop.f32.mrf.mxu0
    %v3477 = vpop.f32.mrf.mxu0
    %v3478 = vadd.f32 0.0, %v3477
    %v3479 = vpop.f32.mrf.mxu0
    %3480 = vmatprep.mubr.bf16.mxu0 0
    %3481 = vmatmul.mubr.bf16.gmra.mxu0 %v3426
    %v3482 = vpop.f32.mrf.mxu0
    %v3483 = vadd.f32 0.0, %v3482
    %v3484 = vpop.f32.mrf.mxu0
    %v3485 = vpop.f32.mrf.mxu0
    %v3486 = vadd.f32 0.0, %v3485
    %v3487 = vpop.f32.mrf.mxu0
    %3488 = vmatprep.mubr.bf16.mxu0 0
    %3489 = vmatmul.mubr.bf16.gmra.mxu0 %v3427
    %v3490 = vpop.f32.mrf.mxu0
    %v3491 = vadd.f32 0.0, %v3490
    %v3492 = vpop.f32.mrf.mxu0
    %v3493 = vpop.f32.mrf.mxu0
    %v3494 = vadd.f32 0.0, %v3493
    %v3495 = vpop.f32.mrf.mxu0
    %3496 = vmatprep.mubr.bf16.mxu0 0
    %3497 = vmatmul.mubr.bf16.gmra.mxu0 %v3428
    %v3498 = vpop.f32.mrf.mxu0
    %v3499 = vadd.f32 0.0, %v3498
    %v3500 = vpop.f32.mrf.mxu0
    %v3501 = vpop.f32.mrf.mxu0
    %v3502 = vadd.f32 0.0, %v3501
    %v3503 = vpop.f32.mrf.mxu0
    %3504 = vmatprep.mubr.bf16.mxu0 0
    %3505 = vmatmul.mubr.bf16.gmra.mxu0 %v3429
    %v3506 = vpop.f32.mrf.mxu0
    %v3507 = vadd.f32 0.0, %v3506
    %v3508 = vpop.f32.mrf.mxu0
    %v3509 = vpop.f32.mrf.mxu0
    %v3510 = vadd.f32 0.0, %v3509
    %v3511 = vpop.f32.mrf.mxu0
    %3512 = vmatprep.mubr.bf16.mxu0 0
    %3513 = vmatmul.mubr.bf16.gmra.mxu0 %v3430
    %v3514 = vpop.f32.mrf.mxu0
    %v3515 = vadd.f32 0.0, %v3514
    %v3516 = vpop.f32.mrf.mxu0
    %v3517 = vpop.f32.mrf.mxu0
    %v3518 = vadd.f32 0.0, %v3517
    %v3519 = vpop.f32.mrf.mxu0
    %3520 = vmatprep.mubr.bf16.mxu0 0
    %3521 = vmatmul.mubr.bf16.gmra.mxu0 %v3431
    %v3522 = vpop.f32.mrf.mxu0
    %v3523 = vadd.f32 0.0, %v3522
    %v3524 = vpop.f32.mrf.mxu0
    %v3525 = vpop.f32.mrf.mxu0
    %v3526 = vadd.f32 0.0, %v3525
    %v3527 = vpop.f32.mrf.mxu0
    %3528 = vdwg.mxu0
    %3529 = vmatprep.subr.bf16.mxu0 0
    %3530 = vmatpush1.bf16.msra.mxu0 %v3391
    %3531 = vmatprep.subr.bf16.mxu0 0
    %3532 = vmatpush1.bf16.msra.mxu0 %v3390
    %3533 = vmatprep.subr.bf16.mxu0 0
    %3534 = vmatpush1.bf16.msra.mxu0 %v3389
    %3535 = vmatprep.subr.bf16.mxu0 0
    %3536 = vmatpush1.bf16.msra.mxu0 %v3388
    %3537 = vmatprep.subr.bf16.mxu0 0
    %3538 = vmatpush1.bf16.msra.mxu0 %v3387
    %3539 = vmatprep.subr.bf16.mxu0 0
    %3540 = vmatpush1.bf16.msra.mxu0 %v3386
    %3541 = vmatprep.subr.bf16.mxu0 0
    %3542 = vmatpush1.bf16.msra.mxu0 %v3385
    %3543 = vmatprep.subr.bf16.mxu0 0
    %3544 = vmatpush1.bf16.msra.mxu0 %v3384
    %3545 = vmatprep.subr.bf16.mxu0 0
    %3546 = vmatpush2.bf16.msra.mxu0 0
    %3547 = vmatprep.subr.bf16.mxu0 0
    %3548 = vmatpush2.bf16.msra.mxu0 0
    %3549 = vmatprep.subr.bf16.mxu0 0
    %3550 = vmatpush2.bf16.msra.mxu0 0
    %3551 = vmatprep.subr.bf16.mxu0 0
    %3552 = vmatpush2.bf16.msra.mxu0 0
    %3553 = vmatprep.subr.bf16.mxu0 0
    %3554 = vmatpush2.bf16.msra.mxu0 0
    %3555 = vmatprep.subr.bf16.mxu0 0
    %3556 = vmatpush2.bf16.msra.mxu0 0
    %3557 = vmatprep.subr.bf16.mxu0 0
    %3558 = vmatpush2.bf16.msra.mxu0 0
    %3559 = vmatprep.subr.bf16.mxu0 0
    %3560 = vmatpush2.bf16.msra.mxu0 0
    %3561 = vmatprep.mubr.bf16.mxu0 0
    %3562 = vmatmul.mubr.bf16.gmra.mxu0 %v3384
    %v3563 = vpop.f32.mrf.mxu0
    %v3564 = vadd.f32 %v3467, %v3563
    %v3565 = vpop.f32.mrf.mxu0
    %v3566 = vpop.f32.mrf.mxu0
    %v3567 = vadd.f32 %v3470, %v3566
    %v3568 = vpop.f32.mrf.mxu0
    %3569 = vmatprep.mubr.bf16.mxu0 0
    %3570 = vmatmul.mubr.bf16.gmra.mxu0 %v3385
    %v3571 = vpop.f32.mrf.mxu0
    %v3572 = vadd.f32 %v3475, %v3571
    %v3573 = vpop.f32.mrf.mxu0
    %v3574 = vpop.f32.mrf.mxu0
    %v3575 = vadd.f32 %v3478, %v3574
    %v3576 = vpop.f32.mrf.mxu0
    %3577 = vmatprep.mubr.bf16.mxu0 0
    %3578 = vmatmul.mubr.bf16.gmra.mxu0 %v3386
    %v3579 = vpop.f32.mrf.mxu0
    %v3580 = vadd.f32 %v3483, %v3579
    %v3581 = vpop.f32.mrf.mxu0
    %v3582 = vpop.f32.mrf.mxu0
    %v3583 = vadd.f32 %v3486, %v3582
    %v3584 = vpop.f32.mrf.mxu0
    %3585 = vmatprep.mubr.bf16.mxu0 0
    %3586 = vmatmul.mubr.bf16.gmra.mxu0 %v3387
    %v3587 = vpop.f32.mrf.mxu0
    %v3588 = vadd.f32 %v3491, %v3587
    %v3589 = vpop.f32.mrf.mxu0
    %v3590 = vpop.f32.mrf.mxu0
    %v3591 = vadd.f32 %v3494, %v3590
    %v3592 = vpop.f32.mrf.mxu0
    %3593 = vmatprep.mubr.bf16.mxu0 0
    %3594 = vmatmul.mubr.bf16.gmra.mxu0 %v3388
    %v3595 = vpop.f32.mrf.mxu0
    %v3596 = vadd.f32 %v3499, %v3595
    %v3597 = vpop.f32.mrf.mxu0
    %v3598 = vpop.f32.mrf.mxu0
    %v3599 = vadd.f32 %v3502, %v3598
    %v3600 = vpop.f32.mrf.mxu0
    %3601 = vmatprep.mubr.bf16.mxu0 0
    %3602 = vmatmul.mubr.bf16.gmra.mxu0 %v3389
    %v3603 = vpop.f32.mrf.mxu0
    %v3604 = vadd.f32 %v3507, %v3603
    %v3605 = vpop.f32.mrf.mxu0
    %v3606 = vpop.f32.mrf.mxu0
    %v3607 = vadd.f32 %v3510, %v3606
    %v3608 = vpop.f32.mrf.mxu0
    %3609 = vmatprep.mubr.bf16.mxu0 0
    %3610 = vmatmul.mubr.bf16.gmra.mxu0 %v3390
    %v3611 = vpop.f32.mrf.mxu0
    %v3612 = vadd.f32 %v3515, %v3611
    %v3613 = vpop.f32.mrf.mxu0
    %v3614 = vpop.f32.mrf.mxu0
    %v3615 = vadd.f32 %v3518, %v3614
    %v3616 = vpop.f32.mrf.mxu0
    %3617 = vmatprep.mubr.bf16.mxu0 0
    %3618 = vmatmul.mubr.bf16.gmra.mxu0 %v3391
    %v3619 = vpop.f32.mrf.mxu0
    %v3620 = vadd.f32 %v3523, %v3619
    %v3621 = vpop.f32.mrf.mxu0
    %v3622 = vpop.f32.mrf.mxu0
    %v3623 = vadd.f32 %v3526, %v3622
    %v3624 = vpop.f32.mrf.mxu0
    %3625 = vdwg.mxu0
    %3626 = vmatprep.subr.bf16.mxu0 0
    %3627 = vmatpush1.bf16.msra.mxu0 %v3431
    %3628 = vmatprep.subr.bf16.mxu0 0
    %3629 = vmatpush1.bf16.msra.mxu0 %v3430
    %3630 = vmatprep.subr.bf16.mxu0 0
    %3631 = vmatpush1.bf16.msra.mxu0 %v3429
    %3632 = vmatprep.subr.bf16.mxu0 0
    %3633 = vmatpush1.bf16.msra.mxu0 %v3428
    %3634 = vmatprep.subr.bf16.mxu0 0
    %3635 = vmatpush1.bf16.msra.mxu0 %v3427
    %3636 = vmatprep.subr.bf16.mxu0 0
    %3637 = vmatpush1.bf16.msra.mxu0 %v3426
    %3638 = vmatprep.subr.bf16.mxu0 0
    %3639 = vmatpush1.bf16.msra.mxu0 %v3425
    %3640 = vmatprep.subr.bf16.mxu0 0
    %3641 = vmatpush1.bf16.msra.mxu0 %v3424
    %3642 = vmatprep.subr.bf16.mxu0 0
    %3643 = vmatpush2.bf16.msra.mxu0 0
    %3644 = vmatprep.subr.bf16.mxu0 0
    %3645 = vmatpush2.bf16.msra.mxu0 0
    %3646 = vmatprep.subr.bf16.mxu0 0
    %3647 = vmatpush2.bf16.msra.mxu0 0
    %3648 = vmatprep.subr.bf16.mxu0 0
    %3649 = vmatpush2.bf16.msra.mxu0 0
    %3650 = vmatprep.subr.bf16.mxu0 0
    %3651 = vmatpush2.bf16.msra.mxu0 0
    %3652 = vmatprep.subr.bf16.mxu0 0
    %3653 = vmatpush2.bf16.msra.mxu0 0
    %3654 = vmatprep.subr.bf16.mxu0 0
    %3655 = vmatpush2.bf16.msra.mxu0 0
    %3656 = vmatprep.subr.bf16.mxu0 0
    %3657 = vmatpush2.bf16.msra.mxu0 0
    %3658 = vmatprep.mubr.bf16.mxu0 0
    %3659 = vmatmul.mubr.bf16.gmra.mxu0 %v3384
    %v3660 = vpop.f32.mrf.mxu0
    %v3661 = vadd.f32 0.0, %v3660
    %v3662 = vpop.f32.mrf.mxu0
    %v3663 = vpop.f32.mrf.mxu0
    %v3664 = vadd.f32 0.0, %v3663
    %v3665 = vpop.f32.mrf.mxu0
    %3666 = vmatprep.mubr.bf16.mxu0 0
    %3667 = vmatmul.mubr.bf16.gmra.mxu0 %v3385
    %v3668 = vpop.f32.mrf.mxu0
    %v3669 = vadd.f32 0.0, %v3668
    %v3670 = vpop.f32.mrf.mxu0
    %v3671 = vpop.f32.mrf.mxu0
    %v3672 = vadd.f32 0.0, %v3671
    %v3673 = vpop.f32.mrf.mxu0
    %3674 = vmatprep.mubr.bf16.mxu0 0
    %3675 = vmatmul.mubr.bf16.gmra.mxu0 %v3386
    %v3676 = vpop.f32.mrf.mxu0
    %v3677 = vadd.f32 0.0, %v3676
    %v3678 = vpop.f32.mrf.mxu0
    %v3679 = vpop.f32.mrf.mxu0
    %v3680 = vadd.f32 0.0, %v3679
    %v3681 = vpop.f32.mrf.mxu0
    %3682 = vmatprep.mubr.bf16.mxu0 0
    %3683 = vmatmul.mubr.bf16.gmra.mxu0 %v3387
    %v3684 = vpop.f32.mrf.mxu0
    %v3685 = vadd.f32 0.0, %v3684
    %v3686 = vpop.f32.mrf.mxu0
    %v3687 = vpop.f32.mrf.mxu0
    %v3688 = vadd.f32 0.0, %v3687
    %v3689 = vpop.f32.mrf.mxu0
    %3690 = vmatprep.mubr.bf16.mxu0 0
    %3691 = vmatmul.mubr.bf16.gmra.mxu0 %v3388
    %v3692 = vpop.f32.mrf.mxu0
    %v3693 = vadd.f32 0.0, %v3692
    %v3694 = vpop.f32.mrf.mxu0
    %v3695 = vpop.f32.mrf.mxu0
    %v3696 = vadd.f32 0.0, %v3695
    %v3697 = vpop.f32.mrf.mxu0
    %3698 = vmatprep.mubr.bf16.mxu0 0
    %3699 = vmatmul.mubr.bf16.gmra.mxu0 %v3389
    %v3700 = vpop.f32.mrf.mxu0
    %v3701 = vadd.f32 0.0, %v3700
    %v3702 = vpop.f32.mrf.mxu0
    %v3703 = vpop.f32.mrf.mxu0
    %v3704 = vadd.f32 0.0, %v3703
    %v3705 = vpop.f32.mrf.mxu0
    %3706 = vmatprep.mubr.bf16.mxu0 0
    %3707 = vmatmul.mubr.bf16.gmra.mxu0 %v3390
    %v3708 = vpop.f32.mrf.mxu0
    %v3709 = vadd.f32 0.0, %v3708
    %v3710 = vpop.f32.mrf.mxu0
    %v3711 = vpop.f32.mrf.mxu0
    %v3712 = vadd.f32 0.0, %v3711
    %v3713 = vpop.f32.mrf.mxu0
    %3714 = vmatprep.mubr.bf16.mxu0 0
    %3715 = vmatmul.mubr.bf16.gmra.mxu0 %v3391
    %v3716 = vpop.f32.mrf.mxu0
    %v3717 = vadd.f32 0.0, %v3716
    %v3718 = vpop.f32.mrf.mxu0
    %v3719 = vpop.f32.mrf.mxu0
    %v3720 = vadd.f32 0.0, %v3719
    %v3721 = vpop.f32.mrf.mxu0
    %3722 = vdwg.mxu0
    %v3723 = vadd.f32 %v3564, %v3661
    %v3724 = vadd.f32 %v3567, %v3664
    %v3725 = vadd.f32 %v3572, %v3669
    %v3726 = vadd.f32 %v3575, %v3672
    %v3727 = vadd.f32 %v3580, %v3677
    %v3728 = vadd.f32 %v3583, %v3680
    %v3729 = vadd.f32 %v3588, %v3685
    %v3730 = vadd.f32 %v3591, %v3688
    %v3731 = vadd.f32 %v3596, %v3693
    %v3732 = vadd.f32 %v3599, %v3696
    %v3733 = vadd.f32 %v3604, %v3701
    %v3734 = vadd.f32 %v3607, %v3704
    %v3735 = vadd.f32 %v3612, %v3709
    %v3736 = vadd.f32 %v3615, %v3712
    %v3737 = vadd.f32 %v3620, %v3717
    %v3738 = vadd.f32 %v3623, %v3720
    %v3739 = vpack.c.bf16 %v3724, %v3723
    %v3740 = vpack.c.bf16 %v3726, %v3725
    %v3741 = vpack.c.bf16 %v3728, %v3727
    %v3742 = vpack.c.bf16 %v3730, %v3729
    %v3743 = vpack.c.bf16 %v3732, %v3731
    %v3744 = vpack.c.bf16 %v3734, %v3733
    %v3745 = vpack.c.bf16 %v3736, %v3735
    %v3746 = vpack.c.bf16 %v3738, %v3737
    %v3747 = vunpack.c.l.bf16 %v3739
    %v3748 = vunpack.c.h.bf16 %v3739
    %v3749 = vunpack.c.l.bf16 %v3740
    %v3750 = vunpack.c.h.bf16 %v3740
    %v3751 = vunpack.c.l.bf16 %v3741
    %v3752 = vunpack.c.h.bf16 %v3741
    %v3753 = vunpack.c.l.bf16 %v3742
    %v3754 = vunpack.c.h.bf16 %v3742
    %v3755 = vunpack.c.l.bf16 %v3743
    %v3756 = vunpack.c.h.bf16 %v3743
    %v3757 = vunpack.c.l.bf16 %v3744
    %v3758 = vunpack.c.h.bf16 %v3744
    %v3759 = vunpack.c.l.bf16 %v3745
    %v3760 = vunpack.c.h.bf16 %v3745
    %v3761 = vunpack.c.l.bf16 %v3746
    %v3762 = vunpack.c.h.bf16 %v3746
    %v3763 = vsub.f32 %v3723, %v3747
    %v3764 = vsub.f32 %v3724, %v3748
    %v3765 = vsub.f32 %v3725, %v3749
    %v3766 = vsub.f32 %v3726, %v3750
    %v3767 = vsub.f32 %v3727, %v3751
    %v3768 = vsub.f32 %v3728, %v3752
    %v3769 = vsub.f32 %v3729, %v3753
    %v3770 = vsub.f32 %v3730, %v3754
    %v3771 = vsub.f32 %v3731, %v3755
    %v3772 = vsub.f32 %v3732, %v3756
    %v3773 = vsub.f32 %v3733, %v3757
    %v3774 = vsub.f32 %v3734, %v3758
    %v3775 = vsub.f32 %v3735, %v3759
    %v3776 = vsub.f32 %v3736, %v3760
    %v3777 = vsub.f32 %v3737, %v3761
    %v3778 = vsub.f32 %v3738, %v3762
    %v3779 = vpack.c.bf16 %v3764, %v3763
    %v3780 = vpack.c.bf16 %v3766, %v3765
    %v3781 = vpack.c.bf16 %v3768, %v3767
    %v3782 = vpack.c.bf16 %v3770, %v3769
    %v3783 = vpack.c.bf16 %v3772, %v3771
    %v3784 = vpack.c.bf16 %v3774, %v3773
    %v3785 = vpack.c.bf16 %v3776, %v3775
    %v3786 = vpack.c.bf16 %v3778, %v3777
    %3787 = vmatprep.subr.bf16.mxu0 0
    %3788 = vmatpush1.bf16.msra.mxu0 %v3391
    %3789 = vmatprep.subr.bf16.mxu0 0
    %3790 = vmatpush1.bf16.msra.mxu0 %v3390
    %3791 = vmatprep.subr.bf16.mxu0 0
    %3792 = vmatpush1.bf16.msra.mxu0 %v3389
    %3793 = vmatprep.subr.bf16.mxu0 0
    %3794 = vmatpush1.bf16.msra.mxu0 %v3388
    %3795 = vmatprep.subr.bf16.mxu0 0
    %3796 = vmatpush1.bf16.msra.mxu0 %v3387
    %3797 = vmatprep.subr.bf16.mxu0 0
    %3798 = vmatpush1.bf16.msra.mxu0 %v3386
    %3799 = vmatprep.subr.bf16.mxu0 0
    %3800 = vmatpush1.bf16.msra.mxu0 %v3385
    %3801 = vmatprep.subr.bf16.mxu0 0
    %3802 = vmatpush1.bf16.msra.mxu0 %v3384
    %3803 = vmatprep.subr.bf16.mxu0 0
    %3804 = vmatpush2.bf16.msra.mxu0 0
    %3805 = vmatprep.subr.bf16.mxu0 0
    %3806 = vmatpush2.bf16.msra.mxu0 0
    %3807 = vmatprep.subr.bf16.mxu0 0
    %3808 = vmatpush2.bf16.msra.mxu0 0
    %3809 = vmatprep.subr.bf16.mxu0 0
    %3810 = vmatpush2.bf16.msra.mxu0 0
    %3811 = vmatprep.subr.bf16.mxu0 0
    %3812 = vmatpush2.bf16.msra.mxu0 0
    %3813 = vmatprep.subr.bf16.mxu0 0
    %3814 = vmatpush2.bf16.msra.mxu0 0
    %3815 = vmatprep.subr.bf16.mxu0 0
    %3816 = vmatpush2.bf16.msra.mxu0 0
    %3817 = vmatprep.subr.bf16.mxu0 0
    %3818 = vmatpush2.bf16.msra.mxu0 0
    %3819 = vmatprep.mubr.bf16.mxu0 0
    %3820 = vmatmul.mubr.bf16.gmra.mxu0 %v3779
    %v3821 = vpop.f32.mrf.mxu0
    %v3822 = vadd.f32 0.0, %v3821
    %v3823 = vpop.f32.mrf.mxu0
    %v3824 = vpop.f32.mrf.mxu0
    %v3825 = vadd.f32 0.0, %v3824
    %v3826 = vpop.f32.mrf.mxu0
    %3827 = vmatprep.mubr.bf16.mxu0 0
    %3828 = vmatmul.mubr.bf16.gmra.mxu0 %v3780
    %v3829 = vpop.f32.mrf.mxu0
    %v3830 = vadd.f32 0.0, %v3829
    %v3831 = vpop.f32.mrf.mxu0
    %v3832 = vpop.f32.mrf.mxu0
    %v3833 = vadd.f32 0.0, %v3832
    %v3834 = vpop.f32.mrf.mxu0
    %3835 = vmatprep.mubr.bf16.mxu0 0
    %3836 = vmatmul.mubr.bf16.gmra.mxu0 %v3781
    %v3837 = vpop.f32.mrf.mxu0
    %v3838 = vadd.f32 0.0, %v3837
    %v3839 = vpop.f32.mrf.mxu0
    %v3840 = vpop.f32.mrf.mxu0
    %v3841 = vadd.f32 0.0, %v3840
    %v3842 = vpop.f32.mrf.mxu0
    %3843 = vmatprep.mubr.bf16.mxu0 0
    %3844 = vmatmul.mubr.bf16.gmra.mxu0 %v3782
    %v3845 = vpop.f32.mrf.mxu0
    %v3846 = vadd.f32 0.0, %v3845
    %v3847 = vpop.f32.mrf.mxu0
    %v3848 = vpop.f32.mrf.mxu0
    %v3849 = vadd.f32 0.0, %v3848
    %v3850 = vpop.f32.mrf.mxu0
    %3851 = vmatprep.mubr.bf16.mxu0 0
    %3852 = vmatmul.mubr.bf16.gmra.mxu0 %v3783
    %v3853 = vpop.f32.mrf.mxu0
    %v3854 = vadd.f32 0.0, %v3853
    %v3855 = vpop.f32.mrf.mxu0
    %v3856 = vpop.f32.mrf.mxu0
    %v3857 = vadd.f32 0.0, %v3856
    %v3858 = vpop.f32.mrf.mxu0
    %3859 = vmatprep.mubr.bf16.mxu0 0
    %3860 = vmatmul.mubr.bf16.gmra.mxu0 %v3784
    %v3861 = vpop.f32.mrf.mxu0
    %v3862 = vadd.f32 0.0, %v3861
    %v3863 = vpop.f32.mrf.mxu0
    %v3864 = vpop.f32.mrf.mxu0
    %v3865 = vadd.f32 0.0, %v3864
    %v3866 = vpop.f32.mrf.mxu0
    %3867 = vmatprep.mubr.bf16.mxu0 0
    %3868 = vmatmul.mubr.bf16.gmra.mxu0 %v3785
    %v3869 = vpop.f32.mrf.mxu0
    %v3870 = vadd.f32 0.0, %v3869
    %v3871 = vpop.f32.mrf.mxu0
    %v3872 = vpop.f32.mrf.mxu0
    %v3873 = vadd.f32 0.0, %v3872
    %v3874 = vpop.f32.mrf.mxu0
    %3875 = vmatprep.mubr.bf16.mxu0 0
    %3876 = vmatmul.mubr.bf16.gmra.mxu0 %v3786
    %v3877 = vpop.f32.mrf.mxu0
    %v3878 = vadd.f32 0.0, %v3877
    %v3879 = vpop.f32.mrf.mxu0
    %v3880 = vpop.f32.mrf.mxu0
    %v3881 = vadd.f32 0.0, %v3880
    %v3882 = vpop.f32.mrf.mxu0
    %3883 = vdwg.mxu0
    %3884 = vmatprep.subr.bf16.mxu0 0
    %3885 = vmatpush1.bf16.msra.mxu0 %v3391
    %3886 = vmatprep.subr.bf16.mxu0 0
    %3887 = vmatpush1.bf16.msra.mxu0 %v3390
    %3888 = vmatprep.subr.bf16.mxu0 0
    %3889 = vmatpush1.bf16.msra.mxu0 %v3389
    %3890 = vmatprep.subr.bf16.mxu0 0
    %3891 = vmatpush1.bf16.msra.mxu0 %v3388
    %3892 = vmatprep.subr.bf16.mxu0 0
    %3893 = vmatpush1.bf16.msra.mxu0 %v3387
    %3894 = vmatprep.subr.bf16.mxu0 0
    %3895 = vmatpush1.bf16.msra.mxu0 %v3386
    %3896 = vmatprep.subr.bf16.mxu0 0
    %3897 = vmatpush1.bf16.msra.mxu0 %v3385
    %3898 = vmatprep.subr.bf16.mxu0 0
    %3899 = vmatpush1.bf16.msra.mxu0 %v3384
    %3900 = vmatprep.subr.bf16.mxu0 0
    %3901 = vmatpush2.bf16.msra.mxu0 0
    %3902 = vmatprep.subr.bf16.mxu0 0
    %3903 = vmatpush2.bf16.msra.mxu0 0
    %3904 = vmatprep.subr.bf16.mxu0 0
    %3905 = vmatpush2.bf16.msra.mxu0 0
    %3906 = vmatprep.subr.bf16.mxu0 0
    %3907 = vmatpush2.bf16.msra.mxu0 0
    %3908 = vmatprep.subr.bf16.mxu0 0
    %3909 = vmatpush2.bf16.msra.mxu0 0
    %3910 = vmatprep.subr.bf16.mxu0 0
    %3911 = vmatpush2.bf16.msra.mxu0 0
    %3912 = vmatprep.subr.bf16.mxu0 0
    %3913 = vmatpush2.bf16.msra.mxu0 0
    %3914 = vmatprep.subr.bf16.mxu0 0
    %3915 = vmatpush2.bf16.msra.mxu0 0
    %3916 = vmatprep.mubr.bf16.mxu0 0
    %3917 = vmatmul.mubr.bf16.gmra.mxu0 %v3739
    %v3918 = vpop.f32.mrf.mxu0
    %v3919 = vadd.f32 %v3822, %v3918
    %v3920 = vpop.f32.mrf.mxu0
    %v3921 = vpop.f32.mrf.mxu0
    %v3922 = vadd.f32 %v3825, %v3921
    %v3923 = vpop.f32.mrf.mxu0
    %3924 = vmatprep.mubr.bf16.mxu0 0
    %3925 = vmatmul.mubr.bf16.gmra.mxu0 %v3740
    %v3926 = vpop.f32.mrf.mxu0
    %v3927 = vadd.f32 %v3830, %v3926
    %v3928 = vpop.f32.mrf.mxu0
    %v3929 = vpop.f32.mrf.mxu0
    %v3930 = vadd.f32 %v3833, %v3929
    %v3931 = vpop.f32.mrf.mxu0
    %3932 = vmatprep.mubr.bf16.mxu0 0
    %3933 = vmatmul.mubr.bf16.gmra.mxu0 %v3741
    %v3934 = vpop.f32.mrf.mxu0
    %v3935 = vadd.f32 %v3838, %v3934
    %v3936 = vpop.f32.mrf.mxu0
    %v3937 = vpop.f32.mrf.mxu0
    %v3938 = vadd.f32 %v3841, %v3937
    %v3939 = vpop.f32.mrf.mxu0
    %3940 = vmatprep.mubr.bf16.mxu0 0
    %3941 = vmatmul.mubr.bf16.gmra.mxu0 %v3742
    %v3942 = vpop.f32.mrf.mxu0
    %v3943 = vadd.f32 %v3846, %v3942
    %v3944 = vpop.f32.mrf.mxu0
    %v3945 = vpop.f32.mrf.mxu0
    %v3946 = vadd.f32 %v3849, %v3945
    %v3947 = vpop.f32.mrf.mxu0
    %3948 = vmatprep.mubr.bf16.mxu0 0
    %3949 = vmatmul.mubr.bf16.gmra.mxu0 %v3743
    %v3950 = vpop.f32.mrf.mxu0
    %v3951 = vadd.f32 %v3854, %v3950
    %v3952 = vpop.f32.mrf.mxu0
    %v3953 = vpop.f32.mrf.mxu0
    %v3954 = vadd.f32 %v3857, %v3953
    %v3955 = vpop.f32.mrf.mxu0
    %3956 = vmatprep.mubr.bf16.mxu0 0
    %3957 = vmatmul.mubr.bf16.gmra.mxu0 %v3744
    %v3958 = vpop.f32.mrf.mxu0
    %v3959 = vadd.f32 %v3862, %v3958
    %v3960 = vpop.f32.mrf.mxu0
    %v3961 = vpop.f32.mrf.mxu0
    %v3962 = vadd.f32 %v3865, %v3961
    %v3963 = vpop.f32.mrf.mxu0
    %3964 = vmatprep.mubr.bf16.mxu0 0
    %3965 = vmatmul.mubr.bf16.gmra.mxu0 %v3745
    %v3966 = vpop.f32.mrf.mxu0
    %v3967 = vadd.f32 %v3870, %v3966
    %v3968 = vpop.f32.mrf.mxu0
    %v3969 = vpop.f32.mrf.mxu0
    %v3970 = vadd.f32 %v3873, %v3969
    %v3971 = vpop.f32.mrf.mxu0
    %3972 = vmatprep.mubr.bf16.mxu0 0
    %3973 = vmatmul.mubr.bf16.gmra.mxu0 %v3746
    %v3974 = vpop.f32.mrf.mxu0
    %v3975 = vadd.f32 %v3878, %v3974
    %v3976 = vpop.f32.mrf.mxu0
    %v3977 = vpop.f32.mrf.mxu0
    %v3978 = vadd.f32 %v3881, %v3977
    %v3979 = vpop.f32.mrf.mxu0
    %3980 = vdwg.mxu0
    %3981 = vmatprep.subr.bf16.mxu0 0
    %3982 = vmatpush1.bf16.msra.mxu0 %v3431
    %3983 = vmatprep.subr.bf16.mxu0 0
    %3984 = vmatpush1.bf16.msra.mxu0 %v3430
    %3985 = vmatprep.subr.bf16.mxu0 0
    %3986 = vmatpush1.bf16.msra.mxu0 %v3429
    %3987 = vmatprep.subr.bf16.mxu0 0
    %3988 = vmatpush1.bf16.msra.mxu0 %v3428
    %3989 = vmatprep.subr.bf16.mxu0 0
    %3990 = vmatpush1.bf16.msra.mxu0 %v3427
    %3991 = vmatprep.subr.bf16.mxu0 0
    %3992 = vmatpush1.bf16.msra.mxu0 %v3426
    %3993 = vmatprep.subr.bf16.mxu0 0
    %3994 = vmatpush1.bf16.msra.mxu0 %v3425
    %3995 = vmatprep.subr.bf16.mxu0 0
    %3996 = vmatpush1.bf16.msra.mxu0 %v3424
    %3997 = vmatprep.subr.bf16.mxu0 0
    %3998 = vmatpush2.bf16.msra.mxu0 0
    %3999 = vmatprep.subr.bf16.mxu0 0
    %4000 = vmatpush2.bf16.msra.mxu0 0
    %4001 = vmatprep.subr.bf16.mxu0 0
    %4002 = vmatpush2.bf16.msra.mxu0 0
    %4003 = vmatprep.subr.bf16.mxu0 0
    %4004 = vmatpush2.bf16.msra.mxu0 0
    %4005 = vmatprep.subr.bf16.mxu0 0
    %4006 = vmatpush2.bf16.msra.mxu0 0
    %4007 = vmatprep.subr.bf16.mxu0 0
    %4008 = vmatpush2.bf16.msra.mxu0 0
    %4009 = vmatprep.subr.bf16.mxu0 0
    %4010 = vmatpush2.bf16.msra.mxu0 0
    %4011 = vmatprep.subr.bf16.mxu0 0
    %4012 = vmatpush2.bf16.msra.mxu0 0
    %4013 = vmatprep.mubr.bf16.mxu0 0
    %4014 = vmatmul.mubr.bf16.gmra.mxu0 %v3739
    %v4015 = vpop.f32.mrf.mxu0
    %v4016 = vadd.f32 0.0, %v4015
    %v4017 = vpop.f32.mrf.mxu0
    %v4018 = vpop.f32.mrf.mxu0
    %v4019 = vadd.f32 0.0, %v4018
    %v4020 = vpop.f32.mrf.mxu0
    %4021 = vmatprep.mubr.bf16.mxu0 0
    %4022 = vmatmul.mubr.bf16.gmra.mxu0 %v3740
    %v4023 = vpop.f32.mrf.mxu0
    %v4024 = vadd.f32 0.0, %v4023
    %v4025 = vpop.f32.mrf.mxu0
    %v4026 = vpop.f32.mrf.mxu0
    %v4027 = vadd.f32 0.0, %v4026
    %v4028 = vpop.f32.mrf.mxu0
    %4029 = vmatprep.mubr.bf16.mxu0 0
    %4030 = vmatmul.mubr.bf16.gmra.mxu0 %v3741
    %v4031 = vpop.f32.mrf.mxu0
    %v4032 = vadd.f32 0.0, %v4031
    %v4033 = vpop.f32.mrf.mxu0
    %v4034 = vpop.f32.mrf.mxu0
    %v4035 = vadd.f32 0.0, %v4034
    %v4036 = vpop.f32.mrf.mxu0
    %4037 = vmatprep.mubr.bf16.mxu0 0
    %4038 = vmatmul.mubr.bf16.gmra.mxu0 %v3742
    %v4039 = vpop.f32.mrf.mxu0
    %v4040 = vadd.f32 0.0, %v4039
    %v4041 = vpop.f32.mrf.mxu0
    %v4042 = vpop.f32.mrf.mxu0
    %v4043 = vadd.f32 0.0, %v4042
    %v4044 = vpop.f32.mrf.mxu0
    %4045 = vmatprep.mubr.bf16.mxu0 0
    %4046 = vmatmul.mubr.bf16.gmra.mxu0 %v3743
    %v4047 = vpop.f32.mrf.mxu0
    %v4048 = vadd.f32 0.0, %v4047
    %v4049 = vpop.f32.mrf.mxu0
    %v4050 = vpop.f32.mrf.mxu0
    %v4051 = vadd.f32 0.0, %v4050
    %v4052 = vpop.f32.mrf.mxu0
    %4053 = vmatprep.mubr.bf16.mxu0 0
    %4054 = vmatmul.mubr.bf16.gmra.mxu0 %v3744
    %v4055 = vpop.f32.mrf.mxu0
    %v4056 = vadd.f32 0.0, %v4055
    %v4057 = vpop.f32.mrf.mxu0
    %v4058 = vpop.f32.mrf.mxu0
    %v4059 = vadd.f32 0.0, %v4058
    %v4060 = vpop.f32.mrf.mxu0
    %4061 = vmatprep.mubr.bf16.mxu0 0
    %4062 = vmatmul.mubr.bf16.gmra.mxu0 %v3745
    %v4063 = vpop.f32.mrf.mxu0
    %v4064 = vadd.f32 0.0, %v4063
    %v4065 = vpop.f32.mrf.mxu0
    %v4066 = vpop.f32.mrf.mxu0
    %v4067 = vadd.f32 0.0, %v4066
    %v4068 = vpop.f32.mrf.mxu0
    %4069 = vmatprep.mubr.bf16.mxu0 0
    %4070 = vmatmul.mubr.bf16.gmra.mxu0 %v3746
    %v4071 = vpop.f32.mrf.mxu0
    %v4072 = vadd.f32 0.0, %v4071
    %v4073 = vpop.f32.mrf.mxu0
    %v4074 = vpop.f32.mrf.mxu0
    %v4075 = vadd.f32 0.0, %v4074
    %v4076 = vpop.f32.mrf.mxu0
    %4077 = vdwg.mxu0
    %v4078 = vadd.f32 %v3919, %v4016
    %v4079 = vadd.f32 %v3922, %v4019
    %v4080 = vadd.f32 %v3927, %v4024
    %v4081 = vadd.f32 %v3930, %v4027
    %v4082 = vadd.f32 %v3935, %v4032
    %v4083 = vadd.f32 %v3938, %v4035
    %v4084 = vadd.f32 %v3943, %v4040
    %v4085 = vadd.f32 %v3946, %v4043
    %v4086 = vadd.f32 %v3951, %v4048
    %v4087 = vadd.f32 %v3954, %v4051
    %v4088 = vadd.f32 %v3959, %v4056
    %v4089 = vadd.f32 %v3962, %v4059
    %v4090 = vadd.f32 %v3967, %v4064
    %v4091 = vadd.f32 %v3970, %v4067
    %v4092 = vadd.f32 %v3975, %v4072
    %v4093 = vadd.f32 %v3978, %v4075
    %4094 = vmatprep.subr.bf16.mxu0 0
    %4095 = vmatpush1.bf16.msra.mxu0 %v3746
    %4096 = vmatprep.subr.bf16.mxu0 0
    %4097 = vmatpush1.bf16.msra.mxu0 %v3745
    %4098 = vmatprep.subr.bf16.mxu0 0
    %4099 = vmatpush1.bf16.msra.mxu0 %v3744
    %4100 = vmatprep.subr.bf16.mxu0 0
    %4101 = vmatpush1.bf16.msra.mxu0 %v3743
    %4102 = vmatprep.subr.bf16.mxu0 0
    %4103 = vmatpush1.bf16.msra.mxu0 %v3742
    %4104 = vmatprep.subr.bf16.mxu0 0
    %4105 = vmatpush1.bf16.msra.mxu0 %v3741
    %4106 = vmatprep.subr.bf16.mxu0 0
    %4107 = vmatpush1.bf16.msra.mxu0 %v3740
    %4108 = vmatprep.subr.bf16.mxu0 0
    %4109 = vmatpush1.bf16.msra.mxu0 %v3739
    %4110 = vmatprep.subr.bf16.mxu0 0
    %4111 = vmatpush2.bf16.msra.mxu0 0
    %4112 = vmatprep.subr.bf16.mxu0 0
    %4113 = vmatpush2.bf16.msra.mxu0 0
    %4114 = vmatprep.subr.bf16.mxu0 0
    %4115 = vmatpush2.bf16.msra.mxu0 0
    %4116 = vmatprep.subr.bf16.mxu0 0
    %4117 = vmatpush2.bf16.msra.mxu0 0
    %4118 = vmatprep.subr.bf16.mxu0 0
    %4119 = vmatpush2.bf16.msra.mxu0 0
    %4120 = vmatprep.subr.bf16.mxu0 0
    %4121 = vmatpush2.bf16.msra.mxu0 0
    %4122 = vmatprep.subr.bf16.mxu0 0
    %4123 = vmatpush2.bf16.msra.mxu0 0
    %4124 = vmatprep.subr.bf16.mxu0 0
    %4125 = vmatpush2.bf16.msra.mxu0 0
    %4126 = vmatprep.mubr.bf16.mxu0 0
    %4127 = vmatmul.mubr.bf16.gmra.mxu0 %v3779
    %v4128 = vpop.f32.mrf.mxu0
    %v4129 = vadd.f32 0.0, %v4128
    %v4130 = vpop.f32.mrf.mxu0
    %v4131 = vpop.f32.mrf.mxu0
    %v4132 = vadd.f32 0.0, %v4131
    %v4133 = vpop.f32.mrf.mxu0
    %4134 = vmatprep.mubr.bf16.mxu0 0
    %4135 = vmatmul.mubr.bf16.gmra.mxu0 %v3780
    %v4136 = vpop.f32.mrf.mxu0
    %v4137 = vadd.f32 0.0, %v4136
    %v4138 = vpop.f32.mrf.mxu0
    %v4139 = vpop.f32.mrf.mxu0
    %v4140 = vadd.f32 0.0, %v4139
    %v4141 = vpop.f32.mrf.mxu0
    %4142 = vmatprep.mubr.bf16.mxu0 0
    %4143 = vmatmul.mubr.bf16.gmra.mxu0 %v3781
    %v4144 = vpop.f32.mrf.mxu0
    %v4145 = vadd.f32 0.0, %v4144
    %v4146 = vpop.f32.mrf.mxu0
    %v4147 = vpop.f32.mrf.mxu0
    %v4148 = vadd.f32 0.0, %v4147
    %v4149 = vpop.f32.mrf.mxu0
    %4150 = vmatprep.mubr.bf16.mxu0 0
    %4151 = vmatmul.mubr.bf16.gmra.mxu0 %v3782
    %v4152 = vpop.f32.mrf.mxu0
    %v4153 = vadd.f32 0.0, %v4152
    %v4154 = vpop.f32.mrf.mxu0
    %v4155 = vpop.f32.mrf.mxu0
    %v4156 = vadd.f32 0.0, %v4155
    %v4157 = vpop.f32.mrf.mxu0
    %4158 = vmatprep.mubr.bf16.mxu0 0
    %4159 = vmatmul.mubr.bf16.gmra.mxu0 %v3783
    %v4160 = vpop.f32.mrf.mxu0
    %v4161 = vadd.f32 0.0, %v4160
    %v4162 = vpop.f32.mrf.mxu0
    %v4163 = vpop.f32.mrf.mxu0
    %v4164 = vadd.f32 0.0, %v4163
    %v4165 = vpop.f32.mrf.mxu0
    %4166 = vmatprep.mubr.bf16.mxu0 0
    %4167 = vmatmul.mubr.bf16.gmra.mxu0 %v3784
    %v4168 = vpop.f32.mrf.mxu0
    %v4169 = vadd.f32 0.0, %v4168
    %v4170 = vpop.f32.mrf.mxu0
    %v4171 = vpop.f32.mrf.mxu0
    %v4172 = vadd.f32 0.0, %v4171
    %v4173 = vpop.f32.mrf.mxu0
    %4174 = vmatprep.mubr.bf16.mxu0 0
    %4175 = vmatmul.mubr.bf16.gmra.mxu0 %v3785
    %v4176 = vpop.f32.mrf.mxu0
    %v4177 = vadd.f32 0.0, %v4176
    %v4178 = vpop.f32.mrf.mxu0
    %v4179 = vpop.f32.mrf.mxu0
    %v4180 = vadd.f32 0.0, %v4179
    %v4181 = vpop.f32.mrf.mxu0
    %4182 = vmatprep.mubr.bf16.mxu0 0
    %4183 = vmatmul.mubr.bf16.gmra.mxu0 %v3786
    %v4184 = vpop.f32.mrf.mxu0
    %v4185 = vadd.f32 0.0, %v4184
    %v4186 = vpop.f32.mrf.mxu0
    %v4187 = vpop.f32.mrf.mxu0
    %v4188 = vadd.f32 0.0, %v4187
    %v4189 = vpop.f32.mrf.mxu0
    %4190 = vdwg.mxu0
    %4191 = vmatprep.subr.bf16.mxu0 0
    %4192 = vmatpush1.bf16.msra.mxu0 %v3746
    %4193 = vmatprep.subr.bf16.mxu0 0
    %4194 = vmatpush1.bf16.msra.mxu0 %v3745
    %4195 = vmatprep.subr.bf16.mxu0 0
    %4196 = vmatpush1.bf16.msra.mxu0 %v3744
    %4197 = vmatprep.subr.bf16.mxu0 0
    %4198 = vmatpush1.bf16.msra.mxu0 %v3743
    %4199 = vmatprep.subr.bf16.mxu0 0
    %4200 = vmatpush1.bf16.msra.mxu0 %v3742
    %4201 = vmatprep.subr.bf16.mxu0 0
    %4202 = vmatpush1.bf16.msra.mxu0 %v3741
    %4203 = vmatprep.subr.bf16.mxu0 0
    %4204 = vmatpush1.bf16.msra.mxu0 %v3740
    %4205 = vmatprep.subr.bf16.mxu0 0
    %4206 = vmatpush1.bf16.msra.mxu0 %v3739
    %4207 = vmatprep.subr.bf16.mxu0 0
    %4208 = vmatpush2.bf16.msra.mxu0 0
    %4209 = vmatprep.subr.bf16.mxu0 0
    %4210 = vmatpush2.bf16.msra.mxu0 0
    %4211 = vmatprep.subr.bf16.mxu0 0
    %4212 = vmatpush2.bf16.msra.mxu0 0
    %4213 = vmatprep.subr.bf16.mxu0 0
    %4214 = vmatpush2.bf16.msra.mxu0 0
    %4215 = vmatprep.subr.bf16.mxu0 0
    %4216 = vmatpush2.bf16.msra.mxu0 0
    %4217 = vmatprep.subr.bf16.mxu0 0
    %4218 = vmatpush2.bf16.msra.mxu0 0
    %4219 = vmatprep.subr.bf16.mxu0 0
    %4220 = vmatpush2.bf16.msra.mxu0 0
    %4221 = vmatprep.subr.bf16.mxu0 0
    %4222 = vmatpush2.bf16.msra.mxu0 0
    %4223 = vmatprep.mubr.bf16.mxu0 0
    %4224 = vmatmul.mubr.bf16.gmra.mxu0 %v3739
    %v4225 = vpop.f32.mrf.mxu0
    %v4226 = vadd.f32 %v4129, %v4225
    %v4227 = vpop.f32.mrf.mxu0
    %v4228 = vpop.f32.mrf.mxu0
    %v4229 = vadd.f32 %v4132, %v4228
    %v4230 = vpop.f32.mrf.mxu0
    %4231 = vmatprep.mubr.bf16.mxu0 0
    %4232 = vmatmul.mubr.bf16.gmra.mxu0 %v3740
    %v4233 = vpop.f32.mrf.mxu0
    %v4234 = vadd.f32 %v4137, %v4233
    %v4235 = vpop.f32.mrf.mxu0
    %v4236 = vpop.f32.mrf.mxu0
    %v4237 = vadd.f32 %v4140, %v4236
    %v4238 = vpop.f32.mrf.mxu0
    %4239 = vmatprep.mubr.bf16.mxu0 0
    %4240 = vmatmul.mubr.bf16.gmra.mxu0 %v3741
    %v4241 = vpop.f32.mrf.mxu0
    %v4242 = vadd.f32 %v4145, %v4241
    %v4243 = vpop.f32.mrf.mxu0
    %v4244 = vpop.f32.mrf.mxu0
    %v4245 = vadd.f32 %v4148, %v4244
    %v4246 = vpop.f32.mrf.mxu0
    %4247 = vmatprep.mubr.bf16.mxu0 0
    %4248 = vmatmul.mubr.bf16.gmra.mxu0 %v3742
    %v4249 = vpop.f32.mrf.mxu0
    %v4250 = vadd.f32 %v4153, %v4249
    %v4251 = vpop.f32.mrf.mxu0
    %v4252 = vpop.f32.mrf.mxu0
    %v4253 = vadd.f32 %v4156, %v4252
    %v4254 = vpop.f32.mrf.mxu0
    %4255 = vmatprep.mubr.bf16.mxu0 0
    %4256 = vmatmul.mubr.bf16.gmra.mxu0 %v3743
    %v4257 = vpop.f32.mrf.mxu0
    %v4258 = vadd.f32 %v4161, %v4257
    %v4259 = vpop.f32.mrf.mxu0
    %v4260 = vpop.f32.mrf.mxu0
    %v4261 = vadd.f32 %v4164, %v4260
    %v4262 = vpop.f32.mrf.mxu0
    %4263 = vmatprep.mubr.bf16.mxu0 0
    %4264 = vmatmul.mubr.bf16.gmra.mxu0 %v3744
    %v4265 = vpop.f32.mrf.mxu0
    %v4266 = vadd.f32 %v4169, %v4265
    %v4267 = vpop.f32.mrf.mxu0
    %v4268 = vpop.f32.mrf.mxu0
    %v4269 = vadd.f32 %v4172, %v4268
    %v4270 = vpop.f32.mrf.mxu0
    %4271 = vmatprep.mubr.bf16.mxu0 0
    %4272 = vmatmul.mubr.bf16.gmra.mxu0 %v3745
    %v4273 = vpop.f32.mrf.mxu0
    %v4274 = vadd.f32 %v4177, %v4273
    %v4275 = vpop.f32.mrf.mxu0
    %v4276 = vpop.f32.mrf.mxu0
    %v4277 = vadd.f32 %v4180, %v4276
    %v4278 = vpop.f32.mrf.mxu0
    %4279 = vmatprep.mubr.bf16.mxu0 0
    %4280 = vmatmul.mubr.bf16.gmra.mxu0 %v3746
    %v4281 = vpop.f32.mrf.mxu0
    %v4282 = vadd.f32 %v4185, %v4281
    %v4283 = vpop.f32.mrf.mxu0
    %v4284 = vpop.f32.mrf.mxu0
    %v4285 = vadd.f32 %v4188, %v4284
    %v4286 = vpop.f32.mrf.mxu0
    %4287 = vdwg.mxu0
    %4288 = vmatprep.subr.bf16.mxu0 0
    %4289 = vmatpush1.bf16.msra.mxu0 %v3786
    %4290 = vmatprep.subr.bf16.mxu0 0
    %4291 = vmatpush1.bf16.msra.mxu0 %v3785
    %4292 = vmatprep.subr.bf16.mxu0 0
    %4293 = vmatpush1.bf16.msra.mxu0 %v3784
    %4294 = vmatprep.subr.bf16.mxu0 0
    %4295 = vmatpush1.bf16.msra.mxu0 %v3783
    %4296 = vmatprep.subr.bf16.mxu0 0
    %4297 = vmatpush1.bf16.msra.mxu0 %v3782
    %4298 = vmatprep.subr.bf16.mxu0 0
    %4299 = vmatpush1.bf16.msra.mxu0 %v3781
    %4300 = vmatprep.subr.bf16.mxu0 0
    %4301 = vmatpush1.bf16.msra.mxu0 %v3780
    %4302 = vmatprep.subr.bf16.mxu0 0
    %4303 = vmatpush1.bf16.msra.mxu0 %v3779
    %4304 = vmatprep.subr.bf16.mxu0 0
    %4305 = vmatpush2.bf16.msra.mxu0 0
    %4306 = vmatprep.subr.bf16.mxu0 0
    %4307 = vmatpush2.bf16.msra.mxu0 0
    %4308 = vmatprep.subr.bf16.mxu0 0
    %4309 = vmatpush2.bf16.msra.mxu0 0
    %4310 = vmatprep.subr.bf16.mxu0 0
    %4311 = vmatpush2.bf16.msra.mxu0 0
    %4312 = vmatprep.subr.bf16.mxu0 0
    %4313 = vmatpush2.bf16.msra.mxu0 0
    %4314 = vmatprep.subr.bf16.mxu0 0
    %4315 = vmatpush2.bf16.msra.mxu0 0
    %4316 = vmatprep.subr.bf16.mxu0 0
    %4317 = vmatpush2.bf16.msra.mxu0 0
    %4318 = vmatprep.subr.bf16.mxu0 0
    %4319 = vmatpush2.bf16.msra.mxu0 0
    %4320 = vmatprep.mubr.bf16.mxu0 0
    %4321 = vmatmul.mubr.bf16.gmra.mxu0 %v3739
    %v4322 = vpop.f32.mrf.mxu0
    %v4323 = vadd.f32 0.0, %v4322
    %v4324 = vpop.f32.mrf.mxu0
    %v4325 = vpop.f32.mrf.mxu0
    %v4326 = vadd.f32 0.0, %v4325
    %v4327 = vpop.f32.mrf.mxu0
    %4328 = vmatprep.mubr.bf16.mxu0 0
    %4329 = vmatmul.mubr.bf16.gmra.mxu0 %v3740
    %v4330 = vpop.f32.mrf.mxu0
    %v4331 = vadd.f32 0.0, %v4330
    %v4332 = vpop.f32.mrf.mxu0
    %v4333 = vpop.f32.mrf.mxu0
    %v4334 = vadd.f32 0.0, %v4333
    %v4335 = vpop.f32.mrf.mxu0
    %4336 = vmatprep.mubr.bf16.mxu0 0
    %4337 = vmatmul.mubr.bf16.gmra.mxu0 %v3741
    %v4338 = vpop.f32.mrf.mxu0
    %v4339 = vadd.f32 0.0, %v4338
    %v4340 = vpop.f32.mrf.mxu0
    %v4341 = vpop.f32.mrf.mxu0
    %v4342 = vadd.f32 0.0, %v4341
    %v4343 = vpop.f32.mrf.mxu0
    %4344 = vmatprep.mubr.bf16.mxu0 0
    %4345 = vmatmul.mubr.bf16.gmra.mxu0 %v3742
    %v4346 = vpop.f32.mrf.mxu0
    %v4347 = vadd.f32 0.0, %v4346
    %v4348 = vpop.f32.mrf.mxu0
    %v4349 = vpop.f32.mrf.mxu0
    %v4350 = vadd.f32 0.0, %v4349
    %v4351 = vpop.f32.mrf.mxu0
    %4352 = vmatprep.mubr.bf16.mxu0 0
    %4353 = vmatmul.mubr.bf16.gmra.mxu0 %v3743
    %v4354 = vpop.f32.mrf.mxu0
    %v4355 = vadd.f32 0.0, %v4354
    %v4356 = vpop.f32.mrf.mxu0
    %v4357 = vpop.f32.mrf.mxu0
    %v4358 = vadd.f32 0.0, %v4357
    %v4359 = vpop.f32.mrf.mxu0
    %4360 = vmatprep.mubr.bf16.mxu0 0
    %4361 = vmatmul.mubr.bf16.gmra.mxu0 %v3744
    %v4362 = vpop.f32.mrf.mxu0
    %v4363 = vadd.f32 0.0, %v4362
    %v4364 = vpop.f32.mrf.mxu0
    %v4365 = vpop.f32.mrf.mxu0
    %v4366 = vadd.f32 0.0, %v4365
    %v4367 = vpop.f32.mrf.mxu0
    %4368 = vmatprep.mubr.bf16.mxu0 0
    %4369 = vmatmul.mubr.bf16.gmra.mxu0 %v3745
    %v4370 = vpop.f32.mrf.mxu0
    %v4371 = vadd.f32 0.0, %v4370
    %v4372 = vpop.f32.mrf.mxu0
    %v4373 = vpop.f32.mrf.mxu0
    %v4374 = vadd.f32 0.0, %v4373
    %v4375 = vpop.f32.mrf.mxu0
    %4376 = vmatprep.mubr.bf16.mxu0 0
    %4377 = vmatmul.mubr.bf16.gmra.mxu0 %v3746
    %v4378 = vpop.f32.mrf.mxu0
    %v4379 = vadd.f32 0.0, %v4378
    %v4380 = vpop.f32.mrf.mxu0
    %v4381 = vpop.f32.mrf.mxu0
    %v4382 = vadd.f32 0.0, %v4381
    %v4383 = vpop.f32.mrf.mxu0
    %4384 = vdwg.mxu0
    %v4385 = vadd.f32 %v4226, %v4323
    %v4386 = vadd.f32 %v4229, %v4326
    %v4387 = vadd.f32 %v4234, %v4331
    %v4388 = vadd.f32 %v4237, %v4334
    %v4389 = vadd.f32 %v4242, %v4339
    %v4390 = vadd.f32 %v4245, %v4342
    %v4391 = vadd.f32 %v4250, %v4347
    %v4392 = vadd.f32 %v4253, %v4350
    %v4393 = vadd.f32 %v4258, %v4355
    %v4394 = vadd.f32 %v4261, %v4358
    %v4395 = vadd.f32 %v4266, %v4363
    %v4396 = vadd.f32 %v4269, %v4366
    %v4397 = vadd.f32 %v4274, %v4371
    %v4398 = vadd.f32 %v4277, %v4374
    %v4399 = vadd.f32 %v4282, %v4379
    %v4400 = vadd.f32 %v4285, %v4382
    %v4401 = vpack.c.bf16 %v4386, %v4385
    %v4402 = vpack.c.bf16 %v4388, %v4387
    %v4403 = vpack.c.bf16 %v4390, %v4389
    %v4404 = vpack.c.bf16 %v4392, %v4391
    %v4405 = vpack.c.bf16 %v4394, %v4393
    %v4406 = vpack.c.bf16 %v4396, %v4395
    %v4407 = vpack.c.bf16 %v4398, %v4397
    %v4408 = vpack.c.bf16 %v4400, %v4399
    %v4409 = vunpack.c.l.bf16 %v4401
    %v4410 = vunpack.c.h.bf16 %v4401
    %v4411 = vunpack.c.l.bf16 %v4402
    %v4412 = vunpack.c.h.bf16 %v4402
    %v4413 = vunpack.c.l.bf16 %v4403
    %v4414 = vunpack.c.h.bf16 %v4403
    %v4415 = vunpack.c.l.bf16 %v4404
    %v4416 = vunpack.c.h.bf16 %v4404
    %v4417 = vunpack.c.l.bf16 %v4405
    %v4418 = vunpack.c.h.bf16 %v4405
    %v4419 = vunpack.c.l.bf16 %v4406
    %v4420 = vunpack.c.h.bf16 %v4406
    %v4421 = vunpack.c.l.bf16 %v4407
    %v4422 = vunpack.c.h.bf16 %v4407
    %v4423 = vunpack.c.l.bf16 %v4408
    %v4424 = vunpack.c.h.bf16 %v4408
    %v4425 = vsub.f32 %v4385, %v4409
    %v4426 = vsub.f32 %v4386, %v4410
    %v4427 = vsub.f32 %v4387, %v4411
    %v4428 = vsub.f32 %v4388, %v4412
    %v4429 = vsub.f32 %v4389, %v4413
    %v4430 = vsub.f32 %v4390, %v4414
    %v4431 = vsub.f32 %v4391, %v4415
    %v4432 = vsub.f32 %v4392, %v4416
    %v4433 = vsub.f32 %v4393, %v4417
    %v4434 = vsub.f32 %v4394, %v4418
    %v4435 = vsub.f32 %v4395, %v4419
    %v4436 = vsub.f32 %v4396, %v4420
    %v4437 = vsub.f32 %v4397, %v4421
    %v4438 = vsub.f32 %v4398, %v4422
    %v4439 = vsub.f32 %v4399, %v4423
    %v4440 = vsub.f32 %v4400, %v4424
    %v4441 = vpack.c.bf16 %v4426, %v4425
    %v4442 = vpack.c.bf16 %v4428, %v4427
    %v4443 = vpack.c.bf16 %v4430, %v4429
    %v4444 = vpack.c.bf16 %v4432, %v4431
    %v4445 = vpack.c.bf16 %v4434, %v4433
    %v4446 = vpack.c.bf16 %v4436, %v4435
    %v4447 = vpack.c.bf16 %v4438, %v4437
    %v4448 = vpack.c.bf16 %v4440, %v4439
    %v4449 = vadd.f32 %v77, %v3368
    %v4450 = vadd.f32 %v78, %v3369
    %v4451 = vadd.f32 %v79, %v3370
    %v4452 = vadd.f32 %v80, %v3371
    %v4453 = vadd.f32 %v81, %v3372
    %v4454 = vadd.f32 %v82, %v3373
    %v4455 = vadd.f32 %v83, %v3374
    %v4456 = vadd.f32 %v84, %v3375
    %v4457 = vadd.f32 %v85, %v3376
    %v4458 = vadd.f32 %v86, %v3377
    %v4459 = vadd.f32 %v87, %v3378
    %v4460 = vadd.f32 %v88, %v3379
    %v4461 = vadd.f32 %v89, %v3380
    %v4462 = vadd.f32 %v90, %v3381
    %v4463 = vadd.f32 %v91, %v3382
    %v4464 = vadd.f32 %v92, %v3383
    %v4465 = vmul.f32 %v3723, 0.5
    %v4466 = vmul.f32 %v3724, 0.5
    %v4467 = vmul.f32 %v3725, 0.5
    %v4468 = vmul.f32 %v3726, 0.5
    %v4469 = vmul.f32 %v3727, 0.5
    %v4470 = vmul.f32 %v3728, 0.5
    %v4471 = vmul.f32 %v3729, 0.5
    %v4472 = vmul.f32 %v3730, 0.5
    %v4473 = vmul.f32 %v3731, 0.5
    %v4474 = vmul.f32 %v3732, 0.5
    %v4475 = vmul.f32 %v3733, 0.5
    %v4476 = vmul.f32 %v3734, 0.5
    %v4477 = vmul.f32 %v3735, 0.5
    %v4478 = vmul.f32 %v3736, 0.5
    %v4479 = vmul.f32 %v3737, 0.5
    %v4480 = vmul.f32 %v3738, 0.5
    %v4481 = vadd.f32 %v4449, %v4465
    %v4482 = vadd.f32 %v4450, %v4466
    %v4483 = vadd.f32 %v4451, %v4467
    %v4484 = vadd.f32 %v4452, %v4468
    %v4485 = vadd.f32 %v4453, %v4469
    %v4486 = vadd.f32 %v4454, %v4470
    %v4487 = vadd.f32 %v4455, %v4471
    %v4488 = vadd.f32 %v4456, %v4472
    %v4489 = vadd.f32 %v4457, %v4473
    %v4490 = vadd.f32 %v4458, %v4474
    %v4491 = vadd.f32 %v4459, %v4475
    %v4492 = vadd.f32 %v4460, %v4476
    %v4493 = vadd.f32 %v4461, %v4477
    %v4494 = vadd.f32 %v4462, %v4478
    %v4495 = vadd.f32 %v4463, %v4479
    %v4496 = vadd.f32 %v4464, %v4480
    %v4497 = vmul.f32 %v4078, 0.16666667
    %v4498 = vmul.f32 %v4079, 0.16666667
    %v4499 = vmul.f32 %v4080, 0.16666667
    %v4500 = vmul.f32 %v4081, 0.16666667
    %v4501 = vmul.f32 %v4082, 0.16666667
    %v4502 = vmul.f32 %v4083, 0.16666667
    %v4503 = vmul.f32 %v4084, 0.16666667
    %v4504 = vmul.f32 %v4085, 0.16666667
    %v4505 = vmul.f32 %v4086, 0.16666667
    %v4506 = vmul.f32 %v4087, 0.16666667
    %v4507 = vmul.f32 %v4088, 0.16666667
    %v4508 = vmul.f32 %v4089, 0.16666667
    %v4509 = vmul.f32 %v4090, 0.16666667
    %v4510 = vmul.f32 %v4091, 0.16666667
    %v4511 = vmul.f32 %v4092, 0.16666667
    %v4512 = vmul.f32 %v4093, 0.16666667
    %v4513 = vadd.f32 %v4481, %v4497
    %v4514 = vadd.f32 %v4482, %v4498
    %v4515 = vadd.f32 %v4483, %v4499
    %v4516 = vadd.f32 %v4484, %v4500
    %v4517 = vadd.f32 %v4485, %v4501
    %v4518 = vadd.f32 %v4486, %v4502
    %v4519 = vadd.f32 %v4487, %v4503
    %v4520 = vadd.f32 %v4488, %v4504
    %v4521 = vadd.f32 %v4489, %v4505
    %v4522 = vadd.f32 %v4490, %v4506
    %v4523 = vadd.f32 %v4491, %v4507
    %v4524 = vadd.f32 %v4492, %v4508
    %v4525 = vadd.f32 %v4493, %v4509
    %v4526 = vadd.f32 %v4494, %v4510
    %v4527 = vadd.f32 %v4495, %v4511
    %v4528 = vadd.f32 %v4496, %v4512
    %v4529 = vmul.f32 %v77, 0.041666668
    %v4530 = vmul.f32 %v78, 0.041666668
    %v4531 = vmul.f32 %v79, 0.041666668
    %v4532 = vmul.f32 %v80, 0.041666668
    %v4533 = vmul.f32 %v81, 0.041666668
    %v4534 = vmul.f32 %v82, 0.041666668
    %v4535 = vmul.f32 %v83, 0.041666668
    %v4536 = vmul.f32 %v84, 0.041666668
    %v4537 = vmul.f32 %v85, 0.041666668
    %v4538 = vmul.f32 %v86, 0.041666668
    %v4539 = vmul.f32 %v87, 0.041666668
    %v4540 = vmul.f32 %v88, 0.041666668
    %v4541 = vmul.f32 %v89, 0.041666668
    %v4542 = vmul.f32 %v90, 0.041666668
    %v4543 = vmul.f32 %v91, 0.041666668
    %v4544 = vmul.f32 %v92, 0.041666668
    %v4545 = vmul.f32 %v3368, 0.008333334
    %v4546 = vmul.f32 %v3369, 0.008333334
    %v4547 = vmul.f32 %v3370, 0.008333334
    %v4548 = vmul.f32 %v3371, 0.008333334
    %v4549 = vmul.f32 %v3372, 0.008333334
    %v4550 = vmul.f32 %v3373, 0.008333334
    %v4551 = vmul.f32 %v3374, 0.008333334
    %v4552 = vmul.f32 %v3375, 0.008333334
    %v4553 = vmul.f32 %v3376, 0.008333334
    %v4554 = vmul.f32 %v3377, 0.008333334
    %v4555 = vmul.f32 %v3378, 0.008333334
    %v4556 = vmul.f32 %v3379, 0.008333334
    %v4557 = vmul.f32 %v3380, 0.008333334
    %v4558 = vmul.f32 %v3381, 0.008333334
    %v4559 = vmul.f32 %v3382, 0.008333334
    %v4560 = vmul.f32 %v3383, 0.008333334
    %v4561 = vadd.f32 %v4529, %v4545
    %v4562 = vadd.f32 %v4530, %v4546
    %v4563 = vadd.f32 %v4531, %v4547
    %v4564 = vadd.f32 %v4532, %v4548
    %v4565 = vadd.f32 %v4533, %v4549
    %v4566 = vadd.f32 %v4534, %v4550
    %v4567 = vadd.f32 %v4535, %v4551
    %v4568 = vadd.f32 %v4536, %v4552
    %v4569 = vadd.f32 %v4537, %v4553
    %v4570 = vadd.f32 %v4538, %v4554
    %v4571 = vadd.f32 %v4539, %v4555
    %v4572 = vadd.f32 %v4540, %v4556
    %v4573 = vadd.f32 %v4541, %v4557
    %v4574 = vadd.f32 %v4542, %v4558
    %v4575 = vadd.f32 %v4543, %v4559
    %v4576 = vadd.f32 %v4544, %v4560
    %v4577 = vmul.f32 %v3723, 0.0013888889
    %v4578 = vmul.f32 %v3724, 0.0013888889
    %v4579 = vmul.f32 %v3725, 0.0013888889
    %v4580 = vmul.f32 %v3726, 0.0013888889
    %v4581 = vmul.f32 %v3727, 0.0013888889
    %v4582 = vmul.f32 %v3728, 0.0013888889
    %v4583 = vmul.f32 %v3729, 0.0013888889
    %v4584 = vmul.f32 %v3730, 0.0013888889
    %v4585 = vmul.f32 %v3731, 0.0013888889
    %v4586 = vmul.f32 %v3732, 0.0013888889
    %v4587 = vmul.f32 %v3733, 0.0013888889
    %v4588 = vmul.f32 %v3734, 0.0013888889
    %v4589 = vmul.f32 %v3735, 0.0013888889
    %v4590 = vmul.f32 %v3736, 0.0013888889
    %v4591 = vmul.f32 %v3737, 0.0013888889
    %v4592 = vmul.f32 %v3738, 0.0013888889
    %v4593 = vadd.f32 %v4561, %v4577
    %v4594 = vadd.f32 %v4562, %v4578
    %v4595 = vadd.f32 %v4563, %v4579
    %v4596 = vadd.f32 %v4564, %v4580
    %v4597 = vadd.f32 %v4565, %v4581
    %v4598 = vadd.f32 %v4566, %v4582
    %v4599 = vadd.f32 %v4567, %v4583
    %v4600 = vadd.f32 %v4568, %v4584
    %v4601 = vadd.f32 %v4569, %v4585
    %v4602 = vadd.f32 %v4570, %v4586
    %v4603 = vadd.f32 %v4571, %v4587
    %v4604 = vadd.f32 %v4572, %v4588
    %v4605 = vadd.f32 %v4573, %v4589
    %v4606 = vadd.f32 %v4574, %v4590
    %v4607 = vadd.f32 %v4575, %v4591
    %v4608 = vadd.f32 %v4576, %v4592
    %v4609 = vmul.f32 %v4078, 0.0001984127
    %v4610 = vmul.f32 %v4079, 0.0001984127
    %v4611 = vmul.f32 %v4080, 0.0001984127
    %v4612 = vmul.f32 %v4081, 0.0001984127
    %v4613 = vmul.f32 %v4082, 0.0001984127
    %v4614 = vmul.f32 %v4083, 0.0001984127
    %v4615 = vmul.f32 %v4084, 0.0001984127
    %v4616 = vmul.f32 %v4085, 0.0001984127
    %v4617 = vmul.f32 %v4086, 0.0001984127
    %v4618 = vmul.f32 %v4087, 0.0001984127
    %v4619 = vmul.f32 %v4088, 0.0001984127
    %v4620 = vmul.f32 %v4089, 0.0001984127
    %v4621 = vmul.f32 %v4090, 0.0001984127
    %v4622 = vmul.f32 %v4091, 0.0001984127
    %v4623 = vmul.f32 %v4092, 0.0001984127
    %v4624 = vmul.f32 %v4093, 0.0001984127
    %v4625 = vadd.f32 %v4593, %v4609
    %v4626 = vadd.f32 %v4594, %v4610
    %v4627 = vadd.f32 %v4595, %v4611
    %v4628 = vadd.f32 %v4596, %v4612
    %v4629 = vadd.f32 %v4597, %v4613
    %v4630 = vadd.f32 %v4598, %v4614
    %v4631 = vadd.f32 %v4599, %v4615
    %v4632 = vadd.f32 %v4600, %v4616
    %v4633 = vadd.f32 %v4601, %v4617
    %v4634 = vadd.f32 %v4602, %v4618
    %v4635 = vadd.f32 %v4603, %v4619
    %v4636 = vadd.f32 %v4604, %v4620
    %v4637 = vadd.f32 %v4605, %v4621
    %v4638 = vadd.f32 %v4606, %v4622
    %v4639 = vadd.f32 %v4607, %v4623
    %v4640 = vadd.f32 %v4608, %v4624
    %v4641 = vmul.f32 %v77, 2.4801588e-05
    %v4642 = vmul.f32 %v78, 2.4801588e-05
    %v4643 = vmul.f32 %v79, 2.4801588e-05
    %v4644 = vmul.f32 %v80, 2.4801588e-05
    %v4645 = vmul.f32 %v81, 2.4801588e-05
    %v4646 = vmul.f32 %v82, 2.4801588e-05
    %v4647 = vmul.f32 %v83, 2.4801588e-05
    %v4648 = vmul.f32 %v84, 2.4801588e-05
    %v4649 = vmul.f32 %v85, 2.4801588e-05
    %v4650 = vmul.f32 %v86, 2.4801588e-05
    %v4651 = vmul.f32 %v87, 2.4801588e-05
    %v4652 = vmul.f32 %v88, 2.4801588e-05
    %v4653 = vmul.f32 %v89, 2.4801588e-05
    %v4654 = vmul.f32 %v90, 2.4801588e-05
    %v4655 = vmul.f32 %v91, 2.4801588e-05
    %v4656 = vmul.f32 %v92, 2.4801588e-05
    %v4657 = vmul.f32 %v3368, 2.7557319e-06
    %v4658 = vmul.f32 %v3369, 2.7557319e-06
    %v4659 = vmul.f32 %v3370, 2.7557319e-06
    %v4660 = vmul.f32 %v3371, 2.7557319e-06
    %v4661 = vmul.f32 %v3372, 2.7557319e-06
    %v4662 = vmul.f32 %v3373, 2.7557319e-06
    %v4663 = vmul.f32 %v3374, 2.7557319e-06
    %v4664 = vmul.f32 %v3375, 2.7557319e-06
    %v4665 = vmul.f32 %v3376, 2.7557319e-06
    %v4666 = vmul.f32 %v3377, 2.7557319e-06
    %v4667 = vmul.f32 %v3378, 2.7557319e-06
    %v4668 = vmul.f32 %v3379, 2.7557319e-06
    %v4669 = vmul.f32 %v3380, 2.7557319e-06
    %v4670 = vmul.f32 %v3381, 2.7557319e-06
    %v4671 = vmul.f32 %v3382, 2.7557319e-06
    %v4672 = vmul.f32 %v3383, 2.7557319e-06
    %v4673 = vadd.f32 %v4641, %v4657
    %v4674 = vadd.f32 %v4642, %v4658
    %v4675 = vadd.f32 %v4643, %v4659
    %v4676 = vadd.f32 %v4644, %v4660
    %v4677 = vadd.f32 %v4645, %v4661
    %v4678 = vadd.f32 %v4646, %v4662
    %v4679 = vadd.f32 %v4647, %v4663
    %v4680 = vadd.f32 %v4648, %v4664
    %v4681 = vadd.f32 %v4649, %v4665
    %v4682 = vadd.f32 %v4650, %v4666
    %v4683 = vadd.f32 %v4651, %v4667
    %v4684 = vadd.f32 %v4652, %v4668
    %v4685 = vadd.f32 %v4653, %v4669
    %v4686 = vadd.f32 %v4654, %v4670
    %v4687 = vadd.f32 %v4655, %v4671
    %v4688 = vadd.f32 %v4656, %v4672
    %v4689 = vmul.f32 %v3723, 2.755732e-07
    %v4690 = vmul.f32 %v3724, 2.755732e-07
    %v4691 = vmul.f32 %v3725, 2.755732e-07
    %v4692 = vmul.f32 %v3726, 2.755732e-07
    %v4693 = vmul.f32 %v3727, 2.755732e-07
    %v4694 = vmul.f32 %v3728, 2.755732e-07
    %v4695 = vmul.f32 %v3729, 2.755732e-07
    %v4696 = vmul.f32 %v3730, 2.755732e-07
    %v4697 = vmul.f32 %v3731, 2.755732e-07
    %v4698 = vmul.f32 %v3732, 2.755732e-07
    %v4699 = vmul.f32 %v3733, 2.755732e-07
    %v4700 = vmul.f32 %v3734, 2.755732e-07
    %v4701 = vmul.f32 %v3735, 2.755732e-07
    %v4702 = vmul.f32 %v3736, 2.755732e-07
    %v4703 = vmul.f32 %v3737, 2.755732e-07
    %v4704 = vmul.f32 %v3738, 2.755732e-07
    %v4705 = vadd.f32 %v4673, %v4689
    %v4706 = vadd.f32 %v4674, %v4690
    %v4707 = vadd.f32 %v4675, %v4691
    %v4708 = vadd.f32 %v4676, %v4692
    %v4709 = vadd.f32 %v4677, %v4693
    %v4710 = vadd.f32 %v4678, %v4694
    %v4711 = vadd.f32 %v4679, %v4695
    %v4712 = vadd.f32 %v4680, %v4696
    %v4713 = vadd.f32 %v4681, %v4697
    %v4714 = vadd.f32 %v4682, %v4698
    %v4715 = vadd.f32 %v4683, %v4699
    %v4716 = vadd.f32 %v4684, %v4700
    %v4717 = vadd.f32 %v4685, %v4701
    %v4718 = vadd.f32 %v4686, %v4702
    %v4719 = vadd.f32 %v4687, %v4703
    %v4720 = vadd.f32 %v4688, %v4704
    %v4721 = vmul.f32 %v4078, 2.5052108e-08
    %v4722 = vmul.f32 %v4079, 2.5052108e-08
    %v4723 = vmul.f32 %v4080, 2.5052108e-08
    %v4724 = vmul.f32 %v4081, 2.5052108e-08
    %v4725 = vmul.f32 %v4082, 2.5052108e-08
    %v4726 = vmul.f32 %v4083, 2.5052108e-08
    %v4727 = vmul.f32 %v4084, 2.5052108e-08
    %v4728 = vmul.f32 %v4085, 2.5052108e-08
    %v4729 = vmul.f32 %v4086, 2.5052108e-08
    %v4730 = vmul.f32 %v4087, 2.5052108e-08
    %v4731 = vmul.f32 %v4088, 2.5052108e-08
    %v4732 = vmul.f32 %v4089, 2.5052108e-08
    %v4733 = vmul.f32 %v4090, 2.5052108e-08
    %v4734 = vmul.f32 %v4091, 2.5052108e-08
    %v4735 = vmul.f32 %v4092, 2.5052108e-08
    %v4736 = vmul.f32 %v4093, 2.5052108e-08
    %v4737 = vadd.f32 %v4705, %v4721
    %v4738 = vadd.f32 %v4706, %v4722
    %v4739 = vadd.f32 %v4707, %v4723
    %v4740 = vadd.f32 %v4708, %v4724
    %v4741 = vadd.f32 %v4709, %v4725
    %v4742 = vadd.f32 %v4710, %v4726
    %v4743 = vadd.f32 %v4711, %v4727
    %v4744 = vadd.f32 %v4712, %v4728
    %v4745 = vadd.f32 %v4713, %v4729
    %v4746 = vadd.f32 %v4714, %v4730
    %v4747 = vadd.f32 %v4715, %v4731
    %v4748 = vadd.f32 %v4716, %v4732
    %v4749 = vadd.f32 %v4717, %v4733
    %v4750 = vadd.f32 %v4718, %v4734
    %v4751 = vadd.f32 %v4719, %v4735
    %v4752 = vadd.f32 %v4720, %v4736
    %v4753 = vmul.f32 %v4385, 2.0876756e-09
    %v4754 = vmul.f32 %v4386, 2.0876756e-09
    %v4755 = vmul.f32 %v4387, 2.0876756e-09
    %v4756 = vmul.f32 %v4388, 2.0876756e-09
    %v4757 = vmul.f32 %v4389, 2.0876756e-09
    %v4758 = vmul.f32 %v4390, 2.0876756e-09
    %v4759 = vmul.f32 %v4391, 2.0876756e-09
    %v4760 = vmul.f32 %v4392, 2.0876756e-09
    %v4761 = vmul.f32 %v4393, 2.0876756e-09
    %v4762 = vmul.f32 %v4394, 2.0876756e-09
    %v4763 = vmul.f32 %v4395, 2.0876756e-09
    %v4764 = vmul.f32 %v4396, 2.0876756e-09
    %v4765 = vmul.f32 %v4397, 2.0876756e-09
    %v4766 = vmul.f32 %v4398, 2.0876756e-09
    %v4767 = vmul.f32 %v4399, 2.0876756e-09
    %v4768 = vmul.f32 %v4400, 2.0876756e-09
    %v4769 = vadd.f32 %v4753, %v4737
    %v4770 = vadd.f32 %v4754, %v4738
    %v4771 = vadd.f32 %v4755, %v4739
    %v4772 = vadd.f32 %v4756, %v4740
    %v4773 = vadd.f32 %v4757, %v4741
    %v4774 = vadd.f32 %v4758, %v4742
    %v4775 = vadd.f32 %v4759, %v4743
    %v4776 = vadd.f32 %v4760, %v4744
    %v4777 = vadd.f32 %v4761, %v4745
    %v4778 = vadd.f32 %v4762, %v4746
    %v4779 = vadd.f32 %v4763, %v4747
    %v4780 = vadd.f32 %v4764, %v4748
    %v4781 = vadd.f32 %v4765, %v4749
    %v4782 = vadd.f32 %v4766, %v4750
    %v4783 = vadd.f32 %v4767, %v4751
    %v4784 = vadd.f32 %v4768, %v4752
    %v4785 = vpack.c.bf16 %v4770, %v4769
    %v4786 = vpack.c.bf16 %v4772, %v4771
    %v4787 = vpack.c.bf16 %v4774, %v4773
    %v4788 = vpack.c.bf16 %v4776, %v4775
    %v4789 = vpack.c.bf16 %v4778, %v4777
    %v4790 = vpack.c.bf16 %v4780, %v4779
    %v4791 = vpack.c.bf16 %v4782, %v4781
    %v4792 = vpack.c.bf16 %v4784, %v4783
    %v4793 = vunpack.c.l.bf16 %v4785
    %v4794 = vunpack.c.h.bf16 %v4785
    %v4795 = vunpack.c.l.bf16 %v4786
    %v4796 = vunpack.c.h.bf16 %v4786
    %v4797 = vunpack.c.l.bf16 %v4787
    %v4798 = vunpack.c.h.bf16 %v4787
    %v4799 = vunpack.c.l.bf16 %v4788
    %v4800 = vunpack.c.h.bf16 %v4788
    %v4801 = vunpack.c.l.bf16 %v4789
    %v4802 = vunpack.c.h.bf16 %v4789
    %v4803 = vunpack.c.l.bf16 %v4790
    %v4804 = vunpack.c.h.bf16 %v4790
    %v4805 = vunpack.c.l.bf16 %v4791
    %v4806 = vunpack.c.h.bf16 %v4791
    %v4807 = vunpack.c.l.bf16 %v4792
    %v4808 = vunpack.c.h.bf16 %v4792
    %v4809 = vsub.f32 %v4769, %v4793
    %v4810 = vsub.f32 %v4770, %v4794
    %v4811 = vsub.f32 %v4771, %v4795
    %v4812 = vsub.f32 %v4772, %v4796
    %v4813 = vsub.f32 %v4773, %v4797
    %v4814 = vsub.f32 %v4774, %v4798
    %v4815 = vsub.f32 %v4775, %v4799
    %v4816 = vsub.f32 %v4776, %v4800
    %v4817 = vsub.f32 %v4777, %v4801
    %v4818 = vsub.f32 %v4778, %v4802
    %v4819 = vsub.f32 %v4779, %v4803
    %v4820 = vsub.f32 %v4780, %v4804
    %v4821 = vsub.f32 %v4781, %v4805
    %v4822 = vsub.f32 %v4782, %v4806
    %v4823 = vsub.f32 %v4783, %v4807
    %v4824 = vsub.f32 %v4784, %v4808
    %v4825 = vpack.c.bf16 %v4810, %v4809
    %v4826 = vpack.c.bf16 %v4812, %v4811
    %v4827 = vpack.c.bf16 %v4814, %v4813
    %v4828 = vpack.c.bf16 %v4816, %v4815
    %v4829 = vpack.c.bf16 %v4818, %v4817
    %v4830 = vpack.c.bf16 %v4820, %v4819
    %v4831 = vpack.c.bf16 %v4822, %v4821
    %v4832 = vpack.c.bf16 %v4824, %v4823
    %4833 = vmatprep.subr.bf16.mxu0 0
    %4834 = vmatpush1.bf16.msra.mxu0 %v4408
    %4835 = vmatprep.subr.bf16.mxu0 0
    %4836 = vmatpush1.bf16.msra.mxu0 %v4407
    %4837 = vmatprep.subr.bf16.mxu0 0
    %4838 = vmatpush1.bf16.msra.mxu0 %v4406
    %4839 = vmatprep.subr.bf16.mxu0 0
    %4840 = vmatpush1.bf16.msra.mxu0 %v4405
    %4841 = vmatprep.subr.bf16.mxu0 0
    %4842 = vmatpush1.bf16.msra.mxu0 %v4404
    %4843 = vmatprep.subr.bf16.mxu0 0
    %4844 = vmatpush1.bf16.msra.mxu0 %v4403
    %4845 = vmatprep.subr.bf16.mxu0 0
    %4846 = vmatpush1.bf16.msra.mxu0 %v4402
    %4847 = vmatprep.subr.bf16.mxu0 0
    %4848 = vmatpush1.bf16.msra.mxu0 %v4401
    %4849 = vmatprep.subr.bf16.mxu0 0
    %4850 = vmatpush2.bf16.msra.mxu0 0
    %4851 = vmatprep.subr.bf16.mxu0 0
    %4852 = vmatpush2.bf16.msra.mxu0 0
    %4853 = vmatprep.subr.bf16.mxu0 0
    %4854 = vmatpush2.bf16.msra.mxu0 0
    %4855 = vmatprep.subr.bf16.mxu0 0
    %4856 = vmatpush2.bf16.msra.mxu0 0
    %4857 = vmatprep.subr.bf16.mxu0 0
    %4858 = vmatpush2.bf16.msra.mxu0 0
    %4859 = vmatprep.subr.bf16.mxu0 0
    %4860 = vmatpush2.bf16.msra.mxu0 0
    %4861 = vmatprep.subr.bf16.mxu0 0
    %4862 = vmatpush2.bf16.msra.mxu0 0
    %4863 = vmatprep.subr.bf16.mxu0 0
    %4864 = vmatpush2.bf16.msra.mxu0 0
    %4865 = vmatprep.mubr.bf16.mxu0 0
    %4866 = vmatmul.mubr.bf16.gmra.mxu0 %v4825
    %v4867 = vpop.f32.mrf.mxu0
    %v4868 = vadd.f32 0.0, %v4867
    %v4869 = vpop.f32.mrf.mxu0
    %v4870 = vpop.f32.mrf.mxu0
    %v4871 = vadd.f32 0.0, %v4870
    %v4872 = vpop.f32.mrf.mxu0
    %4873 = vmatprep.mubr.bf16.mxu0 0
    %4874 = vmatmul.mubr.bf16.gmra.mxu0 %v4826
    %v4875 = vpop.f32.mrf.mxu0
    %v4876 = vadd.f32 0.0, %v4875
    %v4877 = vpop.f32.mrf.mxu0
    %v4878 = vpop.f32.mrf.mxu0
    %v4879 = vadd.f32 0.0, %v4878
    %v4880 = vpop.f32.mrf.mxu0
    %4881 = vmatprep.mubr.bf16.mxu0 0
    %4882 = vmatmul.mubr.bf16.gmra.mxu0 %v4827
    %v4883 = vpop.f32.mrf.mxu0
    %v4884 = vadd.f32 0.0, %v4883
    %v4885 = vpop.f32.mrf.mxu0
    %v4886 = vpop.f32.mrf.mxu0
    %v4887 = vadd.f32 0.0, %v4886
    %v4888 = vpop.f32.mrf.mxu0
    %4889 = vmatprep.mubr.bf16.mxu0 0
    %4890 = vmatmul.mubr.bf16.gmra.mxu0 %v4828
    %v4891 = vpop.f32.mrf.mxu0
    %v4892 = vadd.f32 0.0, %v4891
    %v4893 = vpop.f32.mrf.mxu0
    %v4894 = vpop.f32.mrf.mxu0
    %v4895 = vadd.f32 0.0, %v4894
    %v4896 = vpop.f32.mrf.mxu0
    %4897 = vmatprep.mubr.bf16.mxu0 0
    %4898 = vmatmul.mubr.bf16.gmra.mxu0 %v4829
    %v4899 = vpop.f32.mrf.mxu0
    %v4900 = vadd.f32 0.0, %v4899
    %v4901 = vpop.f32.mrf.mxu0
    %v4902 = vpop.f32.mrf.mxu0
    %v4903 = vadd.f32 0.0, %v4902
    %v4904 = vpop.f32.mrf.mxu0
    %4905 = vmatprep.mubr.bf16.mxu0 0
    %4906 = vmatmul.mubr.bf16.gmra.mxu0 %v4830
    %v4907 = vpop.f32.mrf.mxu0
    %v4908 = vadd.f32 0.0, %v4907
    %v4909 = vpop.f32.mrf.mxu0
    %v4910 = vpop.f32.mrf.mxu0
    %v4911 = vadd.f32 0.0, %v4910
    %v4912 = vpop.f32.mrf.mxu0
    %4913 = vmatprep.mubr.bf16.mxu0 0
    %4914 = vmatmul.mubr.bf16.gmra.mxu0 %v4831
    %v4915 = vpop.f32.mrf.mxu0
    %v4916 = vadd.f32 0.0, %v4915
    %v4917 = vpop.f32.mrf.mxu0
    %v4918 = vpop.f32.mrf.mxu0
    %v4919 = vadd.f32 0.0, %v4918
    %v4920 = vpop.f32.mrf.mxu0
    %4921 = vmatprep.mubr.bf16.mxu0 0
    %4922 = vmatmul.mubr.bf16.gmra.mxu0 %v4832
    %v4923 = vpop.f32.mrf.mxu0
    %v4924 = vadd.f32 0.0, %v4923
    %v4925 = vpop.f32.mrf.mxu0
    %v4926 = vpop.f32.mrf.mxu0
    %v4927 = vadd.f32 0.0, %v4926
    %v4928 = vpop.f32.mrf.mxu0
    %4929 = vdwg.mxu0
    %4930 = vmatprep.subr.bf16.mxu0 0
    %4931 = vmatpush1.bf16.msra.mxu0 %v4408
    %4932 = vmatprep.subr.bf16.mxu0 0
    %4933 = vmatpush1.bf16.msra.mxu0 %v4407
    %4934 = vmatprep.subr.bf16.mxu0 0
    %4935 = vmatpush1.bf16.msra.mxu0 %v4406
    %4936 = vmatprep.subr.bf16.mxu0 0
    %4937 = vmatpush1.bf16.msra.mxu0 %v4405
    %4938 = vmatprep.subr.bf16.mxu0 0
    %4939 = vmatpush1.bf16.msra.mxu0 %v4404
    %4940 = vmatprep.subr.bf16.mxu0 0
    %4941 = vmatpush1.bf16.msra.mxu0 %v4403
    %4942 = vmatprep.subr.bf16.mxu0 0
    %4943 = vmatpush1.bf16.msra.mxu0 %v4402
    %4944 = vmatprep.subr.bf16.mxu0 0
    %4945 = vmatpush1.bf16.msra.mxu0 %v4401
    %4946 = vmatprep.subr.bf16.mxu0 0
    %4947 = vmatpush2.bf16.msra.mxu0 0
    %4948 = vmatprep.subr.bf16.mxu0 0
    %4949 = vmatpush2.bf16.msra.mxu0 0
    %4950 = vmatprep.subr.bf16.mxu0 0
    %4951 = vmatpush2.bf16.msra.mxu0 0
    %4952 = vmatprep.subr.bf16.mxu0 0
    %4953 = vmatpush2.bf16.msra.mxu0 0
    %4954 = vmatprep.subr.bf16.mxu0 0
    %4955 = vmatpush2.bf16.msra.mxu0 0
    %4956 = vmatprep.subr.bf16.mxu0 0
    %4957 = vmatpush2.bf16.msra.mxu0 0
    %4958 = vmatprep.subr.bf16.mxu0 0
    %4959 = vmatpush2.bf16.msra.mxu0 0
    %4960 = vmatprep.subr.bf16.mxu0 0
    %4961 = vmatpush2.bf16.msra.mxu0 0
    %4962 = vmatprep.mubr.bf16.mxu0 0
    %4963 = vmatmul.mubr.bf16.gmra.mxu0 %v4785
    %v4964 = vpop.f32.mrf.mxu0
    %v4965 = vadd.f32 %v4868, %v4964
    %v4966 = vpop.f32.mrf.mxu0
    %v4967 = vpop.f32.mrf.mxu0
    %v4968 = vadd.f32 %v4871, %v4967
    %v4969 = vpop.f32.mrf.mxu0
    %4970 = vmatprep.mubr.bf16.mxu0 0
    %4971 = vmatmul.mubr.bf16.gmra.mxu0 %v4786
    %v4972 = vpop.f32.mrf.mxu0
    %v4973 = vadd.f32 %v4876, %v4972
    %v4974 = vpop.f32.mrf.mxu0
    %v4975 = vpop.f32.mrf.mxu0
    %v4976 = vadd.f32 %v4879, %v4975
    %v4977 = vpop.f32.mrf.mxu0
    %4978 = vmatprep.mubr.bf16.mxu0 0
    %4979 = vmatmul.mubr.bf16.gmra.mxu0 %v4787
    %v4980 = vpop.f32.mrf.mxu0
    %v4981 = vadd.f32 %v4884, %v4980
    %v4982 = vpop.f32.mrf.mxu0
    %v4983 = vpop.f32.mrf.mxu0
    %v4984 = vadd.f32 %v4887, %v4983
    %v4985 = vpop.f32.mrf.mxu0
    %4986 = vmatprep.mubr.bf16.mxu0 0
    %4987 = vmatmul.mubr.bf16.gmra.mxu0 %v4788
    %v4988 = vpop.f32.mrf.mxu0
    %v4989 = vadd.f32 %v4892, %v4988
    %v4990 = vpop.f32.mrf.mxu0
    %v4991 = vpop.f32.mrf.mxu0
    %v4992 = vadd.f32 %v4895, %v4991
    %v4993 = vpop.f32.mrf.mxu0
    %4994 = vmatprep.mubr.bf16.mxu0 0
    %4995 = vmatmul.mubr.bf16.gmra.mxu0 %v4789
    %v4996 = vpop.f32.mrf.mxu0
    %v4997 = vadd.f32 %v4900, %v4996
    %v4998 = vpop.f32.mrf.mxu0
    %v4999 = vpop.f32.mrf.mxu0
    %v5000 = vadd.f32 %v4903, %v4999
    %v5001 = vpop.f32.mrf.mxu0
    %5002 = vmatprep.mubr.bf16.mxu0 0
    %5003 = vmatmul.mubr.bf16.gmra.mxu0 %v4790
    %v5004 = vpop.f32.mrf.mxu0
    %v5005 = vadd.f32 %v4908, %v5004
    %v5006 = vpop.f32.mrf.mxu0
    %v5007 = vpop.f32.mrf.mxu0
    %v5008 = vadd.f32 %v4911, %v5007
    %v5009 = vpop.f32.mrf.mxu0
    %5010 = vmatprep.mubr.bf16.mxu0 0
    %5011 = vmatmul.mubr.bf16.gmra.mxu0 %v4791
    %v5012 = vpop.f32.mrf.mxu0
    %v5013 = vadd.f32 %v4916, %v5012
    %v5014 = vpop.f32.mrf.mxu0
    %v5015 = vpop.f32.mrf.mxu0
    %v5016 = vadd.f32 %v4919, %v5015
    %v5017 = vpop.f32.mrf.mxu0
    %5018 = vmatprep.mubr.bf16.mxu0 0
    %5019 = vmatmul.mubr.bf16.gmra.mxu0 %v4792
    %v5020 = vpop.f32.mrf.mxu0
    %v5021 = vadd.f32 %v4924, %v5020
    %v5022 = vpop.f32.mrf.mxu0
    %v5023 = vpop.f32.mrf.mxu0
    %v5024 = vadd.f32 %v4927, %v5023
    %v5025 = vpop.f32.mrf.mxu0
    %5026 = vdwg.mxu0
    %5027 = vmatprep.subr.bf16.mxu0 0
    %5028 = vmatpush1.bf16.msra.mxu0 %v4448
    %5029 = vmatprep.subr.bf16.mxu0 0
    %5030 = vmatpush1.bf16.msra.mxu0 %v4447
    %5031 = vmatprep.subr.bf16.mxu0 0
    %5032 = vmatpush1.bf16.msra.mxu0 %v4446
    %5033 = vmatprep.subr.bf16.mxu0 0
    %5034 = vmatpush1.bf16.msra.mxu0 %v4445
    %5035 = vmatprep.subr.bf16.mxu0 0
    %5036 = vmatpush1.bf16.msra.mxu0 %v4444
    %5037 = vmatprep.subr.bf16.mxu0 0
    %5038 = vmatpush1.bf16.msra.mxu0 %v4443
    %5039 = vmatprep.subr.bf16.mxu0 0
    %5040 = vmatpush1.bf16.msra.mxu0 %v4442
    %5041 = vmatprep.subr.bf16.mxu0 0
    %5042 = vmatpush1.bf16.msra.mxu0 %v4441
    %5043 = vmatprep.subr.bf16.mxu0 0
    %5044 = vmatpush2.bf16.msra.mxu0 0
    %5045 = vmatprep.subr.bf16.mxu0 0
    %5046 = vmatpush2.bf16.msra.mxu0 0
    %5047 = vmatprep.subr.bf16.mxu0 0
    %5048 = vmatpush2.bf16.msra.mxu0 0
    %5049 = vmatprep.subr.bf16.mxu0 0
    %5050 = vmatpush2.bf16.msra.mxu0 0
    %5051 = vmatprep.subr.bf16.mxu0 0
    %5052 = vmatpush2.bf16.msra.mxu0 0
    %5053 = vmatprep.subr.bf16.mxu0 0
    %5054 = vmatpush2.bf16.msra.mxu0 0
    %5055 = vmatprep.subr.bf16.mxu0 0
    %5056 = vmatpush2.bf16.msra.mxu0 0
    %5057 = vmatprep.subr.bf16.mxu0 0
    %5058 = vmatpush2.bf16.msra.mxu0 0
    %5059 = vmatprep.mubr.bf16.mxu0 0
    %5060 = vmatmul.mubr.bf16.gmra.mxu0 %v4785
    %v5061 = vpop.f32.mrf.mxu0
    %v5062 = vadd.f32 0.0, %v5061
    %v5063 = vpop.f32.mrf.mxu0
    %v5064 = vpop.f32.mrf.mxu0
    %v5065 = vadd.f32 0.0, %v5064
    %v5066 = vpop.f32.mrf.mxu0
    %5067 = vmatprep.mubr.bf16.mxu0 0
    %5068 = vmatmul.mubr.bf16.gmra.mxu0 %v4786
    %v5069 = vpop.f32.mrf.mxu0
    %v5070 = vadd.f32 0.0, %v5069
    %v5071 = vpop.f32.mrf.mxu0
    %v5072 = vpop.f32.mrf.mxu0
    %v5073 = vadd.f32 0.0, %v5072
    %v5074 = vpop.f32.mrf.mxu0
    %5075 = vmatprep.mubr.bf16.mxu0 0
    %5076 = vmatmul.mubr.bf16.gmra.mxu0 %v4787
    %v5077 = vpop.f32.mrf.mxu0
    %v5078 = vadd.f32 0.0, %v5077
    %v5079 = vpop.f32.mrf.mxu0
    %v5080 = vpop.f32.mrf.mxu0
    %v5081 = vadd.f32 0.0, %v5080
    %v5082 = vpop.f32.mrf.mxu0
    %5083 = vmatprep.mubr.bf16.mxu0 0
    %5084 = vmatmul.mubr.bf16.gmra.mxu0 %v4788
    %v5085 = vpop.f32.mrf.mxu0
    %v5086 = vadd.f32 0.0, %v5085
    %v5087 = vpop.f32.mrf.mxu0
    %v5088 = vpop.f32.mrf.mxu0
    %v5089 = vadd.f32 0.0, %v5088
    %v5090 = vpop.f32.mrf.mxu0
    %5091 = vmatprep.mubr.bf16.mxu0 0
    %5092 = vmatmul.mubr.bf16.gmra.mxu0 %v4789
    %v5093 = vpop.f32.mrf.mxu0
    %v5094 = vadd.f32 0.0, %v5093
    %v5095 = vpop.f32.mrf.mxu0
    %v5096 = vpop.f32.mrf.mxu0
    %v5097 = vadd.f32 0.0, %v5096
    %v5098 = vpop.f32.mrf.mxu0
    %5099 = vmatprep.mubr.bf16.mxu0 0
    %5100 = vmatmul.mubr.bf16.gmra.mxu0 %v4790
    %v5101 = vpop.f32.mrf.mxu0
    %v5102 = vadd.f32 0.0, %v5101
    %v5103 = vpop.f32.mrf.mxu0
    %v5104 = vpop.f32.mrf.mxu0
    %v5105 = vadd.f32 0.0, %v5104
    %v5106 = vpop.f32.mrf.mxu0
    %5107 = vmatprep.mubr.bf16.mxu0 0
    %5108 = vmatmul.mubr.bf16.gmra.mxu0 %v4791
    %v5109 = vpop.f32.mrf.mxu0
    %v5110 = vadd.f32 0.0, %v5109
    %v5111 = vpop.f32.mrf.mxu0
    %v5112 = vpop.f32.mrf.mxu0
    %v5113 = vadd.f32 0.0, %v5112
    %v5114 = vpop.f32.mrf.mxu0
    %5115 = vmatprep.mubr.bf16.mxu0 0
    %5116 = vmatmul.mubr.bf16.gmra.mxu0 %v4792
    %v5117 = vpop.f32.mrf.mxu0
    %v5118 = vadd.f32 0.0, %v5117
    %v5119 = vpop.f32.mrf.mxu0
    %v5120 = vpop.f32.mrf.mxu0
    %v5121 = vadd.f32 0.0, %v5120
    %v5122 = vpop.f32.mrf.mxu0
    %5123 = vdwg.mxu0
    %v5124 = vadd.f32 %v4965, %v5062
    %v5125 = vadd.f32 %v4968, %v5065
    %v5126 = vadd.f32 %v4973, %v5070
    %v5127 = vadd.f32 %v4976, %v5073
    %v5128 = vadd.f32 %v4981, %v5078
    %v5129 = vadd.f32 %v4984, %v5081
    %v5130 = vadd.f32 %v4989, %v5086
    %v5131 = vadd.f32 %v4992, %v5089
    %v5132 = vadd.f32 %v4997, %v5094
    %v5133 = vadd.f32 %v5000, %v5097
    %v5134 = vadd.f32 %v5005, %v5102
    %v5135 = vadd.f32 %v5008, %v5105
    %v5136 = vadd.f32 %v5013, %v5110
    %v5137 = vadd.f32 %v5016, %v5113
    %v5138 = vadd.f32 %v5021, %v5118
    %v5139 = vadd.f32 %v5024, %v5121
    %v5140 = vadd.f32 %v5124, %v4625
    %v5141 = vadd.f32 %v5125, %v4626
    %v5142 = vadd.f32 %v5126, %v4627
    %v5143 = vadd.f32 %v5127, %v4628
    %v5144 = vadd.f32 %v5128, %v4629
    %v5145 = vadd.f32 %v5129, %v4630
    %v5146 = vadd.f32 %v5130, %v4631
    %v5147 = vadd.f32 %v5131, %v4632
    %v5148 = vadd.f32 %v5132, %v4633
    %v5149 = vadd.f32 %v5133, %v4634
    %v5150 = vadd.f32 %v5134, %v4635
    %v5151 = vadd.f32 %v5135, %v4636
    %v5152 = vadd.f32 %v5136, %v4637
    %v5153 = vadd.f32 %v5137, %v4638
    %v5154 = vadd.f32 %v5138, %v4639
    %v5155 = vadd.f32 %v5139, %v4640
    %v5156 = vpack.c.bf16 %v5141, %v5140
    %v5157 = vpack.c.bf16 %v5143, %v5142
    %v5158 = vpack.c.bf16 %v5145, %v5144
    %v5159 = vpack.c.bf16 %v5147, %v5146
    %v5160 = vpack.c.bf16 %v5149, %v5148
    %v5161 = vpack.c.bf16 %v5151, %v5150
    %v5162 = vpack.c.bf16 %v5153, %v5152
    %v5163 = vpack.c.bf16 %v5155, %v5154
    %v5164 = vunpack.c.l.bf16 %v5156
    %v5165 = vunpack.c.h.bf16 %v5156
    %v5166 = vunpack.c.l.bf16 %v5157
    %v5167 = vunpack.c.h.bf16 %v5157
    %v5168 = vunpack.c.l.bf16 %v5158
    %v5169 = vunpack.c.h.bf16 %v5158
    %v5170 = vunpack.c.l.bf16 %v5159
    %v5171 = vunpack.c.h.bf16 %v5159
    %v5172 = vunpack.c.l.bf16 %v5160
    %v5173 = vunpack.c.h.bf16 %v5160
    %v5174 = vunpack.c.l.bf16 %v5161
    %v5175 = vunpack.c.h.bf16 %v5161
    %v5176 = vunpack.c.l.bf16 %v5162
    %v5177 = vunpack.c.h.bf16 %v5162
    %v5178 = vunpack.c.l.bf16 %v5163
    %v5179 = vunpack.c.h.bf16 %v5163
    %v5180 = vsub.f32 %v5140, %v5164
    %v5181 = vsub.f32 %v5141, %v5165
    %v5182 = vsub.f32 %v5142, %v5166
    %v5183 = vsub.f32 %v5143, %v5167
    %v5184 = vsub.f32 %v5144, %v5168
    %v5185 = vsub.f32 %v5145, %v5169
    %v5186 = vsub.f32 %v5146, %v5170
    %v5187 = vsub.f32 %v5147, %v5171
    %v5188 = vsub.f32 %v5148, %v5172
    %v5189 = vsub.f32 %v5149, %v5173
    %v5190 = vsub.f32 %v5150, %v5174
    %v5191 = vsub.f32 %v5151, %v5175
    %v5192 = vsub.f32 %v5152, %v5176
    %v5193 = vsub.f32 %v5153, %v5177
    %v5194 = vsub.f32 %v5154, %v5178
    %v5195 = vsub.f32 %v5155, %v5179
    %v5196 = vpack.c.bf16 %v5181, %v5180
    %v5197 = vpack.c.bf16 %v5183, %v5182
    %v5198 = vpack.c.bf16 %v5185, %v5184
    %v5199 = vpack.c.bf16 %v5187, %v5186
    %v5200 = vpack.c.bf16 %v5189, %v5188
    %v5201 = vpack.c.bf16 %v5191, %v5190
    %v5202 = vpack.c.bf16 %v5193, %v5192
    %v5203 = vpack.c.bf16 %v5195, %v5194
    %5204 = vmatprep.subr.bf16.mxu0 0
    %5205 = vmatpush1.bf16.msra.mxu0 %v4408
    %5206 = vmatprep.subr.bf16.mxu0 0
    %5207 = vmatpush1.bf16.msra.mxu0 %v4407
    %5208 = vmatprep.subr.bf16.mxu0 0
    %5209 = vmatpush1.bf16.msra.mxu0 %v4406
    %5210 = vmatprep.subr.bf16.mxu0 0
    %5211 = vmatpush1.bf16.msra.mxu0 %v4405
    %5212 = vmatprep.subr.bf16.mxu0 0
    %5213 = vmatpush1.bf16.msra.mxu0 %v4404
    %5214 = vmatprep.subr.bf16.mxu0 0
    %5215 = vmatpush1.bf16.msra.mxu0 %v4403
    %5216 = vmatprep.subr.bf16.mxu0 0
    %5217 = vmatpush1.bf16.msra.mxu0 %v4402
    %5218 = vmatprep.subr.bf16.mxu0 0
    %5219 = vmatpush1.bf16.msra.mxu0 %v4401
    %5220 = vmatprep.subr.bf16.mxu0 0
    %5221 = vmatpush2.bf16.msra.mxu0 0
    %5222 = vmatprep.subr.bf16.mxu0 0
    %5223 = vmatpush2.bf16.msra.mxu0 0
    %5224 = vmatprep.subr.bf16.mxu0 0
    %5225 = vmatpush2.bf16.msra.mxu0 0
    %5226 = vmatprep.subr.bf16.mxu0 0
    %5227 = vmatpush2.bf16.msra.mxu0 0
    %5228 = vmatprep.subr.bf16.mxu0 0
    %5229 = vmatpush2.bf16.msra.mxu0 0
    %5230 = vmatprep.subr.bf16.mxu0 0
    %5231 = vmatpush2.bf16.msra.mxu0 0
    %5232 = vmatprep.subr.bf16.mxu0 0
    %5233 = vmatpush2.bf16.msra.mxu0 0
    %5234 = vmatprep.subr.bf16.mxu0 0
    %5235 = vmatpush2.bf16.msra.mxu0 0
    %5236 = vmatprep.mubr.bf16.mxu0 0
    %5237 = vmatmul.mubr.bf16.gmra.mxu0 %v5196
    %v5238 = vpop.f32.mrf.mxu0
    %v5239 = vadd.f32 0.0, %v5238
    %v5240 = vpop.f32.mrf.mxu0
    %v5241 = vpop.f32.mrf.mxu0
    %v5242 = vadd.f32 0.0, %v5241
    %v5243 = vpop.f32.mrf.mxu0
    %5244 = vmatprep.mubr.bf16.mxu0 0
    %5245 = vmatmul.mubr.bf16.gmra.mxu0 %v5197
    %v5246 = vpop.f32.mrf.mxu0
    %v5247 = vadd.f32 0.0, %v5246
    %v5248 = vpop.f32.mrf.mxu0
    %v5249 = vpop.f32.mrf.mxu0
    %v5250 = vadd.f32 0.0, %v5249
    %v5251 = vpop.f32.mrf.mxu0
    %5252 = vmatprep.mubr.bf16.mxu0 0
    %5253 = vmatmul.mubr.bf16.gmra.mxu0 %v5198
    %v5254 = vpop.f32.mrf.mxu0
    %v5255 = vadd.f32 0.0, %v5254
    %v5256 = vpop.f32.mrf.mxu0
    %v5257 = vpop.f32.mrf.mxu0
    %v5258 = vadd.f32 0.0, %v5257
    %v5259 = vpop.f32.mrf.mxu0
    %5260 = vmatprep.mubr.bf16.mxu0 0
    %5261 = vmatmul.mubr.bf16.gmra.mxu0 %v5199
    %v5262 = vpop.f32.mrf.mxu0
    %v5263 = vadd.f32 0.0, %v5262
    %v5264 = vpop.f32.mrf.mxu0
    %v5265 = vpop.f32.mrf.mxu0
    %v5266 = vadd.f32 0.0, %v5265
    %v5267 = vpop.f32.mrf.mxu0
    %5268 = vmatprep.mubr.bf16.mxu0 0
    %5269 = vmatmul.mubr.bf16.gmra.mxu0 %v5200
    %v5270 = vpop.f32.mrf.mxu0
    %v5271 = vadd.f32 0.0, %v5270
    %v5272 = vpop.f32.mrf.mxu0
    %v5273 = vpop.f32.mrf.mxu0
    %v5274 = vadd.f32 0.0, %v5273
    %v5275 = vpop.f32.mrf.mxu0
    %5276 = vmatprep.mubr.bf16.mxu0 0
    %5277 = vmatmul.mubr.bf16.gmra.mxu0 %v5201
    %v5278 = vpop.f32.mrf.mxu0
    %v5279 = vadd.f32 0.0, %v5278
    %v5280 = vpop.f32.mrf.mxu0
    %v5281 = vpop.f32.mrf.mxu0
    %v5282 = vadd.f32 0.0, %v5281
    %v5283 = vpop.f32.mrf.mxu0
    %5284 = vmatprep.mubr.bf16.mxu0 0
    %5285 = vmatmul.mubr.bf16.gmra.mxu0 %v5202
    %v5286 = vpop.f32.mrf.mxu0
    %v5287 = vadd.f32 0.0, %v5286
    %v5288 = vpop.f32.mrf.mxu0
    %v5289 = vpop.f32.mrf.mxu0
    %v5290 = vadd.f32 0.0, %v5289
    %v5291 = vpop.f32.mrf.mxu0
    %5292 = vmatprep.mubr.bf16.mxu0 0
    %5293 = vmatmul.mubr.bf16.gmra.mxu0 %v5203
    %v5294 = vpop.f32.mrf.mxu0
    %v5295 = vadd.f32 0.0, %v5294
    %v5296 = vpop.f32.mrf.mxu0
    %v5297 = vpop.f32.mrf.mxu0
    %v5298 = vadd.f32 0.0, %v5297
    %v5299 = vpop.f32.mrf.mxu0
    %5300 = vdwg.mxu0
    %5301 = vmatprep.subr.bf16.mxu0 0
    %5302 = vmatpush1.bf16.msra.mxu0 %v4408
    %5303 = vmatprep.subr.bf16.mxu0 0
    %5304 = vmatpush1.bf16.msra.mxu0 %v4407
    %5305 = vmatprep.subr.bf16.mxu0 0
    %5306 = vmatpush1.bf16.msra.mxu0 %v4406
    %5307 = vmatprep.subr.bf16.mxu0 0
    %5308 = vmatpush1.bf16.msra.mxu0 %v4405
    %5309 = vmatprep.subr.bf16.mxu0 0
    %5310 = vmatpush1.bf16.msra.mxu0 %v4404
    %5311 = vmatprep.subr.bf16.mxu0 0
    %5312 = vmatpush1.bf16.msra.mxu0 %v4403
    %5313 = vmatprep.subr.bf16.mxu0 0
    %5314 = vmatpush1.bf16.msra.mxu0 %v4402
    %5315 = vmatprep.subr.bf16.mxu0 0
    %5316 = vmatpush1.bf16.msra.mxu0 %v4401
    %5317 = vmatprep.subr.bf16.mxu0 0
    %5318 = vmatpush2.bf16.msra.mxu0 0
    %5319 = vmatprep.subr.bf16.mxu0 0
    %5320 = vmatpush2.bf16.msra.mxu0 0
    %5321 = vmatprep.subr.bf16.mxu0 0
    %5322 = vmatpush2.bf16.msra.mxu0 0
    %5323 = vmatprep.subr.bf16.mxu0 0
    %5324 = vmatpush2.bf16.msra.mxu0 0
    %5325 = vmatprep.subr.bf16.mxu0 0
    %5326 = vmatpush2.bf16.msra.mxu0 0
    %5327 = vmatprep.subr.bf16.mxu0 0
    %5328 = vmatpush2.bf16.msra.mxu0 0
    %5329 = vmatprep.subr.bf16.mxu0 0
    %5330 = vmatpush2.bf16.msra.mxu0 0
    %5331 = vmatprep.subr.bf16.mxu0 0
    %5332 = vmatpush2.bf16.msra.mxu0 0
    %5333 = vmatprep.mubr.bf16.mxu0 0
    %5334 = vmatmul.mubr.bf16.gmra.mxu0 %v5156
    %v5335 = vpop.f32.mrf.mxu0
    %v5336 = vadd.f32 %v5239, %v5335
    %v5337 = vpop.f32.mrf.mxu0
    %v5338 = vpop.f32.mrf.mxu0
    %v5339 = vadd.f32 %v5242, %v5338
    %v5340 = vpop.f32.mrf.mxu0
    %5341 = vmatprep.mubr.bf16.mxu0 0
    %5342 = vmatmul.mubr.bf16.gmra.mxu0 %v5157
    %v5343 = vpop.f32.mrf.mxu0
    %v5344 = vadd.f32 %v5247, %v5343
    %v5345 = vpop.f32.mrf.mxu0
    %v5346 = vpop.f32.mrf.mxu0
    %v5347 = vadd.f32 %v5250, %v5346
    %v5348 = vpop.f32.mrf.mxu0
    %5349 = vmatprep.mubr.bf16.mxu0 0
    %5350 = vmatmul.mubr.bf16.gmra.mxu0 %v5158
    %v5351 = vpop.f32.mrf.mxu0
    %v5352 = vadd.f32 %v5255, %v5351
    %v5353 = vpop.f32.mrf.mxu0
    %v5354 = vpop.f32.mrf.mxu0
    %v5355 = vadd.f32 %v5258, %v5354
    %v5356 = vpop.f32.mrf.mxu0
    %5357 = vmatprep.mubr.bf16.mxu0 0
    %5358 = vmatmul.mubr.bf16.gmra.mxu0 %v5159
    %v5359 = vpop.f32.mrf.mxu0
    %v5360 = vadd.f32 %v5263, %v5359
    %v5361 = vpop.f32.mrf.mxu0
    %v5362 = vpop.f32.mrf.mxu0
    %v5363 = vadd.f32 %v5266, %v5362
    %v5364 = vpop.f32.mrf.mxu0
    %5365 = vmatprep.mubr.bf16.mxu0 0
    %5366 = vmatmul.mubr.bf16.gmra.mxu0 %v5160
    %v5367 = vpop.f32.mrf.mxu0
    %v5368 = vadd.f32 %v5271, %v5367
    %v5369 = vpop.f32.mrf.mxu0
    %v5370 = vpop.f32.mrf.mxu0
    %v5371 = vadd.f32 %v5274, %v5370
    %v5372 = vpop.f32.mrf.mxu0
    %5373 = vmatprep.mubr.bf16.mxu0 0
    %5374 = vmatmul.mubr.bf16.gmra.mxu0 %v5161
    %v5375 = vpop.f32.mrf.mxu0
    %v5376 = vadd.f32 %v5279, %v5375
    %v5377 = vpop.f32.mrf.mxu0
    %v5378 = vpop.f32.mrf.mxu0
    %v5379 = vadd.f32 %v5282, %v5378
    %v5380 = vpop.f32.mrf.mxu0
    %5381 = vmatprep.mubr.bf16.mxu0 0
    %5382 = vmatmul.mubr.bf16.gmra.mxu0 %v5162
    %v5383 = vpop.f32.mrf.mxu0
    %v5384 = vadd.f32 %v5287, %v5383
    %v5385 = vpop.f32.mrf.mxu0
    %v5386 = vpop.f32.mrf.mxu0
    %v5387 = vadd.f32 %v5290, %v5386
    %v5388 = vpop.f32.mrf.mxu0
    %5389 = vmatprep.mubr.bf16.mxu0 0
    %5390 = vmatmul.mubr.bf16.gmra.mxu0 %v5163
    %v5391 = vpop.f32.mrf.mxu0
    %v5392 = vadd.f32 %v5295, %v5391
    %v5393 = vpop.f32.mrf.mxu0
    %v5394 = vpop.f32.mrf.mxu0
    %v5395 = vadd.f32 %v5298, %v5394
    %v5396 = vpop.f32.mrf.mxu0
    %5397 = vdwg.mxu0
    %5398 = vmatprep.subr.bf16.mxu0 0
    %5399 = vmatpush1.bf16.msra.mxu0 %v4448
    %5400 = vmatprep.subr.bf16.mxu0 0
    %5401 = vmatpush1.bf16.msra.mxu0 %v4447
    %5402 = vmatprep.subr.bf16.mxu0 0
    %5403 = vmatpush1.bf16.msra.mxu0 %v4446
    %5404 = vmatprep.subr.bf16.mxu0 0
    %5405 = vmatpush1.bf16.msra.mxu0 %v4445
    %5406 = vmatprep.subr.bf16.mxu0 0
    %5407 = vmatpush1.bf16.msra.mxu0 %v4444
    %5408 = vmatprep.subr.bf16.mxu0 0
    %5409 = vmatpush1.bf16.msra.mxu0 %v4443
    %5410 = vmatprep.subr.bf16.mxu0 0
    %5411 = vmatpush1.bf16.msra.mxu0 %v4442
    %5412 = vmatprep.subr.bf16.mxu0 0
    %5413 = vmatpush1.bf16.msra.mxu0 %v4441
    %5414 = vmatprep.subr.bf16.mxu0 0
    %5415 = vmatpush2.bf16.msra.mxu0 0
    %5416 = vmatprep.subr.bf16.mxu0 0
    %5417 = vmatpush2.bf16.msra.mxu0 0
    %5418 = vmatprep.subr.bf16.mxu0 0
    %5419 = vmatpush2.bf16.msra.mxu0 0
    %5420 = vmatprep.subr.bf16.mxu0 0
    %5421 = vmatpush2.bf16.msra.mxu0 0
    %5422 = vmatprep.subr.bf16.mxu0 0
    %5423 = vmatpush2.bf16.msra.mxu0 0
    %5424 = vmatprep.subr.bf16.mxu0 0
    %5425 = vmatpush2.bf16.msra.mxu0 0
    %5426 = vmatprep.subr.bf16.mxu0 0
    %5427 = vmatpush2.bf16.msra.mxu0 0
    %5428 = vmatprep.subr.bf16.mxu0 0
    %5429 = vmatpush2.bf16.msra.mxu0 0
    %5430 = vmatprep.mubr.bf16.mxu0 0
    %5431 = vmatmul.mubr.bf16.gmra.mxu0 %v5156
    %v5432 = vpop.f32.mrf.mxu0
    %v5433 = vadd.f32 0.0, %v5432
    %v5434 = vpop.f32.mrf.mxu0
    %v5435 = vpop.f32.mrf.mxu0
    %v5436 = vadd.f32 0.0, %v5435
    %v5437 = vpop.f32.mrf.mxu0
    %5438 = vmatprep.mubr.bf16.mxu0 0
    %5439 = vmatmul.mubr.bf16.gmra.mxu0 %v5157
    %v5440 = vpop.f32.mrf.mxu0
    %v5441 = vadd.f32 0.0, %v5440
    %v5442 = vpop.f32.mrf.mxu0
    %v5443 = vpop.f32.mrf.mxu0
    %v5444 = vadd.f32 0.0, %v5443
    %v5445 = vpop.f32.mrf.mxu0
    %5446 = vmatprep.mubr.bf16.mxu0 0
    %5447 = vmatmul.mubr.bf16.gmra.mxu0 %v5158
    %v5448 = vpop.f32.mrf.mxu0
    %v5449 = vadd.f32 0.0, %v5448
    %v5450 = vpop.f32.mrf.mxu0
    %v5451 = vpop.f32.mrf.mxu0
    %v5452 = vadd.f32 0.0, %v5451
    %v5453 = vpop.f32.mrf.mxu0
    %5454 = vmatprep.mubr.bf16.mxu0 0
    %5455 = vmatmul.mubr.bf16.gmra.mxu0 %v5159
    %v5456 = vpop.f32.mrf.mxu0
    %v5457 = vadd.f32 0.0, %v5456
    %v5458 = vpop.f32.mrf.mxu0
    %v5459 = vpop.f32.mrf.mxu0
    %v5460 = vadd.f32 0.0, %v5459
    %v5461 = vpop.f32.mrf.mxu0
    %5462 = vmatprep.mubr.bf16.mxu0 0
    %5463 = vmatmul.mubr.bf16.gmra.mxu0 %v5160
    %v5464 = vpop.f32.mrf.mxu0
    %v5465 = vadd.f32 0.0, %v5464
    %v5466 = vpop.f32.mrf.mxu0
    %v5467 = vpop.f32.mrf.mxu0
    %v5468 = vadd.f32 0.0, %v5467
    %v5469 = vpop.f32.mrf.mxu0
    %5470 = vmatprep.mubr.bf16.mxu0 0
    %5471 = vmatmul.mubr.bf16.gmra.mxu0 %v5161
    %v5472 = vpop.f32.mrf.mxu0
    %v5473 = vadd.f32 0.0, %v5472
    %v5474 = vpop.f32.mrf.mxu0
    %v5475 = vpop.f32.mrf.mxu0
    %v5476 = vadd.f32 0.0, %v5475
    %v5477 = vpop.f32.mrf.mxu0
    %5478 = vmatprep.mubr.bf16.mxu0 0
    %5479 = vmatmul.mubr.bf16.gmra.mxu0 %v5162
    %v5480 = vpop.f32.mrf.mxu0
    %v5481 = vadd.f32 0.0, %v5480
    %v5482 = vpop.f32.mrf.mxu0
    %v5483 = vpop.f32.mrf.mxu0
    %v5484 = vadd.f32 0.0, %v5483
    %v5485 = vpop.f32.mrf.mxu0
    %5486 = vmatprep.mubr.bf16.mxu0 0
    %5487 = vmatmul.mubr.bf16.gmra.mxu0 %v5163
    %v5488 = vpop.f32.mrf.mxu0
    %v5489 = vadd.f32 0.0, %v5488
    %v5490 = vpop.f32.mrf.mxu0
    %v5491 = vpop.f32.mrf.mxu0
    %v5492 = vadd.f32 0.0, %v5491
    %v5493 = vpop.f32.mrf.mxu0
    %5494 = vdwg.mxu0
    %v5495 = vadd.f32 %v5336, %v5433
    %v5496 = vadd.f32 %v5339, %v5436
    %v5497 = vadd.f32 %v5344, %v5441
    %v5498 = vadd.f32 %v5347, %v5444
    %v5499 = vadd.f32 %v5352, %v5449
    %v5500 = vadd.f32 %v5355, %v5452
    %v5501 = vadd.f32 %v5360, %v5457
    %v5502 = vadd.f32 %v5363, %v5460
    %v5503 = vadd.f32 %v5368, %v5465
    %v5504 = vadd.f32 %v5371, %v5468
    %v5505 = vadd.f32 %v5376, %v5473
    %v5506 = vadd.f32 %v5379, %v5476
    %v5507 = vadd.f32 %v5384, %v5481
    %v5508 = vadd.f32 %v5387, %v5484
    %v5509 = vadd.f32 %v5392, %v5489
    %v5510 = vadd.f32 %v5395, %v5492
    %v5511 = vadd.f32 %v5495, %v4513
    %v5512 = vadd.f32 %v5496, %v4514
    %v5513 = vadd.f32 %v5497, %v4515
    %v5514 = vadd.f32 %v5498, %v4516
    %v5515 = vadd.f32 %v5499, %v4517
    %v5516 = vadd.f32 %v5500, %v4518
    %v5517 = vadd.f32 %v5501, %v4519
    %v5518 = vadd.f32 %v5502, %v4520
    %v5519 = vadd.f32 %v5503, %v4521
    %v5520 = vadd.f32 %v5504, %v4522
    %v5521 = vadd.f32 %v5505, %v4523
    %v5522 = vadd.f32 %v5506, %v4524
    %v5523 = vadd.f32 %v5507, %v4525
    %v5524 = vadd.f32 %v5508, %v4526
    %v5525 = vadd.f32 %v5509, %v4527
    %v5526 = vadd.f32 %v5510, %v4528
    %v5527 = vpack.c.bf16 %v5512, %v5511
    %v5528 = vpack.c.bf16 %v5514, %v5513
    %v5529 = vpack.c.bf16 %v5516, %v5515
    %v5530 = vpack.c.bf16 %v5518, %v5517
    %v5531 = vpack.c.bf16 %v5520, %v5519
    %v5532 = vpack.c.bf16 %v5522, %v5521
    %v5533 = vpack.c.bf16 %v5524, %v5523
    %v5534 = vpack.c.bf16 %v5526, %v5525
    %v5535 = vunpack.c.l.bf16 %v5527
    %v5536 = vunpack.c.h.bf16 %v5527
    %v5537 = vunpack.c.l.bf16 %v5528
    %v5538 = vunpack.c.h.bf16 %v5528
    %v5539 = vunpack.c.l.bf16 %v5529
    %v5540 = vunpack.c.h.bf16 %v5529
    %v5541 = vunpack.c.l.bf16 %v5530
    %v5542 = vunpack.c.h.bf16 %v5530
    %v5543 = vunpack.c.l.bf16 %v5531
    %v5544 = vunpack.c.h.bf16 %v5531
    %v5545 = vunpack.c.l.bf16 %v5532
    %v5546 = vunpack.c.h.bf16 %v5532
    %v5547 = vunpack.c.l.bf16 %v5533
    %v5548 = vunpack.c.h.bf16 %v5533
    %v5549 = vunpack.c.l.bf16 %v5534
    %v5550 = vunpack.c.h.bf16 %v5534
    %v5551 = vsub.f32 %v5511, %v5535
    %v5552 = vsub.f32 %v5512, %v5536
    %v5553 = vsub.f32 %v5513, %v5537
    %v5554 = vsub.f32 %v5514, %v5538
    %v5555 = vsub.f32 %v5515, %v5539
    %v5556 = vsub.f32 %v5516, %v5540
    %v5557 = vsub.f32 %v5517, %v5541
    %v5558 = vsub.f32 %v5518, %v5542
    %v5559 = vsub.f32 %v5519, %v5543
    %v5560 = vsub.f32 %v5520, %v5544
    %v5561 = vsub.f32 %v5521, %v5545
    %v5562 = vsub.f32 %v5522, %v5546
    %v5563 = vsub.f32 %v5523, %v5547
    %v5564 = vsub.f32 %v5524, %v5548
    %v5565 = vsub.f32 %v5525, %v5549
    %v5566 = vsub.f32 %v5526, %v5550
    %v5567 = vpack.c.bf16 %v5552, %v5551
    %v5568 = vpack.c.bf16 %v5554, %v5553
    %v5569 = vpack.c.bf16 %v5556, %v5555
    %v5570 = vpack.c.bf16 %v5558, %v5557
    %v5571 = vpack.c.bf16 %v5560, %v5559
    %v5572 = vpack.c.bf16 %v5562, %v5561
    %v5573 = vpack.c.bf16 %v5564, %v5563
    %v5574 = vpack.c.bf16 %v5566, %v5565
    %5575 = vmatprep.subr.bf16.mxu0 0
    %5576 = vmatpush1.bf16.msra.mxu0 %v5534
    %5577 = vmatprep.subr.bf16.mxu0 0
    %5578 = vmatpush1.bf16.msra.mxu0 %v5533
    %5579 = vmatprep.subr.bf16.mxu0 0
    %5580 = vmatpush1.bf16.msra.mxu0 %v5532
    %5581 = vmatprep.subr.bf16.mxu0 0
    %5582 = vmatpush1.bf16.msra.mxu0 %v5531
    %5583 = vmatprep.subr.bf16.mxu0 0
    %5584 = vmatpush1.bf16.msra.mxu0 %v5530
    %5585 = vmatprep.subr.bf16.mxu0 0
    %5586 = vmatpush1.bf16.msra.mxu0 %v5529
    %5587 = vmatprep.subr.bf16.mxu0 0
    %5588 = vmatpush1.bf16.msra.mxu0 %v5528
    %5589 = vmatprep.subr.bf16.mxu0 0
    %5590 = vmatpush1.bf16.msra.mxu0 %v5527
    %5591 = vmatprep.subr.bf16.mxu0 0
    %5592 = vmatpush2.bf16.msra.mxu0 0
    %5593 = vmatprep.subr.bf16.mxu0 0
    %5594 = vmatpush2.bf16.msra.mxu0 0
    %5595 = vmatprep.subr.bf16.mxu0 0
    %5596 = vmatpush2.bf16.msra.mxu0 0
    %5597 = vmatprep.subr.bf16.mxu0 0
    %5598 = vmatpush2.bf16.msra.mxu0 0
    %5599 = vmatprep.subr.bf16.mxu0 0
    %5600 = vmatpush2.bf16.msra.mxu0 0
    %5601 = vmatprep.subr.bf16.mxu0 0
    %5602 = vmatpush2.bf16.msra.mxu0 0
    %5603 = vmatprep.subr.bf16.mxu0 0
    %5604 = vmatpush2.bf16.msra.mxu0 0
    %5605 = vmatprep.subr.bf16.mxu0 0
    %5606 = vmatpush2.bf16.msra.mxu0 0
    %5607 = vmatprep.mubr.bf16.mxu0 0
    %5608 = vmatmul.mubr.bf16.gmra.mxu0 %v5567
    %v5609 = vpop.f32.mrf.mxu0
    %v5610 = vadd.f32 0.0, %v5609
    %v5611 = vpop.f32.mrf.mxu0
    %v5612 = vpop.f32.mrf.mxu0
    %v5613 = vadd.f32 0.0, %v5612
    %v5614 = vpop.f32.mrf.mxu0
    %5615 = vmatprep.mubr.bf16.mxu0 0
    %5616 = vmatmul.mubr.bf16.gmra.mxu0 %v5568
    %v5617 = vpop.f32.mrf.mxu0
    %v5618 = vadd.f32 0.0, %v5617
    %v5619 = vpop.f32.mrf.mxu0
    %v5620 = vpop.f32.mrf.mxu0
    %v5621 = vadd.f32 0.0, %v5620
    %v5622 = vpop.f32.mrf.mxu0
    %5623 = vmatprep.mubr.bf16.mxu0 0
    %5624 = vmatmul.mubr.bf16.gmra.mxu0 %v5569
    %v5625 = vpop.f32.mrf.mxu0
    %v5626 = vadd.f32 0.0, %v5625
    %v5627 = vpop.f32.mrf.mxu0
    %v5628 = vpop.f32.mrf.mxu0
    %v5629 = vadd.f32 0.0, %v5628
    %v5630 = vpop.f32.mrf.mxu0
    %5631 = vmatprep.mubr.bf16.mxu0 0
    %5632 = vmatmul.mubr.bf16.gmra.mxu0 %v5570
    %v5633 = vpop.f32.mrf.mxu0
    %v5634 = vadd.f32 0.0, %v5633
    %v5635 = vpop.f32.mrf.mxu0
    %v5636 = vpop.f32.mrf.mxu0
    %v5637 = vadd.f32 0.0, %v5636
    %v5638 = vpop.f32.mrf.mxu0
    %5639 = vmatprep.mubr.bf16.mxu0 0
    %5640 = vmatmul.mubr.bf16.gmra.mxu0 %v5571
    %v5641 = vpop.f32.mrf.mxu0
    %v5642 = vadd.f32 0.0, %v5641
    %v5643 = vpop.f32.mrf.mxu0
    %v5644 = vpop.f32.mrf.mxu0
    %v5645 = vadd.f32 0.0, %v5644
    %v5646 = vpop.f32.mrf.mxu0
    %5647 = vmatprep.mubr.bf16.mxu0 0
    %5648 = vmatmul.mubr.bf16.gmra.mxu0 %v5572
    %v5649 = vpop.f32.mrf.mxu0
    %v5650 = vadd.f32 0.0, %v5649
    %v5651 = vpop.f32.mrf.mxu0
    %v5652 = vpop.f32.mrf.mxu0
    %v5653 = vadd.f32 0.0, %v5652
    %v5654 = vpop.f32.mrf.mxu0
    %5655 = vmatprep.mubr.bf16.mxu0 0
    %5656 = vmatmul.mubr.bf16.gmra.mxu0 %v5573
    %v5657 = vpop.f32.mrf.mxu0
    %v5658 = vadd.f32 0.0, %v5657
    %v5659 = vpop.f32.mrf.mxu0
    %v5660 = vpop.f32.mrf.mxu0
    %v5661 = vadd.f32 0.0, %v5660
    %v5662 = vpop.f32.mrf.mxu0
    %5663 = vmatprep.mubr.bf16.mxu0 0
    %5664 = vmatmul.mubr.bf16.gmra.mxu0 %v5574
    %v5665 = vpop.f32.mrf.mxu0
    %v5666 = vadd.f32 0.0, %v5665
    %v5667 = vpop.f32.mrf.mxu0
    %v5668 = vpop.f32.mrf.mxu0
    %v5669 = vadd.f32 0.0, %v5668
    %v5670 = vpop.f32.mrf.mxu0
    %5671 = vdwg.mxu0
    %5672 = vmatprep.subr.bf16.mxu0 0
    %5673 = vmatpush1.bf16.msra.mxu0 %v5534
    %5674 = vmatprep.subr.bf16.mxu0 0
    %5675 = vmatpush1.bf16.msra.mxu0 %v5533
    %5676 = vmatprep.subr.bf16.mxu0 0
    %5677 = vmatpush1.bf16.msra.mxu0 %v5532
    %5678 = vmatprep.subr.bf16.mxu0 0
    %5679 = vmatpush1.bf16.msra.mxu0 %v5531
    %5680 = vmatprep.subr.bf16.mxu0 0
    %5681 = vmatpush1.bf16.msra.mxu0 %v5530
    %5682 = vmatprep.subr.bf16.mxu0 0
    %5683 = vmatpush1.bf16.msra.mxu0 %v5529
    %5684 = vmatprep.subr.bf16.mxu0 0
    %5685 = vmatpush1.bf16.msra.mxu0 %v5528
    %5686 = vmatprep.subr.bf16.mxu0 0
    %5687 = vmatpush1.bf16.msra.mxu0 %v5527
    %5688 = vmatprep.subr.bf16.mxu0 0
    %5689 = vmatpush2.bf16.msra.mxu0 0
    %5690 = vmatprep.subr.bf16.mxu0 0
    %5691 = vmatpush2.bf16.msra.mxu0 0
    %5692 = vmatprep.subr.bf16.mxu0 0
    %5693 = vmatpush2.bf16.msra.mxu0 0
    %5694 = vmatprep.subr.bf16.mxu0 0
    %5695 = vmatpush2.bf16.msra.mxu0 0
    %5696 = vmatprep.subr.bf16.mxu0 0
    %5697 = vmatpush2.bf16.msra.mxu0 0
    %5698 = vmatprep.subr.bf16.mxu0 0
    %5699 = vmatpush2.bf16.msra.mxu0 0
    %5700 = vmatprep.subr.bf16.mxu0 0
    %5701 = vmatpush2.bf16.msra.mxu0 0
    %5702 = vmatprep.subr.bf16.mxu0 0
    %5703 = vmatpush2.bf16.msra.mxu0 0
    %5704 = vmatprep.mubr.bf16.mxu0 0
    %5705 = vmatmul.mubr.bf16.gmra.mxu0 %v5527
    %v5706 = vpop.f32.mrf.mxu0
    %v5707 = vadd.f32 %v5610, %v5706
    %v5708 = vpop.f32.mrf.mxu0
    %v5709 = vpop.f32.mrf.mxu0
    %v5710 = vadd.f32 %v5613, %v5709
    %v5711 = vpop.f32.mrf.mxu0
    %5712 = vmatprep.mubr.bf16.mxu0 0
    %5713 = vmatmul.mubr.bf16.gmra.mxu0 %v5528
    %v5714 = vpop.f32.mrf.mxu0
    %v5715 = vadd.f32 %v5618, %v5714
    %v5716 = vpop.f32.mrf.mxu0
    %v5717 = vpop.f32.mrf.mxu0
    %v5718 = vadd.f32 %v5621, %v5717
    %v5719 = vpop.f32.mrf.mxu0
    %5720 = vmatprep.mubr.bf16.mxu0 0
    %5721 = vmatmul.mubr.bf16.gmra.mxu0 %v5529
    %v5722 = vpop.f32.mrf.mxu0
    %v5723 = vadd.f32 %v5626, %v5722
    %v5724 = vpop.f32.mrf.mxu0
    %v5725 = vpop.f32.mrf.mxu0
    %v5726 = vadd.f32 %v5629, %v5725
    %v5727 = vpop.f32.mrf.mxu0
    %5728 = vmatprep.mubr.bf16.mxu0 0
    %5729 = vmatmul.mubr.bf16.gmra.mxu0 %v5530
    %v5730 = vpop.f32.mrf.mxu0
    %v5731 = vadd.f32 %v5634, %v5730
    %v5732 = vpop.f32.mrf.mxu0
    %v5733 = vpop.f32.mrf.mxu0
    %v5734 = vadd.f32 %v5637, %v5733
    %v5735 = vpop.f32.mrf.mxu0
    %5736 = vmatprep.mubr.bf16.mxu0 0
    %5737 = vmatmul.mubr.bf16.gmra.mxu0 %v5531
    %v5738 = vpop.f32.mrf.mxu0
    %v5739 = vadd.f32 %v5642, %v5738
    %v5740 = vpop.f32.mrf.mxu0
    %v5741 = vpop.f32.mrf.mxu0
    %v5742 = vadd.f32 %v5645, %v5741
    %v5743 = vpop.f32.mrf.mxu0
    %5744 = vmatprep.mubr.bf16.mxu0 0
    %5745 = vmatmul.mubr.bf16.gmra.mxu0 %v5532
    %v5746 = vpop.f32.mrf.mxu0
    %v5747 = vadd.f32 %v5650, %v5746
    %v5748 = vpop.f32.mrf.mxu0
    %v5749 = vpop.f32.mrf.mxu0
    %v5750 = vadd.f32 %v5653, %v5749
    %v5751 = vpop.f32.mrf.mxu0
    %5752 = vmatprep.mubr.bf16.mxu0 0
    %5753 = vmatmul.mubr.bf16.gmra.mxu0 %v5533
    %v5754 = vpop.f32.mrf.mxu0
    %v5755 = vadd.f32 %v5658, %v5754
    %v5756 = vpop.f32.mrf.mxu0
    %v5757 = vpop.f32.mrf.mxu0
    %v5758 = vadd.f32 %v5661, %v5757
    %v5759 = vpop.f32.mrf.mxu0
    %5760 = vmatprep.mubr.bf16.mxu0 0
    %5761 = vmatmul.mubr.bf16.gmra.mxu0 %v5534
    %v5762 = vpop.f32.mrf.mxu0
    %v5763 = vadd.f32 %v5666, %v5762
    %v5764 = vpop.f32.mrf.mxu0
    %v5765 = vpop.f32.mrf.mxu0
    %v5766 = vadd.f32 %v5669, %v5765
    %v5767 = vpop.f32.mrf.mxu0
    %5768 = vdwg.mxu0
    %5769 = vmatprep.subr.bf16.mxu0 0
    %5770 = vmatpush1.bf16.msra.mxu0 %v5574
    %5771 = vmatprep.subr.bf16.mxu0 0
    %5772 = vmatpush1.bf16.msra.mxu0 %v5573
    %5773 = vmatprep.subr.bf16.mxu0 0
    %5774 = vmatpush1.bf16.msra.mxu0 %v5572
    %5775 = vmatprep.subr.bf16.mxu0 0
    %5776 = vmatpush1.bf16.msra.mxu0 %v5571
    %5777 = vmatprep.subr.bf16.mxu0 0
    %5778 = vmatpush1.bf16.msra.mxu0 %v5570
    %5779 = vmatprep.subr.bf16.mxu0 0
    %5780 = vmatpush1.bf16.msra.mxu0 %v5569
    %5781 = vmatprep.subr.bf16.mxu0 0
    %5782 = vmatpush1.bf16.msra.mxu0 %v5568
    %5783 = vmatprep.subr.bf16.mxu0 0
    %5784 = vmatpush1.bf16.msra.mxu0 %v5567
    %5785 = vmatprep.subr.bf16.mxu0 0
    %5786 = vmatpush2.bf16.msra.mxu0 0
    %5787 = vmatprep.subr.bf16.mxu0 0
    %5788 = vmatpush2.bf16.msra.mxu0 0
    %5789 = vmatprep.subr.bf16.mxu0 0
    %5790 = vmatpush2.bf16.msra.mxu0 0
    %5791 = vmatprep.subr.bf16.mxu0 0
    %5792 = vmatpush2.bf16.msra.mxu0 0
    %5793 = vmatprep.subr.bf16.mxu0 0
    %5794 = vmatpush2.bf16.msra.mxu0 0
    %5795 = vmatprep.subr.bf16.mxu0 0
    %5796 = vmatpush2.bf16.msra.mxu0 0
    %5797 = vmatprep.subr.bf16.mxu0 0
    %5798 = vmatpush2.bf16.msra.mxu0 0
    %5799 = vmatprep.subr.bf16.mxu0 0
    %5800 = vmatpush2.bf16.msra.mxu0 0
    %5801 = vmatprep.mubr.bf16.mxu0 0
    %5802 = vmatmul.mubr.bf16.gmra.mxu0 %v5527
    %v5803 = vpop.f32.mrf.mxu0
    %v5804 = vadd.f32 0.0, %v5803
    %v5805 = vpop.f32.mrf.mxu0
    %v5806 = vpop.f32.mrf.mxu0
    %v5807 = vadd.f32 0.0, %v5806
    %v5808 = vpop.f32.mrf.mxu0
    %5809 = vmatprep.mubr.bf16.mxu0 0
    %5810 = vmatmul.mubr.bf16.gmra.mxu0 %v5528
    %v5811 = vpop.f32.mrf.mxu0
    %v5812 = vadd.f32 0.0, %v5811
    %v5813 = vpop.f32.mrf.mxu0
    %v5814 = vpop.f32.mrf.mxu0
    %v5815 = vadd.f32 0.0, %v5814
    %v5816 = vpop.f32.mrf.mxu0
    %5817 = vmatprep.mubr.bf16.mxu0 0
    %5818 = vmatmul.mubr.bf16.gmra.mxu0 %v5529
    %v5819 = vpop.f32.mrf.mxu0
    %v5820 = vadd.f32 0.0, %v5819
    %v5821 = vpop.f32.mrf.mxu0
    %v5822 = vpop.f32.mrf.mxu0
    %v5823 = vadd.f32 0.0, %v5822
    %v5824 = vpop.f32.mrf.mxu0
    %5825 = vmatprep.mubr.bf16.mxu0 0
    %5826 = vmatmul.mubr.bf16.gmra.mxu0 %v5530
    %v5827 = vpop.f32.mrf.mxu0
    %v5828 = vadd.f32 0.0, %v5827
    %v5829 = vpop.f32.mrf.mxu0
    %v5830 = vpop.f32.mrf.mxu0
    %v5831 = vadd.f32 0.0, %v5830
    %v5832 = vpop.f32.mrf.mxu0
    %5833 = vmatprep.mubr.bf16.mxu0 0
    %5834 = vmatmul.mubr.bf16.gmra.mxu0 %v5531
    %v5835 = vpop.f32.mrf.mxu0
    %v5836 = vadd.f32 0.0, %v5835
    %v5837 = vpop.f32.mrf.mxu0
    %v5838 = vpop.f32.mrf.mxu0
    %v5839 = vadd.f32 0.0, %v5838
    %v5840 = vpop.f32.mrf.mxu0
    %5841 = vmatprep.mubr.bf16.mxu0 0
    %5842 = vmatmul.mubr.bf16.gmra.mxu0 %v5532
    %v5843 = vpop.f32.mrf.mxu0
    %v5844 = vadd.f32 0.0, %v5843
    %v5845 = vpop.f32.mrf.mxu0
    %v5846 = vpop.f32.mrf.mxu0
    %v5847 = vadd.f32 0.0, %v5846
    %v5848 = vpop.f32.mrf.mxu0
    %5849 = vmatprep.mubr.bf16.mxu0 0
    %5850 = vmatmul.mubr.bf16.gmra.mxu0 %v5533
    %v5851 = vpop.f32.mrf.mxu0
    %v5852 = vadd.f32 0.0, %v5851
    %v5853 = vpop.f32.mrf.mxu0
    %v5854 = vpop.f32.mrf.mxu0
    %v5855 = vadd.f32 0.0, %v5854
    %v5856 = vpop.f32.mrf.mxu0
    %5857 = vmatprep.mubr.bf16.mxu0 0
    %5858 = vmatmul.mubr.bf16.gmra.mxu0 %v5534
    %v5859 = vpop.f32.mrf.mxu0
    %v5860 = vadd.f32 0.0, %v5859
    %v5861 = vpop.f32.mrf.mxu0
    %v5862 = vpop.f32.mrf.mxu0
    %v5863 = vadd.f32 0.0, %v5862
    %v5864 = vpop.f32.mrf.mxu0
    %5865 = vdwg.mxu0
    %v5866 = vadd.f32 %v5707, %v5804
    %v5867 = vadd.f32 %v5710, %v5807
    %v5868 = vadd.f32 %v5715, %v5812
    %v5869 = vadd.f32 %v5718, %v5815
    %v5870 = vadd.f32 %v5723, %v5820
    %v5871 = vadd.f32 %v5726, %v5823
    %v5872 = vadd.f32 %v5731, %v5828
    %v5873 = vadd.f32 %v5734, %v5831
    %v5874 = vadd.f32 %v5739, %v5836
    %v5875 = vadd.f32 %v5742, %v5839
    %v5876 = vadd.f32 %v5747, %v5844
    %v5877 = vadd.f32 %v5750, %v5847
    %v5878 = vadd.f32 %v5755, %v5852
    %v5879 = vadd.f32 %v5758, %v5855
    %v5880 = vadd.f32 %v5763, %v5860
    %v5881 = vadd.f32 %v5766, %v5863
    %v5882 = vpack.c.bf16 %v5867, %v5866
    %v5883 = vpack.c.bf16 %v5869, %v5868
    %v5884 = vpack.c.bf16 %v5871, %v5870
    %v5885 = vpack.c.bf16 %v5873, %v5872
    %v5886 = vpack.c.bf16 %v5875, %v5874
    %v5887 = vpack.c.bf16 %v5877, %v5876
    %v5888 = vpack.c.bf16 %v5879, %v5878
    %v5889 = vpack.c.bf16 %v5881, %v5880
    %v5890 = vunpack.c.l.bf16 %v5882
    %v5891 = vunpack.c.h.bf16 %v5882
    %v5892 = vunpack.c.l.bf16 %v5883
    %v5893 = vunpack.c.h.bf16 %v5883
    %v5894 = vunpack.c.l.bf16 %v5884
    %v5895 = vunpack.c.h.bf16 %v5884
    %v5896 = vunpack.c.l.bf16 %v5885
    %v5897 = vunpack.c.h.bf16 %v5885
    %v5898 = vunpack.c.l.bf16 %v5886
    %v5899 = vunpack.c.h.bf16 %v5886
    %v5900 = vunpack.c.l.bf16 %v5887
    %v5901 = vunpack.c.h.bf16 %v5887
    %v5902 = vunpack.c.l.bf16 %v5888
    %v5903 = vunpack.c.h.bf16 %v5888
    %v5904 = vunpack.c.l.bf16 %v5889
    %v5905 = vunpack.c.h.bf16 %v5889
    %v5906 = vsub.f32 %v5866, %v5890
    %v5907 = vsub.f32 %v5867, %v5891
    %v5908 = vsub.f32 %v5868, %v5892
    %v5909 = vsub.f32 %v5869, %v5893
    %v5910 = vsub.f32 %v5870, %v5894
    %v5911 = vsub.f32 %v5871, %v5895
    %v5912 = vsub.f32 %v5872, %v5896
    %v5913 = vsub.f32 %v5873, %v5897
    %v5914 = vsub.f32 %v5874, %v5898
    %v5915 = vsub.f32 %v5875, %v5899
    %v5916 = vsub.f32 %v5876, %v5900
    %v5917 = vsub.f32 %v5877, %v5901
    %v5918 = vsub.f32 %v5878, %v5902
    %v5919 = vsub.f32 %v5879, %v5903
    %v5920 = vsub.f32 %v5880, %v5904
    %v5921 = vsub.f32 %v5881, %v5905
    %v5922 = vpack.c.bf16 %v5907, %v5906
    %v5923 = vpack.c.bf16 %v5909, %v5908
    %v5924 = vpack.c.bf16 %v5911, %v5910
    %v5925 = vpack.c.bf16 %v5913, %v5912
    %v5926 = vpack.c.bf16 %v5915, %v5914
    %v5927 = vpack.c.bf16 %v5917, %v5916
    %v5928 = vpack.c.bf16 %v5919, %v5918
    %v5929 = vpack.c.bf16 %v5921, %v5920
    %5930 = vmatprep.subr.bf16.mxu0 0
    %5931 = vmatpush1.bf16.msra.mxu0 %v5889
    %5932 = vmatprep.subr.bf16.mxu0 0
    %5933 = vmatpush1.bf16.msra.mxu0 %v5888
    %5934 = vmatprep.subr.bf16.mxu0 0
    %5935 = vmatpush1.bf16.msra.mxu0 %v5887
    %5936 = vmatprep.subr.bf16.mxu0 0
    %5937 = vmatpush1.bf16.msra.mxu0 %v5886
    %5938 = vmatprep.subr.bf16.mxu0 0
    %5939 = vmatpush1.bf16.msra.mxu0 %v5885
    %5940 = vmatprep.subr.bf16.mxu0 0
    %5941 = vmatpush1.bf16.msra.mxu0 %v5884
    %5942 = vmatprep.subr.bf16.mxu0 0
    %5943 = vmatpush1.bf16.msra.mxu0 %v5883
    %5944 = vmatprep.subr.bf16.mxu0 0
    %5945 = vmatpush1.bf16.msra.mxu0 %v5882
    %5946 = vmatprep.subr.bf16.mxu0 0
    %5947 = vmatpush2.bf16.msra.mxu0 0
    %5948 = vmatprep.subr.bf16.mxu0 0
    %5949 = vmatpush2.bf16.msra.mxu0 0
    %5950 = vmatprep.subr.bf16.mxu0 0
    %5951 = vmatpush2.bf16.msra.mxu0 0
    %5952 = vmatprep.subr.bf16.mxu0 0
    %5953 = vmatpush2.bf16.msra.mxu0 0
    %5954 = vmatprep.subr.bf16.mxu0 0
    %5955 = vmatpush2.bf16.msra.mxu0 0
    %5956 = vmatprep.subr.bf16.mxu0 0
    %5957 = vmatpush2.bf16.msra.mxu0 0
    %5958 = vmatprep.subr.bf16.mxu0 0
    %5959 = vmatpush2.bf16.msra.mxu0 0
    %5960 = vmatprep.subr.bf16.mxu0 0
    %5961 = vmatpush2.bf16.msra.mxu0 0
    %5962 = vmatprep.mubr.bf16.mxu0 0
    %5963 = vmatmul.mubr.bf16.gmra.mxu0 %v5922
    %v5964 = vpop.f32.mrf.mxu0
    %v5965 = vadd.f32 0.0, %v5964
    %v5966 = vpop.f32.mrf.mxu0
    %v5967 = vpop.f32.mrf.mxu0
    %v5968 = vadd.f32 0.0, %v5967
    %v5969 = vpop.f32.mrf.mxu0
    %5970 = vmatprep.mubr.bf16.mxu0 0
    %5971 = vmatmul.mubr.bf16.gmra.mxu0 %v5923
    %v5972 = vpop.f32.mrf.mxu0
    %v5973 = vadd.f32 0.0, %v5972
    %v5974 = vpop.f32.mrf.mxu0
    %v5975 = vpop.f32.mrf.mxu0
    %v5976 = vadd.f32 0.0, %v5975
    %v5977 = vpop.f32.mrf.mxu0
    %5978 = vmatprep.mubr.bf16.mxu0 0
    %5979 = vmatmul.mubr.bf16.gmra.mxu0 %v5924
    %v5980 = vpop.f32.mrf.mxu0
    %v5981 = vadd.f32 0.0, %v5980
    %v5982 = vpop.f32.mrf.mxu0
    %v5983 = vpop.f32.mrf.mxu0
    %v5984 = vadd.f32 0.0, %v5983
    %v5985 = vpop.f32.mrf.mxu0
    %5986 = vmatprep.mubr.bf16.mxu0 0
    %5987 = vmatmul.mubr.bf16.gmra.mxu0 %v5925
    %v5988 = vpop.f32.mrf.mxu0
    %v5989 = vadd.f32 0.0, %v5988
    %v5990 = vpop.f32.mrf.mxu0
    %v5991 = vpop.f32.mrf.mxu0
    %v5992 = vadd.f32 0.0, %v5991
    %v5993 = vpop.f32.mrf.mxu0
    %5994 = vmatprep.mubr.bf16.mxu0 0
    %5995 = vmatmul.mubr.bf16.gmra.mxu0 %v5926
    %v5996 = vpop.f32.mrf.mxu0
    %v5997 = vadd.f32 0.0, %v5996
    %v5998 = vpop.f32.mrf.mxu0
    %v5999 = vpop.f32.mrf.mxu0
    %v6000 = vadd.f32 0.0, %v5999
    %v6001 = vpop.f32.mrf.mxu0
    %6002 = vmatprep.mubr.bf16.mxu0 0
    %6003 = vmatmul.mubr.bf16.gmra.mxu0 %v5927
    %v6004 = vpop.f32.mrf.mxu0
    %v6005 = vadd.f32 0.0, %v6004
    %v6006 = vpop.f32.mrf.mxu0
    %v6007 = vpop.f32.mrf.mxu0
    %v6008 = vadd.f32 0.0, %v6007
    %v6009 = vpop.f32.mrf.mxu0
    %6010 = vmatprep.mubr.bf16.mxu0 0
    %6011 = vmatmul.mubr.bf16.gmra.mxu0 %v5928
    %v6012 = vpop.f32.mrf.mxu0
    %v6013 = vadd.f32 0.0, %v6012
    %v6014 = vpop.f32.mrf.mxu0
    %v6015 = vpop.f32.mrf.mxu0
    %v6016 = vadd.f32 0.0, %v6015
    %v6017 = vpop.f32.mrf.mxu0
    %6018 = vmatprep.mubr.bf16.mxu0 0
    %6019 = vmatmul.mubr.bf16.gmra.mxu0 %v5929
    %v6020 = vpop.f32.mrf.mxu0
    %v6021 = vadd.f32 0.0, %v6020
    %v6022 = vpop.f32.mrf.mxu0
    %v6023 = vpop.f32.mrf.mxu0
    %v6024 = vadd.f32 0.0, %v6023
    %v6025 = vpop.f32.mrf.mxu0
    %6026 = vdwg.mxu0
    %6027 = vmatprep.subr.bf16.mxu0 0
    %6028 = vmatpush1.bf16.msra.mxu0 %v5889
    %6029 = vmatprep.subr.bf16.mxu0 0
    %6030 = vmatpush1.bf16.msra.mxu0 %v5888
    %6031 = vmatprep.subr.bf16.mxu0 0
    %6032 = vmatpush1.bf16.msra.mxu0 %v5887
    %6033 = vmatprep.subr.bf16.mxu0 0
    %6034 = vmatpush1.bf16.msra.mxu0 %v5886
    %6035 = vmatprep.subr.bf16.mxu0 0
    %6036 = vmatpush1.bf16.msra.mxu0 %v5885
    %6037 = vmatprep.subr.bf16.mxu0 0
    %6038 = vmatpush1.bf16.msra.mxu0 %v5884
    %6039 = vmatprep.subr.bf16.mxu0 0
    %6040 = vmatpush1.bf16.msra.mxu0 %v5883
    %6041 = vmatprep.subr.bf16.mxu0 0
    %6042 = vmatpush1.bf16.msra.mxu0 %v5882
    %6043 = vmatprep.subr.bf16.mxu0 0
    %6044 = vmatpush2.bf16.msra.mxu0 0
    %6045 = vmatprep.subr.bf16.mxu0 0
    %6046 = vmatpush2.bf16.msra.mxu0 0
    %6047 = vmatprep.subr.bf16.mxu0 0
    %6048 = vmatpush2.bf16.msra.mxu0 0
    %6049 = vmatprep.subr.bf16.mxu0 0
    %6050 = vmatpush2.bf16.msra.mxu0 0
    %6051 = vmatprep.subr.bf16.mxu0 0
    %6052 = vmatpush2.bf16.msra.mxu0 0
    %6053 = vmatprep.subr.bf16.mxu0 0
    %6054 = vmatpush2.bf16.msra.mxu0 0
    %6055 = vmatprep.subr.bf16.mxu0 0
    %6056 = vmatpush2.bf16.msra.mxu0 0
    %6057 = vmatprep.subr.bf16.mxu0 0
    %6058 = vmatpush2.bf16.msra.mxu0 0
    %6059 = vmatprep.mubr.bf16.mxu0 0
    %6060 = vmatmul.mubr.bf16.gmra.mxu0 %v5882
    %v6061 = vpop.f32.mrf.mxu0
    %v6062 = vadd.f32 %v5965, %v6061
    %v6063 = vpop.f32.mrf.mxu0
    %v6064 = vpop.f32.mrf.mxu0
    %v6065 = vadd.f32 %v5968, %v6064
    %v6066 = vpop.f32.mrf.mxu0
    %6067 = vmatprep.mubr.bf16.mxu0 0
    %6068 = vmatmul.mubr.bf16.gmra.mxu0 %v5883
    %v6069 = vpop.f32.mrf.mxu0
    %v6070 = vadd.f32 %v5973, %v6069
    %v6071 = vpop.f32.mrf.mxu0
    %v6072 = vpop.f32.mrf.mxu0
    %v6073 = vadd.f32 %v5976, %v6072
    %v6074 = vpop.f32.mrf.mxu0
    %6075 = vmatprep.mubr.bf16.mxu0 0
    %6076 = vmatmul.mubr.bf16.gmra.mxu0 %v5884
    %v6077 = vpop.f32.mrf.mxu0
    %v6078 = vadd.f32 %v5981, %v6077
    %v6079 = vpop.f32.mrf.mxu0
    %v6080 = vpop.f32.mrf.mxu0
    %v6081 = vadd.f32 %v5984, %v6080
    %v6082 = vpop.f32.mrf.mxu0
    %6083 = vmatprep.mubr.bf16.mxu0 0
    %6084 = vmatmul.mubr.bf16.gmra.mxu0 %v5885
    %v6085 = vpop.f32.mrf.mxu0
    %v6086 = vadd.f32 %v5989, %v6085
    %v6087 = vpop.f32.mrf.mxu0
    %v6088 = vpop.f32.mrf.mxu0
    %v6089 = vadd.f32 %v5992, %v6088
    %v6090 = vpop.f32.mrf.mxu0
    %6091 = vmatprep.mubr.bf16.mxu0 0
    %6092 = vmatmul.mubr.bf16.gmra.mxu0 %v5886
    %v6093 = vpop.f32.mrf.mxu0
    %v6094 = vadd.f32 %v5997, %v6093
    %v6095 = vpop.f32.mrf.mxu0
    %v6096 = vpop.f32.mrf.mxu0
    %v6097 = vadd.f32 %v6000, %v6096
    %v6098 = vpop.f32.mrf.mxu0
    %6099 = vmatprep.mubr.bf16.mxu0 0
    %6100 = vmatmul.mubr.bf16.gmra.mxu0 %v5887
    %v6101 = vpop.f32.mrf.mxu0
    %v6102 = vadd.f32 %v6005, %v6101
    %v6103 = vpop.f32.mrf.mxu0
    %v6104 = vpop.f32.mrf.mxu0
    %v6105 = vadd.f32 %v6008, %v6104
    %v6106 = vpop.f32.mrf.mxu0
    %6107 = vmatprep.mubr.bf16.mxu0 0
    %6108 = vmatmul.mubr.bf16.gmra.mxu0 %v5888
    %v6109 = vpop.f32.mrf.mxu0
    %v6110 = vadd.f32 %v6013, %v6109
    %v6111 = vpop.f32.mrf.mxu0
    %v6112 = vpop.f32.mrf.mxu0
    %v6113 = vadd.f32 %v6016, %v6112
    %v6114 = vpop.f32.mrf.mxu0
    %6115 = vmatprep.mubr.bf16.mxu0 0
    %6116 = vmatmul.mubr.bf16.gmra.mxu0 %v5889
    %v6117 = vpop.f32.mrf.mxu0
    %v6118 = vadd.f32 %v6021, %v6117
    %v6119 = vpop.f32.mrf.mxu0
    %v6120 = vpop.f32.mrf.mxu0
    %v6121 = vadd.f32 %v6024, %v6120
    %v6122 = vpop.f32.mrf.mxu0
    %6123 = vdwg.mxu0
    %6124 = vmatprep.subr.bf16.mxu0 0
    %6125 = vmatpush1.bf16.msra.mxu0 %v5929
    %6126 = vmatprep.subr.bf16.mxu0 0
    %6127 = vmatpush1.bf16.msra.mxu0 %v5928
    %6128 = vmatprep.subr.bf16.mxu0 0
    %6129 = vmatpush1.bf16.msra.mxu0 %v5927
    %6130 = vmatprep.subr.bf16.mxu0 0
    %6131 = vmatpush1.bf16.msra.mxu0 %v5926
    %6132 = vmatprep.subr.bf16.mxu0 0
    %6133 = vmatpush1.bf16.msra.mxu0 %v5925
    %6134 = vmatprep.subr.bf16.mxu0 0
    %6135 = vmatpush1.bf16.msra.mxu0 %v5924
    %6136 = vmatprep.subr.bf16.mxu0 0
    %6137 = vmatpush1.bf16.msra.mxu0 %v5923
    %6138 = vmatprep.subr.bf16.mxu0 0
    %6139 = vmatpush1.bf16.msra.mxu0 %v5922
    %6140 = vmatprep.subr.bf16.mxu0 0
    %6141 = vmatpush2.bf16.msra.mxu0 0
    %6142 = vmatprep.subr.bf16.mxu0 0
    %6143 = vmatpush2.bf16.msra.mxu0 0
    %6144 = vmatprep.subr.bf16.mxu0 0
    %6145 = vmatpush2.bf16.msra.mxu0 0
    %6146 = vmatprep.subr.bf16.mxu0 0
    %6147 = vmatpush2.bf16.msra.mxu0 0
    %6148 = vmatprep.subr.bf16.mxu0 0
    %6149 = vmatpush2.bf16.msra.mxu0 0
    %6150 = vmatprep.subr.bf16.mxu0 0
    %6151 = vmatpush2.bf16.msra.mxu0 0
    %6152 = vmatprep.subr.bf16.mxu0 0
    %6153 = vmatpush2.bf16.msra.mxu0 0
    %6154 = vmatprep.subr.bf16.mxu0 0
    %6155 = vmatpush2.bf16.msra.mxu0 0
    %6156 = vmatprep.mubr.bf16.mxu0 0
    %6157 = vmatmul.mubr.bf16.gmra.mxu0 %v5882
    %v6158 = vpop.f32.mrf.mxu0
    %v6159 = vadd.f32 0.0, %v6158
    %v6160 = vpop.f32.mrf.mxu0
    %v6161 = vpop.f32.mrf.mxu0
    %v6162 = vadd.f32 0.0, %v6161
    %v6163 = vpop.f32.mrf.mxu0
    %6164 = vmatprep.mubr.bf16.mxu0 0
    %6165 = vmatmul.mubr.bf16.gmra.mxu0 %v5883
    %v6166 = vpop.f32.mrf.mxu0
    %v6167 = vadd.f32 0.0, %v6166
    %v6168 = vpop.f32.mrf.mxu0
    %v6169 = vpop.f32.mrf.mxu0
    %v6170 = vadd.f32 0.0, %v6169
    %v6171 = vpop.f32.mrf.mxu0
    %6172 = vmatprep.mubr.bf16.mxu0 0
    %6173 = vmatmul.mubr.bf16.gmra.mxu0 %v5884
    %v6174 = vpop.f32.mrf.mxu0
    %v6175 = vadd.f32 0.0, %v6174
    %v6176 = vpop.f32.mrf.mxu0
    %v6177 = vpop.f32.mrf.mxu0
    %v6178 = vadd.f32 0.0, %v6177
    %v6179 = vpop.f32.mrf.mxu0
    %6180 = vmatprep.mubr.bf16.mxu0 0
    %6181 = vmatmul.mubr.bf16.gmra.mxu0 %v5885
    %v6182 = vpop.f32.mrf.mxu0
    %v6183 = vadd.f32 0.0, %v6182
    %v6184 = vpop.f32.mrf.mxu0
    %v6185 = vpop.f32.mrf.mxu0
    %v6186 = vadd.f32 0.0, %v6185
    %v6187 = vpop.f32.mrf.mxu0
    %6188 = vmatprep.mubr.bf16.mxu0 0
    %6189 = vmatmul.mubr.bf16.gmra.mxu0 %v5886
    %v6190 = vpop.f32.mrf.mxu0
    %v6191 = vadd.f32 0.0, %v6190
    %v6192 = vpop.f32.mrf.mxu0
    %v6193 = vpop.f32.mrf.mxu0
    %v6194 = vadd.f32 0.0, %v6193
    %v6195 = vpop.f32.mrf.mxu0
    %6196 = vmatprep.mubr.bf16.mxu0 0
    %6197 = vmatmul.mubr.bf16.gmra.mxu0 %v5887
    %v6198 = vpop.f32.mrf.mxu0
    %v6199 = vadd.f32 0.0, %v6198
    %v6200 = vpop.f32.mrf.mxu0
    %v6201 = vpop.f32.mrf.mxu0
    %v6202 = vadd.f32 0.0, %v6201
    %v6203 = vpop.f32.mrf.mxu0
    %6204 = vmatprep.mubr.bf16.mxu0 0
    %6205 = vmatmul.mubr.bf16.gmra.mxu0 %v5888
    %v6206 = vpop.f32.mrf.mxu0
    %v6207 = vadd.f32 0.0, %v6206
    %v6208 = vpop.f32.mrf.mxu0
    %v6209 = vpop.f32.mrf.mxu0
    %v6210 = vadd.f32 0.0, %v6209
    %v6211 = vpop.f32.mrf.mxu0
    %6212 = vmatprep.mubr.bf16.mxu0 0
    %6213 = vmatmul.mubr.bf16.gmra.mxu0 %v5889
    %v6214 = vpop.f32.mrf.mxu0
    %v6215 = vadd.f32 0.0, %v6214
    %v6216 = vpop.f32.mrf.mxu0
    %v6217 = vpop.f32.mrf.mxu0
    %v6218 = vadd.f32 0.0, %v6217
    %v6219 = vpop.f32.mrf.mxu0
    %6220 = vdwg.mxu0
    %v6221 = vadd.f32 %v6062, %v6159
    %v6222 = vadd.f32 %v6065, %v6162
    %v6223 = vadd.f32 %v6070, %v6167
    %v6224 = vadd.f32 %v6073, %v6170
    %v6225 = vadd.f32 %v6078, %v6175
    %v6226 = vadd.f32 %v6081, %v6178
    %v6227 = vadd.f32 %v6086, %v6183
    %v6228 = vadd.f32 %v6089, %v6186
    %v6229 = vadd.f32 %v6094, %v6191
    %v6230 = vadd.f32 %v6097, %v6194
    %v6231 = vadd.f32 %v6102, %v6199
    %v6232 = vadd.f32 %v6105, %v6202
    %v6233 = vadd.f32 %v6110, %v6207
    %v6234 = vadd.f32 %v6113, %v6210
    %v6235 = vadd.f32 %v6118, %v6215
    %v6236 = vadd.f32 %v6121, %v6218
    %v6237 = vpack.c.bf16 %v6222, %v6221
    %v6238 = vpack.c.bf16 %v6224, %v6223
    %v6239 = vpack.c.bf16 %v6226, %v6225
    %v6240 = vpack.c.bf16 %v6228, %v6227
    %v6241 = vpack.c.bf16 %v6230, %v6229
    %v6242 = vpack.c.bf16 %v6232, %v6231
    %v6243 = vpack.c.bf16 %v6234, %v6233
    %v6244 = vpack.c.bf16 %v6236, %v6235
    %v6245 = vunpack.c.l.bf16 %v6237
    %v6246 = vunpack.c.h.bf16 %v6237
    %v6247 = vunpack.c.l.bf16 %v6238
    %v6248 = vunpack.c.h.bf16 %v6238
    %v6249 = vunpack.c.l.bf16 %v6239
    %v6250 = vunpack.c.h.bf16 %v6239
    %v6251 = vunpack.c.l.bf16 %v6240
    %v6252 = vunpack.c.h.bf16 %v6240
    %v6253 = vunpack.c.l.bf16 %v6241
    %v6254 = vunpack.c.h.bf16 %v6241
    %v6255 = vunpack.c.l.bf16 %v6242
    %v6256 = vunpack.c.h.bf16 %v6242
    %v6257 = vunpack.c.l.bf16 %v6243
    %v6258 = vunpack.c.h.bf16 %v6243
    %v6259 = vunpack.c.l.bf16 %v6244
    %v6260 = vunpack.c.h.bf16 %v6244
    %v6261 = vsub.f32 %v6221, %v6245
    %v6262 = vsub.f32 %v6222, %v6246
    %v6263 = vsub.f32 %v6223, %v6247
    %v6264 = vsub.f32 %v6224, %v6248
    %v6265 = vsub.f32 %v6225, %v6249
    %v6266 = vsub.f32 %v6226, %v6250
    %v6267 = vsub.f32 %v6227, %v6251
    %v6268 = vsub.f32 %v6228, %v6252
    %v6269 = vsub.f32 %v6229, %v6253
    %v6270 = vsub.f32 %v6230, %v6254
    %v6271 = vsub.f32 %v6231, %v6255
    %v6272 = vsub.f32 %v6232, %v6256
    %v6273 = vsub.f32 %v6233, %v6257
    %v6274 = vsub.f32 %v6234, %v6258
    %v6275 = vsub.f32 %v6235, %v6259
    %v6276 = vsub.f32 %v6236, %v6260
    %v6277 = vpack.c.bf16 %v6262, %v6261
    %v6278 = vpack.c.bf16 %v6264, %v6263
    %v6279 = vpack.c.bf16 %v6266, %v6265
    %v6280 = vpack.c.bf16 %v6268, %v6267
    %v6281 = vpack.c.bf16 %v6270, %v6269
    %v6282 = vpack.c.bf16 %v6272, %v6271
    %v6283 = vpack.c.bf16 %v6274, %v6273
    %v6284 = vpack.c.bf16 %v6276, %v6275
    %6285 = vmatprep.subr.bf16.mxu0 0
    %6286 = vmatpush1.bf16.msra.mxu0 %v6244
    %6287 = vmatprep.subr.bf16.mxu0 0
    %6288 = vmatpush1.bf16.msra.mxu0 %v6243
    %6289 = vmatprep.subr.bf16.mxu0 0
    %6290 = vmatpush1.bf16.msra.mxu0 %v6242
    %6291 = vmatprep.subr.bf16.mxu0 0
    %6292 = vmatpush1.bf16.msra.mxu0 %v6241
    %6293 = vmatprep.subr.bf16.mxu0 0
    %6294 = vmatpush1.bf16.msra.mxu0 %v6240
    %6295 = vmatprep.subr.bf16.mxu0 0
    %6296 = vmatpush1.bf16.msra.mxu0 %v6239
    %6297 = vmatprep.subr.bf16.mxu0 0
    %6298 = vmatpush1.bf16.msra.mxu0 %v6238
    %6299 = vmatprep.subr.bf16.mxu0 0
    %6300 = vmatpush1.bf16.msra.mxu0 %v6237
    %6301 = vmatprep.subr.bf16.mxu0 0
    %6302 = vmatpush2.bf16.msra.mxu0 0
    %6303 = vmatprep.subr.bf16.mxu0 0
    %6304 = vmatpush2.bf16.msra.mxu0 0
    %6305 = vmatprep.subr.bf16.mxu0 0
    %6306 = vmatpush2.bf16.msra.mxu0 0
    %6307 = vmatprep.subr.bf16.mxu0 0
    %6308 = vmatpush2.bf16.msra.mxu0 0
    %6309 = vmatprep.subr.bf16.mxu0 0
    %6310 = vmatpush2.bf16.msra.mxu0 0
    %6311 = vmatprep.subr.bf16.mxu0 0
    %6312 = vmatpush2.bf16.msra.mxu0 0
    %6313 = vmatprep.subr.bf16.mxu0 0
    %6314 = vmatpush2.bf16.msra.mxu0 0
    %6315 = vmatprep.subr.bf16.mxu0 0
    %6316 = vmatpush2.bf16.msra.mxu0 0
    %6317 = vmatprep.mubr.bf16.mxu0 0
    %6318 = vmatmul.mubr.bf16.gmra.mxu0 %v6277
    %v6319 = vpop.f32.mrf.mxu0
    %v6320 = vadd.f32 0.0, %v6319
    %v6321 = vpop.f32.mrf.mxu0
    %v6322 = vpop.f32.mrf.mxu0
    %v6323 = vadd.f32 0.0, %v6322
    %v6324 = vpop.f32.mrf.mxu0
    %6325 = vmatprep.mubr.bf16.mxu0 0
    %6326 = vmatmul.mubr.bf16.gmra.mxu0 %v6278
    %v6327 = vpop.f32.mrf.mxu0
    %v6328 = vadd.f32 0.0, %v6327
    %v6329 = vpop.f32.mrf.mxu0
    %v6330 = vpop.f32.mrf.mxu0
    %v6331 = vadd.f32 0.0, %v6330
    %v6332 = vpop.f32.mrf.mxu0
    %6333 = vmatprep.mubr.bf16.mxu0 0
    %6334 = vmatmul.mubr.bf16.gmra.mxu0 %v6279
    %v6335 = vpop.f32.mrf.mxu0
    %v6336 = vadd.f32 0.0, %v6335
    %v6337 = vpop.f32.mrf.mxu0
    %v6338 = vpop.f32.mrf.mxu0
    %v6339 = vadd.f32 0.0, %v6338
    %v6340 = vpop.f32.mrf.mxu0
    %6341 = vmatprep.mubr.bf16.mxu0 0
    %6342 = vmatmul.mubr.bf16.gmra.mxu0 %v6280
    %v6343 = vpop.f32.mrf.mxu0
    %v6344 = vadd.f32 0.0, %v6343
    %v6345 = vpop.f32.mrf.mxu0
    %v6346 = vpop.f32.mrf.mxu0
    %v6347 = vadd.f32 0.0, %v6346
    %v6348 = vpop.f32.mrf.mxu0
    %6349 = vmatprep.mubr.bf16.mxu0 0
    %6350 = vmatmul.mubr.bf16.gmra.mxu0 %v6281
    %v6351 = vpop.f32.mrf.mxu0
    %v6352 = vadd.f32 0.0, %v6351
    %v6353 = vpop.f32.mrf.mxu0
    %v6354 = vpop.f32.mrf.mxu0
    %v6355 = vadd.f32 0.0, %v6354
    %v6356 = vpop.f32.mrf.mxu0
    %6357 = vmatprep.mubr.bf16.mxu0 0
    %6358 = vmatmul.mubr.bf16.gmra.mxu0 %v6282
    %v6359 = vpop.f32.mrf.mxu0
    %v6360 = vadd.f32 0.0, %v6359
    %v6361 = vpop.f32.mrf.mxu0
    %v6362 = vpop.f32.mrf.mxu0
    %v6363 = vadd.f32 0.0, %v6362
    %v6364 = vpop.f32.mrf.mxu0
    %6365 = vmatprep.mubr.bf16.mxu0 0
    %6366 = vmatmul.mubr.bf16.gmra.mxu0 %v6283
    %v6367 = vpop.f32.mrf.mxu0
    %v6368 = vadd.f32 0.0, %v6367
    %v6369 = vpop.f32.mrf.mxu0
    %v6370 = vpop.f32.mrf.mxu0
    %v6371 = vadd.f32 0.0, %v6370
    %v6372 = vpop.f32.mrf.mxu0
    %6373 = vmatprep.mubr.bf16.mxu0 0
    %6374 = vmatmul.mubr.bf16.gmra.mxu0 %v6284
    %v6375 = vpop.f32.mrf.mxu0
    %v6376 = vadd.f32 0.0, %v6375
    %v6377 = vpop.f32.mrf.mxu0
    %v6378 = vpop.f32.mrf.mxu0
    %v6379 = vadd.f32 0.0, %v6378
    %v6380 = vpop.f32.mrf.mxu0
    %6381 = vdwg.mxu0
    %6382 = vmatprep.subr.bf16.mxu0 0
    %6383 = vmatpush1.bf16.msra.mxu0 %v6244
    %6384 = vmatprep.subr.bf16.mxu0 0
    %6385 = vmatpush1.bf16.msra.mxu0 %v6243
    %6386 = vmatprep.subr.bf16.mxu0 0
    %6387 = vmatpush1.bf16.msra.mxu0 %v6242
    %6388 = vmatprep.subr.bf16.mxu0 0
    %6389 = vmatpush1.bf16.msra.mxu0 %v6241
    %6390 = vmatprep.subr.bf16.mxu0 0
    %6391 = vmatpush1.bf16.msra.mxu0 %v6240
    %6392 = vmatprep.subr.bf16.mxu0 0
    %6393 = vmatpush1.bf16.msra.mxu0 %v6239
    %6394 = vmatprep.subr.bf16.mxu0 0
    %6395 = vmatpush1.bf16.msra.mxu0 %v6238
    %6396 = vmatprep.subr.bf16.mxu0 0
    %6397 = vmatpush1.bf16.msra.mxu0 %v6237
    %6398 = vmatprep.subr.bf16.mxu0 0
    %6399 = vmatpush2.bf16.msra.mxu0 0
    %6400 = vmatprep.subr.bf16.mxu0 0
    %6401 = vmatpush2.bf16.msra.mxu0 0
    %6402 = vmatprep.subr.bf16.mxu0 0
    %6403 = vmatpush2.bf16.msra.mxu0 0
    %6404 = vmatprep.subr.bf16.mxu0 0
    %6405 = vmatpush2.bf16.msra.mxu0 0
    %6406 = vmatprep.subr.bf16.mxu0 0
    %6407 = vmatpush2.bf16.msra.mxu0 0
    %6408 = vmatprep.subr.bf16.mxu0 0
    %6409 = vmatpush2.bf16.msra.mxu0 0
    %6410 = vmatprep.subr.bf16.mxu0 0
    %6411 = vmatpush2.bf16.msra.mxu0 0
    %6412 = vmatprep.subr.bf16.mxu0 0
    %6413 = vmatpush2.bf16.msra.mxu0 0
    %6414 = vmatprep.mubr.bf16.mxu0 0
    %6415 = vmatmul.mubr.bf16.gmra.mxu0 %v6237
    %v6416 = vpop.f32.mrf.mxu0
    %v6417 = vadd.f32 %v6320, %v6416
    %v6418 = vpop.f32.mrf.mxu0
    %v6419 = vpop.f32.mrf.mxu0
    %v6420 = vadd.f32 %v6323, %v6419
    %v6421 = vpop.f32.mrf.mxu0
    %6422 = vmatprep.mubr.bf16.mxu0 0
    %6423 = vmatmul.mubr.bf16.gmra.mxu0 %v6238
    %v6424 = vpop.f32.mrf.mxu0
    %v6425 = vadd.f32 %v6328, %v6424
    %v6426 = vpop.f32.mrf.mxu0
    %v6427 = vpop.f32.mrf.mxu0
    %v6428 = vadd.f32 %v6331, %v6427
    %v6429 = vpop.f32.mrf.mxu0
    %6430 = vmatprep.mubr.bf16.mxu0 0
    %6431 = vmatmul.mubr.bf16.gmra.mxu0 %v6239
    %v6432 = vpop.f32.mrf.mxu0
    %v6433 = vadd.f32 %v6336, %v6432
    %v6434 = vpop.f32.mrf.mxu0
    %v6435 = vpop.f32.mrf.mxu0
    %v6436 = vadd.f32 %v6339, %v6435
    %v6437 = vpop.f32.mrf.mxu0
    %6438 = vmatprep.mubr.bf16.mxu0 0
    %6439 = vmatmul.mubr.bf16.gmra.mxu0 %v6240
    %v6440 = vpop.f32.mrf.mxu0
    %v6441 = vadd.f32 %v6344, %v6440
    %v6442 = vpop.f32.mrf.mxu0
    %v6443 = vpop.f32.mrf.mxu0
    %v6444 = vadd.f32 %v6347, %v6443
    %v6445 = vpop.f32.mrf.mxu0
    %6446 = vmatprep.mubr.bf16.mxu0 0
    %6447 = vmatmul.mubr.bf16.gmra.mxu0 %v6241
    %v6448 = vpop.f32.mrf.mxu0
    %v6449 = vadd.f32 %v6352, %v6448
    %v6450 = vpop.f32.mrf.mxu0
    %v6451 = vpop.f32.mrf.mxu0
    %v6452 = vadd.f32 %v6355, %v6451
    %v6453 = vpop.f32.mrf.mxu0
    %6454 = vmatprep.mubr.bf16.mxu0 0
    %6455 = vmatmul.mubr.bf16.gmra.mxu0 %v6242
    %v6456 = vpop.f32.mrf.mxu0
    %v6457 = vadd.f32 %v6360, %v6456
    %v6458 = vpop.f32.mrf.mxu0
    %v6459 = vpop.f32.mrf.mxu0
    %v6460 = vadd.f32 %v6363, %v6459
    %v6461 = vpop.f32.mrf.mxu0
    %6462 = vmatprep.mubr.bf16.mxu0 0
    %6463 = vmatmul.mubr.bf16.gmra.mxu0 %v6243
    %v6464 = vpop.f32.mrf.mxu0
    %v6465 = vadd.f32 %v6368, %v6464
    %v6466 = vpop.f32.mrf.mxu0
    %v6467 = vpop.f32.mrf.mxu0
    %v6468 = vadd.f32 %v6371, %v6467
    %v6469 = vpop.f32.mrf.mxu0
    %6470 = vmatprep.mubr.bf16.mxu0 0
    %6471 = vmatmul.mubr.bf16.gmra.mxu0 %v6244
    %v6472 = vpop.f32.mrf.mxu0
    %v6473 = vadd.f32 %v6376, %v6472
    %v6474 = vpop.f32.mrf.mxu0
    %v6475 = vpop.f32.mrf.mxu0
    %v6476 = vadd.f32 %v6379, %v6475
    %v6477 = vpop.f32.mrf.mxu0
    %6478 = vdwg.mxu0
    %6479 = vmatprep.subr.bf16.mxu0 0
    %6480 = vmatpush1.bf16.msra.mxu0 %v6284
    %6481 = vmatprep.subr.bf16.mxu0 0
    %6482 = vmatpush1.bf16.msra.mxu0 %v6283
    %6483 = vmatprep.subr.bf16.mxu0 0
    %6484 = vmatpush1.bf16.msra.mxu0 %v6282
    %6485 = vmatprep.subr.bf16.mxu0 0
    %6486 = vmatpush1.bf16.msra.mxu0 %v6281
    %6487 = vmatprep.subr.bf16.mxu0 0
    %6488 = vmatpush1.bf16.msra.mxu0 %v6280
    %6489 = vmatprep.subr.bf16.mxu0 0
    %6490 = vmatpush1.bf16.msra.mxu0 %v6279
    %6491 = vmatprep.subr.bf16.mxu0 0
    %6492 = vmatpush1.bf16.msra.mxu0 %v6278
    %6493 = vmatprep.subr.bf16.mxu0 0
    %6494 = vmatpush1.bf16.msra.mxu0 %v6277
    %6495 = vmatprep.subr.bf16.mxu0 0
    %6496 = vmatpush2.bf16.msra.mxu0 0
    %6497 = vmatprep.subr.bf16.mxu0 0
    %6498 = vmatpush2.bf16.msra.mxu0 0
    %6499 = vmatprep.subr.bf16.mxu0 0
    %6500 = vmatpush2.bf16.msra.mxu0 0
    %6501 = vmatprep.subr.bf16.mxu0 0
    %6502 = vmatpush2.bf16.msra.mxu0 0
    %6503 = vmatprep.subr.bf16.mxu0 0
    %6504 = vmatpush2.bf16.msra.mxu0 0
    %6505 = vmatprep.subr.bf16.mxu0 0
    %6506 = vmatpush2.bf16.msra.mxu0 0
    %6507 = vmatprep.subr.bf16.mxu0 0
    %6508 = vmatpush2.bf16.msra.mxu0 0
    %6509 = vmatprep.subr.bf16.mxu0 0
    %6510 = vmatpush2.bf16.msra.mxu0 0
    %6511 = vmatprep.mubr.bf16.mxu0 0
    %6512 = vmatmul.mubr.bf16.gmra.mxu0 %v6237
    %v6513 = vpop.f32.mrf.mxu0
    %v6514 = vadd.f32 0.0, %v6513
    %v6515 = vpop.f32.mrf.mxu0
    %v6516 = vpop.f32.mrf.mxu0
    %v6517 = vadd.f32 0.0, %v6516
    %v6518 = vpop.f32.mrf.mxu0
    %6519 = vmatprep.mubr.bf16.mxu0 0
    %6520 = vmatmul.mubr.bf16.gmra.mxu0 %v6238
    %v6521 = vpop.f32.mrf.mxu0
    %v6522 = vadd.f32 0.0, %v6521
    %v6523 = vpop.f32.mrf.mxu0
    %v6524 = vpop.f32.mrf.mxu0
    %v6525 = vadd.f32 0.0, %v6524
    %v6526 = vpop.f32.mrf.mxu0
    %6527 = vmatprep.mubr.bf16.mxu0 0
    %6528 = vmatmul.mubr.bf16.gmra.mxu0 %v6239
    %v6529 = vpop.f32.mrf.mxu0
    %v6530 = vadd.f32 0.0, %v6529
    %v6531 = vpop.f32.mrf.mxu0
    %v6532 = vpop.f32.mrf.mxu0
    %v6533 = vadd.f32 0.0, %v6532
    %v6534 = vpop.f32.mrf.mxu0
    %6535 = vmatprep.mubr.bf16.mxu0 0
    %6536 = vmatmul.mubr.bf16.gmra.mxu0 %v6240
    %v6537 = vpop.f32.mrf.mxu0
    %v6538 = vadd.f32 0.0, %v6537
    %v6539 = vpop.f32.mrf.mxu0
    %v6540 = vpop.f32.mrf.mxu0
    %v6541 = vadd.f32 0.0, %v6540
    %v6542 = vpop.f32.mrf.mxu0
    %6543 = vmatprep.mubr.bf16.mxu0 0
    %6544 = vmatmul.mubr.bf16.gmra.mxu0 %v6241
    %v6545 = vpop.f32.mrf.mxu0
    %v6546 = vadd.f32 0.0, %v6545
    %v6547 = vpop.f32.mrf.mxu0
    %v6548 = vpop.f32.mrf.mxu0
    %v6549 = vadd.f32 0.0, %v6548
    %v6550 = vpop.f32.mrf.mxu0
    %6551 = vmatprep.mubr.bf16.mxu0 0
    %6552 = vmatmul.mubr.bf16.gmra.mxu0 %v6242
    %v6553 = vpop.f32.mrf.mxu0
    %v6554 = vadd.f32 0.0, %v6553
    %v6555 = vpop.f32.mrf.mxu0
    %v6556 = vpop.f32.mrf.mxu0
    %v6557 = vadd.f32 0.0, %v6556
    %v6558 = vpop.f32.mrf.mxu0
    %6559 = vmatprep.mubr.bf16.mxu0 0
    %6560 = vmatmul.mubr.bf16.gmra.mxu0 %v6243
    %v6561 = vpop.f32.mrf.mxu0
    %v6562 = vadd.f32 0.0, %v6561
    %v6563 = vpop.f32.mrf.mxu0
    %v6564 = vpop.f32.mrf.mxu0
    %v6565 = vadd.f32 0.0, %v6564
    %v6566 = vpop.f32.mrf.mxu0
    %6567 = vmatprep.mubr.bf16.mxu0 0
    %6568 = vmatmul.mubr.bf16.gmra.mxu0 %v6244
    %v6569 = vpop.f32.mrf.mxu0
    %v6570 = vadd.f32 0.0, %v6569
    %v6571 = vpop.f32.mrf.mxu0
    %v6572 = vpop.f32.mrf.mxu0
    %v6573 = vadd.f32 0.0, %v6572
    %v6574 = vpop.f32.mrf.mxu0
    %6575 = vdwg.mxu0
    %v6576 = vadd.f32 %v6417, %v6514
    %v6577 = vadd.f32 %v6420, %v6517
    %v6578 = vadd.f32 %v6425, %v6522
    %v6579 = vadd.f32 %v6428, %v6525
    %v6580 = vadd.f32 %v6433, %v6530
    %v6581 = vadd.f32 %v6436, %v6533
    %v6582 = vadd.f32 %v6441, %v6538
    %v6583 = vadd.f32 %v6444, %v6541
    %v6584 = vadd.f32 %v6449, %v6546
    %v6585 = vadd.f32 %v6452, %v6549
    %v6586 = vadd.f32 %v6457, %v6554
    %v6587 = vadd.f32 %v6460, %v6557
    %v6588 = vadd.f32 %v6465, %v6562
    %v6589 = vadd.f32 %v6468, %v6565
    %v6590 = vadd.f32 %v6473, %v6570
    %v6591 = vadd.f32 %v6476, %v6573
    %6592 = vmatprep.subr.mxu0 0.0
    %v6593 = vand.u32 %v6591, 4294901760
    %6594 = vmatpush1.msra.mxu0 %v6593
    %6595 = vmatprep.subr.mxu0 0.0
    %v6596 = vand.u32 %v6590, 4294901760
    %6597 = vmatpush1.msra.mxu0 %v6596
    %6598 = vmatprep.subr.mxu0 0.0
    %v6599 = vand.u32 %v6589, 4294901760
    %6600 = vmatpush1.msra.mxu0 %v6599
    %6601 = vmatprep.subr.mxu0 0.0
    %v6602 = vand.u32 %v6588, 4294901760
    %6603 = vmatpush1.msra.mxu0 %v6602
    %6604 = vmatprep.subr.mxu0 0.0
    %v6605 = vand.u32 %v6587, 4294901760
    %6606 = vmatpush1.msra.mxu0 %v6605
    %6607 = vmatprep.subr.mxu0 0.0
    %v6608 = vand.u32 %v6586, 4294901760
    %6609 = vmatpush1.msra.mxu0 %v6608
    %6610 = vmatprep.subr.mxu0 0.0
    %v6611 = vand.u32 %v6585, 4294901760
    %6612 = vmatpush1.msra.mxu0 %v6611
    %6613 = vmatprep.subr.mxu0 0.0
    %v6614 = vand.u32 %v6584, 4294901760
    %6615 = vmatpush1.msra.mxu0 %v6614
    %6616 = vmatprep.subr.mxu0 0.0
    %v6617 = vand.u32 %v6583, 4294901760
    %6618 = vmatpush1.msra.mxu0 %v6617
    %6619 = vmatprep.subr.mxu0 0.0
    %v6620 = vand.u32 %v6582, 4294901760
    %6621 = vmatpush1.msra.mxu0 %v6620
    %6622 = vmatprep.subr.mxu0 0.0
    %v6623 = vand.u32 %v6581, 4294901760
    %6624 = vmatpush1.msra.mxu0 %v6623
    %6625 = vmatprep.subr.mxu0 0.0
    %v6626 = vand.u32 %v6580, 4294901760
    %6627 = vmatpush1.msra.mxu0 %v6626
    %6628 = vmatprep.subr.mxu0 0.0
    %v6629 = vand.u32 %v6579, 4294901760
    %6630 = vmatpush1.msra.mxu0 %v6629
    %6631 = vmatprep.subr.mxu0 0.0
    %v6632 = vand.u32 %v6578, 4294901760
    %6633 = vmatpush1.msra.mxu0 %v6632
    %6634 = vmatprep.subr.mxu0 0.0
    %v6635 = vand.u32 %v6577, 4294901760
    %6636 = vmatpush1.msra.mxu0 %v6635
    %6637 = vmatprep.subr.mxu0 0.0
    %v6638 = vand.u32 %v6576, 4294901760
    %6639 = vmatpush1.msra.mxu0 %v6638
    %6640 = vmatprep.subr.mxu0 0.0
    %6641 = vmatpush2.msra.mxu0 0.0
    %6642 = vmatprep.subr.mxu0 0.0
    %6643 = vmatpush2.msra.mxu0 0.0
    %6644 = vmatprep.subr.mxu0 0.0
    %6645 = vmatpush2.msra.mxu0 0.0
    %6646 = vmatprep.subr.mxu0 0.0
    %6647 = vmatpush2.msra.mxu0 0.0
    %6648 = vmatprep.subr.mxu0 0.0
    %6649 = vmatpush2.msra.mxu0 0.0
    %6650 = vmatprep.subr.mxu0 0.0
    %6651 = vmatpush2.msra.mxu0 0.0
    %6652 = vmatprep.subr.mxu0 0.0
    %6653 = vmatpush2.msra.mxu0 0.0
    %6654 = vmatprep.subr.mxu0 0.0
    %6655 = vmatpush2.msra.mxu0 0.0
    %6656 = vmatprep.subr.mxu0 0.0
    %6657 = vmatpush2.msra.mxu0 0.0
    %6658 = vmatprep.subr.mxu0 0.0
    %6659 = vmatpush2.msra.mxu0 0.0
    %6660 = vmatprep.subr.mxu0 0.0
    %6661 = vmatpush2.msra.mxu0 0.0
    %6662 = vmatprep.subr.mxu0 0.0
    %6663 = vmatpush2.msra.mxu0 0.0
    %6664 = vmatprep.subr.mxu0 0.0
    %6665 = vmatpush2.msra.mxu0 0.0
    %6666 = vmatprep.subr.mxu0 0.0
    %6667 = vmatpush2.msra.mxu0 0.0
    %6668 = vmatprep.subr.mxu0 0.0
    %6669 = vmatpush2.msra.mxu0 0.0
    %6670 = vmatprep.subr.mxu0 0.0
    %6671 = vmatpush2.msra.mxu0 0.0
    %6672 = vmatprep.mubr.f32.mxu0 0.0
    %v6673 = vand.u32 %v143, 4294901760
    %v6674 = vsub.f32 %v143, %v6673
    %v6675 = vand.u32 %v6674, 4294901760
    %v6676 = vsub.f32 %v6674, %v6675
    %v6677 = vand.u32 %v6676, 4294901760
    %6678 = vmatmul.mubr.f32.gmra.mxu0 %v6677
    %v6679 = vpop.f32.mrf.mxu0
    %v6680 = vadd.f32 0.0, %v6679
    %v6681 = vpop.f32.mrf.mxu0
    %6682 = vdwg.mxu0
    %6683 = vmatprep.subr.mxu0 0.0
    %v6684 = vand.u32 %v6591, 4294901760
    %v6685 = vsub.f32 %v6591, %v6684
    %v6686 = vand.u32 %v6685, 4294901760
    %v6687 = vsub.f32 %v6685, %v6686
    %v6688 = vand.u32 %v6687, 4294901760
    %6689 = vmatpush1.msra.mxu0 %v6688
    %6690 = vmatprep.subr.mxu0 0.0
    %v6691 = vand.u32 %v6590, 4294901760
    %v6692 = vsub.f32 %v6590, %v6691
    %v6693 = vand.u32 %v6692, 4294901760
    %v6694 = vsub.f32 %v6692, %v6693
    %v6695 = vand.u32 %v6694, 4294901760
    %6696 = vmatpush1.msra.mxu0 %v6695
    %6697 = vmatprep.subr.mxu0 0.0
    %v6698 = vand.u32 %v6589, 4294901760
    %v6699 = vsub.f32 %v6589, %v6698
    %v6700 = vand.u32 %v6699, 4294901760
    %v6701 = vsub.f32 %v6699, %v6700
    %v6702 = vand.u32 %v6701, 4294901760
    %6703 = vmatpush1.msra.mxu0 %v6702
    %6704 = vmatprep.subr.mxu0 0.0
    %v6705 = vand.u32 %v6588, 4294901760
    %v6706 = vsub.f32 %v6588, %v6705
    %v6707 = vand.u32 %v6706, 4294901760
    %v6708 = vsub.f32 %v6706, %v6707
    %v6709 = vand.u32 %v6708, 4294901760
    %6710 = vmatpush1.msra.mxu0 %v6709
    %6711 = vmatprep.subr.mxu0 0.0
    %v6712 = vand.u32 %v6587, 4294901760
    %v6713 = vsub.f32 %v6587, %v6712
    %v6714 = vand.u32 %v6713, 4294901760
    %v6715 = vsub.f32 %v6713, %v6714
    %v6716 = vand.u32 %v6715, 4294901760
    %6717 = vmatpush1.msra.mxu0 %v6716
    %6718 = vmatprep.subr.mxu0 0.0
    %v6719 = vand.u32 %v6586, 4294901760
    %v6720 = vsub.f32 %v6586, %v6719
    %v6721 = vand.u32 %v6720, 4294901760
    %v6722 = vsub.f32 %v6720, %v6721
    %v6723 = vand.u32 %v6722, 4294901760
    %6724 = vmatpush1.msra.mxu0 %v6723
    %6725 = vmatprep.subr.mxu0 0.0
    %v6726 = vand.u32 %v6585, 4294901760
    %v6727 = vsub.f32 %v6585, %v6726
    %v6728 = vand.u32 %v6727, 4294901760
    %v6729 = vsub.f32 %v6727, %v6728
    %v6730 = vand.u32 %v6729, 4294901760
    %6731 = vmatpush1.msra.mxu0 %v6730
    %6732 = vmatprep.subr.mxu0 0.0
    %v6733 = vand.u32 %v6584, 4294901760
    %v6734 = vsub.f32 %v6584, %v6733
    %v6735 = vand.u32 %v6734, 4294901760
    %v6736 = vsub.f32 %v6734, %v6735
    %v6737 = vand.u32 %v6736, 4294901760
    %6738 = vmatpush1.msra.mxu0 %v6737
    %6739 = vmatprep.subr.mxu0 0.0
    %v6740 = vand.u32 %v6583, 4294901760
    %v6741 = vsub.f32 %v6583, %v6740
    %v6742 = vand.u32 %v6741, 4294901760
    %v6743 = vsub.f32 %v6741, %v6742
    %v6744 = vand.u32 %v6743, 4294901760
    %6745 = vmatpush1.msra.mxu0 %v6744
    %6746 = vmatprep.subr.mxu0 0.0
    %v6747 = vand.u32 %v6582, 4294901760
    %v6748 = vsub.f32 %v6582, %v6747
    %v6749 = vand.u32 %v6748, 4294901760
    %v6750 = vsub.f32 %v6748, %v6749
    %v6751 = vand.u32 %v6750, 4294901760
    %6752 = vmatpush1.msra.mxu0 %v6751
    %6753 = vmatprep.subr.mxu0 0.0
    %v6754 = vand.u32 %v6581, 4294901760
    %v6755 = vsub.f32 %v6581, %v6754
    %v6756 = vand.u32 %v6755, 4294901760
    %v6757 = vsub.f32 %v6755, %v6756
    %v6758 = vand.u32 %v6757, 4294901760
    %6759 = vmatpush1.msra.mxu0 %v6758
    %6760 = vmatprep.subr.mxu0 0.0
    %v6761 = vand.u32 %v6580, 4294901760
    %v6762 = vsub.f32 %v6580, %v6761
    %v6763 = vand.u32 %v6762, 4294901760
    %v6764 = vsub.f32 %v6762, %v6763
    %v6765 = vand.u32 %v6764, 4294901760
    %6766 = vmatpush1.msra.mxu0 %v6765
    %6767 = vmatprep.subr.mxu0 0.0
    %v6768 = vand.u32 %v6579, 4294901760
    %v6769 = vsub.f32 %v6579, %v6768
    %v6770 = vand.u32 %v6769, 4294901760
    %v6771 = vsub.f32 %v6769, %v6770
    %v6772 = vand.u32 %v6771, 4294901760
    %6773 = vmatpush1.msra.mxu0 %v6772
    %6774 = vmatprep.subr.mxu0 0.0
    %v6775 = vand.u32 %v6578, 4294901760
    %v6776 = vsub.f32 %v6578, %v6775
    %v6777 = vand.u32 %v6776, 4294901760
    %v6778 = vsub.f32 %v6776, %v6777
    %v6779 = vand.u32 %v6778, 4294901760
    %6780 = vmatpush1.msra.mxu0 %v6779
    %6781 = vmatprep.subr.mxu0 0.0
    %v6782 = vand.u32 %v6577, 4294901760
    %v6783 = vsub.f32 %v6577, %v6782
    %v6784 = vand.u32 %v6783, 4294901760
    %v6785 = vsub.f32 %v6783, %v6784
    %v6786 = vand.u32 %v6785, 4294901760
    %6787 = vmatpush1.msra.mxu0 %v6786
    %6788 = vmatprep.subr.mxu0 0.0
    %v6789 = vand.u32 %v6576, 4294901760
    %v6790 = vsub.f32 %v6576, %v6789
    %v6791 = vand.u32 %v6790, 4294901760
    %v6792 = vsub.f32 %v6790, %v6791
    %v6793 = vand.u32 %v6792, 4294901760
    %6794 = vmatpush1.msra.mxu0 %v6793
    %6795 = vmatprep.subr.mxu0 0.0
    %6796 = vmatpush2.msra.mxu0 0.0
    %6797 = vmatprep.subr.mxu0 0.0
    %6798 = vmatpush2.msra.mxu0 0.0
    %6799 = vmatprep.subr.mxu0 0.0
    %6800 = vmatpush2.msra.mxu0 0.0
    %6801 = vmatprep.subr.mxu0 0.0
    %6802 = vmatpush2.msra.mxu0 0.0
    %6803 = vmatprep.subr.mxu0 0.0
    %6804 = vmatpush2.msra.mxu0 0.0
    %6805 = vmatprep.subr.mxu0 0.0
    %6806 = vmatpush2.msra.mxu0 0.0
    %6807 = vmatprep.subr.mxu0 0.0
    %6808 = vmatpush2.msra.mxu0 0.0
    %6809 = vmatprep.subr.mxu0 0.0
    %6810 = vmatpush2.msra.mxu0 0.0
    %6811 = vmatprep.subr.mxu0 0.0
    %6812 = vmatpush2.msra.mxu0 0.0
    %6813 = vmatprep.subr.mxu0 0.0
    %6814 = vmatpush2.msra.mxu0 0.0
    %6815 = vmatprep.subr.mxu0 0.0
    %6816 = vmatpush2.msra.mxu0 0.0
    %6817 = vmatprep.subr.mxu0 0.0
    %6818 = vmatpush2.msra.mxu0 0.0
    %6819 = vmatprep.subr.mxu0 0.0
    %6820 = vmatpush2.msra.mxu0 0.0
    %6821 = vmatprep.subr.mxu0 0.0
    %6822 = vmatpush2.msra.mxu0 0.0
    %6823 = vmatprep.subr.mxu0 0.0
    %6824 = vmatpush2.msra.mxu0 0.0
    %6825 = vmatprep.subr.mxu0 0.0
    %6826 = vmatpush2.msra.mxu0 0.0
    %6827 = vmatprep.mubr.f32.mxu0 0.0
    %v6828 = vand.u32 %v143, 4294901760
    %6829 = vmatmul.mubr.f32.gmra.mxu0 %v6828
    %v6830 = vpop.f32.mrf.mxu0
    %v6831 = vadd.f32 %v6680, %v6830
    %v6832 = vpop.f32.mrf.mxu0
    %6833 = vdwg.mxu0
    %6834 = vmatprep.subr.mxu0 0.0
    %v6835 = vand.u32 %v6591, 4294901760
    %v6836 = vsub.f32 %v6591, %v6835
    %6837 = vmatpush1.msra.mxu0 %v6836
    %6838 = vmatprep.subr.mxu0 0.0
    %v6839 = vand.u32 %v6590, 4294901760
    %v6840 = vsub.f32 %v6590, %v6839
    %6841 = vmatpush1.msra.mxu0 %v6840
    %6842 = vmatprep.subr.mxu0 0.0
    %v6843 = vand.u32 %v6589, 4294901760
    %v6844 = vsub.f32 %v6589, %v6843
    %6845 = vmatpush1.msra.mxu0 %v6844
    %6846 = vmatprep.subr.mxu0 0.0
    %v6847 = vand.u32 %v6588, 4294901760
    %v6848 = vsub.f32 %v6588, %v6847
    %6849 = vmatpush1.msra.mxu0 %v6848
    %6850 = vmatprep.subr.mxu0 0.0
    %v6851 = vand.u32 %v6587, 4294901760
    %v6852 = vsub.f32 %v6587, %v6851
    %6853 = vmatpush1.msra.mxu0 %v6852
    %6854 = vmatprep.subr.mxu0 0.0
    %v6855 = vand.u32 %v6586, 4294901760
    %v6856 = vsub.f32 %v6586, %v6855
    %6857 = vmatpush1.msra.mxu0 %v6856
    %6858 = vmatprep.subr.mxu0 0.0
    %v6859 = vand.u32 %v6585, 4294901760
    %v6860 = vsub.f32 %v6585, %v6859
    %6861 = vmatpush1.msra.mxu0 %v6860
    %6862 = vmatprep.subr.mxu0 0.0
    %v6863 = vand.u32 %v6584, 4294901760
    %v6864 = vsub.f32 %v6584, %v6863
    %6865 = vmatpush1.msra.mxu0 %v6864
    %6866 = vmatprep.subr.mxu0 0.0
    %v6867 = vand.u32 %v6583, 4294901760
    %v6868 = vsub.f32 %v6583, %v6867
    %6869 = vmatpush1.msra.mxu0 %v6868
    %6870 = vmatprep.subr.mxu0 0.0
    %v6871 = vand.u32 %v6582, 4294901760
    %v6872 = vsub.f32 %v6582, %v6871
    %6873 = vmatpush1.msra.mxu0 %v6872
    %6874 = vmatprep.subr.mxu0 0.0
    %v6875 = vand.u32 %v6581, 4294901760
    %v6876 = vsub.f32 %v6581, %v6875
    %6877 = vmatpush1.msra.mxu0 %v6876
    %6878 = vmatprep.subr.mxu0 0.0
    %v6879 = vand.u32 %v6580, 4294901760
    %v6880 = vsub.f32 %v6580, %v6879
    %6881 = vmatpush1.msra.mxu0 %v6880
    %6882 = vmatprep.subr.mxu0 0.0
    %v6883 = vand.u32 %v6579, 4294901760
    %v6884 = vsub.f32 %v6579, %v6883
    %6885 = vmatpush1.msra.mxu0 %v6884
    %6886 = vmatprep.subr.mxu0 0.0
    %v6887 = vand.u32 %v6578, 4294901760
    %v6888 = vsub.f32 %v6578, %v6887
    %6889 = vmatpush1.msra.mxu0 %v6888
    %6890 = vmatprep.subr.mxu0 0.0
    %v6891 = vand.u32 %v6577, 4294901760
    %v6892 = vsub.f32 %v6577, %v6891
    %6893 = vmatpush1.msra.mxu0 %v6892
    %6894 = vmatprep.subr.mxu0 0.0
    %v6895 = vand.u32 %v6576, 4294901760
    %v6896 = vsub.f32 %v6576, %v6895
    %6897 = vmatpush1.msra.mxu0 %v6896
    %6898 = vmatprep.subr.mxu0 0.0
    %6899 = vmatpush2.msra.mxu0 0.0
    %6900 = vmatprep.subr.mxu0 0.0
    %6901 = vmatpush2.msra.mxu0 0.0
    %6902 = vmatprep.subr.mxu0 0.0
    %6903 = vmatpush2.msra.mxu0 0.0
    %6904 = vmatprep.subr.mxu0 0.0
    %6905 = vmatpush2.msra.mxu0 0.0
    %6906 = vmatprep.subr.mxu0 0.0
    %6907 = vmatpush2.msra.mxu0 0.0
    %6908 = vmatprep.subr.mxu0 0.0
    %6909 = vmatpush2.msra.mxu0 0.0
    %6910 = vmatprep.subr.mxu0 0.0
    %6911 = vmatpush2.msra.mxu0 0.0
    %6912 = vmatprep.subr.mxu0 0.0
    %6913 = vmatpush2.msra.mxu0 0.0
    %6914 = vmatprep.subr.mxu0 0.0
    %6915 = vmatpush2.msra.mxu0 0.0
    %6916 = vmatprep.subr.mxu0 0.0
    %6917 = vmatpush2.msra.mxu0 0.0
    %6918 = vmatprep.subr.mxu0 0.0
    %6919 = vmatpush2.msra.mxu0 0.0
    %6920 = vmatprep.subr.mxu0 0.0
    %6921 = vmatpush2.msra.mxu0 0.0
    %6922 = vmatprep.subr.mxu0 0.0
    %6923 = vmatpush2.msra.mxu0 0.0
    %6924 = vmatprep.subr.mxu0 0.0
    %6925 = vmatpush2.msra.mxu0 0.0
    %6926 = vmatprep.subr.mxu0 0.0
    %6927 = vmatpush2.msra.mxu0 0.0
    %6928 = vmatprep.subr.mxu0 0.0
    %6929 = vmatpush2.msra.mxu0 0.0
    %6930 = vmatprep.mubr.f32.mxu0 0.0
    %v6931 = vand.u32 %v143, 4294901760
    %v6932 = vsub.f32 %v143, %v6931
    %6933 = vmatmul.mubr.f32.gmra.mxu0 %v6932
    %v6934 = vpop.f32.mrf.mxu0
    %v6935 = vadd.f32 %v6831, %v6934
    %v6936 = vpop.f32.mrf.mxu0
    %6937 = vdwg.mxu0
    %6938 = vmatprep.subr.mxu0 0.0
    %v6939 = vand.u32 %v6591, 4294901760
    %6940 = vmatpush1.msra.mxu0 %v6939
    %6941 = vmatprep.subr.mxu0 0.0
    %v6942 = vand.u32 %v6590, 4294901760
    %6943 = vmatpush1.msra.mxu0 %v6942
    %6944 = vmatprep.subr.mxu0 0.0
    %v6945 = vand.u32 %v6589, 4294901760
    %6946 = vmatpush1.msra.mxu0 %v6945
    %6947 = vmatprep.subr.mxu0 0.0
    %v6948 = vand.u32 %v6588, 4294901760
    %6949 = vmatpush1.msra.mxu0 %v6948
    %6950 = vmatprep.subr.mxu0 0.0
    %v6951 = vand.u32 %v6587, 4294901760
    %6952 = vmatpush1.msra.mxu0 %v6951
    %6953 = vmatprep.subr.mxu0 0.0
    %v6954 = vand.u32 %v6586, 4294901760
    %6955 = vmatpush1.msra.mxu0 %v6954
    %6956 = vmatprep.subr.mxu0 0.0
    %v6957 = vand.u32 %v6585, 4294901760
    %6958 = vmatpush1.msra.mxu0 %v6957
    %6959 = vmatprep.subr.mxu0 0.0
    %v6960 = vand.u32 %v6584, 4294901760
    %6961 = vmatpush1.msra.mxu0 %v6960
    %6962 = vmatprep.subr.mxu0 0.0
    %v6963 = vand.u32 %v6583, 4294901760
    %6964 = vmatpush1.msra.mxu0 %v6963
    %6965 = vmatprep.subr.mxu0 0.0
    %v6966 = vand.u32 %v6582, 4294901760
    %6967 = vmatpush1.msra.mxu0 %v6966
    %6968 = vmatprep.subr.mxu0 0.0
    %v6969 = vand.u32 %v6581, 4294901760
    %6970 = vmatpush1.msra.mxu0 %v6969
    %6971 = vmatprep.subr.mxu0 0.0
    %v6972 = vand.u32 %v6580, 4294901760
    %6973 = vmatpush1.msra.mxu0 %v6972
    %6974 = vmatprep.subr.mxu0 0.0
    %v6975 = vand.u32 %v6579, 4294901760
    %6976 = vmatpush1.msra.mxu0 %v6975
    %6977 = vmatprep.subr.mxu0 0.0
    %v6978 = vand.u32 %v6578, 4294901760
    %6979 = vmatpush1.msra.mxu0 %v6978
    %6980 = vmatprep.subr.mxu0 0.0
    %v6981 = vand.u32 %v6577, 4294901760
    %6982 = vmatpush1.msra.mxu0 %v6981
    %6983 = vmatprep.subr.mxu0 0.0
    %v6984 = vand.u32 %v6576, 4294901760
    %6985 = vmatpush1.msra.mxu0 %v6984
    %6986 = vmatprep.subr.mxu0 0.0
    %6987 = vmatpush2.msra.mxu0 0.0
    %6988 = vmatprep.subr.mxu0 0.0
    %6989 = vmatpush2.msra.mxu0 0.0
    %6990 = vmatprep.subr.mxu0 0.0
    %6991 = vmatpush2.msra.mxu0 0.0
    %6992 = vmatprep.subr.mxu0 0.0
    %6993 = vmatpush2.msra.mxu0 0.0
    %6994 = vmatprep.subr.mxu0 0.0
    %6995 = vmatpush2.msra.mxu0 0.0
    %6996 = vmatprep.subr.mxu0 0.0
    %6997 = vmatpush2.msra.mxu0 0.0
    %6998 = vmatprep.subr.mxu0 0.0
    %6999 = vmatpush2.msra.mxu0 0.0
    %7000 = vmatprep.subr.mxu0 0.0
    %7001 = vmatpush2.msra.mxu0 0.0
    %7002 = vmatprep.subr.mxu0 0.0
    %7003 = vmatpush2.msra.mxu0 0.0
    %7004 = vmatprep.subr.mxu0 0.0
    %7005 = vmatpush2.msra.mxu0 0.0
    %7006 = vmatprep.subr.mxu0 0.0
    %7007 = vmatpush2.msra.mxu0 0.0
    %7008 = vmatprep.subr.mxu0 0.0
    %7009 = vmatpush2.msra.mxu0 0.0
    %7010 = vmatprep.subr.mxu0 0.0
    %7011 = vmatpush2.msra.mxu0 0.0
    %7012 = vmatprep.subr.mxu0 0.0
    %7013 = vmatpush2.msra.mxu0 0.0
    %7014 = vmatprep.subr.mxu0 0.0
    %7015 = vmatpush2.msra.mxu0 0.0
    %7016 = vmatprep.subr.mxu0 0.0
    %7017 = vmatpush2.msra.mxu0 0.0
    %7018 = vmatprep.mubr.f32.mxu0 0.0
    %v7019 = vand.u32 %v143, 4294901760
    %v7020 = vsub.f32 %v143, %v7019
    %v7021 = vand.u32 %v7020, 4294901760
    %7022 = vmatmul.mubr.f32.gmra.mxu0 %v7021
    %v7023 = vpop.f32.mrf.mxu0
    %v7024 = vadd.f32 %v6935, %v7023
    %v7025 = vpop.f32.mrf.mxu0
    %7026 = vdwg.mxu0
    %7027 = vmatprep.subr.mxu0 0.0
    %v7028 = vand.u32 %v6591, 4294901760
    %v7029 = vsub.f32 %v6591, %v7028
    %v7030 = vand.u32 %v7029, 4294901760
    %7031 = vmatpush1.msra.mxu0 %v7030
    %7032 = vmatprep.subr.mxu0 0.0
    %v7033 = vand.u32 %v6590, 4294901760
    %v7034 = vsub.f32 %v6590, %v7033
    %v7035 = vand.u32 %v7034, 4294901760
    %7036 = vmatpush1.msra.mxu0 %v7035
    %7037 = vmatprep.subr.mxu0 0.0
    %v7038 = vand.u32 %v6589, 4294901760
    %v7039 = vsub.f32 %v6589, %v7038
    %v7040 = vand.u32 %v7039, 4294901760
    %7041 = vmatpush1.msra.mxu0 %v7040
    %7042 = vmatprep.subr.mxu0 0.0
    %v7043 = vand.u32 %v6588, 4294901760
    %v7044 = vsub.f32 %v6588, %v7043
    %v7045 = vand.u32 %v7044, 4294901760
    %7046 = vmatpush1.msra.mxu0 %v7045
    %7047 = vmatprep.subr.mxu0 0.0
    %v7048 = vand.u32 %v6587, 4294901760
    %v7049 = vsub.f32 %v6587, %v7048
    %v7050 = vand.u32 %v7049, 4294901760
    %7051 = vmatpush1.msra.mxu0 %v7050
    %7052 = vmatprep.subr.mxu0 0.0
    %v7053 = vand.u32 %v6586, 4294901760
    %v7054 = vsub.f32 %v6586, %v7053
    %v7055 = vand.u32 %v7054, 4294901760
    %7056 = vmatpush1.msra.mxu0 %v7055
    %7057 = vmatprep.subr.mxu0 0.0
    %v7058 = vand.u32 %v6585, 4294901760
    %v7059 = vsub.f32 %v6585, %v7058
    %v7060 = vand.u32 %v7059, 4294901760
    %7061 = vmatpush1.msra.mxu0 %v7060
    %7062 = vmatprep.subr.mxu0 0.0
    %v7063 = vand.u32 %v6584, 4294901760
    %v7064 = vsub.f32 %v6584, %v7063
    %v7065 = vand.u32 %v7064, 4294901760
    %7066 = vmatpush1.msra.mxu0 %v7065
    %7067 = vmatprep.subr.mxu0 0.0
    %v7068 = vand.u32 %v6583, 4294901760
    %v7069 = vsub.f32 %v6583, %v7068
    %v7070 = vand.u32 %v7069, 4294901760
    %7071 = vmatpush1.msra.mxu0 %v7070
    %7072 = vmatprep.subr.mxu0 0.0
    %v7073 = vand.u32 %v6582, 4294901760
    %v7074 = vsub.f32 %v6582, %v7073
    %v7075 = vand.u32 %v7074, 4294901760
    %7076 = vmatpush1.msra.mxu0 %v7075
    %7077 = vmatprep.subr.mxu0 0.0
    %v7078 = vand.u32 %v6581, 4294901760
    %v7079 = vsub.f32 %v6581, %v7078
    %v7080 = vand.u32 %v7079, 4294901760
    %7081 = vmatpush1.msra.mxu0 %v7080
    %7082 = vmatprep.subr.mxu0 0.0
    %v7083 = vand.u32 %v6580, 4294901760
    %v7084 = vsub.f32 %v6580, %v7083
    %v7085 = vand.u32 %v7084, 4294901760
    %7086 = vmatpush1.msra.mxu0 %v7085
    %7087 = vmatprep.subr.mxu0 0.0
    %v7088 = vand.u32 %v6579, 4294901760
    %v7089 = vsub.f32 %v6579, %v7088
    %v7090 = vand.u32 %v7089, 4294901760
    %7091 = vmatpush1.msra.mxu0 %v7090
    %7092 = vmatprep.subr.mxu0 0.0
    %v7093 = vand.u32 %v6578, 4294901760
    %v7094 = vsub.f32 %v6578, %v7093
    %v7095 = vand.u32 %v7094, 4294901760
    %7096 = vmatpush1.msra.mxu0 %v7095
    %7097 = vmatprep.subr.mxu0 0.0
    %v7098 = vand.u32 %v6577, 4294901760
    %v7099 = vsub.f32 %v6577, %v7098
    %v7100 = vand.u32 %v7099, 4294901760
    %7101 = vmatpush1.msra.mxu0 %v7100
    %7102 = vmatprep.subr.mxu0 0.0
    %v7103 = vand.u32 %v6576, 4294901760
    %v7104 = vsub.f32 %v6576, %v7103
    %v7105 = vand.u32 %v7104, 4294901760
    %7106 = vmatpush1.msra.mxu0 %v7105
    %7107 = vmatprep.subr.mxu0 0.0
    %7108 = vmatpush2.msra.mxu0 0.0
    %7109 = vmatprep.subr.mxu0 0.0
    %7110 = vmatpush2.msra.mxu0 0.0
    %7111 = vmatprep.subr.mxu0 0.0
    %7112 = vmatpush2.msra.mxu0 0.0
    %7113 = vmatprep.subr.mxu0 0.0
    %7114 = vmatpush2.msra.mxu0 0.0
    %7115 = vmatprep.subr.mxu0 0.0
    %7116 = vmatpush2.msra.mxu0 0.0
    %7117 = vmatprep.subr.mxu0 0.0
    %7118 = vmatpush2.msra.mxu0 0.0
    %7119 = vmatprep.subr.mxu0 0.0
    %7120 = vmatpush2.msra.mxu0 0.0
    %7121 = vmatprep.subr.mxu0 0.0
    %7122 = vmatpush2.msra.mxu0 0.0
    %7123 = vmatprep.subr.mxu0 0.0
    %7124 = vmatpush2.msra.mxu0 0.0
    %7125 = vmatprep.subr.mxu0 0.0
    %7126 = vmatpush2.msra.mxu0 0.0
    %7127 = vmatprep.subr.mxu0 0.0
    %7128 = vmatpush2.msra.mxu0 0.0
    %7129 = vmatprep.subr.mxu0 0.0
    %7130 = vmatpush2.msra.mxu0 0.0
    %7131 = vmatprep.subr.mxu0 0.0
    %7132 = vmatpush2.msra.mxu0 0.0
    %7133 = vmatprep.subr.mxu0 0.0
    %7134 = vmatpush2.msra.mxu0 0.0
    %7135 = vmatprep.subr.mxu0 0.0
    %7136 = vmatpush2.msra.mxu0 0.0
    %7137 = vmatprep.subr.mxu0 0.0
    %7138 = vmatpush2.msra.mxu0 0.0
    %7139 = vmatprep.mubr.f32.mxu0 0.0
    %v7140 = vand.u32 %v143, 4294901760
    %7141 = vmatmul.mubr.f32.gmra.mxu0 %v7140
    %v7142 = vpop.f32.mrf.mxu0
    %v7143 = vadd.f32 %v7024, %v7142
    %v7144 = vpop.f32.mrf.mxu0
    %7145 = vdwg.mxu0
    %7146 = vmatprep.subr.mxu0 0.0
    %v7147 = vand.u32 %v6591, 4294901760
    %7148 = vmatpush1.msra.mxu0 %v7147
    %7149 = vmatprep.subr.mxu0 0.0
    %v7150 = vand.u32 %v6590, 4294901760
    %7151 = vmatpush1.msra.mxu0 %v7150
    %7152 = vmatprep.subr.mxu0 0.0
    %v7153 = vand.u32 %v6589, 4294901760
    %7154 = vmatpush1.msra.mxu0 %v7153
    %7155 = vmatprep.subr.mxu0 0.0
    %v7156 = vand.u32 %v6588, 4294901760
    %7157 = vmatpush1.msra.mxu0 %v7156
    %7158 = vmatprep.subr.mxu0 0.0
    %v7159 = vand.u32 %v6587, 4294901760
    %7160 = vmatpush1.msra.mxu0 %v7159
    %7161 = vmatprep.subr.mxu0 0.0
    %v7162 = vand.u32 %v6586, 4294901760
    %7163 = vmatpush1.msra.mxu0 %v7162
    %7164 = vmatprep.subr.mxu0 0.0
    %v7165 = vand.u32 %v6585, 4294901760
    %7166 = vmatpush1.msra.mxu0 %v7165
    %7167 = vmatprep.subr.mxu0 0.0
    %v7168 = vand.u32 %v6584, 4294901760
    %7169 = vmatpush1.msra.mxu0 %v7168
    %7170 = vmatprep.subr.mxu0 0.0
    %v7171 = vand.u32 %v6583, 4294901760
    %7172 = vmatpush1.msra.mxu0 %v7171
    %7173 = vmatprep.subr.mxu0 0.0
    %v7174 = vand.u32 %v6582, 4294901760
    %7175 = vmatpush1.msra.mxu0 %v7174
    %7176 = vmatprep.subr.mxu0 0.0
    %v7177 = vand.u32 %v6581, 4294901760
    %7178 = vmatpush1.msra.mxu0 %v7177
    %7179 = vmatprep.subr.mxu0 0.0
    %v7180 = vand.u32 %v6580, 4294901760
    %7181 = vmatpush1.msra.mxu0 %v7180
    %7182 = vmatprep.subr.mxu0 0.0
    %v7183 = vand.u32 %v6579, 4294901760
    %7184 = vmatpush1.msra.mxu0 %v7183
    %7185 = vmatprep.subr.mxu0 0.0
    %v7186 = vand.u32 %v6578, 4294901760
    %7187 = vmatpush1.msra.mxu0 %v7186
    %7188 = vmatprep.subr.mxu0 0.0
    %v7189 = vand.u32 %v6577, 4294901760
    %7190 = vmatpush1.msra.mxu0 %v7189
    %7191 = vmatprep.subr.mxu0 0.0
    %v7192 = vand.u32 %v6576, 4294901760
    %7193 = vmatpush1.msra.mxu0 %v7192
    %7194 = vmatprep.subr.mxu0 0.0
    %7195 = vmatpush2.msra.mxu0 0.0
    %7196 = vmatprep.subr.mxu0 0.0
    %7197 = vmatpush2.msra.mxu0 0.0
    %7198 = vmatprep.subr.mxu0 0.0
    %7199 = vmatpush2.msra.mxu0 0.0
    %7200 = vmatprep.subr.mxu0 0.0
    %7201 = vmatpush2.msra.mxu0 0.0
    %7202 = vmatprep.subr.mxu0 0.0
    %7203 = vmatpush2.msra.mxu0 0.0
    %7204 = vmatprep.subr.mxu0 0.0
    %7205 = vmatpush2.msra.mxu0 0.0
    %7206 = vmatprep.subr.mxu0 0.0
    %7207 = vmatpush2.msra.mxu0 0.0
    %7208 = vmatprep.subr.mxu0 0.0
    %7209 = vmatpush2.msra.mxu0 0.0
    %7210 = vmatprep.subr.mxu0 0.0
    %7211 = vmatpush2.msra.mxu0 0.0
    %7212 = vmatprep.subr.mxu0 0.0
    %7213 = vmatpush2.msra.mxu0 0.0
    %7214 = vmatprep.subr.mxu0 0.0
    %7215 = vmatpush2.msra.mxu0 0.0
    %7216 = vmatprep.subr.mxu0 0.0
    %7217 = vmatpush2.msra.mxu0 0.0
    %7218 = vmatprep.subr.mxu0 0.0
    %7219 = vmatpush2.msra.mxu0 0.0
    %7220 = vmatprep.subr.mxu0 0.0
    %7221 = vmatpush2.msra.mxu0 0.0
    %7222 = vmatprep.subr.mxu0 0.0
    %7223 = vmatpush2.msra.mxu0 0.0
    %7224 = vmatprep.subr.mxu0 0.0
    %7225 = vmatpush2.msra.mxu0 0.0
    %7226 = vmatprep.mubr.f32.mxu0 0.0
    %v7227 = vand.u32 %v143, 4294901760
    %7228 = vmatmul.mubr.f32.gmra.mxu0 %v7227
    %v7229 = vpop.f32.mrf.mxu0
    %v7230 = vadd.f32 %v7143, %v7229
    %v7231 = vpop.f32.mrf.mxu0
    %7232 = vdwg.mxu0
    %v7233 = vmul.f32 %v7230, 0.125
    %v7234 = vlaneseq
    %v7235 = vshrl.u32 %v7234, 7
    %v7236 = vsub.s32 0, %v7235
    %v7237 = vrot.slane %v7233, %v7236
    %v7238 = vsub.f32 %v6576, %v7237
    %v7239 = vsub.f32 %v6577, %v7237
    %v7240 = vsub.f32 %v6578, %v7237
    %v7241 = vsub.f32 %v6579, %v7237
    %v7242 = vsub.f32 %v6580, %v7237
    %v7243 = vsub.f32 %v6581, %v7237
    %v7244 = vsub.f32 %v6582, %v7237
    %v7245 = vsub.f32 %v6583, %v7237
    %v7246 = vsub.f32 %v6584, %v7237
    %v7247 = vsub.f32 %v6585, %v7237
    %v7248 = vsub.f32 %v6586, %v7237
    %v7249 = vsub.f32 %v6587, %v7237
    %v7250 = vsub.f32 %v6588, %v7237
    %v7251 = vsub.f32 %v6589, %v7237
    %v7252 = vsub.f32 %v6590, %v7237
    %v7253 = vsub.f32 %v6591, %v7237
    %v7254 = vmul.f32 %v7238, %v7238
    %v7255 = vmul.f32 %v7239, %v7239
    %v7256 = vmul.f32 %v7240, %v7240
    %v7257 = vmul.f32 %v7241, %v7241
    %v7258 = vmul.f32 %v7242, %v7242
    %v7259 = vmul.f32 %v7243, %v7243
    %v7260 = vmul.f32 %v7244, %v7244
    %v7261 = vmul.f32 %v7245, %v7245
    %v7262 = vmul.f32 %v7246, %v7246
    %v7263 = vmul.f32 %v7247, %v7247
    %v7264 = vmul.f32 %v7248, %v7248
    %v7265 = vmul.f32 %v7249, %v7249
    %v7266 = vmul.f32 %v7250, %v7250
    %v7267 = vmul.f32 %v7251, %v7251
    %v7268 = vmul.f32 %v7252, %v7252
    %v7269 = vmul.f32 %v7253, %v7253
    %7270 = vmatprep.subr.mxu0 0.0
    %v7271 = vand.u32 %v7269, 4294901760
    %7272 = vmatpush1.msra.mxu0 %v7271
    %7273 = vmatprep.subr.mxu0 0.0
    %v7274 = vand.u32 %v7268, 4294901760
    %7275 = vmatpush1.msra.mxu0 %v7274
    %7276 = vmatprep.subr.mxu0 0.0
    %v7277 = vand.u32 %v7267, 4294901760
    %7278 = vmatpush1.msra.mxu0 %v7277
    %7279 = vmatprep.subr.mxu0 0.0
    %v7280 = vand.u32 %v7266, 4294901760
    %7281 = vmatpush1.msra.mxu0 %v7280
    %7282 = vmatprep.subr.mxu0 0.0
    %v7283 = vand.u32 %v7265, 4294901760
    %7284 = vmatpush1.msra.mxu0 %v7283
    %7285 = vmatprep.subr.mxu0 0.0
    %v7286 = vand.u32 %v7264, 4294901760
    %7287 = vmatpush1.msra.mxu0 %v7286
    %7288 = vmatprep.subr.mxu0 0.0
    %v7289 = vand.u32 %v7263, 4294901760
    %7290 = vmatpush1.msra.mxu0 %v7289
    %7291 = vmatprep.subr.mxu0 0.0
    %v7292 = vand.u32 %v7262, 4294901760
    %7293 = vmatpush1.msra.mxu0 %v7292
    %7294 = vmatprep.subr.mxu0 0.0
    %v7295 = vand.u32 %v7261, 4294901760
    %7296 = vmatpush1.msra.mxu0 %v7295
    %7297 = vmatprep.subr.mxu0 0.0
    %v7298 = vand.u32 %v7260, 4294901760
    %7299 = vmatpush1.msra.mxu0 %v7298
    %7300 = vmatprep.subr.mxu0 0.0
    %v7301 = vand.u32 %v7259, 4294901760
    %7302 = vmatpush1.msra.mxu0 %v7301
    %7303 = vmatprep.subr.mxu0 0.0
    %v7304 = vand.u32 %v7258, 4294901760
    %7305 = vmatpush1.msra.mxu0 %v7304
    %7306 = vmatprep.subr.mxu0 0.0
    %v7307 = vand.u32 %v7257, 4294901760
    %7308 = vmatpush1.msra.mxu0 %v7307
    %7309 = vmatprep.subr.mxu0 0.0
    %v7310 = vand.u32 %v7256, 4294901760
    %7311 = vmatpush1.msra.mxu0 %v7310
    %7312 = vmatprep.subr.mxu0 0.0
    %v7313 = vand.u32 %v7255, 4294901760
    %7314 = vmatpush1.msra.mxu0 %v7313
    %7315 = vmatprep.subr.mxu0 0.0
    %v7316 = vand.u32 %v7254, 4294901760
    %7317 = vmatpush1.msra.mxu0 %v7316
    %7318 = vmatprep.subr.mxu0 0.0
    %7319 = vmatpush2.msra.mxu0 0.0
    %7320 = vmatprep.subr.mxu0 0.0
    %7321 = vmatpush2.msra.mxu0 0.0
    %7322 = vmatprep.subr.mxu0 0.0
    %7323 = vmatpush2.msra.mxu0 0.0
    %7324 = vmatprep.subr.mxu0 0.0
    %7325 = vmatpush2.msra.mxu0 0.0
    %7326 = vmatprep.subr.mxu0 0.0
    %7327 = vmatpush2.msra.mxu0 0.0
    %7328 = vmatprep.subr.mxu0 0.0
    %7329 = vmatpush2.msra.mxu0 0.0
    %7330 = vmatprep.subr.mxu0 0.0
    %7331 = vmatpush2.msra.mxu0 0.0
    %7332 = vmatprep.subr.mxu0 0.0
    %7333 = vmatpush2.msra.mxu0 0.0
    %7334 = vmatprep.subr.mxu0 0.0
    %7335 = vmatpush2.msra.mxu0 0.0
    %7336 = vmatprep.subr.mxu0 0.0
    %7337 = vmatpush2.msra.mxu0 0.0
    %7338 = vmatprep.subr.mxu0 0.0
    %7339 = vmatpush2.msra.mxu0 0.0
    %7340 = vmatprep.subr.mxu0 0.0
    %7341 = vmatpush2.msra.mxu0 0.0
    %7342 = vmatprep.subr.mxu0 0.0
    %7343 = vmatpush2.msra.mxu0 0.0
    %7344 = vmatprep.subr.mxu0 0.0
    %7345 = vmatpush2.msra.mxu0 0.0
    %7346 = vmatprep.subr.mxu0 0.0
    %7347 = vmatpush2.msra.mxu0 0.0
    %7348 = vmatprep.subr.mxu0 0.0
    %7349 = vmatpush2.msra.mxu0 0.0
    %7350 = vmatprep.mubr.f32.mxu0 0.0
    %v7351 = vand.u32 %v143, 4294901760
    %v7352 = vsub.f32 %v143, %v7351
    %v7353 = vand.u32 %v7352, 4294901760
    %v7354 = vsub.f32 %v7352, %v7353
    %v7355 = vand.u32 %v7354, 4294901760
    %7356 = vmatmul.mubr.f32.gmra.mxu0 %v7355
    %v7357 = vpop.f32.mrf.mxu0
    %v7358 = vadd.f32 0.0, %v7357
    %v7359 = vpop.f32.mrf.mxu0
    %7360 = vdwg.mxu0
    %7361 = vmatprep.subr.mxu0 0.0
    %v7362 = vand.u32 %v7269, 4294901760
    %v7363 = vsub.f32 %v7269, %v7362
    %v7364 = vand.u32 %v7363, 4294901760
    %v7365 = vsub.f32 %v7363, %v7364
    %v7366 = vand.u32 %v7365, 4294901760
    %7367 = vmatpush1.msra.mxu0 %v7366
    %7368 = vmatprep.subr.mxu0 0.0
    %v7369 = vand.u32 %v7268, 4294901760
    %v7370 = vsub.f32 %v7268, %v7369
    %v7371 = vand.u32 %v7370, 4294901760
    %v7372 = vsub.f32 %v7370, %v7371
    %v7373 = vand.u32 %v7372, 4294901760
    %7374 = vmatpush1.msra.mxu0 %v7373
    %7375 = vmatprep.subr.mxu0 0.0
    %v7376 = vand.u32 %v7267, 4294901760
    %v7377 = vsub.f32 %v7267, %v7376
    %v7378 = vand.u32 %v7377, 4294901760
    %v7379 = vsub.f32 %v7377, %v7378
    %v7380 = vand.u32 %v7379, 4294901760
    %7381 = vmatpush1.msra.mxu0 %v7380
    %7382 = vmatprep.subr.mxu0 0.0
    %v7383 = vand.u32 %v7266, 4294901760
    %v7384 = vsub.f32 %v7266, %v7383
    %v7385 = vand.u32 %v7384, 4294901760
    %v7386 = vsub.f32 %v7384, %v7385
    %v7387 = vand.u32 %v7386, 4294901760
    %7388 = vmatpush1.msra.mxu0 %v7387
    %7389 = vmatprep.subr.mxu0 0.0
    %v7390 = vand.u32 %v7265, 4294901760
    %v7391 = vsub.f32 %v7265, %v7390
    %v7392 = vand.u32 %v7391, 4294901760
    %v7393 = vsub.f32 %v7391, %v7392
    %v7394 = vand.u32 %v7393, 4294901760
    %7395 = vmatpush1.msra.mxu0 %v7394
    %7396 = vmatprep.subr.mxu0 0.0
    %v7397 = vand.u32 %v7264, 4294901760
    %v7398 = vsub.f32 %v7264, %v7397
    %v7399 = vand.u32 %v7398, 4294901760
    %v7400 = vsub.f32 %v7398, %v7399
    %v7401 = vand.u32 %v7400, 4294901760
    %7402 = vmatpush1.msra.mxu0 %v7401
    %7403 = vmatprep.subr.mxu0 0.0
    %v7404 = vand.u32 %v7263, 4294901760
    %v7405 = vsub.f32 %v7263, %v7404
    %v7406 = vand.u32 %v7405, 4294901760
    %v7407 = vsub.f32 %v7405, %v7406
    %v7408 = vand.u32 %v7407, 4294901760
    %7409 = vmatpush1.msra.mxu0 %v7408
    %7410 = vmatprep.subr.mxu0 0.0
    %v7411 = vand.u32 %v7262, 4294901760
    %v7412 = vsub.f32 %v7262, %v7411
    %v7413 = vand.u32 %v7412, 4294901760
    %v7414 = vsub.f32 %v7412, %v7413
    %v7415 = vand.u32 %v7414, 4294901760
    %7416 = vmatpush1.msra.mxu0 %v7415
    %7417 = vmatprep.subr.mxu0 0.0
    %v7418 = vand.u32 %v7261, 4294901760
    %v7419 = vsub.f32 %v7261, %v7418
    %v7420 = vand.u32 %v7419, 4294901760
    %v7421 = vsub.f32 %v7419, %v7420
    %v7422 = vand.u32 %v7421, 4294901760
    %7423 = vmatpush1.msra.mxu0 %v7422
    %7424 = vmatprep.subr.mxu0 0.0
    %v7425 = vand.u32 %v7260, 4294901760
    %v7426 = vsub.f32 %v7260, %v7425
    %v7427 = vand.u32 %v7426, 4294901760
    %v7428 = vsub.f32 %v7426, %v7427
    %v7429 = vand.u32 %v7428, 4294901760
    %7430 = vmatpush1.msra.mxu0 %v7429
    %7431 = vmatprep.subr.mxu0 0.0
    %v7432 = vand.u32 %v7259, 4294901760
    %v7433 = vsub.f32 %v7259, %v7432
    %v7434 = vand.u32 %v7433, 4294901760
    %v7435 = vsub.f32 %v7433, %v7434
    %v7436 = vand.u32 %v7435, 4294901760
    %7437 = vmatpush1.msra.mxu0 %v7436
    %7438 = vmatprep.subr.mxu0 0.0
    %v7439 = vand.u32 %v7258, 4294901760
    %v7440 = vsub.f32 %v7258, %v7439
    %v7441 = vand.u32 %v7440, 4294901760
    %v7442 = vsub.f32 %v7440, %v7441
    %v7443 = vand.u32 %v7442, 4294901760
    %7444 = vmatpush1.msra.mxu0 %v7443
    %7445 = vmatprep.subr.mxu0 0.0
    %v7446 = vand.u32 %v7257, 4294901760
    %v7447 = vsub.f32 %v7257, %v7446
    %v7448 = vand.u32 %v7447, 4294901760
    %v7449 = vsub.f32 %v7447, %v7448
    %v7450 = vand.u32 %v7449, 4294901760
    %7451 = vmatpush1.msra.mxu0 %v7450
    %7452 = vmatprep.subr.mxu0 0.0
    %v7453 = vand.u32 %v7256, 4294901760
    %v7454 = vsub.f32 %v7256, %v7453
    %v7455 = vand.u32 %v7454, 4294901760
    %v7456 = vsub.f32 %v7454, %v7455
    %v7457 = vand.u32 %v7456, 4294901760
    %7458 = vmatpush1.msra.mxu0 %v7457
    %7459 = vmatprep.subr.mxu0 0.0
    %v7460 = vand.u32 %v7255, 4294901760
    %v7461 = vsub.f32 %v7255, %v7460
    %v7462 = vand.u32 %v7461, 4294901760
    %v7463 = vsub.f32 %v7461, %v7462
    %v7464 = vand.u32 %v7463, 4294901760
    %7465 = vmatpush1.msra.mxu0 %v7464
    %7466 = vmatprep.subr.mxu0 0.0
    %v7467 = vand.u32 %v7254, 4294901760
    %v7468 = vsub.f32 %v7254, %v7467
    %v7469 = vand.u32 %v7468, 4294901760
    %v7470 = vsub.f32 %v7468, %v7469
    %v7471 = vand.u32 %v7470, 4294901760
    %7472 = vmatpush1.msra.mxu0 %v7471
    %7473 = vmatprep.subr.mxu0 0.0
    %7474 = vmatpush2.msra.mxu0 0.0
    %7475 = vmatprep.subr.mxu0 0.0
    %7476 = vmatpush2.msra.mxu0 0.0
    %7477 = vmatprep.subr.mxu0 0.0
    %7478 = vmatpush2.msra.mxu0 0.0
    %7479 = vmatprep.subr.mxu0 0.0
    %7480 = vmatpush2.msra.mxu0 0.0
    %7481 = vmatprep.subr.mxu0 0.0
    %7482 = vmatpush2.msra.mxu0 0.0
    %7483 = vmatprep.subr.mxu0 0.0
    %7484 = vmatpush2.msra.mxu0 0.0
    %7485 = vmatprep.subr.mxu0 0.0
    %7486 = vmatpush2.msra.mxu0 0.0
    %7487 = vmatprep.subr.mxu0 0.0
    %7488 = vmatpush2.msra.mxu0 0.0
    %7489 = vmatprep.subr.mxu0 0.0
    %7490 = vmatpush2.msra.mxu0 0.0
    %7491 = vmatprep.subr.mxu0 0.0
    %7492 = vmatpush2.msra.mxu0 0.0
    %7493 = vmatprep.subr.mxu0 0.0
    %7494 = vmatpush2.msra.mxu0 0.0
    %7495 = vmatprep.subr.mxu0 0.0
    %7496 = vmatpush2.msra.mxu0 0.0
    %7497 = vmatprep.subr.mxu0 0.0
    %7498 = vmatpush2.msra.mxu0 0.0
    %7499 = vmatprep.subr.mxu0 0.0
    %7500 = vmatpush2.msra.mxu0 0.0
    %7501 = vmatprep.subr.mxu0 0.0
    %7502 = vmatpush2.msra.mxu0 0.0
    %7503 = vmatprep.subr.mxu0 0.0
    %7504 = vmatpush2.msra.mxu0 0.0
    %7505 = vmatprep.mubr.f32.mxu0 0.0
    %v7506 = vand.u32 %v143, 4294901760
    %7507 = vmatmul.mubr.f32.gmra.mxu0 %v7506
    %v7508 = vpop.f32.mrf.mxu0
    %v7509 = vadd.f32 %v7358, %v7508
    %v7510 = vpop.f32.mrf.mxu0
    %7511 = vdwg.mxu0
    %7512 = vmatprep.subr.mxu0 0.0
    %v7513 = vand.u32 %v7269, 4294901760
    %v7514 = vsub.f32 %v7269, %v7513
    %7515 = vmatpush1.msra.mxu0 %v7514
    %7516 = vmatprep.subr.mxu0 0.0
    %v7517 = vand.u32 %v7268, 4294901760
    %v7518 = vsub.f32 %v7268, %v7517
    %7519 = vmatpush1.msra.mxu0 %v7518
    %7520 = vmatprep.subr.mxu0 0.0
    %v7521 = vand.u32 %v7267, 4294901760
    %v7522 = vsub.f32 %v7267, %v7521
    %7523 = vmatpush1.msra.mxu0 %v7522
    %7524 = vmatprep.subr.mxu0 0.0
    %v7525 = vand.u32 %v7266, 4294901760
    %v7526 = vsub.f32 %v7266, %v7525
    %7527 = vmatpush1.msra.mxu0 %v7526
    %7528 = vmatprep.subr.mxu0 0.0
    %v7529 = vand.u32 %v7265, 4294901760
    %v7530 = vsub.f32 %v7265, %v7529
    %7531 = vmatpush1.msra.mxu0 %v7530
    %7532 = vmatprep.subr.mxu0 0.0
    %v7533 = vand.u32 %v7264, 4294901760
    %v7534 = vsub.f32 %v7264, %v7533
    %7535 = vmatpush1.msra.mxu0 %v7534
    %7536 = vmatprep.subr.mxu0 0.0
    %v7537 = vand.u32 %v7263, 4294901760
    %v7538 = vsub.f32 %v7263, %v7537
    %7539 = vmatpush1.msra.mxu0 %v7538
    %7540 = vmatprep.subr.mxu0 0.0
    %v7541 = vand.u32 %v7262, 4294901760
    %v7542 = vsub.f32 %v7262, %v7541
    %7543 = vmatpush1.msra.mxu0 %v7542
    %7544 = vmatprep.subr.mxu0 0.0
    %v7545 = vand.u32 %v7261, 4294901760
    %v7546 = vsub.f32 %v7261, %v7545
    %7547 = vmatpush1.msra.mxu0 %v7546
    %7548 = vmatprep.subr.mxu0 0.0
    %v7549 = vand.u32 %v7260, 4294901760
    %v7550 = vsub.f32 %v7260, %v7549
    %7551 = vmatpush1.msra.mxu0 %v7550
    %7552 = vmatprep.subr.mxu0 0.0
    %v7553 = vand.u32 %v7259, 4294901760
    %v7554 = vsub.f32 %v7259, %v7553
    %7555 = vmatpush1.msra.mxu0 %v7554
    %7556 = vmatprep.subr.mxu0 0.0
    %v7557 = vand.u32 %v7258, 4294901760
    %v7558 = vsub.f32 %v7258, %v7557
    %7559 = vmatpush1.msra.mxu0 %v7558
    %7560 = vmatprep.subr.mxu0 0.0
    %v7561 = vand.u32 %v7257, 4294901760
    %v7562 = vsub.f32 %v7257, %v7561
    %7563 = vmatpush1.msra.mxu0 %v7562
    %7564 = vmatprep.subr.mxu0 0.0
    %v7565 = vand.u32 %v7256, 4294901760
    %v7566 = vsub.f32 %v7256, %v7565
    %7567 = vmatpush1.msra.mxu0 %v7566
    %7568 = vmatprep.subr.mxu0 0.0
    %v7569 = vand.u32 %v7255, 4294901760
    %v7570 = vsub.f32 %v7255, %v7569
    %7571 = vmatpush1.msra.mxu0 %v7570
    %7572 = vmatprep.subr.mxu0 0.0
    %v7573 = vand.u32 %v7254, 4294901760
    %v7574 = vsub.f32 %v7254, %v7573
    %7575 = vmatpush1.msra.mxu0 %v7574
    %7576 = vmatprep.subr.mxu0 0.0
    %7577 = vmatpush2.msra.mxu0 0.0
    %7578 = vmatprep.subr.mxu0 0.0
    %7579 = vmatpush2.msra.mxu0 0.0
    %7580 = vmatprep.subr.mxu0 0.0
    %7581 = vmatpush2.msra.mxu0 0.0
    %7582 = vmatprep.subr.mxu0 0.0
    %7583 = vmatpush2.msra.mxu0 0.0
    %7584 = vmatprep.subr.mxu0 0.0
    %7585 = vmatpush2.msra.mxu0 0.0
    %7586 = vmatprep.subr.mxu0 0.0
    %7587 = vmatpush2.msra.mxu0 0.0
    %7588 = vmatprep.subr.mxu0 0.0
    %7589 = vmatpush2.msra.mxu0 0.0
    %7590 = vmatprep.subr.mxu0 0.0
    %7591 = vmatpush2.msra.mxu0 0.0
    %7592 = vmatprep.subr.mxu0 0.0
    %7593 = vmatpush2.msra.mxu0 0.0
    %7594 = vmatprep.subr.mxu0 0.0
    %7595 = vmatpush2.msra.mxu0 0.0
    %7596 = vmatprep.subr.mxu0 0.0
    %7597 = vmatpush2.msra.mxu0 0.0
    %7598 = vmatprep.subr.mxu0 0.0
    %7599 = vmatpush2.msra.mxu0 0.0
    %7600 = vmatprep.subr.mxu0 0.0
    %7601 = vmatpush2.msra.mxu0 0.0
    %7602 = vmatprep.subr.mxu0 0.0
    %7603 = vmatpush2.msra.mxu0 0.0
    %7604 = vmatprep.subr.mxu0 0.0
    %7605 = vmatpush2.msra.mxu0 0.0
    %7606 = vmatprep.subr.mxu0 0.0
    %7607 = vmatpush2.msra.mxu0 0.0
    %7608 = vmatprep.mubr.f32.mxu0 0.0
    %v7609 = vand.u32 %v143, 4294901760
    %v7610 = vsub.f32 %v143, %v7609
    %7611 = vmatmul.mubr.f32.gmra.mxu0 %v7610
    %v7612 = vpop.f32.mrf.mxu0
    %v7613 = vadd.f32 %v7509, %v7612
    %v7614 = vpop.f32.mrf.mxu0
    %7615 = vdwg.mxu0
    %7616 = vmatprep.subr.mxu0 0.0
    %v7617 = vand.u32 %v7269, 4294901760
    %7618 = vmatpush1.msra.mxu0 %v7617
    %7619 = vmatprep.subr.mxu0 0.0
    %v7620 = vand.u32 %v7268, 4294901760
    %7621 = vmatpush1.msra.mxu0 %v7620
    %7622 = vmatprep.subr.mxu0 0.0
    %v7623 = vand.u32 %v7267, 4294901760
    %7624 = vmatpush1.msra.mxu0 %v7623
    %7625 = vmatprep.subr.mxu0 0.0
    %v7626 = vand.u32 %v7266, 4294901760
    %7627 = vmatpush1.msra.mxu0 %v7626
    %7628 = vmatprep.subr.mxu0 0.0
    %v7629 = vand.u32 %v7265, 4294901760
    %7630 = vmatpush1.msra.mxu0 %v7629
    %7631 = vmatprep.subr.mxu0 0.0
    %v7632 = vand.u32 %v7264, 4294901760
    %7633 = vmatpush1.msra.mxu0 %v7632
    %7634 = vmatprep.subr.mxu0 0.0
    %v7635 = vand.u32 %v7263, 4294901760
    %7636 = vmatpush1.msra.mxu0 %v7635
    %7637 = vmatprep.subr.mxu0 0.0
    %v7638 = vand.u32 %v7262, 4294901760
    %7639 = vmatpush1.msra.mxu0 %v7638
    %7640 = vmatprep.subr.mxu0 0.0
    %v7641 = vand.u32 %v7261, 4294901760
    %7642 = vmatpush1.msra.mxu0 %v7641
    %7643 = vmatprep.subr.mxu0 0.0
    %v7644 = vand.u32 %v7260, 4294901760
    %7645 = vmatpush1.msra.mxu0 %v7644
    %7646 = vmatprep.subr.mxu0 0.0
    %v7647 = vand.u32 %v7259, 4294901760
    %7648 = vmatpush1.msra.mxu0 %v7647
    %7649 = vmatprep.subr.mxu0 0.0
    %v7650 = vand.u32 %v7258, 4294901760
    %7651 = vmatpush1.msra.mxu0 %v7650
    %7652 = vmatprep.subr.mxu0 0.0
    %v7653 = vand.u32 %v7257, 4294901760
    %7654 = vmatpush1.msra.mxu0 %v7653
    %7655 = vmatprep.subr.mxu0 0.0
    %v7656 = vand.u32 %v7256, 4294901760
    %7657 = vmatpush1.msra.mxu0 %v7656
    %7658 = vmatprep.subr.mxu0 0.0
    %v7659 = vand.u32 %v7255, 4294901760
    %7660 = vmatpush1.msra.mxu0 %v7659
    %7661 = vmatprep.subr.mxu0 0.0
    %v7662 = vand.u32 %v7254, 4294901760
    %7663 = vmatpush1.msra.mxu0 %v7662
    %7664 = vmatprep.subr.mxu0 0.0
    %7665 = vmatpush2.msra.mxu0 0.0
    %7666 = vmatprep.subr.mxu0 0.0
    %7667 = vmatpush2.msra.mxu0 0.0
    %7668 = vmatprep.subr.mxu0 0.0
    %7669 = vmatpush2.msra.mxu0 0.0
    %7670 = vmatprep.subr.mxu0 0.0
    %7671 = vmatpush2.msra.mxu0 0.0
    %7672 = vmatprep.subr.mxu0 0.0
    %7673 = vmatpush2.msra.mxu0 0.0
    %7674 = vmatprep.subr.mxu0 0.0
    %7675 = vmatpush2.msra.mxu0 0.0
    %7676 = vmatprep.subr.mxu0 0.0
    %7677 = vmatpush2.msra.mxu0 0.0
    %7678 = vmatprep.subr.mxu0 0.0
    %7679 = vmatpush2.msra.mxu0 0.0
    %7680 = vmatprep.subr.mxu0 0.0
    %7681 = vmatpush2.msra.mxu0 0.0
    %7682 = vmatprep.subr.mxu0 0.0
    %7683 = vmatpush2.msra.mxu0 0.0
    %7684 = vmatprep.subr.mxu0 0.0
    %7685 = vmatpush2.msra.mxu0 0.0
    %7686 = vmatprep.subr.mxu0 0.0
    %7687 = vmatpush2.msra.mxu0 0.0
    %7688 = vmatprep.subr.mxu0 0.0
    %7689 = vmatpush2.msra.mxu0 0.0
    %7690 = vmatprep.subr.mxu0 0.0
    %7691 = vmatpush2.msra.mxu0 0.0
    %7692 = vmatprep.subr.mxu0 0.0
    %7693 = vmatpush2.msra.mxu0 0.0
    %7694 = vmatprep.subr.mxu0 0.0
    %7695 = vmatpush2.msra.mxu0 0.0
    %7696 = vmatprep.mubr.f32.mxu0 0.0
    %v7697 = vand.u32 %v143, 4294901760
    %v7698 = vsub.f32 %v143, %v7697
    %v7699 = vand.u32 %v7698, 4294901760
    %7700 = vmatmul.mubr.f32.gmra.mxu0 %v7699
    %v7701 = vpop.f32.mrf.mxu0
    %v7702 = vadd.f32 %v7613, %v7701
    %v7703 = vpop.f32.mrf.mxu0
    %7704 = vdwg.mxu0
    %7705 = vmatprep.subr.mxu0 0.0
    %v7706 = vand.u32 %v7269, 4294901760
    %v7707 = vsub.f32 %v7269, %v7706
    %v7708 = vand.u32 %v7707, 4294901760
    %7709 = vmatpush1.msra.mxu0 %v7708
    %7710 = vmatprep.subr.mxu0 0.0
    %v7711 = vand.u32 %v7268, 4294901760
    %v7712 = vsub.f32 %v7268, %v7711
    %v7713 = vand.u32 %v7712, 4294901760
    %7714 = vmatpush1.msra.mxu0 %v7713
    %7715 = vmatprep.subr.mxu0 0.0
    %v7716 = vand.u32 %v7267, 4294901760
    %v7717 = vsub.f32 %v7267, %v7716
    %v7718 = vand.u32 %v7717, 4294901760
    %7719 = vmatpush1.msra.mxu0 %v7718
    %7720 = vmatprep.subr.mxu0 0.0
    %v7721 = vand.u32 %v7266, 4294901760
    %v7722 = vsub.f32 %v7266, %v7721
    %v7723 = vand.u32 %v7722, 4294901760
    %7724 = vmatpush1.msra.mxu0 %v7723
    %7725 = vmatprep.subr.mxu0 0.0
    %v7726 = vand.u32 %v7265, 4294901760
    %v7727 = vsub.f32 %v7265, %v7726
    %v7728 = vand.u32 %v7727, 4294901760
    %7729 = vmatpush1.msra.mxu0 %v7728
    %7730 = vmatprep.subr.mxu0 0.0
    %v7731 = vand.u32 %v7264, 4294901760
    %v7732 = vsub.f32 %v7264, %v7731
    %v7733 = vand.u32 %v7732, 4294901760
    %7734 = vmatpush1.msra.mxu0 %v7733
    %7735 = vmatprep.subr.mxu0 0.0
    %v7736 = vand.u32 %v7263, 4294901760
    %v7737 = vsub.f32 %v7263, %v7736
    %v7738 = vand.u32 %v7737, 4294901760
    %7739 = vmatpush1.msra.mxu0 %v7738
    %7740 = vmatprep.subr.mxu0 0.0
    %v7741 = vand.u32 %v7262, 4294901760
    %v7742 = vsub.f32 %v7262, %v7741
    %v7743 = vand.u32 %v7742, 4294901760
    %7744 = vmatpush1.msra.mxu0 %v7743
    %7745 = vmatprep.subr.mxu0 0.0
    %v7746 = vand.u32 %v7261, 4294901760
    %v7747 = vsub.f32 %v7261, %v7746
    %v7748 = vand.u32 %v7747, 4294901760
    %7749 = vmatpush1.msra.mxu0 %v7748
    %7750 = vmatprep.subr.mxu0 0.0
    %v7751 = vand.u32 %v7260, 4294901760
    %v7752 = vsub.f32 %v7260, %v7751
    %v7753 = vand.u32 %v7752, 4294901760
    %7754 = vmatpush1.msra.mxu0 %v7753
    %7755 = vmatprep.subr.mxu0 0.0
    %v7756 = vand.u32 %v7259, 4294901760
    %v7757 = vsub.f32 %v7259, %v7756
    %v7758 = vand.u32 %v7757, 4294901760
    %7759 = vmatpush1.msra.mxu0 %v7758
    %7760 = vmatprep.subr.mxu0 0.0
    %v7761 = vand.u32 %v7258, 4294901760
    %v7762 = vsub.f32 %v7258, %v7761
    %v7763 = vand.u32 %v7762, 4294901760
    %7764 = vmatpush1.msra.mxu0 %v7763
    %7765 = vmatprep.subr.mxu0 0.0
    %v7766 = vand.u32 %v7257, 4294901760
    %v7767 = vsub.f32 %v7257, %v7766
    %v7768 = vand.u32 %v7767, 4294901760
    %7769 = vmatpush1.msra.mxu0 %v7768
    %7770 = vmatprep.subr.mxu0 0.0
    %v7771 = vand.u32 %v7256, 4294901760
    %v7772 = vsub.f32 %v7256, %v7771
    %v7773 = vand.u32 %v7772, 4294901760
    %7774 = vmatpush1.msra.mxu0 %v7773
    %7775 = vmatprep.subr.mxu0 0.0
    %v7776 = vand.u32 %v7255, 4294901760
    %v7777 = vsub.f32 %v7255, %v7776
    %v7778 = vand.u32 %v7777, 4294901760
    %7779 = vmatpush1.msra.mxu0 %v7778
    %7780 = vmatprep.subr.mxu0 0.0
    %v7781 = vand.u32 %v7254, 4294901760
    %v7782 = vsub.f32 %v7254, %v7781
    %v7783 = vand.u32 %v7782, 4294901760
    %7784 = vmatpush1.msra.mxu0 %v7783
    %7785 = vmatprep.subr.mxu0 0.0
    %7786 = vmatpush2.msra.mxu0 0.0
    %7787 = vmatprep.subr.mxu0 0.0
    %7788 = vmatpush2.msra.mxu0 0.0
    %7789 = vmatprep.subr.mxu0 0.0
    %7790 = vmatpush2.msra.mxu0 0.0
    %7791 = vmatprep.subr.mxu0 0.0
    %7792 = vmatpush2.msra.mxu0 0.0
    %7793 = vmatprep.subr.mxu0 0.0
    %7794 = vmatpush2.msra.mxu0 0.0
    %7795 = vmatprep.subr.mxu0 0.0
    %7796 = vmatpush2.msra.mxu0 0.0
    %7797 = vmatprep.subr.mxu0 0.0
    %7798 = vmatpush2.msra.mxu0 0.0
    %7799 = vmatprep.subr.mxu0 0.0
    %7800 = vmatpush2.msra.mxu0 0.0
    %7801 = vmatprep.subr.mxu0 0.0
    %7802 = vmatpush2.msra.mxu0 0.0
    %7803 = vmatprep.subr.mxu0 0.0
    %7804 = vmatpush2.msra.mxu0 0.0
    %7805 = vmatprep.subr.mxu0 0.0
    %7806 = vmatpush2.msra.mxu0 0.0
    %7807 = vmatprep.subr.mxu0 0.0
    %7808 = vmatpush2.msra.mxu0 0.0
    %7809 = vmatprep.subr.mxu0 0.0
    %7810 = vmatpush2.msra.mxu0 0.0
    %7811 = vmatprep.subr.mxu0 0.0
    %7812 = vmatpush2.msra.mxu0 0.0
    %7813 = vmatprep.subr.mxu0 0.0
    %7814 = vmatpush2.msra.mxu0 0.0
    %7815 = vmatprep.subr.mxu0 0.0
    %7816 = vmatpush2.msra.mxu0 0.0
    %7817 = vmatprep.mubr.f32.mxu0 0.0
    %v7818 = vand.u32 %v143, 4294901760
    %7819 = vmatmul.mubr.f32.gmra.mxu0 %v7818
    %v7820 = vpop.f32.mrf.mxu0
    %v7821 = vadd.f32 %v7702, %v7820
    %v7822 = vpop.f32.mrf.mxu0
    %7823 = vdwg.mxu0
    %7824 = vmatprep.subr.mxu0 0.0
    %v7825 = vand.u32 %v7269, 4294901760
    %7826 = vmatpush1.msra.mxu0 %v7825
    %7827 = vmatprep.subr.mxu0 0.0
    %v7828 = vand.u32 %v7268, 4294901760
    %7829 = vmatpush1.msra.mxu0 %v7828
    %7830 = vmatprep.subr.mxu0 0.0
    %v7831 = vand.u32 %v7267, 4294901760
    %7832 = vmatpush1.msra.mxu0 %v7831
    %7833 = vmatprep.subr.mxu0 0.0
    %v7834 = vand.u32 %v7266, 4294901760
    %7835 = vmatpush1.msra.mxu0 %v7834
    %7836 = vmatprep.subr.mxu0 0.0
    %v7837 = vand.u32 %v7265, 4294901760
    %7838 = vmatpush1.msra.mxu0 %v7837
    %7839 = vmatprep.subr.mxu0 0.0
    %v7840 = vand.u32 %v7264, 4294901760
    %7841 = vmatpush1.msra.mxu0 %v7840
    %7842 = vmatprep.subr.mxu0 0.0
    %v7843 = vand.u32 %v7263, 4294901760
    %7844 = vmatpush1.msra.mxu0 %v7843
    %7845 = vmatprep.subr.mxu0 0.0
    %v7846 = vand.u32 %v7262, 4294901760
    %7847 = vmatpush1.msra.mxu0 %v7846
    %7848 = vmatprep.subr.mxu0 0.0
    %v7849 = vand.u32 %v7261, 4294901760
    %7850 = vmatpush1.msra.mxu0 %v7849
    %7851 = vmatprep.subr.mxu0 0.0
    %v7852 = vand.u32 %v7260, 4294901760
    %7853 = vmatpush1.msra.mxu0 %v7852
    %7854 = vmatprep.subr.mxu0 0.0
    %v7855 = vand.u32 %v7259, 4294901760
    %7856 = vmatpush1.msra.mxu0 %v7855
    %7857 = vmatprep.subr.mxu0 0.0
    %v7858 = vand.u32 %v7258, 4294901760
    %7859 = vmatpush1.msra.mxu0 %v7858
    %7860 = vmatprep.subr.mxu0 0.0
    %v7861 = vand.u32 %v7257, 4294901760
    %7862 = vmatpush1.msra.mxu0 %v7861
    %7863 = vmatprep.subr.mxu0 0.0
    %v7864 = vand.u32 %v7256, 4294901760
    %7865 = vmatpush1.msra.mxu0 %v7864
    %7866 = vmatprep.subr.mxu0 0.0
    %v7867 = vand.u32 %v7255, 4294901760
    %7868 = vmatpush1.msra.mxu0 %v7867
    %7869 = vmatprep.subr.mxu0 0.0
    %v7870 = vand.u32 %v7254, 4294901760
    %7871 = vmatpush1.msra.mxu0 %v7870
    %7872 = vmatprep.subr.mxu0 0.0
    %7873 = vmatpush2.msra.mxu0 0.0
    %7874 = vmatprep.subr.mxu0 0.0
    %7875 = vmatpush2.msra.mxu0 0.0
    %7876 = vmatprep.subr.mxu0 0.0
    %7877 = vmatpush2.msra.mxu0 0.0
    %7878 = vmatprep.subr.mxu0 0.0
    %7879 = vmatpush2.msra.mxu0 0.0
    %7880 = vmatprep.subr.mxu0 0.0
    %7881 = vmatpush2.msra.mxu0 0.0
    %7882 = vmatprep.subr.mxu0 0.0
    %7883 = vmatpush2.msra.mxu0 0.0
    %7884 = vmatprep.subr.mxu0 0.0
    %7885 = vmatpush2.msra.mxu0 0.0
    %7886 = vmatprep.subr.mxu0 0.0
    %7887 = vmatpush2.msra.mxu0 0.0
    %7888 = vmatprep.subr.mxu0 0.0
    %7889 = vmatpush2.msra.mxu0 0.0
    %7890 = vmatprep.subr.mxu0 0.0
    %7891 = vmatpush2.msra.mxu0 0.0
    %7892 = vmatprep.subr.mxu0 0.0
    %7893 = vmatpush2.msra.mxu0 0.0
    %7894 = vmatprep.subr.mxu0 0.0
    %7895 = vmatpush2.msra.mxu0 0.0
    %7896 = vmatprep.subr.mxu0 0.0
    %7897 = vmatpush2.msra.mxu0 0.0
    %7898 = vmatprep.subr.mxu0 0.0
    %7899 = vmatpush2.msra.mxu0 0.0
    %7900 = vmatprep.subr.mxu0 0.0
    %7901 = vmatpush2.msra.mxu0 0.0
    %7902 = vmatprep.subr.mxu0 0.0
    %7903 = vmatpush2.msra.mxu0 0.0
    %7904 = vmatprep.mubr.f32.mxu0 0.0
    %v7905 = vand.u32 %v143, 4294901760
    %7906 = vmatmul.mubr.f32.gmra.mxu0 %v7905
    %v7907 = vpop.f32.mrf.mxu0
    %v7908 = vadd.f32 %v7821, %v7907
    %v7909 = vpop.f32.mrf.mxu0
    %7910 = vdwg.mxu0
    %v7911 = vmul.f32 %v7908, 0.14285715
    %v7912 = vrsqrt.pop %v7911
    %v7913 = vmul.f32 %v7911, %v7912
    %vm7914 = vcmp.eq.f32.partialorder %v7911, inf
    %v7915 = vsel %vm7914, %v7911, %v7913
    %vm7916 = vcmp.eq.f32.partialorder %v7911, 0.0
    %v7917 = vand.u32 %v7911, 2147483648
    %v7918 = vsel %vm7916, %v7917, %v7915
    %v7919 = vadd.f32 %v7233, 1e-06
    %v7920 = vrcp.pop %v7919
    %v7921 = vmul.f32 %v7918, %v7920
    %v7922 = vmul.f32 %v7921, %v143
    %vm7923 = vcmask 1040384
    %v7924 = vsel %vm7923, %v7922, 0.0
    %7925 = vadd.xlane.f32.xlu0 %v7924
    %v7926 = vpop.xlane.xlu0 %7925
    %v7927 = vrot.slane %v7926, 4
    %v7928 = vadd.f32 %v7926, %v7927
    %v7929 = vrot.slane %v7928, 2
    %v7930 = vadd.f32 %v7928, %v7929
    %v7931 = vrot.slane %v7930, 1
    %v7932 = vadd.f32 %v7930, %v7931
    %s7933 = vtos %v7932
    %v7934 = vstv %s7933
    %v7935 = vadd.f32 %v7934, 0.0
    %v7936 = vpack.c.bf16 %v6577, %v6576
    %v7937 = vpack.c.bf16 %v6579, %v6578
    %v7938 = vpack.c.bf16 %v6581, %v6580
    %v7939 = vpack.c.bf16 %v6583, %v6582
    %v7940 = vpack.c.bf16 %v6585, %v6584
    %v7941 = vpack.c.bf16 %v6587, %v6586
    %v7942 = vpack.c.bf16 %v6589, %v6588
    %v7943 = vpack.c.bf16 %v6591, %v6590
    %v7944 = vunpack.c.l.bf16 %v7936
    %v7945 = vunpack.c.h.bf16 %v7936
    %v7946 = vunpack.c.l.bf16 %v7937
    %v7947 = vunpack.c.h.bf16 %v7937
    %v7948 = vunpack.c.l.bf16 %v7938
    %v7949 = vunpack.c.h.bf16 %v7938
    %v7950 = vunpack.c.l.bf16 %v7939
    %v7951 = vunpack.c.h.bf16 %v7939
    %v7952 = vunpack.c.l.bf16 %v7940
    %v7953 = vunpack.c.h.bf16 %v7940
    %v7954 = vunpack.c.l.bf16 %v7941
    %v7955 = vunpack.c.h.bf16 %v7941
    %v7956 = vunpack.c.l.bf16 %v7942
    %v7957 = vunpack.c.h.bf16 %v7942
    %v7958 = vunpack.c.l.bf16 %v7943
    %v7959 = vunpack.c.h.bf16 %v7943
    %v7960 = vsub.f32 %v6576, %v7944
    %v7961 = vsub.f32 %v6577, %v7945
    %v7962 = vsub.f32 %v6578, %v7946
    %v7963 = vsub.f32 %v6579, %v7947
    %v7964 = vsub.f32 %v6580, %v7948
    %v7965 = vsub.f32 %v6581, %v7949
    %v7966 = vsub.f32 %v6582, %v7950
    %v7967 = vsub.f32 %v6583, %v7951
    %v7968 = vsub.f32 %v6584, %v7952
    %v7969 = vsub.f32 %v6585, %v7953
    %v7970 = vsub.f32 %v6586, %v7954
    %v7971 = vsub.f32 %v6587, %v7955
    %v7972 = vsub.f32 %v6588, %v7956
    %v7973 = vsub.f32 %v6589, %v7957
    %v7974 = vsub.f32 %v6590, %v7958
    %v7975 = vsub.f32 %v6591, %v7959
    %v7976 = vpack.c.bf16 %v7961, %v7960
    %v7977 = vpack.c.bf16 %v7963, %v7962
    %v7978 = vpack.c.bf16 %v7965, %v7964
    %v7979 = vpack.c.bf16 %v7967, %v7966
    %v7980 = vpack.c.bf16 %v7969, %v7968
    %v7981 = vpack.c.bf16 %v7971, %v7970
    %v7982 = vpack.c.bf16 %v7973, %v7972
    %v7983 = vpack.c.bf16 %v7975, %v7974
    %7984 = vmatprep.subr.bf16.mxu0 0
    %7985 = vmatpush1.bf16.msra.mxu0 %v7943
    %7986 = vmatprep.subr.bf16.mxu0 0
    %7987 = vmatpush1.bf16.msra.mxu0 %v7942
    %7988 = vmatprep.subr.bf16.mxu0 0
    %7989 = vmatpush1.bf16.msra.mxu0 %v7941
    %7990 = vmatprep.subr.bf16.mxu0 0
    %7991 = vmatpush1.bf16.msra.mxu0 %v7940
    %7992 = vmatprep.subr.bf16.mxu0 0
    %7993 = vmatpush1.bf16.msra.mxu0 %v7939
    %7994 = vmatprep.subr.bf16.mxu0 0
    %7995 = vmatpush1.bf16.msra.mxu0 %v7938
    %7996 = vmatprep.subr.bf16.mxu0 0
    %7997 = vmatpush1.bf16.msra.mxu0 %v7937
    %7998 = vmatprep.subr.bf16.mxu0 0
    %7999 = vmatpush1.bf16.msra.mxu0 %v7936
    %8000 = vmatprep.subr.bf16.mxu0 0
    %8001 = vmatpush2.bf16.msra.mxu0 0
    %8002 = vmatprep.subr.bf16.mxu0 0
    %8003 = vmatpush2.bf16.msra.mxu0 0
    %8004 = vmatprep.subr.bf16.mxu0 0
    %8005 = vmatpush2.bf16.msra.mxu0 0
    %8006 = vmatprep.subr.bf16.mxu0 0
    %8007 = vmatpush2.bf16.msra.mxu0 0
    %8008 = vmatprep.subr.bf16.mxu0 0
    %8009 = vmatpush2.bf16.msra.mxu0 0
    %8010 = vmatprep.subr.bf16.mxu0 0
    %8011 = vmatpush2.bf16.msra.mxu0 0
    %8012 = vmatprep.subr.bf16.mxu0 0
    %8013 = vmatpush2.bf16.msra.mxu0 0
    %8014 = vmatprep.subr.bf16.mxu0 0
    %8015 = vmatpush2.bf16.msra.mxu0 0
    %8016 = vmatprep.mubr.bf16.mxu0 0
    %8017 = vmatmul.mubr.bf16.gmra.mxu0 %v7976
    %v8018 = vpop.f32.mrf.mxu0
    %v8019 = vadd.f32 0.0, %v8018
    %v8020 = vpop.f32.mrf.mxu0
    %v8021 = vpop.f32.mrf.mxu0
    %v8022 = vadd.f32 0.0, %v8021
    %v8023 = vpop.f32.mrf.mxu0
    %8024 = vmatprep.mubr.bf16.mxu0 0
    %8025 = vmatmul.mubr.bf16.gmra.mxu0 %v7977
    %v8026 = vpop.f32.mrf.mxu0
    %v8027 = vadd.f32 0.0, %v8026
    %v8028 = vpop.f32.mrf.mxu0
    %v8029 = vpop.f32.mrf.mxu0
    %v8030 = vadd.f32 0.0, %v8029
    %v8031 = vpop.f32.mrf.mxu0
    %8032 = vmatprep.mubr.bf16.mxu0 0
    %8033 = vmatmul.mubr.bf16.gmra.mxu0 %v7978
    %v8034 = vpop.f32.mrf.mxu0
    %v8035 = vadd.f32 0.0, %v8034
    %v8036 = vpop.f32.mrf.mxu0
    %v8037 = vpop.f32.mrf.mxu0
    %v8038 = vadd.f32 0.0, %v8037
    %v8039 = vpop.f32.mrf.mxu0
    %8040 = vmatprep.mubr.bf16.mxu0 0
    %8041 = vmatmul.mubr.bf16.gmra.mxu0 %v7979
    %v8042 = vpop.f32.mrf.mxu0
    %v8043 = vadd.f32 0.0, %v8042
    %v8044 = vpop.f32.mrf.mxu0
    %v8045 = vpop.f32.mrf.mxu0
    %v8046 = vadd.f32 0.0, %v8045
    %v8047 = vpop.f32.mrf.mxu0
    %8048 = vmatprep.mubr.bf16.mxu0 0
    %8049 = vmatmul.mubr.bf16.gmra.mxu0 %v7980
    %v8050 = vpop.f32.mrf.mxu0
    %v8051 = vadd.f32 0.0, %v8050
    %v8052 = vpop.f32.mrf.mxu0
    %v8053 = vpop.f32.mrf.mxu0
    %v8054 = vadd.f32 0.0, %v8053
    %v8055 = vpop.f32.mrf.mxu0
    %8056 = vmatprep.mubr.bf16.mxu0 0
    %8057 = vmatmul.mubr.bf16.gmra.mxu0 %v7981
    %v8058 = vpop.f32.mrf.mxu0
    %v8059 = vadd.f32 0.0, %v8058
    %v8060 = vpop.f32.mrf.mxu0
    %v8061 = vpop.f32.mrf.mxu0
    %v8062 = vadd.f32 0.0, %v8061
    %v8063 = vpop.f32.mrf.mxu0
    %8064 = vmatprep.mubr.bf16.mxu0 0
    %8065 = vmatmul.mubr.bf16.gmra.mxu0 %v7982
    %v8066 = vpop.f32.mrf.mxu0
    %v8067 = vadd.f32 0.0, %v8066
    %v8068 = vpop.f32.mrf.mxu0
    %v8069 = vpop.f32.mrf.mxu0
    %v8070 = vadd.f32 0.0, %v8069
    %v8071 = vpop.f32.mrf.mxu0
    %8072 = vmatprep.mubr.bf16.mxu0 0
    %8073 = vmatmul.mubr.bf16.gmra.mxu0 %v7983
    %v8074 = vpop.f32.mrf.mxu0
    %v8075 = vadd.f32 0.0, %v8074
    %v8076 = vpop.f32.mrf.mxu0
    %v8077 = vpop.f32.mrf.mxu0
    %v8078 = vadd.f32 0.0, %v8077
    %v8079 = vpop.f32.mrf.mxu0
    %8080 = vdwg.mxu0
    %8081 = vmatprep.subr.bf16.mxu0 0
    %8082 = vmatpush1.bf16.msra.mxu0 %v7943
    %8083 = vmatprep.subr.bf16.mxu0 0
    %8084 = vmatpush1.bf16.msra.mxu0 %v7942
    %8085 = vmatprep.subr.bf16.mxu0 0
    %8086 = vmatpush1.bf16.msra.mxu0 %v7941
    %8087 = vmatprep.subr.bf16.mxu0 0
    %8088 = vmatpush1.bf16.msra.mxu0 %v7940
    %8089 = vmatprep.subr.bf16.mxu0 0
    %8090 = vmatpush1.bf16.msra.mxu0 %v7939
    %8091 = vmatprep.subr.bf16.mxu0 0
    %8092 = vmatpush1.bf16.msra.mxu0 %v7938
    %8093 = vmatprep.subr.bf16.mxu0 0
    %8094 = vmatpush1.bf16.msra.mxu0 %v7937
    %8095 = vmatprep.subr.bf16.mxu0 0
    %8096 = vmatpush1.bf16.msra.mxu0 %v7936
    %8097 = vmatprep.subr.bf16.mxu0 0
    %8098 = vmatpush2.bf16.msra.mxu0 0
    %8099 = vmatprep.subr.bf16.mxu0 0
    %8100 = vmatpush2.bf16.msra.mxu0 0
    %8101 = vmatprep.subr.bf16.mxu0 0
    %8102 = vmatpush2.bf16.msra.mxu0 0
    %8103 = vmatprep.subr.bf16.mxu0 0
    %8104 = vmatpush2.bf16.msra.mxu0 0
    %8105 = vmatprep.subr.bf16.mxu0 0
    %8106 = vmatpush2.bf16.msra.mxu0 0
    %8107 = vmatprep.subr.bf16.mxu0 0
    %8108 = vmatpush2.bf16.msra.mxu0 0
    %8109 = vmatprep.subr.bf16.mxu0 0
    %8110 = vmatpush2.bf16.msra.mxu0 0
    %8111 = vmatprep.subr.bf16.mxu0 0
    %8112 = vmatpush2.bf16.msra.mxu0 0
    %8113 = vmatprep.mubr.bf16.mxu0 0
    %8114 = vmatmul.mubr.bf16.gmra.mxu0 %v7936
    %v8115 = vpop.f32.mrf.mxu0
    %v8116 = vadd.f32 %v8019, %v8115
    %v8117 = vpop.f32.mrf.mxu0
    %v8118 = vpop.f32.mrf.mxu0
    %v8119 = vadd.f32 %v8022, %v8118
    %v8120 = vpop.f32.mrf.mxu0
    %8121 = vmatprep.mubr.bf16.mxu0 0
    %8122 = vmatmul.mubr.bf16.gmra.mxu0 %v7937
    %v8123 = vpop.f32.mrf.mxu0
    %v8124 = vadd.f32 %v8027, %v8123
    %v8125 = vpop.f32.mrf.mxu0
    %v8126 = vpop.f32.mrf.mxu0
    %v8127 = vadd.f32 %v8030, %v8126
    %v8128 = vpop.f32.mrf.mxu0
    %8129 = vmatprep.mubr.bf16.mxu0 0
    %8130 = vmatmul.mubr.bf16.gmra.mxu0 %v7938
    %v8131 = vpop.f32.mrf.mxu0
    %v8132 = vadd.f32 %v8035, %v8131
    %v8133 = vpop.f32.mrf.mxu0
    %v8134 = vpop.f32.mrf.mxu0
    %v8135 = vadd.f32 %v8038, %v8134
    %v8136 = vpop.f32.mrf.mxu0
    %8137 = vmatprep.mubr.bf16.mxu0 0
    %8138 = vmatmul.mubr.bf16.gmra.mxu0 %v7939
    %v8139 = vpop.f32.mrf.mxu0
    %v8140 = vadd.f32 %v8043, %v8139
    %v8141 = vpop.f32.mrf.mxu0
    %v8142 = vpop.f32.mrf.mxu0
    %v8143 = vadd.f32 %v8046, %v8142
    %v8144 = vpop.f32.mrf.mxu0
    %8145 = vmatprep.mubr.bf16.mxu0 0
    %8146 = vmatmul.mubr.bf16.gmra.mxu0 %v7940
    %v8147 = vpop.f32.mrf.mxu0
    %v8148 = vadd.f32 %v8051, %v8147
    %v8149 = vpop.f32.mrf.mxu0
    %v8150 = vpop.f32.mrf.mxu0
    %v8151 = vadd.f32 %v8054, %v8150
    %v8152 = vpop.f32.mrf.mxu0
    %8153 = vmatprep.mubr.bf16.mxu0 0
    %8154 = vmatmul.mubr.bf16.gmra.mxu0 %v7941
    %v8155 = vpop.f32.mrf.mxu0
    %v8156 = vadd.f32 %v8059, %v8155
    %v8157 = vpop.f32.mrf.mxu0
    %v8158 = vpop.f32.mrf.mxu0
    %v8159 = vadd.f32 %v8062, %v8158
    %v8160 = vpop.f32.mrf.mxu0
    %8161 = vmatprep.mubr.bf16.mxu0 0
    %8162 = vmatmul.mubr.bf16.gmra.mxu0 %v7942
    %v8163 = vpop.f32.mrf.mxu0
    %v8164 = vadd.f32 %v8067, %v8163
    %v8165 = vpop.f32.mrf.mxu0
    %v8166 = vpop.f32.mrf.mxu0
    %v8167 = vadd.f32 %v8070, %v8166
    %v8168 = vpop.f32.mrf.mxu0
    %8169 = vmatprep.mubr.bf16.mxu0 0
    %8170 = vmatmul.mubr.bf16.gmra.mxu0 %v7943
    %v8171 = vpop.f32.mrf.mxu0
    %v8172 = vadd.f32 %v8075, %v8171
    %v8173 = vpop.f32.mrf.mxu0
    %v8174 = vpop.f32.mrf.mxu0
    %v8175 = vadd.f32 %v8078, %v8174
    %v8176 = vpop.f32.mrf.mxu0
    %8177 = vdwg.mxu0
    %8178 = vmatprep.subr.bf16.mxu0 0
    %8179 = vmatpush1.bf16.msra.mxu0 %v7983
    %8180 = vmatprep.subr.bf16.mxu0 0
    %8181 = vmatpush1.bf16.msra.mxu0 %v7982
    %8182 = vmatprep.subr.bf16.mxu0 0
    %8183 = vmatpush1.bf16.msra.mxu0 %v7981
    %8184 = vmatprep.subr.bf16.mxu0 0
    %8185 = vmatpush1.bf16.msra.mxu0 %v7980
    %8186 = vmatprep.subr.bf16.mxu0 0
    %8187 = vmatpush1.bf16.msra.mxu0 %v7979
    %8188 = vmatprep.subr.bf16.mxu0 0
    %8189 = vmatpush1.bf16.msra.mxu0 %v7978
    %8190 = vmatprep.subr.bf16.mxu0 0
    %8191 = vmatpush1.bf16.msra.mxu0 %v7977
    %8192 = vmatprep.subr.bf16.mxu0 0
    %8193 = vmatpush1.bf16.msra.mxu0 %v7976
    %8194 = vmatprep.subr.bf16.mxu0 0
    %8195 = vmatpush2.bf16.msra.mxu0 0
    %8196 = vmatprep.subr.bf16.mxu0 0
    %8197 = vmatpush2.bf16.msra.mxu0 0
    %8198 = vmatprep.subr.bf16.mxu0 0
    %8199 = vmatpush2.bf16.msra.mxu0 0
    %8200 = vmatprep.subr.bf16.mxu0 0
    %8201 = vmatpush2.bf16.msra.mxu0 0
    %8202 = vmatprep.subr.bf16.mxu0 0
    %8203 = vmatpush2.bf16.msra.mxu0 0
    %8204 = vmatprep.subr.bf16.mxu0 0
    %8205 = vmatpush2.bf16.msra.mxu0 0
    %8206 = vmatprep.subr.bf16.mxu0 0
    %8207 = vmatpush2.bf16.msra.mxu0 0
    %8208 = vmatprep.subr.bf16.mxu0 0
    %8209 = vmatpush2.bf16.msra.mxu0 0
    %8210 = vmatprep.mubr.bf16.mxu0 0
    %8211 = vmatmul.mubr.bf16.gmra.mxu0 %v7936
    %v8212 = vpop.f32.mrf.mxu0
    %v8213 = vadd.f32 0.0, %v8212
    %v8214 = vpop.f32.mrf.mxu0
    %v8215 = vpop.f32.mrf.mxu0
    %v8216 = vadd.f32 0.0, %v8215
    %v8217 = vpop.f32.mrf.mxu0
    %8218 = vmatprep.mubr.bf16.mxu0 0
    %8219 = vmatmul.mubr.bf16.gmra.mxu0 %v7937
    %v8220 = vpop.f32.mrf.mxu0
    %v8221 = vadd.f32 0.0, %v8220
    %v8222 = vpop.f32.mrf.mxu0
    %v8223 = vpop.f32.mrf.mxu0
    %v8224 = vadd.f32 0.0, %v8223
    %v8225 = vpop.f32.mrf.mxu0
    %8226 = vmatprep.mubr.bf16.mxu0 0
    %8227 = vmatmul.mubr.bf16.gmra.mxu0 %v7938
    %v8228 = vpop.f32.mrf.mxu0
    %v8229 = vadd.f32 0.0, %v8228
    %v8230 = vpop.f32.mrf.mxu0
    %v8231 = vpop.f32.mrf.mxu0
    %v8232 = vadd.f32 0.0, %v8231
    %v8233 = vpop.f32.mrf.mxu0
    %8234 = vmatprep.mubr.bf16.mxu0 0
    %8235 = vmatmul.mubr.bf16.gmra.mxu0 %v7939
    %v8236 = vpop.f32.mrf.mxu0
    %v8237 = vadd.f32 0.0, %v8236
    %v8238 = vpop.f32.mrf.mxu0
    %v8239 = vpop.f32.mrf.mxu0
    %v8240 = vadd.f32 0.0, %v8239
    %v8241 = vpop.f32.mrf.mxu0
    %8242 = vmatprep.mubr.bf16.mxu0 0
    %8243 = vmatmul.mubr.bf16.gmra.mxu0 %v7940
    %v8244 = vpop.f32.mrf.mxu0
    %v8245 = vadd.f32 0.0, %v8244
    %v8246 = vpop.f32.mrf.mxu0
    %v8247 = vpop.f32.mrf.mxu0
    %v8248 = vadd.f32 0.0, %v8247
    %v8249 = vpop.f32.mrf.mxu0
    %8250 = vmatprep.mubr.bf16.mxu0 0
    %8251 = vmatmul.mubr.bf16.gmra.mxu0 %v7941
    %v8252 = vpop.f32.mrf.mxu0
    %v8253 = vadd.f32 0.0, %v8252
    %v8254 = vpop.f32.mrf.mxu0
    %v8255 = vpop.f32.mrf.mxu0
    %v8256 = vadd.f32 0.0, %v8255
    %v8257 = vpop.f32.mrf.mxu0
    %8258 = vmatprep.mubr.bf16.mxu0 0
    %8259 = vmatmul.mubr.bf16.gmra.mxu0 %v7942
    %v8260 = vpop.f32.mrf.mxu0
    %v8261 = vadd.f32 0.0, %v8260
    %v8262 = vpop.f32.mrf.mxu0
    %v8263 = vpop.f32.mrf.mxu0
    %v8264 = vadd.f32 0.0, %v8263
    %v8265 = vpop.f32.mrf.mxu0
    %8266 = vmatprep.mubr.bf16.mxu0 0
    %8267 = vmatmul.mubr.bf16.gmra.mxu0 %v7943
    %v8268 = vpop.f32.mrf.mxu0
    %v8269 = vadd.f32 0.0, %v8268
    %v8270 = vpop.f32.mrf.mxu0
    %v8271 = vpop.f32.mrf.mxu0
    %v8272 = vadd.f32 0.0, %v8271
    %v8273 = vpop.f32.mrf.mxu0
    %8274 = vdwg.mxu0
    %v8275 = vadd.f32 %v8116, %v8213
    %v8276 = vadd.f32 %v8119, %v8216
    %v8277 = vadd.f32 %v8124, %v8221
    %v8278 = vadd.f32 %v8127, %v8224
    %v8279 = vadd.f32 %v8132, %v8229
    %v8280 = vadd.f32 %v8135, %v8232
    %v8281 = vadd.f32 %v8140, %v8237
    %v8282 = vadd.f32 %v8143, %v8240
    %v8283 = vadd.f32 %v8148, %v8245
    %v8284 = vadd.f32 %v8151, %v8248
    %v8285 = vadd.f32 %v8156, %v8253
    %v8286 = vadd.f32 %v8159, %v8256
    %v8287 = vadd.f32 %v8164, %v8261
    %v8288 = vadd.f32 %v8167, %v8264
    %v8289 = vadd.f32 %v8172, %v8269
    %v8290 = vadd.f32 %v8175, %v8272
    %8291 = vmatprep.subr.mxu0 0.0
    %v8292 = vand.u32 %v8290, 4294901760
    %8293 = vmatpush1.msra.mxu0 %v8292
    %8294 = vmatprep.subr.mxu0 0.0
    %v8295 = vand.u32 %v8289, 4294901760
    %8296 = vmatpush1.msra.mxu0 %v8295
    %8297 = vmatprep.subr.mxu0 0.0
    %v8298 = vand.u32 %v8288, 4294901760
    %8299 = vmatpush1.msra.mxu0 %v8298
    %8300 = vmatprep.subr.mxu0 0.0
    %v8301 = vand.u32 %v8287, 4294901760
    %8302 = vmatpush1.msra.mxu0 %v8301
    %8303 = vmatprep.subr.mxu0 0.0
    %v8304 = vand.u32 %v8286, 4294901760
    %8305 = vmatpush1.msra.mxu0 %v8304
    %8306 = vmatprep.subr.mxu0 0.0
    %v8307 = vand.u32 %v8285, 4294901760
    %8308 = vmatpush1.msra.mxu0 %v8307
    %8309 = vmatprep.subr.mxu0 0.0
    %v8310 = vand.u32 %v8284, 4294901760
    %8311 = vmatpush1.msra.mxu0 %v8310
    %8312 = vmatprep.subr.mxu0 0.0
    %v8313 = vand.u32 %v8283, 4294901760
    %8314 = vmatpush1.msra.mxu0 %v8313
    %8315 = vmatprep.subr.mxu0 0.0
    %v8316 = vand.u32 %v8282, 4294901760
    %8317 = vmatpush1.msra.mxu0 %v8316
    %8318 = vmatprep.subr.mxu0 0.0
    %v8319 = vand.u32 %v8281, 4294901760
    %8320 = vmatpush1.msra.mxu0 %v8319
    %8321 = vmatprep.subr.mxu0 0.0
    %v8322 = vand.u32 %v8280, 4294901760
    %8323 = vmatpush1.msra.mxu0 %v8322
    %8324 = vmatprep.subr.mxu0 0.0
    %v8325 = vand.u32 %v8279, 4294901760
    %8326 = vmatpush1.msra.mxu0 %v8325
    %8327 = vmatprep.subr.mxu0 0.0
    %v8328 = vand.u32 %v8278, 4294901760
    %8329 = vmatpush1.msra.mxu0 %v8328
    %8330 = vmatprep.subr.mxu0 0.0
    %v8331 = vand.u32 %v8277, 4294901760
    %8332 = vmatpush1.msra.mxu0 %v8331
    %8333 = vmatprep.subr.mxu0 0.0
    %v8334 = vand.u32 %v8276, 4294901760
    %8335 = vmatpush1.msra.mxu0 %v8334
    %8336 = vmatprep.subr.mxu0 0.0
    %v8337 = vand.u32 %v8275, 4294901760
    %8338 = vmatpush1.msra.mxu0 %v8337
    %8339 = vmatprep.subr.mxu0 0.0
    %8340 = vmatpush2.msra.mxu0 0.0
    %8341 = vmatprep.subr.mxu0 0.0
    %8342 = vmatpush2.msra.mxu0 0.0
    %8343 = vmatprep.subr.mxu0 0.0
    %8344 = vmatpush2.msra.mxu0 0.0
    %8345 = vmatprep.subr.mxu0 0.0
    %8346 = vmatpush2.msra.mxu0 0.0
    %8347 = vmatprep.subr.mxu0 0.0
    %8348 = vmatpush2.msra.mxu0 0.0
    %8349 = vmatprep.subr.mxu0 0.0
    %8350 = vmatpush2.msra.mxu0 0.0
    %8351 = vmatprep.subr.mxu0 0.0
    %8352 = vmatpush2.msra.mxu0 0.0
    %8353 = vmatprep.subr.mxu0 0.0
    %8354 = vmatpush2.msra.mxu0 0.0
    %8355 = vmatprep.subr.mxu0 0.0
    %8356 = vmatpush2.msra.mxu0 0.0
    %8357 = vmatprep.subr.mxu0 0.0
    %8358 = vmatpush2.msra.mxu0 0.0
    %8359 = vmatprep.subr.mxu0 0.0
    %8360 = vmatpush2.msra.mxu0 0.0
    %8361 = vmatprep.subr.mxu0 0.0
    %8362 = vmatpush2.msra.mxu0 0.0
    %8363 = vmatprep.subr.mxu0 0.0
    %8364 = vmatpush2.msra.mxu0 0.0
    %8365 = vmatprep.subr.mxu0 0.0
    %8366 = vmatpush2.msra.mxu0 0.0
    %8367 = vmatprep.subr.mxu0 0.0
    %8368 = vmatpush2.msra.mxu0 0.0
    %8369 = vmatprep.subr.mxu0 0.0
    %8370 = vmatpush2.msra.mxu0 0.0
    %8371 = vmatprep.mubr.f32.mxu0 0.0
    %v8372 = vand.u32 %v143, 4294901760
    %v8373 = vsub.f32 %v143, %v8372
    %v8374 = vand.u32 %v8373, 4294901760
    %v8375 = vsub.f32 %v8373, %v8374
    %v8376 = vand.u32 %v8375, 4294901760
    %8377 = vmatmul.mubr.f32.gmra.mxu0 %v8376
    %v8378 = vpop.f32.mrf.mxu0
    %v8379 = vadd.f32 0.0, %v8378
    %v8380 = vpop.f32.mrf.mxu0
    %8381 = vdwg.mxu0
    %8382 = vmatprep.subr.mxu0 0.0
    %v8383 = vand.u32 %v8290, 4294901760
    %v8384 = vsub.f32 %v8290, %v8383
    %v8385 = vand.u32 %v8384, 4294901760
    %v8386 = vsub.f32 %v8384, %v8385
    %v8387 = vand.u32 %v8386, 4294901760
    %8388 = vmatpush1.msra.mxu0 %v8387
    %8389 = vmatprep.subr.mxu0 0.0
    %v8390 = vand.u32 %v8289, 4294901760
    %v8391 = vsub.f32 %v8289, %v8390
    %v8392 = vand.u32 %v8391, 4294901760
    %v8393 = vsub.f32 %v8391, %v8392
    %v8394 = vand.u32 %v8393, 4294901760
    %8395 = vmatpush1.msra.mxu0 %v8394
    %8396 = vmatprep.subr.mxu0 0.0
    %v8397 = vand.u32 %v8288, 4294901760
    %v8398 = vsub.f32 %v8288, %v8397
    %v8399 = vand.u32 %v8398, 4294901760
    %v8400 = vsub.f32 %v8398, %v8399
    %v8401 = vand.u32 %v8400, 4294901760
    %8402 = vmatpush1.msra.mxu0 %v8401
    %8403 = vmatprep.subr.mxu0 0.0
    %v8404 = vand.u32 %v8287, 4294901760
    %v8405 = vsub.f32 %v8287, %v8404
    %v8406 = vand.u32 %v8405, 4294901760
    %v8407 = vsub.f32 %v8405, %v8406
    %v8408 = vand.u32 %v8407, 4294901760
    %8409 = vmatpush1.msra.mxu0 %v8408
    %8410 = vmatprep.subr.mxu0 0.0
    %v8411 = vand.u32 %v8286, 4294901760
    %v8412 = vsub.f32 %v8286, %v8411
    %v8413 = vand.u32 %v8412, 4294901760
    %v8414 = vsub.f32 %v8412, %v8413
    %v8415 = vand.u32 %v8414, 4294901760
    %8416 = vmatpush1.msra.mxu0 %v8415
    %8417 = vmatprep.subr.mxu0 0.0
    %v8418 = vand.u32 %v8285, 4294901760
    %v8419 = vsub.f32 %v8285, %v8418
    %v8420 = vand.u32 %v8419, 4294901760
    %v8421 = vsub.f32 %v8419, %v8420
    %v8422 = vand.u32 %v8421, 4294901760
    %8423 = vmatpush1.msra.mxu0 %v8422
    %8424 = vmatprep.subr.mxu0 0.0
    %v8425 = vand.u32 %v8284, 4294901760
    %v8426 = vsub.f32 %v8284, %v8425
    %v8427 = vand.u32 %v8426, 4294901760
    %v8428 = vsub.f32 %v8426, %v8427
    %v8429 = vand.u32 %v8428, 4294901760
    %8430 = vmatpush1.msra.mxu0 %v8429
    %8431 = vmatprep.subr.mxu0 0.0
    %v8432 = vand.u32 %v8283, 4294901760
    %v8433 = vsub.f32 %v8283, %v8432
    %v8434 = vand.u32 %v8433, 4294901760
    %v8435 = vsub.f32 %v8433, %v8434
    %v8436 = vand.u32 %v8435, 4294901760
    %8437 = vmatpush1.msra.mxu0 %v8436
    %8438 = vmatprep.subr.mxu0 0.0
    %v8439 = vand.u32 %v8282, 4294901760
    %v8440 = vsub.f32 %v8282, %v8439
    %v8441 = vand.u32 %v8440, 4294901760
    %v8442 = vsub.f32 %v8440, %v8441
    %v8443 = vand.u32 %v8442, 4294901760
    %8444 = vmatpush1.msra.mxu0 %v8443
    %8445 = vmatprep.subr.mxu0 0.0
    %v8446 = vand.u32 %v8281, 4294901760
    %v8447 = vsub.f32 %v8281, %v8446
    %v8448 = vand.u32 %v8447, 4294901760
    %v8449 = vsub.f32 %v8447, %v8448
    %v8450 = vand.u32 %v8449, 4294901760
    %8451 = vmatpush1.msra.mxu0 %v8450
    %8452 = vmatprep.subr.mxu0 0.0
    %v8453 = vand.u32 %v8280, 4294901760
    %v8454 = vsub.f32 %v8280, %v8453
    %v8455 = vand.u32 %v8454, 4294901760
    %v8456 = vsub.f32 %v8454, %v8455
    %v8457 = vand.u32 %v8456, 4294901760
    %8458 = vmatpush1.msra.mxu0 %v8457
    %8459 = vmatprep.subr.mxu0 0.0
    %v8460 = vand.u32 %v8279, 4294901760
    %v8461 = vsub.f32 %v8279, %v8460
    %v8462 = vand.u32 %v8461, 4294901760
    %v8463 = vsub.f32 %v8461, %v8462
    %v8464 = vand.u32 %v8463, 4294901760
    %8465 = vmatpush1.msra.mxu0 %v8464
    %8466 = vmatprep.subr.mxu0 0.0
    %v8467 = vand.u32 %v8278, 4294901760
    %v8468 = vsub.f32 %v8278, %v8467
    %v8469 = vand.u32 %v8468, 4294901760
    %v8470 = vsub.f32 %v8468, %v8469
    %v8471 = vand.u32 %v8470, 4294901760
    %8472 = vmatpush1.msra.mxu0 %v8471
    %8473 = vmatprep.subr.mxu0 0.0
    %v8474 = vand.u32 %v8277, 4294901760
    %v8475 = vsub.f32 %v8277, %v8474
    %v8476 = vand.u32 %v8475, 4294901760
    %v8477 = vsub.f32 %v8475, %v8476
    %v8478 = vand.u32 %v8477, 4294901760
    %8479 = vmatpush1.msra.mxu0 %v8478
    %8480 = vmatprep.subr.mxu0 0.0
    %v8481 = vand.u32 %v8276, 4294901760
    %v8482 = vsub.f32 %v8276, %v8481
    %v8483 = vand.u32 %v8482, 4294901760
    %v8484 = vsub.f32 %v8482, %v8483
    %v8485 = vand.u32 %v8484, 4294901760
    %8486 = vmatpush1.msra.mxu0 %v8485
    %8487 = vmatprep.subr.mxu0 0.0
    %v8488 = vand.u32 %v8275, 4294901760
    %v8489 = vsub.f32 %v8275, %v8488
    %v8490 = vand.u32 %v8489, 4294901760
    %v8491 = vsub.f32 %v8489, %v8490
    %v8492 = vand.u32 %v8491, 4294901760
    %8493 = vmatpush1.msra.mxu0 %v8492
    %8494 = vmatprep.subr.mxu0 0.0
    %8495 = vmatpush2.msra.mxu0 0.0
    %8496 = vmatprep.subr.mxu0 0.0
    %8497 = vmatpush2.msra.mxu0 0.0
    %8498 = vmatprep.subr.mxu0 0.0
    %8499 = vmatpush2.msra.mxu0 0.0
    %8500 = vmatprep.subr.mxu0 0.0
    %8501 = vmatpush2.msra.mxu0 0.0
    %8502 = vmatprep.subr.mxu0 0.0
    %8503 = vmatpush2.msra.mxu0 0.0
    %8504 = vmatprep.subr.mxu0 0.0
    %8505 = vmatpush2.msra.mxu0 0.0
    %8506 = vmatprep.subr.mxu0 0.0
    %8507 = vmatpush2.msra.mxu0 0.0
    %8508 = vmatprep.subr.mxu0 0.0
    %8509 = vmatpush2.msra.mxu0 0.0
    %8510 = vmatprep.subr.mxu0 0.0
    %8511 = vmatpush2.msra.mxu0 0.0
    %8512 = vmatprep.subr.mxu0 0.0
    %8513 = vmatpush2.msra.mxu0 0.0
    %8514 = vmatprep.subr.mxu0 0.0
    %8515 = vmatpush2.msra.mxu0 0.0
    %8516 = vmatprep.subr.mxu0 0.0
    %8517 = vmatpush2.msra.mxu0 0.0
    %8518 = vmatprep.subr.mxu0 0.0
    %8519 = vmatpush2.msra.mxu0 0.0
    %8520 = vmatprep.subr.mxu0 0.0
    %8521 = vmatpush2.msra.mxu0 0.0
    %8522 = vmatprep.subr.mxu0 0.0
    %8523 = vmatpush2.msra.mxu0 0.0
    %8524 = vmatprep.subr.mxu0 0.0
    %8525 = vmatpush2.msra.mxu0 0.0
    %8526 = vmatprep.mubr.f32.mxu0 0.0
    %v8527 = vand.u32 %v143, 4294901760
    %8528 = vmatmul.mubr.f32.gmra.mxu0 %v8527
    %v8529 = vpop.f32.mrf.mxu0
    %v8530 = vadd.f32 %v8379, %v8529
    %v8531 = vpop.f32.mrf.mxu0
    %8532 = vdwg.mxu0
    %8533 = vmatprep.subr.mxu0 0.0
    %v8534 = vand.u32 %v8290, 4294901760
    %v8535 = vsub.f32 %v8290, %v8534
    %8536 = vmatpush1.msra.mxu0 %v8535
    %8537 = vmatprep.subr.mxu0 0.0
    %v8538 = vand.u32 %v8289, 4294901760
    %v8539 = vsub.f32 %v8289, %v8538
    %8540 = vmatpush1.msra.mxu0 %v8539
    %8541 = vmatprep.subr.mxu0 0.0
    %v8542 = vand.u32 %v8288, 4294901760
    %v8543 = vsub.f32 %v8288, %v8542
    %8544 = vmatpush1.msra.mxu0 %v8543
    %8545 = vmatprep.subr.mxu0 0.0
    %v8546 = vand.u32 %v8287, 4294901760
    %v8547 = vsub.f32 %v8287, %v8546
    %8548 = vmatpush1.msra.mxu0 %v8547
    %8549 = vmatprep.subr.mxu0 0.0
    %v8550 = vand.u32 %v8286, 4294901760
    %v8551 = vsub.f32 %v8286, %v8550
    %8552 = vmatpush1.msra.mxu0 %v8551
    %8553 = vmatprep.subr.mxu0 0.0
    %v8554 = vand.u32 %v8285, 4294901760
    %v8555 = vsub.f32 %v8285, %v8554
    %8556 = vmatpush1.msra.mxu0 %v8555
    %8557 = vmatprep.subr.mxu0 0.0
    %v8558 = vand.u32 %v8284, 4294901760
    %v8559 = vsub.f32 %v8284, %v8558
    %8560 = vmatpush1.msra.mxu0 %v8559
    %8561 = vmatprep.subr.mxu0 0.0
    %v8562 = vand.u32 %v8283, 4294901760
    %v8563 = vsub.f32 %v8283, %v8562
    %8564 = vmatpush1.msra.mxu0 %v8563
    %8565 = vmatprep.subr.mxu0 0.0
    %v8566 = vand.u32 %v8282, 4294901760
    %v8567 = vsub.f32 %v8282, %v8566
    %8568 = vmatpush1.msra.mxu0 %v8567
    %8569 = vmatprep.subr.mxu0 0.0
    %v8570 = vand.u32 %v8281, 4294901760
    %v8571 = vsub.f32 %v8281, %v8570
    %8572 = vmatpush1.msra.mxu0 %v8571
    %8573 = vmatprep.subr.mxu0 0.0
    %v8574 = vand.u32 %v8280, 4294901760
    %v8575 = vsub.f32 %v8280, %v8574
    %8576 = vmatpush1.msra.mxu0 %v8575
    %8577 = vmatprep.subr.mxu0 0.0
    %v8578 = vand.u32 %v8279, 4294901760
    %v8579 = vsub.f32 %v8279, %v8578
    %8580 = vmatpush1.msra.mxu0 %v8579
    %8581 = vmatprep.subr.mxu0 0.0
    %v8582 = vand.u32 %v8278, 4294901760
    %v8583 = vsub.f32 %v8278, %v8582
    %8584 = vmatpush1.msra.mxu0 %v8583
    %8585 = vmatprep.subr.mxu0 0.0
    %v8586 = vand.u32 %v8277, 4294901760
    %v8587 = vsub.f32 %v8277, %v8586
    %8588 = vmatpush1.msra.mxu0 %v8587
    %8589 = vmatprep.subr.mxu0 0.0
    %v8590 = vand.u32 %v8276, 4294901760
    %v8591 = vsub.f32 %v8276, %v8590
    %8592 = vmatpush1.msra.mxu0 %v8591
    %8593 = vmatprep.subr.mxu0 0.0
    %v8594 = vand.u32 %v8275, 4294901760
    %v8595 = vsub.f32 %v8275, %v8594
    %8596 = vmatpush1.msra.mxu0 %v8595
    %8597 = vmatprep.subr.mxu0 0.0
    %8598 = vmatpush2.msra.mxu0 0.0
    %8599 = vmatprep.subr.mxu0 0.0
    %8600 = vmatpush2.msra.mxu0 0.0
    %8601 = vmatprep.subr.mxu0 0.0
    %8602 = vmatpush2.msra.mxu0 0.0
    %8603 = vmatprep.subr.mxu0 0.0
    %8604 = vmatpush2.msra.mxu0 0.0
    %8605 = vmatprep.subr.mxu0 0.0
    %8606 = vmatpush2.msra.mxu0 0.0
    %8607 = vmatprep.subr.mxu0 0.0
    %8608 = vmatpush2.msra.mxu0 0.0
    %8609 = vmatprep.subr.mxu0 0.0
    %8610 = vmatpush2.msra.mxu0 0.0
    %8611 = vmatprep.subr.mxu0 0.0
    %8612 = vmatpush2.msra.mxu0 0.0
    %8613 = vmatprep.subr.mxu0 0.0
    %8614 = vmatpush2.msra.mxu0 0.0
    %8615 = vmatprep.subr.mxu0 0.0
    %8616 = vmatpush2.msra.mxu0 0.0
    %8617 = vmatprep.subr.mxu0 0.0
    %8618 = vmatpush2.msra.mxu0 0.0
    %8619 = vmatprep.subr.mxu0 0.0
    %8620 = vmatpush2.msra.mxu0 0.0
    %8621 = vmatprep.subr.mxu0 0.0
    %8622 = vmatpush2.msra.mxu0 0.0
    %8623 = vmatprep.subr.mxu0 0.0
    %8624 = vmatpush2.msra.mxu0 0.0
    %8625 = vmatprep.subr.mxu0 0.0
    %8626 = vmatpush2.msra.mxu0 0.0
    %8627 = vmatprep.subr.mxu0 0.0
    %8628 = vmatpush2.msra.mxu0 0.0
    %8629 = vmatprep.mubr.f32.mxu0 0.0
    %v8630 = vand.u32 %v143, 4294901760
    %v8631 = vsub.f32 %v143, %v8630
    %8632 = vmatmul.mubr.f32.gmra.mxu0 %v8631
    %v8633 = vpop.f32.mrf.mxu0
    %v8634 = vadd.f32 %v8530, %v8633
    %v8635 = vpop.f32.mrf.mxu0
    %8636 = vdwg.mxu0
    %8637 = vmatprep.subr.mxu0 0.0
    %v8638 = vand.u32 %v8290, 4294901760
    %8639 = vmatpush1.msra.mxu0 %v8638
    %8640 = vmatprep.subr.mxu0 0.0
    %v8641 = vand.u32 %v8289, 4294901760
    %8642 = vmatpush1.msra.mxu0 %v8641
    %8643 = vmatprep.subr.mxu0 0.0
    %v8644 = vand.u32 %v8288, 4294901760
    %8645 = vmatpush1.msra.mxu0 %v8644
    %8646 = vmatprep.subr.mxu0 0.0
    %v8647 = vand.u32 %v8287, 4294901760
    %8648 = vmatpush1.msra.mxu0 %v8647
    %8649 = vmatprep.subr.mxu0 0.0
    %v8650 = vand.u32 %v8286, 4294901760
    %8651 = vmatpush1.msra.mxu0 %v8650
    %8652 = vmatprep.subr.mxu0 0.0
    %v8653 = vand.u32 %v8285, 4294901760
    %8654 = vmatpush1.msra.mxu0 %v8653
    %8655 = vmatprep.subr.mxu0 0.0
    %v8656 = vand.u32 %v8284, 4294901760
    %8657 = vmatpush1.msra.mxu0 %v8656
    %8658 = vmatprep.subr.mxu0 0.0
    %v8659 = vand.u32 %v8283, 4294901760
    %8660 = vmatpush1.msra.mxu0 %v8659
    %8661 = vmatprep.subr.mxu0 0.0
    %v8662 = vand.u32 %v8282, 4294901760
    %8663 = vmatpush1.msra.mxu0 %v8662
    %8664 = vmatprep.subr.mxu0 0.0
    %v8665 = vand.u32 %v8281, 4294901760
    %8666 = vmatpush1.msra.mxu0 %v8665
    %8667 = vmatprep.subr.mxu0 0.0
    %v8668 = vand.u32 %v8280, 4294901760
    %8669 = vmatpush1.msra.mxu0 %v8668
    %8670 = vmatprep.subr.mxu0 0.0
    %v8671 = vand.u32 %v8279, 4294901760
    %8672 = vmatpush1.msra.mxu0 %v8671
    %8673 = vmatprep.subr.mxu0 0.0
    %v8674 = vand.u32 %v8278, 4294901760
    %8675 = vmatpush1.msra.mxu0 %v8674
    %8676 = vmatprep.subr.mxu0 0.0
    %v8677 = vand.u32 %v8277, 4294901760
    %8678 = vmatpush1.msra.mxu0 %v8677
    %8679 = vmatprep.subr.mxu0 0.0
    %v8680 = vand.u32 %v8276, 4294901760
    %8681 = vmatpush1.msra.mxu0 %v8680
    %8682 = vmatprep.subr.mxu0 0.0
    %v8683 = vand.u32 %v8275, 4294901760
    %8684 = vmatpush1.msra.mxu0 %v8683
    %8685 = vmatprep.subr.mxu0 0.0
    %8686 = vmatpush2.msra.mxu0 0.0
    %8687 = vmatprep.subr.mxu0 0.0
    %8688 = vmatpush2.msra.mxu0 0.0
    %8689 = vmatprep.subr.mxu0 0.0
    %8690 = vmatpush2.msra.mxu0 0.0
    %8691 = vmatprep.subr.mxu0 0.0
    %8692 = vmatpush2.msra.mxu0 0.0
    %8693 = vmatprep.subr.mxu0 0.0
    %8694 = vmatpush2.msra.mxu0 0.0
    %8695 = vmatprep.subr.mxu0 0.0
    %8696 = vmatpush2.msra.mxu0 0.0
    %8697 = vmatprep.subr.mxu0 0.0
    %8698 = vmatpush2.msra.mxu0 0.0
    %8699 = vmatprep.subr.mxu0 0.0
    %8700 = vmatpush2.msra.mxu0 0.0
    %8701 = vmatprep.subr.mxu0 0.0
    %8702 = vmatpush2.msra.mxu0 0.0
    %8703 = vmatprep.subr.mxu0 0.0
    %8704 = vmatpush2.msra.mxu0 0.0
    %8705 = vmatprep.subr.mxu0 0.0
    %8706 = vmatpush2.msra.mxu0 0.0
    %8707 = vmatprep.subr.mxu0 0.0
    %8708 = vmatpush2.msra.mxu0 0.0
    %8709 = vmatprep.subr.mxu0 0.0
    %8710 = vmatpush2.msra.mxu0 0.0
    %8711 = vmatprep.subr.mxu0 0.0
    %8712 = vmatpush2.msra.mxu0 0.0
    %8713 = vmatprep.subr.mxu0 0.0
    %8714 = vmatpush2.msra.mxu0 0.0
    %8715 = vmatprep.subr.mxu0 0.0
    %8716 = vmatpush2.msra.mxu0 0.0
    %8717 = vmatprep.mubr.f32.mxu0 0.0
    %v8718 = vand.u32 %v143, 4294901760
    %v8719 = vsub.f32 %v143, %v8718
    %v8720 = vand.u32 %v8719, 4294901760
    %8721 = vmatmul.mubr.f32.gmra.mxu0 %v8720
    %v8722 = vpop.f32.mrf.mxu0
    %v8723 = vadd.f32 %v8634, %v8722
    %v8724 = vpop.f32.mrf.mxu0
    %8725 = vdwg.mxu0
    %8726 = vmatprep.subr.mxu0 0.0
    %v8727 = vand.u32 %v8290, 4294901760
    %v8728 = vsub.f32 %v8290, %v8727
    %v8729 = vand.u32 %v8728, 4294901760
    %8730 = vmatpush1.msra.mxu0 %v8729
    %8731 = vmatprep.subr.mxu0 0.0
    %v8732 = vand.u32 %v8289, 4294901760
    %v8733 = vsub.f32 %v8289, %v8732
    %v8734 = vand.u32 %v8733, 4294901760
    %8735 = vmatpush1.msra.mxu0 %v8734
    %8736 = vmatprep.subr.mxu0 0.0
    %v8737 = vand.u32 %v8288, 4294901760
    %v8738 = vsub.f32 %v8288, %v8737
    %v8739 = vand.u32 %v8738, 4294901760
    %8740 = vmatpush1.msra.mxu0 %v8739
    %8741 = vmatprep.subr.mxu0 0.0
    %v8742 = vand.u32 %v8287, 4294901760
    %v8743 = vsub.f32 %v8287, %v8742
    %v8744 = vand.u32 %v8743, 4294901760
    %8745 = vmatpush1.msra.mxu0 %v8744
    %8746 = vmatprep.subr.mxu0 0.0
    %v8747 = vand.u32 %v8286, 4294901760
    %v8748 = vsub.f32 %v8286, %v8747
    %v8749 = vand.u32 %v8748, 4294901760
    %8750 = vmatpush1.msra.mxu0 %v8749
    %8751 = vmatprep.subr.mxu0 0.0
    %v8752 = vand.u32 %v8285, 4294901760
    %v8753 = vsub.f32 %v8285, %v8752
    %v8754 = vand.u32 %v8753, 4294901760
    %8755 = vmatpush1.msra.mxu0 %v8754
    %8756 = vmatprep.subr.mxu0 0.0
    %v8757 = vand.u32 %v8284, 4294901760
    %v8758 = vsub.f32 %v8284, %v8757
    %v8759 = vand.u32 %v8758, 4294901760
    %8760 = vmatpush1.msra.mxu0 %v8759
    %8761 = vmatprep.subr.mxu0 0.0
    %v8762 = vand.u32 %v8283, 4294901760
    %v8763 = vsub.f32 %v8283, %v8762
    %v8764 = vand.u32 %v8763, 4294901760
    %8765 = vmatpush1.msra.mxu0 %v8764
    %8766 = vmatprep.subr.mxu0 0.0
    %v8767 = vand.u32 %v8282, 4294901760
    %v8768 = vsub.f32 %v8282, %v8767
    %v8769 = vand.u32 %v8768, 4294901760
    %8770 = vmatpush1.msra.mxu0 %v8769
    %8771 = vmatprep.subr.mxu0 0.0
    %v8772 = vand.u32 %v8281, 4294901760
    %v8773 = vsub.f32 %v8281, %v8772
    %v8774 = vand.u32 %v8773, 4294901760
    %8775 = vmatpush1.msra.mxu0 %v8774
    %8776 = vmatprep.subr.mxu0 0.0
    %v8777 = vand.u32 %v8280, 4294901760
    %v8778 = vsub.f32 %v8280, %v8777
    %v8779 = vand.u32 %v8778, 4294901760
    %8780 = vmatpush1.msra.mxu0 %v8779
    %8781 = vmatprep.subr.mxu0 0.0
    %v8782 = vand.u32 %v8279, 4294901760
    %v8783 = vsub.f32 %v8279, %v8782
    %v8784 = vand.u32 %v8783, 4294901760
    %8785 = vmatpush1.msra.mxu0 %v8784
    %8786 = vmatprep.subr.mxu0 0.0
    %v8787 = vand.u32 %v8278, 4294901760
    %v8788 = vsub.f32 %v8278, %v8787
    %v8789 = vand.u32 %v8788, 4294901760
    %8790 = vmatpush1.msra.mxu0 %v8789
    %8791 = vmatprep.subr.mxu0 0.0
    %v8792 = vand.u32 %v8277, 4294901760
    %v8793 = vsub.f32 %v8277, %v8792
    %v8794 = vand.u32 %v8793, 4294901760
    %8795 = vmatpush1.msra.mxu0 %v8794
    %8796 = vmatprep.subr.mxu0 0.0
    %v8797 = vand.u32 %v8276, 4294901760
    %v8798 = vsub.f32 %v8276, %v8797
    %v8799 = vand.u32 %v8798, 4294901760
    %8800 = vmatpush1.msra.mxu0 %v8799
    %8801 = vmatprep.subr.mxu0 0.0
    %v8802 = vand.u32 %v8275, 4294901760
    %v8803 = vsub.f32 %v8275, %v8802
    %v8804 = vand.u32 %v8803, 4294901760
    %8805 = vmatpush1.msra.mxu0 %v8804
    %8806 = vmatprep.subr.mxu0 0.0
    %8807 = vmatpush2.msra.mxu0 0.0
    %8808 = vmatprep.subr.mxu0 0.0
    %8809 = vmatpush2.msra.mxu0 0.0
    %8810 = vmatprep.subr.mxu0 0.0
    %8811 = vmatpush2.msra.mxu0 0.0
    %8812 = vmatprep.subr.mxu0 0.0
    %8813 = vmatpush2.msra.mxu0 0.0
    %8814 = vmatprep.subr.mxu0 0.0
    %8815 = vmatpush2.msra.mxu0 0.0
    %8816 = vmatprep.subr.mxu0 0.0
    %8817 = vmatpush2.msra.mxu0 0.0
    %8818 = vmatprep.subr.mxu0 0.0
    %8819 = vmatpush2.msra.mxu0 0.0
    %8820 = vmatprep.subr.mxu0 0.0
    %8821 = vmatpush2.msra.mxu0 0.0
    %8822 = vmatprep.subr.mxu0 0.0
    %8823 = vmatpush2.msra.mxu0 0.0
    %8824 = vmatprep.subr.mxu0 0.0
    %8825 = vmatpush2.msra.mxu0 0.0
    %8826 = vmatprep.subr.mxu0 0.0
    %8827 = vmatpush2.msra.mxu0 0.0
    %8828 = vmatprep.subr.mxu0 0.0
    %8829 = vmatpush2.msra.mxu0 0.0
    %8830 = vmatprep.subr.mxu0 0.0
    %8831 = vmatpush2.msra.mxu0 0.0
    %8832 = vmatprep.subr.mxu0 0.0
    %8833 = vmatpush2.msra.mxu0 0.0
    %8834 = vmatprep.subr.mxu0 0.0
    %8835 = vmatpush2.msra.mxu0 0.0
    %8836 = vmatprep.subr.mxu0 0.0
    %8837 = vmatpush2.msra.mxu0 0.0
    %8838 = vmatprep.mubr.f32.mxu0 0.0
    %v8839 = vand.u32 %v143, 4294901760
    %8840 = vmatmul.mubr.f32.gmra.mxu0 %v8839
    %v8841 = vpop.f32.mrf.mxu0
    %v8842 = vadd.f32 %v8723, %v8841
    %v8843 = vpop.f32.mrf.mxu0
    %8844 = vdwg.mxu0
    %8845 = vmatprep.subr.mxu0 0.0
    %v8846 = vand.u32 %v8290, 4294901760
    %8847 = vmatpush1.msra.mxu0 %v8846
    %8848 = vmatprep.subr.mxu0 0.0
    %v8849 = vand.u32 %v8289, 4294901760
    %8850 = vmatpush1.msra.mxu0 %v8849
    %8851 = vmatprep.subr.mxu0 0.0
    %v8852 = vand.u32 %v8288, 4294901760
    %8853 = vmatpush1.msra.mxu0 %v8852
    %8854 = vmatprep.subr.mxu0 0.0
    %v8855 = vand.u32 %v8287, 4294901760
    %8856 = vmatpush1.msra.mxu0 %v8855
    %8857 = vmatprep.subr.mxu0 0.0
    %v8858 = vand.u32 %v8286, 4294901760
    %8859 = vmatpush1.msra.mxu0 %v8858
    %8860 = vmatprep.subr.mxu0 0.0
    %v8861 = vand.u32 %v8285, 4294901760
    %8862 = vmatpush1.msra.mxu0 %v8861
    %8863 = vmatprep.subr.mxu0 0.0
    %v8864 = vand.u32 %v8284, 4294901760
    %8865 = vmatpush1.msra.mxu0 %v8864
    %8866 = vmatprep.subr.mxu0 0.0
    %v8867 = vand.u32 %v8283, 4294901760
    %8868 = vmatpush1.msra.mxu0 %v8867
    %8869 = vmatprep.subr.mxu0 0.0
    %v8870 = vand.u32 %v8282, 4294901760
    %8871 = vmatpush1.msra.mxu0 %v8870
    %8872 = vmatprep.subr.mxu0 0.0
    %v8873 = vand.u32 %v8281, 4294901760
    %8874 = vmatpush1.msra.mxu0 %v8873
    %8875 = vmatprep.subr.mxu0 0.0
    %v8876 = vand.u32 %v8280, 4294901760
    %8877 = vmatpush1.msra.mxu0 %v8876
    %8878 = vmatprep.subr.mxu0 0.0
    %v8879 = vand.u32 %v8279, 4294901760
    %8880 = vmatpush1.msra.mxu0 %v8879
    %8881 = vmatprep.subr.mxu0 0.0
    %v8882 = vand.u32 %v8278, 4294901760
    %8883 = vmatpush1.msra.mxu0 %v8882
    %8884 = vmatprep.subr.mxu0 0.0
    %v8885 = vand.u32 %v8277, 4294901760
    %8886 = vmatpush1.msra.mxu0 %v8885
    %8887 = vmatprep.subr.mxu0 0.0
    %v8888 = vand.u32 %v8276, 4294901760
    %8889 = vmatpush1.msra.mxu0 %v8888
    %8890 = vmatprep.subr.mxu0 0.0
    %v8891 = vand.u32 %v8275, 4294901760
    %8892 = vmatpush1.msra.mxu0 %v8891
    %8893 = vmatprep.subr.mxu0 0.0
    %8894 = vmatpush2.msra.mxu0 0.0
    %8895 = vmatprep.subr.mxu0 0.0
    %8896 = vmatpush2.msra.mxu0 0.0
    %8897 = vmatprep.subr.mxu0 0.0
    %8898 = vmatpush2.msra.mxu0 0.0
    %8899 = vmatprep.subr.mxu0 0.0
    %8900 = vmatpush2.msra.mxu0 0.0
    %8901 = vmatprep.subr.mxu0 0.0
    %8902 = vmatpush2.msra.mxu0 0.0
    %8903 = vmatprep.subr.mxu0 0.0
    %8904 = vmatpush2.msra.mxu0 0.0
    %8905 = vmatprep.subr.mxu0 0.0
    %8906 = vmatpush2.msra.mxu0 0.0
    %8907 = vmatprep.subr.mxu0 0.0
    %8908 = vmatpush2.msra.mxu0 0.0
    %8909 = vmatprep.subr.mxu0 0.0
    %8910 = vmatpush2.msra.mxu0 0.0
    %8911 = vmatprep.subr.mxu0 0.0
    %8912 = vmatpush2.msra.mxu0 0.0
    %8913 = vmatprep.subr.mxu0 0.0
    %8914 = vmatpush2.msra.mxu0 0.0
    %8915 = vmatprep.subr.mxu0 0.0
    %8916 = vmatpush2.msra.mxu0 0.0
    %8917 = vmatprep.subr.mxu0 0.0
    %8918 = vmatpush2.msra.mxu0 0.0
    %8919 = vmatprep.subr.mxu0 0.0
    %8920 = vmatpush2.msra.mxu0 0.0
    %8921 = vmatprep.subr.mxu0 0.0
    %8922 = vmatpush2.msra.mxu0 0.0
    %8923 = vmatprep.subr.mxu0 0.0
    %8924 = vmatpush2.msra.mxu0 0.0
    %8925 = vmatprep.mubr.f32.mxu0 0.0
    %v8926 = vand.u32 %v143, 4294901760
    %8927 = vmatmul.mubr.f32.gmra.mxu0 %v8926
    %v8928 = vpop.f32.mrf.mxu0
    %v8929 = vadd.f32 %v8842, %v8928
    %v8930 = vpop.f32.mrf.mxu0
    %8931 = vdwg.mxu0
    %v8932 = vmul.f32 %v8929, 0.125
    %v8933 = vlaneseq
    %v8934 = vshrl.u32 %v8933, 7
    %v8935 = vsub.s32 0, %v8934
    %v8936 = vrot.slane %v8932, %v8935
    %v8937 = vsub.f32 %v8275, %v8936
    %v8938 = vsub.f32 %v8276, %v8936
    %v8939 = vsub.f32 %v8277, %v8936
    %v8940 = vsub.f32 %v8278, %v8936
    %v8941 = vsub.f32 %v8279, %v8936
    %v8942 = vsub.f32 %v8280, %v8936
    %v8943 = vsub.f32 %v8281, %v8936
    %v8944 = vsub.f32 %v8282, %v8936
    %v8945 = vsub.f32 %v8283, %v8936
    %v8946 = vsub.f32 %v8284, %v8936
    %v8947 = vsub.f32 %v8285, %v8936
    %v8948 = vsub.f32 %v8286, %v8936
    %v8949 = vsub.f32 %v8287, %v8936
    %v8950 = vsub.f32 %v8288, %v8936
    %v8951 = vsub.f32 %v8289, %v8936
    %v8952 = vsub.f32 %v8290, %v8936
    %v8953 = vmul.f32 %v8937, %v8937
    %v8954 = vmul.f32 %v8938, %v8938
    %v8955 = vmul.f32 %v8939, %v8939
    %v8956 = vmul.f32 %v8940, %v8940
    %v8957 = vmul.f32 %v8941, %v8941
    %v8958 = vmul.f32 %v8942, %v8942
    %v8959 = vmul.f32 %v8943, %v8943
    %v8960 = vmul.f32 %v8944, %v8944
    %v8961 = vmul.f32 %v8945, %v8945
    %v8962 = vmul.f32 %v8946, %v8946
    %v8963 = vmul.f32 %v8947, %v8947
    %v8964 = vmul.f32 %v8948, %v8948
    %v8965 = vmul.f32 %v8949, %v8949
    %v8966 = vmul.f32 %v8950, %v8950
    %v8967 = vmul.f32 %v8951, %v8951
    %v8968 = vmul.f32 %v8952, %v8952
    %8969 = vmatprep.subr.mxu0 0.0
    %v8970 = vand.u32 %v8968, 4294901760
    %8971 = vmatpush1.msra.mxu0 %v8970
    %8972 = vmatprep.subr.mxu0 0.0
    %v8973 = vand.u32 %v8967, 4294901760
    %8974 = vmatpush1.msra.mxu0 %v8973
    %8975 = vmatprep.subr.mxu0 0.0
    %v8976 = vand.u32 %v8966, 4294901760
    %8977 = vmatpush1.msra.mxu0 %v8976
    %8978 = vmatprep.subr.mxu0 0.0
    %v8979 = vand.u32 %v8965, 4294901760
    %8980 = vmatpush1.msra.mxu0 %v8979
    %8981 = vmatprep.subr.mxu0 0.0
    %v8982 = vand.u32 %v8964, 4294901760
    %8983 = vmatpush1.msra.mxu0 %v8982
    %8984 = vmatprep.subr.mxu0 0.0
    %v8985 = vand.u32 %v8963, 4294901760
    %8986 = vmatpush1.msra.mxu0 %v8985
    %8987 = vmatprep.subr.mxu0 0.0
    %v8988 = vand.u32 %v8962, 4294901760
    %8989 = vmatpush1.msra.mxu0 %v8988
    %8990 = vmatprep.subr.mxu0 0.0
    %v8991 = vand.u32 %v8961, 4294901760
    %8992 = vmatpush1.msra.mxu0 %v8991
    %8993 = vmatprep.subr.mxu0 0.0
    %v8994 = vand.u32 %v8960, 4294901760
    %8995 = vmatpush1.msra.mxu0 %v8994
    %8996 = vmatprep.subr.mxu0 0.0
    %v8997 = vand.u32 %v8959, 4294901760
    %8998 = vmatpush1.msra.mxu0 %v8997
    %8999 = vmatprep.subr.mxu0 0.0
    %v9000 = vand.u32 %v8958, 4294901760
    %9001 = vmatpush1.msra.mxu0 %v9000
    %9002 = vmatprep.subr.mxu0 0.0
    %v9003 = vand.u32 %v8957, 4294901760
    %9004 = vmatpush1.msra.mxu0 %v9003
    %9005 = vmatprep.subr.mxu0 0.0
    %v9006 = vand.u32 %v8956, 4294901760
    %9007 = vmatpush1.msra.mxu0 %v9006
    %9008 = vmatprep.subr.mxu0 0.0
    %v9009 = vand.u32 %v8955, 4294901760
    %9010 = vmatpush1.msra.mxu0 %v9009
    %9011 = vmatprep.subr.mxu0 0.0
    %v9012 = vand.u32 %v8954, 4294901760
    %9013 = vmatpush1.msra.mxu0 %v9012
    %9014 = vmatprep.subr.mxu0 0.0
    %v9015 = vand.u32 %v8953, 4294901760
    %9016 = vmatpush1.msra.mxu0 %v9015
    %9017 = vmatprep.subr.mxu0 0.0
    %9018 = vmatpush2.msra.mxu0 0.0
    %9019 = vmatprep.subr.mxu0 0.0
    %9020 = vmatpush2.msra.mxu0 0.0
    %9021 = vmatprep.subr.mxu0 0.0
    %9022 = vmatpush2.msra.mxu0 0.0
    %9023 = vmatprep.subr.mxu0 0.0
    %9024 = vmatpush2.msra.mxu0 0.0
    %9025 = vmatprep.subr.mxu0 0.0
    %9026 = vmatpush2.msra.mxu0 0.0
    %9027 = vmatprep.subr.mxu0 0.0
    %9028 = vmatpush2.msra.mxu0 0.0
    %9029 = vmatprep.subr.mxu0 0.0
    %9030 = vmatpush2.msra.mxu0 0.0
    %9031 = vmatprep.subr.mxu0 0.0
    %9032 = vmatpush2.msra.mxu0 0.0
    %9033 = vmatprep.subr.mxu0 0.0
    %9034 = vmatpush2.msra.mxu0 0.0
    %9035 = vmatprep.subr.mxu0 0.0
    %9036 = vmatpush2.msra.mxu0 0.0
    %9037 = vmatprep.subr.mxu0 0.0
    %9038 = vmatpush2.msra.mxu0 0.0
    %9039 = vmatprep.subr.mxu0 0.0
    %9040 = vmatpush2.msra.mxu0 0.0
    %9041 = vmatprep.subr.mxu0 0.0
    %9042 = vmatpush2.msra.mxu0 0.0
    %9043 = vmatprep.subr.mxu0 0.0
    %9044 = vmatpush2.msra.mxu0 0.0
    %9045 = vmatprep.subr.mxu0 0.0
    %9046 = vmatpush2.msra.mxu0 0.0
    %9047 = vmatprep.subr.mxu0 0.0
    %9048 = vmatpush2.msra.mxu0 0.0
    %9049 = vmatprep.mubr.f32.mxu0 0.0
    %v9050 = vand.u32 %v143, 4294901760
    %v9051 = vsub.f32 %v143, %v9050
    %v9052 = vand.u32 %v9051, 4294901760
    %v9053 = vsub.f32 %v9051, %v9052
    %v9054 = vand.u32 %v9053, 4294901760
    %9055 = vmatmul.mubr.f32.gmra.mxu0 %v9054
    %v9056 = vpop.f32.mrf.mxu0
    %v9057 = vadd.f32 0.0, %v9056
    %v9058 = vpop.f32.mrf.mxu0
    %9059 = vdwg.mxu0
    %9060 = vmatprep.subr.mxu0 0.0
    %v9061 = vand.u32 %v8968, 4294901760
    %v9062 = vsub.f32 %v8968, %v9061
    %v9063 = vand.u32 %v9062, 4294901760
    %v9064 = vsub.f32 %v9062, %v9063
    %v9065 = vand.u32 %v9064, 4294901760
    %9066 = vmatpush1.msra.mxu0 %v9065
    %9067 = vmatprep.subr.mxu0 0.0
    %v9068 = vand.u32 %v8967, 4294901760
    %v9069 = vsub.f32 %v8967, %v9068
    %v9070 = vand.u32 %v9069, 4294901760
    %v9071 = vsub.f32 %v9069, %v9070
    %v9072 = vand.u32 %v9071, 4294901760
    %9073 = vmatpush1.msra.mxu0 %v9072
    %9074 = vmatprep.subr.mxu0 0.0
    %v9075 = vand.u32 %v8966, 4294901760
    %v9076 = vsub.f32 %v8966, %v9075
    %v9077 = vand.u32 %v9076, 4294901760
    %v9078 = vsub.f32 %v9076, %v9077
    %v9079 = vand.u32 %v9078, 4294901760
    %9080 = vmatpush1.msra.mxu0 %v9079
    %9081 = vmatprep.subr.mxu0 0.0
    %v9082 = vand.u32 %v8965, 4294901760
    %v9083 = vsub.f32 %v8965, %v9082
    %v9084 = vand.u32 %v9083, 4294901760
    %v9085 = vsub.f32 %v9083, %v9084
    %v9086 = vand.u32 %v9085, 4294901760
    %9087 = vmatpush1.msra.mxu0 %v9086
    %9088 = vmatprep.subr.mxu0 0.0
    %v9089 = vand.u32 %v8964, 4294901760
    %v9090 = vsub.f32 %v8964, %v9089
    %v9091 = vand.u32 %v9090, 4294901760
    %v9092 = vsub.f32 %v9090, %v9091
    %v9093 = vand.u32 %v9092, 4294901760
    %9094 = vmatpush1.msra.mxu0 %v9093
    %9095 = vmatprep.subr.mxu0 0.0
    %v9096 = vand.u32 %v8963, 4294901760
    %v9097 = vsub.f32 %v8963, %v9096
    %v9098 = vand.u32 %v9097, 4294901760
    %v9099 = vsub.f32 %v9097, %v9098
    %v9100 = vand.u32 %v9099, 4294901760
    %9101 = vmatpush1.msra.mxu0 %v9100
    %9102 = vmatprep.subr.mxu0 0.0
    %v9103 = vand.u32 %v8962, 4294901760
    %v9104 = vsub.f32 %v8962, %v9103
    %v9105 = vand.u32 %v9104, 4294901760
    %v9106 = vsub.f32 %v9104, %v9105
    %v9107 = vand.u32 %v9106, 4294901760
    %9108 = vmatpush1.msra.mxu0 %v9107
    %9109 = vmatprep.subr.mxu0 0.0
    %v9110 = vand.u32 %v8961, 4294901760
    %v9111 = vsub.f32 %v8961, %v9110
    %v9112 = vand.u32 %v9111, 4294901760
    %v9113 = vsub.f32 %v9111, %v9112
    %v9114 = vand.u32 %v9113, 4294901760
    %9115 = vmatpush1.msra.mxu0 %v9114
    %9116 = vmatprep.subr.mxu0 0.0
    %v9117 = vand.u32 %v8960, 4294901760
    %v9118 = vsub.f32 %v8960, %v9117
    %v9119 = vand.u32 %v9118, 4294901760
    %v9120 = vsub.f32 %v9118, %v9119
    %v9121 = vand.u32 %v9120, 4294901760
    %9122 = vmatpush1.msra.mxu0 %v9121
    %9123 = vmatprep.subr.mxu0 0.0
    %v9124 = vand.u32 %v8959, 4294901760
    %v9125 = vsub.f32 %v8959, %v9124
    %v9126 = vand.u32 %v9125, 4294901760
    %v9127 = vsub.f32 %v9125, %v9126
    %v9128 = vand.u32 %v9127, 4294901760
    %9129 = vmatpush1.msra.mxu0 %v9128
    %9130 = vmatprep.subr.mxu0 0.0
    %v9131 = vand.u32 %v8958, 4294901760
    %v9132 = vsub.f32 %v8958, %v9131
    %v9133 = vand.u32 %v9132, 4294901760
    %v9134 = vsub.f32 %v9132, %v9133
    %v9135 = vand.u32 %v9134, 4294901760
    %9136 = vmatpush1.msra.mxu0 %v9135
    %9137 = vmatprep.subr.mxu0 0.0
    %v9138 = vand.u32 %v8957, 4294901760
    %v9139 = vsub.f32 %v8957, %v9138
    %v9140 = vand.u32 %v9139, 4294901760
    %v9141 = vsub.f32 %v9139, %v9140
    %v9142 = vand.u32 %v9141, 4294901760
    %9143 = vmatpush1.msra.mxu0 %v9142
    %9144 = vmatprep.subr.mxu0 0.0
    %v9145 = vand.u32 %v8956, 4294901760
    %v9146 = vsub.f32 %v8956, %v9145
    %v9147 = vand.u32 %v9146, 4294901760
    %v9148 = vsub.f32 %v9146, %v9147
    %v9149 = vand.u32 %v9148, 4294901760
    %9150 = vmatpush1.msra.mxu0 %v9149
    %9151 = vmatprep.subr.mxu0 0.0
    %v9152 = vand.u32 %v8955, 4294901760
    %v9153 = vsub.f32 %v8955, %v9152
    %v9154 = vand.u32 %v9153, 4294901760
    %v9155 = vsub.f32 %v9153, %v9154
    %v9156 = vand.u32 %v9155, 4294901760
    %9157 = vmatpush1.msra.mxu0 %v9156
    %9158 = vmatprep.subr.mxu0 0.0
    %v9159 = vand.u32 %v8954, 4294901760
    %v9160 = vsub.f32 %v8954, %v9159
    %v9161 = vand.u32 %v9160, 4294901760
    %v9162 = vsub.f32 %v9160, %v9161
    %v9163 = vand.u32 %v9162, 4294901760
    %9164 = vmatpush1.msra.mxu0 %v9163
    %9165 = vmatprep.subr.mxu0 0.0
    %v9166 = vand.u32 %v8953, 4294901760
    %v9167 = vsub.f32 %v8953, %v9166
    %v9168 = vand.u32 %v9167, 4294901760
    %v9169 = vsub.f32 %v9167, %v9168
    %v9170 = vand.u32 %v9169, 4294901760
    %9171 = vmatpush1.msra.mxu0 %v9170
    %9172 = vmatprep.subr.mxu0 0.0
    %9173 = vmatpush2.msra.mxu0 0.0
    %9174 = vmatprep.subr.mxu0 0.0
    %9175 = vmatpush2.msra.mxu0 0.0
    %9176 = vmatprep.subr.mxu0 0.0
    %9177 = vmatpush2.msra.mxu0 0.0
    %9178 = vmatprep.subr.mxu0 0.0
    %9179 = vmatpush2.msra.mxu0 0.0
    %9180 = vmatprep.subr.mxu0 0.0
    %9181 = vmatpush2.msra.mxu0 0.0
    %9182 = vmatprep.subr.mxu0 0.0
    %9183 = vmatpush2.msra.mxu0 0.0
    %9184 = vmatprep.subr.mxu0 0.0
    %9185 = vmatpush2.msra.mxu0 0.0
    %9186 = vmatprep.subr.mxu0 0.0
    %9187 = vmatpush2.msra.mxu0 0.0
    %9188 = vmatprep.subr.mxu0 0.0
    %9189 = vmatpush2.msra.mxu0 0.0
    %9190 = vmatprep.subr.mxu0 0.0
    %9191 = vmatpush2.msra.mxu0 0.0
    %9192 = vmatprep.subr.mxu0 0.0
    %9193 = vmatpush2.msra.mxu0 0.0
    %9194 = vmatprep.subr.mxu0 0.0
    %9195 = vmatpush2.msra.mxu0 0.0
    %9196 = vmatprep.subr.mxu0 0.0
    %9197 = vmatpush2.msra.mxu0 0.0
    %9198 = vmatprep.subr.mxu0 0.0
    %9199 = vmatpush2.msra.mxu0 0.0
    %9200 = vmatprep.subr.mxu0 0.0
    %9201 = vmatpush2.msra.mxu0 0.0
    %9202 = vmatprep.subr.mxu0 0.0
    %9203 = vmatpush2.msra.mxu0 0.0
    %9204 = vmatprep.mubr.f32.mxu0 0.0
    %v9205 = vand.u32 %v143, 4294901760
    %9206 = vmatmul.mubr.f32.gmra.mxu0 %v9205
    %v9207 = vpop.f32.mrf.mxu0
    %v9208 = vadd.f32 %v9057, %v9207
    %v9209 = vpop.f32.mrf.mxu0
    %9210 = vdwg.mxu0
    %9211 = vmatprep.subr.mxu0 0.0
    %v9212 = vand.u32 %v8968, 4294901760
    %v9213 = vsub.f32 %v8968, %v9212
    %9214 = vmatpush1.msra.mxu0 %v9213
    %9215 = vmatprep.subr.mxu0 0.0
    %v9216 = vand.u32 %v8967, 4294901760
    %v9217 = vsub.f32 %v8967, %v9216
    %9218 = vmatpush1.msra.mxu0 %v9217
    %9219 = vmatprep.subr.mxu0 0.0
    %v9220 = vand.u32 %v8966, 4294901760
    %v9221 = vsub.f32 %v8966, %v9220
    %9222 = vmatpush1.msra.mxu0 %v9221
    %9223 = vmatprep.subr.mxu0 0.0
    %v9224 = vand.u32 %v8965, 4294901760
    %v9225 = vsub.f32 %v8965, %v9224
    %9226 = vmatpush1.msra.mxu0 %v9225
    %9227 = vmatprep.subr.mxu0 0.0
    %v9228 = vand.u32 %v8964, 4294901760
    %v9229 = vsub.f32 %v8964, %v9228
    %9230 = vmatpush1.msra.mxu0 %v9229
    %9231 = vmatprep.subr.mxu0 0.0
    %v9232 = vand.u32 %v8963, 4294901760
    %v9233 = vsub.f32 %v8963, %v9232
    %9234 = vmatpush1.msra.mxu0 %v9233
    %9235 = vmatprep.subr.mxu0 0.0
    %v9236 = vand.u32 %v8962, 4294901760
    %v9237 = vsub.f32 %v8962, %v9236
    %9238 = vmatpush1.msra.mxu0 %v9237
    %9239 = vmatprep.subr.mxu0 0.0
    %v9240 = vand.u32 %v8961, 4294901760
    %v9241 = vsub.f32 %v8961, %v9240
    %9242 = vmatpush1.msra.mxu0 %v9241
    %9243 = vmatprep.subr.mxu0 0.0
    %v9244 = vand.u32 %v8960, 4294901760
    %v9245 = vsub.f32 %v8960, %v9244
    %9246 = vmatpush1.msra.mxu0 %v9245
    %9247 = vmatprep.subr.mxu0 0.0
    %v9248 = vand.u32 %v8959, 4294901760
    %v9249 = vsub.f32 %v8959, %v9248
    %9250 = vmatpush1.msra.mxu0 %v9249
    %9251 = vmatprep.subr.mxu0 0.0
    %v9252 = vand.u32 %v8958, 4294901760
    %v9253 = vsub.f32 %v8958, %v9252
    %9254 = vmatpush1.msra.mxu0 %v9253
    %9255 = vmatprep.subr.mxu0 0.0
    %v9256 = vand.u32 %v8957, 4294901760
    %v9257 = vsub.f32 %v8957, %v9256
    %9258 = vmatpush1.msra.mxu0 %v9257
    %9259 = vmatprep.subr.mxu0 0.0
    %v9260 = vand.u32 %v8956, 4294901760
    %v9261 = vsub.f32 %v8956, %v9260
    %9262 = vmatpush1.msra.mxu0 %v9261
    %9263 = vmatprep.subr.mxu0 0.0
    %v9264 = vand.u32 %v8955, 4294901760
    %v9265 = vsub.f32 %v8955, %v9264
    %9266 = vmatpush1.msra.mxu0 %v9265
    %9267 = vmatprep.subr.mxu0 0.0
    %v9268 = vand.u32 %v8954, 4294901760
    %v9269 = vsub.f32 %v8954, %v9268
    %9270 = vmatpush1.msra.mxu0 %v9269
    %9271 = vmatprep.subr.mxu0 0.0
    %v9272 = vand.u32 %v8953, 4294901760
    %v9273 = vsub.f32 %v8953, %v9272
    %9274 = vmatpush1.msra.mxu0 %v9273
    %9275 = vmatprep.subr.mxu0 0.0
    %9276 = vmatpush2.msra.mxu0 0.0
    %9277 = vmatprep.subr.mxu0 0.0
    %9278 = vmatpush2.msra.mxu0 0.0
    %9279 = vmatprep.subr.mxu0 0.0
    %9280 = vmatpush2.msra.mxu0 0.0
    %9281 = vmatprep.subr.mxu0 0.0
    %9282 = vmatpush2.msra.mxu0 0.0
    %9283 = vmatprep.subr.mxu0 0.0
    %9284 = vmatpush2.msra.mxu0 0.0
    %9285 = vmatprep.subr.mxu0 0.0
    %9286 = vmatpush2.msra.mxu0 0.0
    %9287 = vmatprep.subr.mxu0 0.0
    %9288 = vmatpush2.msra.mxu0 0.0
    %9289 = vmatprep.subr.mxu0 0.0
    %9290 = vmatpush2.msra.mxu0 0.0
    %9291 = vmatprep.subr.mxu0 0.0
    %9292 = vmatpush2.msra.mxu0 0.0
    %9293 = vmatprep.subr.mxu0 0.0
    %9294 = vmatpush2.msra.mxu0 0.0
    %9295 = vmatprep.subr.mxu0 0.0
    %9296 = vmatpush2.msra.mxu0 0.0
    %9297 = vmatprep.subr.mxu0 0.0
    %9298 = vmatpush2.msra.mxu0 0.0
    %9299 = vmatprep.subr.mxu0 0.0
    %9300 = vmatpush2.msra.mxu0 0.0
    %9301 = vmatprep.subr.mxu0 0.0
    %9302 = vmatpush2.msra.mxu0 0.0
    %9303 = vmatprep.subr.mxu0 0.0
    %9304 = vmatpush2.msra.mxu0 0.0
    %9305 = vmatprep.subr.mxu0 0.0
    %9306 = vmatpush2.msra.mxu0 0.0
    %9307 = vmatprep.mubr.f32.mxu0 0.0
    %v9308 = vand.u32 %v143, 4294901760
    %v9309 = vsub.f32 %v143, %v9308
    %9310 = vmatmul.mubr.f32.gmra.mxu0 %v9309
    %v9311 = vpop.f32.mrf.mxu0
    %v9312 = vadd.f32 %v9208, %v9311
    %v9313 = vpop.f32.mrf.mxu0
    %9314 = vdwg.mxu0
    %9315 = vmatprep.subr.mxu0 0.0
    %v9316 = vand.u32 %v8968, 4294901760
    %9317 = vmatpush1.msra.mxu0 %v9316
    %9318 = vmatprep.subr.mxu0 0.0
    %v9319 = vand.u32 %v8967, 4294901760
    %9320 = vmatpush1.msra.mxu0 %v9319
    %9321 = vmatprep.subr.mxu0 0.0
    %v9322 = vand.u32 %v8966, 4294901760
    %9323 = vmatpush1.msra.mxu0 %v9322
    %9324 = vmatprep.subr.mxu0 0.0
    %v9325 = vand.u32 %v8965, 4294901760
    %9326 = vmatpush1.msra.mxu0 %v9325
    %9327 = vmatprep.subr.mxu0 0.0
    %v9328 = vand.u32 %v8964, 4294901760
    %9329 = vmatpush1.msra.mxu0 %v9328
    %9330 = vmatprep.subr.mxu0 0.0
    %v9331 = vand.u32 %v8963, 4294901760
    %9332 = vmatpush1.msra.mxu0 %v9331
    %9333 = vmatprep.subr.mxu0 0.0
    %v9334 = vand.u32 %v8962, 4294901760
    %9335 = vmatpush1.msra.mxu0 %v9334
    %9336 = vmatprep.subr.mxu0 0.0
    %v9337 = vand.u32 %v8961, 4294901760
    %9338 = vmatpush1.msra.mxu0 %v9337
    %9339 = vmatprep.subr.mxu0 0.0
    %v9340 = vand.u32 %v8960, 4294901760
    %9341 = vmatpush1.msra.mxu0 %v9340
    %9342 = vmatprep.subr.mxu0 0.0
    %v9343 = vand.u32 %v8959, 4294901760
    %9344 = vmatpush1.msra.mxu0 %v9343
    %9345 = vmatprep.subr.mxu0 0.0
    %v9346 = vand.u32 %v8958, 4294901760
    %9347 = vmatpush1.msra.mxu0 %v9346
    %9348 = vmatprep.subr.mxu0 0.0
    %v9349 = vand.u32 %v8957, 4294901760
    %9350 = vmatpush1.msra.mxu0 %v9349
    %9351 = vmatprep.subr.mxu0 0.0
    %v9352 = vand.u32 %v8956, 4294901760
    %9353 = vmatpush1.msra.mxu0 %v9352
    %9354 = vmatprep.subr.mxu0 0.0
    %v9355 = vand.u32 %v8955, 4294901760
    %9356 = vmatpush1.msra.mxu0 %v9355
    %9357 = vmatprep.subr.mxu0 0.0
    %v9358 = vand.u32 %v8954, 4294901760
    %9359 = vmatpush1.msra.mxu0 %v9358
    %9360 = vmatprep.subr.mxu0 0.0
    %v9361 = vand.u32 %v8953, 4294901760
    %9362 = vmatpush1.msra.mxu0 %v9361
    %9363 = vmatprep.subr.mxu0 0.0
    %9364 = vmatpush2.msra.mxu0 0.0
    %9365 = vmatprep.subr.mxu0 0.0
    %9366 = vmatpush2.msra.mxu0 0.0
    %9367 = vmatprep.subr.mxu0 0.0
    %9368 = vmatpush2.msra.mxu0 0.0
    %9369 = vmatprep.subr.mxu0 0.0
    %9370 = vmatpush2.msra.mxu0 0.0
    %9371 = vmatprep.subr.mxu0 0.0
    %9372 = vmatpush2.msra.mxu0 0.0
    %9373 = vmatprep.subr.mxu0 0.0
    %9374 = vmatpush2.msra.mxu0 0.0
    %9375 = vmatprep.subr.mxu0 0.0
    %9376 = vmatpush2.msra.mxu0 0.0
    %9377 = vmatprep.subr.mxu0 0.0
    %9378 = vmatpush2.msra.mxu0 0.0
    %9379 = vmatprep.subr.mxu0 0.0
    %9380 = vmatpush2.msra.mxu0 0.0
    %9381 = vmatprep.subr.mxu0 0.0
    %9382 = vmatpush2.msra.mxu0 0.0
    %9383 = vmatprep.subr.mxu0 0.0
    %9384 = vmatpush2.msra.mxu0 0.0
    %9385 = vmatprep.subr.mxu0 0.0
    %9386 = vmatpush2.msra.mxu0 0.0
    %9387 = vmatprep.subr.mxu0 0.0
    %9388 = vmatpush2.msra.mxu0 0.0
    %9389 = vmatprep.subr.mxu0 0.0
    %9390 = vmatpush2.msra.mxu0 0.0
    %9391 = vmatprep.subr.mxu0 0.0
    %9392 = vmatpush2.msra.mxu0 0.0
    %9393 = vmatprep.subr.mxu0 0.0
    %9394 = vmatpush2.msra.mxu0 0.0
    %9395 = vmatprep.mubr.f32.mxu0 0.0
    %v9396 = vand.u32 %v143, 4294901760
    %v9397 = vsub.f32 %v143, %v9396
    %v9398 = vand.u32 %v9397, 4294901760
    %9399 = vmatmul.mubr.f32.gmra.mxu0 %v9398
    %v9400 = vpop.f32.mrf.mxu0
    %v9401 = vadd.f32 %v9312, %v9400
    %v9402 = vpop.f32.mrf.mxu0
    %9403 = vdwg.mxu0
    %9404 = vmatprep.subr.mxu0 0.0
    %v9405 = vand.u32 %v8968, 4294901760
    %v9406 = vsub.f32 %v8968, %v9405
    %v9407 = vand.u32 %v9406, 4294901760
    %9408 = vmatpush1.msra.mxu0 %v9407
    %9409 = vmatprep.subr.mxu0 0.0
    %v9410 = vand.u32 %v8967, 4294901760
    %v9411 = vsub.f32 %v8967, %v9410
    %v9412 = vand.u32 %v9411, 4294901760
    %9413 = vmatpush1.msra.mxu0 %v9412
    %9414 = vmatprep.subr.mxu0 0.0
    %v9415 = vand.u32 %v8966, 4294901760
    %v9416 = vsub.f32 %v8966, %v9415
    %v9417 = vand.u32 %v9416, 4294901760
    %9418 = vmatpush1.msra.mxu0 %v9417
    %9419 = vmatprep.subr.mxu0 0.0
    %v9420 = vand.u32 %v8965, 4294901760
    %v9421 = vsub.f32 %v8965, %v9420
    %v9422 = vand.u32 %v9421, 4294901760
    %9423 = vmatpush1.msra.mxu0 %v9422
    %9424 = vmatprep.subr.mxu0 0.0
    %v9425 = vand.u32 %v8964, 4294901760
    %v9426 = vsub.f32 %v8964, %v9425
    %v9427 = vand.u32 %v9426, 4294901760
    %9428 = vmatpush1.msra.mxu0 %v9427
    %9429 = vmatprep.subr.mxu0 0.0
    %v9430 = vand.u32 %v8963, 4294901760
    %v9431 = vsub.f32 %v8963, %v9430
    %v9432 = vand.u32 %v9431, 4294901760
    %9433 = vmatpush1.msra.mxu0 %v9432
    %9434 = vmatprep.subr.mxu0 0.0
    %v9435 = vand.u32 %v8962, 4294901760
    %v9436 = vsub.f32 %v8962, %v9435
    %v9437 = vand.u32 %v9436, 4294901760
    %9438 = vmatpush1.msra.mxu0 %v9437
    %9439 = vmatprep.subr.mxu0 0.0
    %v9440 = vand.u32 %v8961, 4294901760
    %v9441 = vsub.f32 %v8961, %v9440
    %v9442 = vand.u32 %v9441, 4294901760
    %9443 = vmatpush1.msra.mxu0 %v9442
    %9444 = vmatprep.subr.mxu0 0.0
    %v9445 = vand.u32 %v8960, 4294901760
    %v9446 = vsub.f32 %v8960, %v9445
    %v9447 = vand.u32 %v9446, 4294901760
    %9448 = vmatpush1.msra.mxu0 %v9447
    %9449 = vmatprep.subr.mxu0 0.0
    %v9450 = vand.u32 %v8959, 4294901760
    %v9451 = vsub.f32 %v8959, %v9450
    %v9452 = vand.u32 %v9451, 4294901760
    %9453 = vmatpush1.msra.mxu0 %v9452
    %9454 = vmatprep.subr.mxu0 0.0
    %v9455 = vand.u32 %v8958, 4294901760
    %v9456 = vsub.f32 %v8958, %v9455
    %v9457 = vand.u32 %v9456, 4294901760
    %9458 = vmatpush1.msra.mxu0 %v9457
    %9459 = vmatprep.subr.mxu0 0.0
    %v9460 = vand.u32 %v8957, 4294901760
    %v9461 = vsub.f32 %v8957, %v9460
    %v9462 = vand.u32 %v9461, 4294901760
    %9463 = vmatpush1.msra.mxu0 %v9462
    %9464 = vmatprep.subr.mxu0 0.0
    %v9465 = vand.u32 %v8956, 4294901760
    %v9466 = vsub.f32 %v8956, %v9465
    %v9467 = vand.u32 %v9466, 4294901760
    %9468 = vmatpush1.msra.mxu0 %v9467
    %9469 = vmatprep.subr.mxu0 0.0
    %v9470 = vand.u32 %v8955, 4294901760
    %v9471 = vsub.f32 %v8955, %v9470
    %v9472 = vand.u32 %v9471, 4294901760
    %9473 = vmatpush1.msra.mxu0 %v9472
    %9474 = vmatprep.subr.mxu0 0.0
    %v9475 = vand.u32 %v8954, 4294901760
    %v9476 = vsub.f32 %v8954, %v9475
    %v9477 = vand.u32 %v9476, 4294901760
    %9478 = vmatpush1.msra.mxu0 %v9477
    %9479 = vmatprep.subr.mxu0 0.0
    %v9480 = vand.u32 %v8953, 4294901760
    %v9481 = vsub.f32 %v8953, %v9480
    %v9482 = vand.u32 %v9481, 4294901760
    %9483 = vmatpush1.msra.mxu0 %v9482
    %9484 = vmatprep.subr.mxu0 0.0
    %9485 = vmatpush2.msra.mxu0 0.0
    %9486 = vmatprep.subr.mxu0 0.0
    %9487 = vmatpush2.msra.mxu0 0.0
    %9488 = vmatprep.subr.mxu0 0.0
    %9489 = vmatpush2.msra.mxu0 0.0
    %9490 = vmatprep.subr.mxu0 0.0
    %9491 = vmatpush2.msra.mxu0 0.0
    %9492 = vmatprep.subr.mxu0 0.0
    %9493 = vmatpush2.msra.mxu0 0.0
    %9494 = vmatprep.subr.mxu0 0.0
    %9495 = vmatpush2.msra.mxu0 0.0
    %9496 = vmatprep.subr.mxu0 0.0
    %9497 = vmatpush2.msra.mxu0 0.0
    %9498 = vmatprep.subr.mxu0 0.0
    %9499 = vmatpush2.msra.mxu0 0.0
    %9500 = vmatprep.subr.mxu0 0.0
    %9501 = vmatpush2.msra.mxu0 0.0
    %9502 = vmatprep.subr.mxu0 0.0
    %9503 = vmatpush2.msra.mxu0 0.0
    %9504 = vmatprep.subr.mxu0 0.0
    %9505 = vmatpush2.msra.mxu0 0.0
    %9506 = vmatprep.subr.mxu0 0.0
    %9507 = vmatpush2.msra.mxu0 0.0
    %9508 = vmatprep.subr.mxu0 0.0
    %9509 = vmatpush2.msra.mxu0 0.0
    %9510 = vmatprep.subr.mxu0 0.0
    %9511 = vmatpush2.msra.mxu0 0.0
    %9512 = vmatprep.subr.mxu0 0.0
    %9513 = vmatpush2.msra.mxu0 0.0
    %9514 = vmatprep.subr.mxu0 0.0
    %9515 = vmatpush2.msra.mxu0 0.0
    %9516 = vmatprep.mubr.f32.mxu0 0.0
    %v9517 = vand.u32 %v143, 4294901760
    %9518 = vmatmul.mubr.f32.gmra.mxu0 %v9517
    %v9519 = vpop.f32.mrf.mxu0
    %v9520 = vadd.f32 %v9401, %v9519
    %v9521 = vpop.f32.mrf.mxu0
    %9522 = vdwg.mxu0
    %9523 = vmatprep.subr.mxu0 0.0
    %v9524 = vand.u32 %v8968, 4294901760
    %9525 = vmatpush1.msra.mxu0 %v9524
    %9526 = vmatprep.subr.mxu0 0.0
    %v9527 = vand.u32 %v8967, 4294901760
    %9528 = vmatpush1.msra.mxu0 %v9527
    %9529 = vmatprep.subr.mxu0 0.0
    %v9530 = vand.u32 %v8966, 4294901760
    %9531 = vmatpush1.msra.mxu0 %v9530
    %9532 = vmatprep.subr.mxu0 0.0
    %v9533 = vand.u32 %v8965, 4294901760
    %9534 = vmatpush1.msra.mxu0 %v9533
    %9535 = vmatprep.subr.mxu0 0.0
    %v9536 = vand.u32 %v8964, 4294901760
    %9537 = vmatpush1.msra.mxu0 %v9536
    %9538 = vmatprep.subr.mxu0 0.0
    %v9539 = vand.u32 %v8963, 4294901760
    %9540 = vmatpush1.msra.mxu0 %v9539
    %9541 = vmatprep.subr.mxu0 0.0
    %v9542 = vand.u32 %v8962, 4294901760
    %9543 = vmatpush1.msra.mxu0 %v9542
    %9544 = vmatprep.subr.mxu0 0.0
    %v9545 = vand.u32 %v8961, 4294901760
    %9546 = vmatpush1.msra.mxu0 %v9545
    %9547 = vmatprep.subr.mxu0 0.0
    %v9548 = vand.u32 %v8960, 4294901760
    %9549 = vmatpush1.msra.mxu0 %v9548
    %9550 = vmatprep.subr.mxu0 0.0
    %v9551 = vand.u32 %v8959, 4294901760
    %9552 = vmatpush1.msra.mxu0 %v9551
    %9553 = vmatprep.subr.mxu0 0.0
    %v9554 = vand.u32 %v8958, 4294901760
    %9555 = vmatpush1.msra.mxu0 %v9554
    %9556 = vmatprep.subr.mxu0 0.0
    %v9557 = vand.u32 %v8957, 4294901760
    %9558 = vmatpush1.msra.mxu0 %v9557
    %9559 = vmatprep.subr.mxu0 0.0
    %v9560 = vand.u32 %v8956, 4294901760
    %9561 = vmatpush1.msra.mxu0 %v9560
    %9562 = vmatprep.subr.mxu0 0.0
    %v9563 = vand.u32 %v8955, 4294901760
    %9564 = vmatpush1.msra.mxu0 %v9563
    %9565 = vmatprep.subr.mxu0 0.0
    %v9566 = vand.u32 %v8954, 4294901760
    %9567 = vmatpush1.msra.mxu0 %v9566
    %9568 = vmatprep.subr.mxu0 0.0
    %v9569 = vand.u32 %v8953, 4294901760
    %9570 = vmatpush1.msra.mxu0 %v9569
    %9571 = vmatprep.subr.mxu0 0.0
    %9572 = vmatpush2.msra.mxu0 0.0
    %9573 = vmatprep.subr.mxu0 0.0
    %9574 = vmatpush2.msra.mxu0 0.0
    %9575 = vmatprep.subr.mxu0 0.0
    %9576 = vmatpush2.msra.mxu0 0.0
    %9577 = vmatprep.subr.mxu0 0.0
    %9578 = vmatpush2.msra.mxu0 0.0
    %9579 = vmatprep.subr.mxu0 0.0
    %9580 = vmatpush2.msra.mxu0 0.0
    %9581 = vmatprep.subr.mxu0 0.0
    %9582 = vmatpush2.msra.mxu0 0.0
    %9583 = vmatprep.subr.mxu0 0.0
    %9584 = vmatpush2.msra.mxu0 0.0
    %9585 = vmatprep.subr.mxu0 0.0
    %9586 = vmatpush2.msra.mxu0 0.0
    %9587 = vmatprep.subr.mxu0 0.0
    %9588 = vmatpush2.msra.mxu0 0.0
    %9589 = vmatprep.subr.mxu0 0.0
    %9590 = vmatpush2.msra.mxu0 0.0
    %9591 = vmatprep.subr.mxu0 0.0
    %9592 = vmatpush2.msra.mxu0 0.0
    %9593 = vmatprep.subr.mxu0 0.0
    %9594 = vmatpush2.msra.mxu0 0.0
    %9595 = vmatprep.subr.mxu0 0.0
    %9596 = vmatpush2.msra.mxu0 0.0
    %9597 = vmatprep.subr.mxu0 0.0
    %9598 = vmatpush2.msra.mxu0 0.0
    %9599 = vmatprep.subr.mxu0 0.0
    %9600 = vmatpush2.msra.mxu0 0.0
    %9601 = vmatprep.subr.mxu0 0.0
    %9602 = vmatpush2.msra.mxu0 0.0
    %9603 = vmatprep.mubr.f32.mxu0 0.0
    %v9604 = vand.u32 %v143, 4294901760
    %9605 = vmatmul.mubr.f32.gmra.mxu0 %v9604
    %v9606 = vpop.f32.mrf.mxu0
    %v9607 = vadd.f32 %v9520, %v9606
    %v9608 = vpop.f32.mrf.mxu0
    %9609 = vdwg.mxu0
    %v9610 = vmul.f32 %v9607, 0.14285715
    %v9611 = vrsqrt.pop %v9610
    %v9612 = vmul.f32 %v9610, %v9611
    %vm9613 = vcmp.eq.f32.partialorder %v9610, inf
    %v9614 = vsel %vm9613, %v9610, %v9612
    %vm9615 = vcmp.eq.f32.partialorder %v9610, 0.0
    %v9616 = vand.u32 %v9610, 2147483648
    %v9617 = vsel %vm9615, %v9616, %v9614
    %v9618 = vadd.f32 %v8932, 1e-06
    %v9619 = vrcp.pop %v9618
    %v9620 = vmul.f32 %v9617, %v9619
    %v9621 = vmul.f32 %v9620, %v143
    %v9622 = vsel %vm7923, %v9621, 0.0
    %9623 = vadd.xlane.f32.xlu0 %v9622
    %v9624 = vpop.xlane.xlu0 %9623
    %v9625 = vrot.slane %v9624, 4
    %v9626 = vadd.f32 %v9624, %v9625
    %v9627 = vrot.slane %v9626, 2
    %v9628 = vadd.f32 %v9626, %v9627
    %v9629 = vrot.slane %v9628, 1
    %v9630 = vadd.f32 %v9628, %v9629
    %s9631 = vtos %v9630
    %v9632 = vstv %s9631
    %v9633 = vadd.f32 %v7935, %v9632
    %v9634 = vmul.f32 %v9633, 0.0625
    %vm9635 = vcmask 0
    %9636 = vst.msk [vmem:[#allocation2] sm:$0x1] %vm9635, %v9634
    // Predicated region
    $region6: #{tpu_custom_call.1} parent=1 // pred_check
      _
    $region7: #{tpu_custom_call.1} parent=1 // pred_check_branch
      %9638 = sbr.rel (0) target = $region9
    $region8: #{tpu_custom_call.1} parent=1 // pred_region
      %s9640 = ssub.s32 16, 16
      %9641 = vsyncadd [#allocation3], %s9640
      %s9643 = sshll.u32 [#allocation2], 4
      %s9644 = int_to_ptr.vmem [resolvable:$true] %s9643
      %9646 = dma.vmem_to_hbm [thread:$0]  %s9644, 16, %s1, [#allocation3]
    $region9: #{tpu_custom_call.1} parent=1 // pred_fallthru
      _
    // Predicated region
    $region10: #{tpu_custom_call.1} parent=1 // pred_check
      _
    $region11: #{tpu_custom_call.1} parent=1 // pred_check_branch
      %9648 = sbr.rel (0) target = $region13
    $region12: #{tpu_custom_call.1} parent=1 // pred_region
      %9649 = dma.done [#allocation3], 16
    $region13: #{tpu_custom_call.1} parent=1 // pred_fallthru
      _
    %9650 = vsyncpa [#allocation3], 1

</llo_original>
